<compile_context>
chip_gen: v7x
topology: tpu7x:2x2x1
jax: 0.10.0
libtpu: 0.0.40
codegen_flags: <defaults>
</compile_context>

<pallas_src>
import functools

import jax
import jax.numpy as jnp
from jax import lax
from jax.experimental import pallas as pl
from jax.experimental.pallas import tpu as pltpu


def _round_up(x, m):
    return ((x + m - 1) // m) * m


def _pick_row_tile(m, pref):
    """Row tile (multiple of 8, <= pref).  Prefers an exact divisor of m so the
    pad + slice round trip around the kernel disappears; pads only if m has no
    reasonably sized divisor."""
    cap = max(8, min(pref, _round_up(m, 8)))
    cand = (min(cap, m) // 8) * 8
    floor = max(8, cap // 4)
    while cand >= floor:
        if m % cand == 0:
            return cand, m
        cand -= 8
    t = _round_up(cap, 8)
    return t, _round_up(m, t)


def _vmem_limit(nbytes):
    # Explicit scoped-VMEM request sized from the double-buffered tile
    # footprint plus headroom (v5e default is 16 MiB, v6e/v7x 32 MiB).
    return int(min(max(nbytes + (8 << 20), 16 << 20), 128 << 20))


# ---------------------------------------------------------------------------
# Pallas kernels
# ---------------------------------------------------------------------------
def _norm_qkv_kernel(x_ref, g_ref, b_ref, w_ref, gmap_ref, gmapT_ref, o_ref,
                     *, eps, inner, l2_eps):
    # ChanLayerNorm over channels (per pixel row, biased variance), fused with
    # the QKV 1x1-conv GEMM and the per-head l2-normalization of q and k.
    x = x_ref[...]                                           # (tm, C) f32
    mean = jnp.mean(x, axis=-1, keepdims=True)
    var = jnp.mean(jnp.square(x - mean), axis=-1, keepdims=True)
    xn = (x - mean) * lax.rsqrt(var + eps) * g_ref[...] + b_ref[...]
    y = jnp.dot(xn, w_ref[...], preferred_element_type=jnp.float32)  # (tm, 3*inner)

    # l2norm of each dim_head-wide column group of q|k via 0/1 indicator
    # matmuls (no lane-splitting reshapes; overlaps with the next tile's DMA).
    qk = y[:, : 2 * inner]                                   # (tm, 2*inner)
    ssq = jnp.dot(qk * qk, gmap_ref[...],
                  preferred_element_type=jnp.float32)        # (tm, 2*heads)
    inv = 1.0 / jnp.maximum(jnp.sqrt(ssq), l2_eps)
    inv_full = jnp.dot(inv, gmapT_ref[...],
                       preferred_element_type=jnp.float32)   # (tm, 2*inner)
    o_ref[:, : 2 * inner] = qk * inv_full
    o_ref[:, 2 * inner:] = y[:, 2 * inner:]


def _matmul_bias_kernel(x_ref, w_ref, b_ref, o_ref):
    # bf16 operands, f32 accumulation on the MXU.
    o_ref[...] = (
        jnp.dot(x_ref[...], w_ref[...], preferred_element_type=jnp.float32)
        + b_ref[...]
    )


def _attn_kernel(q_ref, k_ref, v_ref, o_ref, *, heads, dim_head, lk_valid):
    # q_ref: (tq, heads*dim_head) f32 (l2-normalized), read straight off the
    #        qkv slab; k_ref/v_ref: (heads, Lkp, dim_head) bf16, VMEM-resident
    #        across query tiles of the same batch; o_ref: (tq, heads*dim_head).
    lkp = k_ref.shape[1]
    col = lax.broadcasted_iota(jnp.int32, (1, lkp), 1)
    outs = []
    for h in range(heads):                                   # static, unrolled
        qh = q_ref[:, h * dim_head:(h + 1) * dim_head].astype(jnp.bfloat16)
        kh = k_ref[h]                                        # (Lkp, d) bf16
        vh = v_ref[h]
        s = lax.dot_general(qh, kh, (((1,), (1,)), ((), ())),
                            preferred_element_type=jnp.float32)   # (tq, Lkp)
        if lk_valid < lkp:
            s = jnp.where(col < lk_valid, s, -1e30)          # mask padded keys
        s = s - jnp.max(s, axis=-1, keepdims=True)
        p = jnp.exp(s)
        inv = pl.reciprocal(jnp.sum(p, axis=-1, keepdims=True), approx=True)
        oh = jnp.dot(p.astype(jnp.bfloat16), vh,
                     preferred_element_type=jnp.float32) * inv     # (tq, d)
        outs.append(oh)
    # one lane-dense (tq, heads*dim_head) store, already in to_out layout
    o_ref[...] = jnp.concatenate(outs, axis=-1).astype(o_ref.dtype)


# ---------------------------------------------------------------------------
# Pallas wrappers
# ---------------------------------------------------------------------------
def _norm_qkv(x2d, g, b, w, gmap, gmapT, *, eps, l2_eps, inner, tm_pref=1024):
    M, C = x2d.shape
    Co = w.shape[1]
    tm, Mp = _pick_row_tile(M, tm_pref)
    if Mp != M:
        x2d = jnp.pad(x2d, ((0, Mp - M), (0, 0)))
    vmem = (2 * tm * C * 4 + 2 * tm * Co * 4
            + (C * Co + 2 * C) * 4 + 2 * gmap.size * 4)
    out = pl.pallas_call(
        functools.partial(_norm_qkv_kernel, eps=eps, inner=inner, l2_eps=l2_eps),
        grid=(Mp // tm,),
        out_shape=jax.ShapeDtypeStruct((Mp, Co), jnp.float32),
        in_specs=[
            pl.BlockSpec((tm, C), lambda i: (i, 0)),
            pl.BlockSpec((1, C), lambda i: (0, 0)),          # gamma, resident
            pl.BlockSpec((1, C), lambda i: (0, 0)),          # beta,  resident
            pl.BlockSpec((C, Co), lambda i: (0, 0)),         # weight, resident
            pl.BlockSpec(gmap.shape, lambda i: (0, 0)),      # head map, resident
            pl.BlockSpec(gmapT.shape, lambda i: (0, 0)),     # head map^T
        ],
        out_specs=pl.BlockSpec((tm, Co), lambda i: (i, 0)),
        compiler_params=pltpu.CompilerParams(
            dimension_semantics=("parallel",),
            vmem_limit_bytes=_vmem_limit(vmem)),
    )(x2d, g, b, w, gmap, gmapT)
    return out[:M] if Mp != M else out


def _matmul_bias(x2d, w, b, *, tm_pref=1024):
    M, K = x2d.shape
    Co = w.shape[1]
    tm, Mp = _pick_row_tile(M, tm_pref)
    if Mp != M:
        x2d = jnp.pad(x2d, ((0, Mp - M), (0, 0)))
    vmem = (2 * tm * K * x2d.dtype.itemsize + 2 * tm * Co * 4
            + K * Co * w.dtype.itemsize + Co * 4)
    out = pl.pallas_call(
        _matmul_bias_kernel,
        grid=(Mp // tm,),
        out_shape=jax.ShapeDtypeStruct((Mp, Co), jnp.float32),
        in_specs=[
            pl.BlockSpec((tm, K), lambda i: (i, 0)),
            pl.BlockSpec((K, Co), lambda i: (0, 0)),         # weight, resident
            pl.BlockSpec((1, Co), lambda i: (0, 0)),         # bias, resident
        ],
        out_specs=pl.BlockSpec((tm, Co), lambda i: (i, 0)),
        compiler_params=pltpu.CompilerParams(
            dimension_semantics=("parallel",),
            vmem_limit_bytes=_vmem_limit(vmem)),
    )(x2d, w, b)
    return out[:M] if Mp != M else out


def _attention(q_src, kf, vf, *, heads, dim_head, lk_valid, tq_pref=512):
    # q_src: (B, L, Wq) f32 slab view; its first heads*dim_head columns are the
    #        l2-normalized q in (head, d) column order.
    # kf/vf: (B, heads, Lkp, dim_head) bf16, Lkp a multiple of 128; the first
    #        lk_valid key rows are real, the rest are padding (masked).
    B, L, Wq = q_src.shape
    inner = heads * dim_head
    Lkp = kf.shape[2]
    tq, Lp = _pick_row_tile(L, tq_pref)
    if Lp != L:
        if Wq != inner:
            q_src = q_src[..., :inner]                        # slice before pad
        q_src = jnp.pad(q_src, ((0, 0), (0, Lp - L), (0, 0)))
    vmem = (2 * tq * inner * 4 + 2 * tq * inner * 2
            + 4 * heads * Lkp * dim_head * 2)
    out = pl.pallas_call(
        functools.partial(_attn_kernel, heads=heads, dim_head=dim_head,
                          lk_valid=lk_valid),
        grid=(B, Lp // tq),
        out_shape=jax.ShapeDtypeStruct((B, Lp, inner), jnp.bfloat16),
        in_specs=[
            pl.BlockSpec((pl.Squeezed(), tq, inner), lambda b, i: (b, i, 0)),
            pl.BlockSpec((pl.Squeezed(), heads, Lkp, dim_head),
                         lambda b, i: (b, 0, 0, 0)),          # K, resident per b
            pl.BlockSpec((pl.Squeezed(), heads, Lkp, dim_head),
                         lambda b, i: (b, 0, 0, 0)),          # V, resident per b
        ],
        out_specs=pl.BlockSpec((pl.Squeezed(), tq, inner), lambda b, i: (b, i, 0)),
        compiler_params=pltpu.CompilerParams(
            dimension_semantics=("parallel", "arbitrary"),
            vmem_limit_bytes=_vmem_limit(vmem)),
    )(q_src, kf, vf)
    if Lp != L:
        out = out[:, :L]
    return out.reshape(B * L, inner)


# ---------------------------------------------------------------------------
# Plain-JAX glue
# ---------------------------------------------------------------------------
def _l2norm(t, eps=1e-12):
    # F.normalize(t, dim=-1): t / max(||t||_2, eps)
    n = jnp.sqrt(jnp.sum(t * t, axis=-1, keepdims=True))
    return t / jnp.maximum(n, eps)


def _dual_prune(q_probe, k, v, height_top_k, width_top_k):
    # q_probe: (B*heads, d); k, v: (B*heads, H, W, d); q, k already l2-normalized.
    BH, H, W, D = k.shape
    if height_top_k < H:
        k_h = jnp.sum(k, axis=2)                                    # (BH, H, d)
        score = jnp.einsum('bd,bhd->bh', q_probe, k_h)
        _, idx = lax.top_k(score, height_top_k)
        idx = jnp.broadcast_to(idx[:, :, None, None],
                               (BH, height_top_k, k.shape[2], D))
        k = jnp.take_along_axis(k, idx, axis=1)
        v = jnp.take_along_axis(v, idx, axis=1)
    if width_top_k < W:
        k_w = jnp.sum(k, axis=1)                                    # (BH, W', d)
        score = jnp.einsum('bd,bwd->bw', q_probe, k_w)
        _, idx = lax.top_k(score, width_top_k)
        idx = jnp.broadcast_to(idx[:, None, :, None],
                               (BH, k.shape[1], width_top_k, D))
        k = jnp.take_along_axis(k, idx, axis=2)
        v = jnp.take_along_axis(v, idx, axis=2)
    return k, v


# ---------------------------------------------------------------------------
# DPSA forward (Pallas-backed)
# ---------------------------------------------------------------------------
@functools.partial(jax.jit, static_argnames=("heads", "dim_head",
                                              "height_top_k", "width_top_k"))
def dpsa_forward(x, params, *, heads, dim_head, height_top_k, width_top_k):
    B, C, H, W = x.shape
    inner = heads * dim_head
    L = H * W
    M = B * L
    eps = 1e-5

    # ---- K1: fused ChanLayerNorm + QKV projection + per-head q/k l2norm -----
    x2d = jnp.transpose(x, (0, 2, 3, 1)).reshape(M, C)              # pixel rows
    g2 = params["g"].reshape(1, C).astype(jnp.float32)
    b2 = params["b"].reshape(1, C).astype(jnp.float32)
    w_qkv = jnp.transpose(params["w_qkv"]).astype(jnp.float32)      # (C, 3*inner)
    grp = jnp.arange(2 * inner) // dim_head
    gmap = (grp[:, None] == jnp.arange(2 * heads)[None, :]).astype(jnp.float32)
    qkv = _norm_qkv(x2d, g2, b2, w_qkv, gmap, gmap.T,
                    eps=eps, l2_eps=1e-12, inner=inner)             # (M, 3*inner)

    # ---- dual top-k pruning of K/V (data-dependent gather, JAX glue) --------
    BH = B * heads

    def _to_bhwd(cols):                       # (M, inner) -> (B*heads, H, W, d)
        t = cols.reshape(B, H, W, heads, dim_head)
        return jnp.transpose(t, (0, 3, 1, 2, 4)).reshape(BH, H, W, dim_head)

    k = _to_bhwd(qkv[:, inner:2 * inner])
    v = _to_bhwd(qkv[:, 2 * inner:])
    if height_top_k < H or width_top_k < W:
        q_probe = jnp.sum(qkv[:, :inner].reshape(B, L, heads, dim_head),
                          axis=1).reshape(BH, dim_head)
        k, v = _dual_prune(q_probe, k, v, height_top_k, width_top_k)

    Lk = k.shape[1] * k.shape[2]
    Lkp = _round_up(Lk, 128)                  # MXU / lane aligned key count

    def _pack_kv(t):
        t = t.reshape(BH, Lk, dim_head)
        if Lkp != Lk:
            t = jnp.pad(t, ((0, 0), (0, Lkp - Lk), (0, 0)))
        return t.reshape(B, heads, Lkp, dim_head).astype(jnp.bfloat16)

    kf, vf = _pack_kv(k), _pack_kv(v)

    # ---- K2: pruned attention, heads batched, q read straight off the slab --
    if inner % 128 == 0:
        q_src = qkv.reshape(B, L, 3 * inner)  # free view; q = column block 0
    else:
        q_src = qkv[:, :inner].reshape(B, L, inner)
    # TODO(synk): nn.Dropout(p=0.0) on the attention matrix is identity at
    # inference and is intentionally not implemented in the kernel.
    out_slab = _attention(q_src, kf, vf, heads=heads, dim_head=dim_head,
                          lk_valid=Lk)        # (M, inner) bf16, (head, d) cols

    # ---- K3: to_out 1x1 conv with bias ---------------------------------------
    w_out = jnp.transpose(params["w_out"]).astype(jnp.bfloat16)     # (inner, C)
    y2d = _matmul_bias(out_slab, w_out,
                       params["b_out"].reshape(1, C).astype(jnp.float32))
    return jnp.transpose(y2d.reshape(B, H, W, C), (0, 3, 1, 2))


# ---------------------------------------------------------------------------
# Pure-JAX reference (high precision) for correctness checking
# ---------------------------------------------------------------------------
def dpsa_reference(x, params, *, heads, dim_head, height_top_k, width_top_k):
    hp = lax.Precision.HIGHEST
    B, C, H, W = x.shape
    inner = heads * dim_head
    eps = 1e-5
    mean = jnp.mean(x, axis=1, keepdims=True)
    var = jnp.mean(jnp.square(x - mean), axis=1, keepdims=True)
    xn = (x - mean) / jnp.sqrt(var + eps) * params["g"] + params["b"]
    qkv = jnp.einsum('oc,bchw->bohw', params["w_qkv"], xn, precision=hp)
    q, k, v = jnp.split(qkv, 3, axis=1)

    def to_bh(t):
        t = t.reshape(B, heads, dim_head, H, W)
        return jnp.transpose(t, (0, 1, 3, 4, 2)).reshape(B * heads, H, W, dim_head)

    q, k, v = map(to_bh, (q, k, v))
    q, k = _l2norm(q), _l2norm(k)
    if height_top_k < H or width_top_k < W:
        q_probe = jnp.sum(q, axis=(1, 2))
        k, v = _dual_prune(q_probe, k, v, height_top_k, width_top_k)
    BH, L = B * heads, H * W
    qf = q.reshape(BH, L, dim_head)
    kf = k.reshape(BH, -1, dim_head)
    vf = v.reshape(BH, -1, dim_head)
    sim = jnp.einsum('bid,bjd->bij', qf, kf, precision=hp)
    attn = jax.nn.softmax(sim, axis=-1)
    out = jnp.einsum('bij,bjd->bid', attn, vf, precision=hp)
    out = out.reshape(B, heads, H, W, dim_head)
    out = jnp.transpose(out, (0, 1, 4, 2, 3)).reshape(B, inner, H, W)
    y = jnp.einsum('oc,bchw->bohw', params["w_out"], out, precision=hp)
    return y + params["b_out"].reshape(1, C, 1, 1)


if __name__ == "__main__":
    B, dim, H, W = 2, 64, 16, 16
    heads, dim_head = 4, 32
    height_top_k, width_top_k = 8, 8      # < H, W -> exercises dual pruning
    inner = heads * dim_head

    key = jax.random.PRNGKey(0)
    kx, kg, kb, kqkv, kwo, kbo = jax.random.split(key, 6)
    x = jax.random.normal(kx, (B, dim, H, W), jnp.float32)
    params = {
        "g": 1.0 + 0.1 * jax.random.normal(kg, (1, dim, 1, 1), jnp.float32),
        "b": 0.1 * jax.random.normal(kb, (1, dim, 1, 1), jnp.float32),
        "w_qkv": 0.1 * jax.random.normal(kqkv, (3 * inner, dim), jnp.float32),
        "w_out": 0.1 * jax.random.normal(kwo, (dim, inner), jnp.float32),
        "b_out": 0.1 * jax.random.normal(kbo, (dim,), jnp.float32),
    }

    out = dpsa_forward(x, params, heads=heads, dim_head=dim_head,
                       height_top_k=height_top_k, width_top_k=width_top_k)
    out = jax.block_until_ready(out)

    assert out.shape == (B, dim, H, W), out.shape
    assert bool(jnp.all(jnp.isfinite(out)))

    ref = dpsa_reference(x, params, heads=heads, dim_head=dim_head,
                         height_top_k=height_top_k, width_top_k=width_top_k)
    ref = jax.block_until_ready(ref)
    err = float(jnp.max(jnp.abs(out - ref)))
    scale = float(jnp.max(jnp.abs(ref))) + 1.0
    assert err < 5e-2 * scale, (err, scale)

    print("KERNEL_OK")
</pallas_src>

<mosaic_0001>
module attributes {stable_mosaic.version = 11 : i64} {
  func.func private @main(%arg0: i32) attributes {dimension_semantics = [#tpu.dimension_semantics<core_parallel>], iteration_bounds = array<i64: 2>, tpu.core_type = #tpu.core_type<sc_scalar_subcore>, window_params = []} {
    return
  }
}

module attributes {stable_mosaic.version = 11 : i64} {
  func.func private @main(%arg0: i32) attributes {dimension_semantics = [#tpu.dimension_semantics<core_parallel>], iteration_bounds = array<i64: 2>, tpu.core_type = #tpu.core_type<sc_scalar_subcore>, window_params = []} {
    return
  }
}

module attributes {stable_mosaic.version = 11 : i64} {
  func.func @_norm_qkv_kernel(%arg0: i32, %arg1: memref<512x64xf32, #tpu.memory_space<vmem>>, %arg2: memref<1x64xf32, #tpu.memory_space<vmem>>, %arg3: memref<1x64xf32, #tpu.memory_space<vmem>>, %arg4: memref<64x384xf32, #tpu.memory_space<vmem>>, %arg5: memref<256x8xf32, #tpu.memory_space<vmem>>, %arg6: memref<8x256xf32, #tpu.memory_space<vmem>>, %arg7: memref<512x384xf32, #tpu.memory_space<vmem>>) attributes {dimension_semantics = [#tpu.dimension_semantics<parallel>], iteration_bounds = array<i64: 1>, scalar_prefetch = 0 : i64, scratch_operands = 0 : i64, tpu.core_type = #tpu.core_type<tc>, window_params = [{transform_indices = @transform_0, window_bounds = array<i64: 512, 64>}, {pipeline_mode = #tpu.pipeline_mode<synchronous>, transform_indices = @transform_1, window_bounds = array<i64: 1, 64>}, {pipeline_mode = #tpu.pipeline_mode<synchronous>, transform_indices = @transform_2, window_bounds = array<i64: 1, 64>}, {pipeline_mode = #tpu.pipeline_mode<synchronous>, transform_indices = @transform_3, window_bounds = array<i64: 64, 384>}, {pipeline_mode = #tpu.pipeline_mode<synchronous>, transform_indices = @transform_4, window_bounds = array<i64: 256, 8>}, {pipeline_mode = #tpu.pipeline_mode<synchronous>, transform_indices = @transform_5, window_bounds = array<i64: 8, 256>}, {transform_indices = @transform_6, window_bounds = array<i64: 512, 384>}]} {
    %c0 = arith.constant 0 : index
    %c0_0 = arith.constant 0 : index
    %0 = vector.load %arg1[%c0, %c0_0] : memref<512x64xf32, #tpu.memory_space<vmem>>, vector<512x64xf32>
    %cst = arith.constant dense<0.000000e+00> : vector<512xf32>
    %1 = vector.multi_reduction <add>, %0, %cst [1] : vector<512x64xf32> to vector<512xf32>
    %2 = vector.shape_cast %1 : vector<512xf32> to vector<512x1xf32>
    %cst_1 = arith.constant 6.400000e+01 : f32
    %3 = vector.broadcast %cst_1 : f32 to vector<512x1xf32>
    %4 = arith.divf %2, %3 : vector<512x1xf32>
    %5 = vector.broadcast %4 : vector<512x1xf32> to vector<512x64xf32>
    %6 = arith.subf %0, %5 : vector<512x64xf32>
    %7 = arith.mulf %6, %6 : vector<512x64xf32>
    %cst_2 = arith.constant dense<0.000000e+00> : vector<512xf32>
    %8 = vector.multi_reduction <add>, %7, %cst_2 [1] : vector<512x64xf32> to vector<512xf32>
    %9 = vector.shape_cast %8 : vector<512xf32> to vector<512x1xf32>
    %cst_3 = arith.constant 6.400000e+01 : f32
    %10 = vector.broadcast %cst_3 : f32 to vector<512x1xf32>
    %11 = arith.divf %9, %10 : vector<512x1xf32>
    %12 = vector.broadcast %4 : vector<512x1xf32> to vector<512x64xf32>
    %13 = arith.subf %0, %12 : vector<512x64xf32>
    %cst_4 = arith.constant 9.99999974E-6 : f32
    %14 = vector.broadcast %cst_4 : f32 to vector<512x1xf32>
    %15 = arith.addf %11, %14 : vector<512x1xf32>
    %16 = math.rsqrt %15 : vector<512x1xf32>
    %17 = vector.broadcast %16 : vector<512x1xf32> to vector<512x64xf32>
    %18 = arith.mulf %13, %17 : vector<512x64xf32>
    %c0_5 = arith.constant 0 : index
    %c0_6 = arith.constant 0 : index
    %19 = vector.load %arg2[%c0_5, %c0_6] : memref<1x64xf32, #tpu.memory_space<vmem>>, vector<1x64xf32>
    %20 = vector.broadcast %19 : vector<1x64xf32> to vector<512x64xf32>
    %21 = arith.mulf %18, %20 : vector<512x64xf32>
    %c0_7 = arith.constant 0 : index
    %c0_8 = arith.constant 0 : index
    %22 = vector.load %arg3[%c0_7, %c0_8] : memref<1x64xf32, #tpu.memory_space<vmem>>, vector<1x64xf32>
    %23 = vector.broadcast %22 : vector<1x64xf32> to vector<512x64xf32>
    %24 = arith.addf %21, %23 : vector<512x64xf32>
    %c0_9 = arith.constant 0 : index
    %c0_10 = arith.constant 0 : index
    %25 = vector.load %arg4[%c0_9, %c0_10] : memref<64x384xf32, #tpu.memory_space<vmem>>, vector<64x384xf32>
    %cst_11 = arith.constant dense<0.000000e+00> : vector<512x384xf32>
    %26 = tpu.matmul %24, %25, %cst_11 {dimension_numbers = #tpu.dot_dimension_numbers<[1], [0], [0], [1], [0, 0, 1, 1], [], []>} : vector<512x64xf32>, vector<64x384xf32>, vector<512x384xf32> -> vector<512x384xf32>
    %27 = vector.extract_strided_slice %26 {offsets = [0, 0], sizes = [512, 256], strides = [1, 1]} : vector<512x384xf32> to vector<512x256xf32>
    %28 = arith.mulf %27, %27 : vector<512x256xf32>
    %c0_12 = arith.constant 0 : index
    %c0_13 = arith.constant 0 : index
    %29 = vector.load %arg5[%c0_12, %c0_13] : memref<256x8xf32, #tpu.memory_space<vmem>>, vector<256x8xf32>
    %cst_14 = arith.constant dense<0.000000e+00> : vector<512x8xf32>
    %30 = tpu.matmul %28, %29, %cst_14 {dimension_numbers = #tpu.dot_dimension_numbers<[1], [0], [0], [1], [0, 0, 1, 1], [], []>} : vector<512x256xf32>, vector<256x8xf32>, vector<512x8xf32> -> vector<512x8xf32>
    %31 = math.sqrt %30 : vector<512x8xf32>
    %cst_15 = arith.constant 9.99999996E-13 : f32
    %32 = vector.broadcast %cst_15 : f32 to vector<512x8xf32>
    %33 = arith.maximumf %31, %32 : vector<512x8xf32>
    %cst_16 = arith.constant 1.000000e+00 : f32
    %34 = vector.broadcast %cst_16 : f32 to vector<512x8xf32>
    %35 = arith.divf %34, %33 : vector<512x8xf32>
    %c0_17 = arith.constant 0 : index
    %c0_18 = arith.constant 0 : index
    %36 = vector.load %arg6[%c0_17, %c0_18] : memref<8x256xf32, #tpu.memory_space<vmem>>, vector<8x256xf32>
    %cst_19 = arith.constant dense<0.000000e+00> : vector<512x256xf32>
    %37 = tpu.matmul %35, %36, %cst_19 {dimension_numbers = #tpu.dot_dimension_numbers<[1], [0], [0], [1], [0, 0, 1, 1], [], []>} : vector<512x8xf32>, vector<8x256xf32>, vector<512x256xf32> -> vector<512x256xf32>
    %38 = arith.mulf %27, %37 : vector<512x256xf32>
    %c0_20 = arith.constant 0 : index
    %c0_21 = arith.constant 0 : index
    %39 = vector.load %arg7[%c0_20, %c0_21] : memref<512x384xf32, #tpu.memory_space<vmem>>, vector<512x256xf32>
    tpu.vector_store %arg7[%c0_20, %c0_21], %38 {strides = array<i32>} : memref<512x384xf32, #tpu.memory_space<vmem>>, vector<512x256xf32>,
    %40 = vector.extract_strided_slice %26 {offsets = [0, 256], sizes = [512, 128], strides = [1, 1]} : vector<512x384xf32> to vector<512x128xf32>
    %c0_22 = arith.constant 0 : index
    %c256 = arith.constant 256 : index
    %41 = vector.load %arg7[%c0_22, %c256] : memref<512x384xf32, #tpu.memory_space<vmem>>, vector<512x128xf32>
    tpu.vector_store %arg7[%c0_22, %c256], %40 {strides = array<i32>} : memref<512x384xf32, #tpu.memory_space<vmem>>, vector<512x128xf32>,
    return
  }
  func.func @transform_0(%arg0: i32) -> (i32, i32) {
    %c0_i32 = arith.constant 0 : i32
    %c0_i32_0 = arith.constant 0 : i32
    return %arg0, %c0_i32 : i32, i32
  }
  func.func @transform_1(%arg0: i32) -> (i32, i32) {
    %c0_i32 = arith.constant 0 : i32
    %c0_i32_0 = arith.constant 0 : i32
    %c0_i32_1 = arith.constant 0 : i32
    return %c0_i32, %c0_i32_0 : i32, i32
  }
  func.func @transform_2(%arg0: i32) -> (i32, i32) {
    %c0_i32 = arith.constant 0 : i32
    %c0_i32_0 = arith.constant 0 : i32
    %c0_i32_1 = arith.constant 0 : i32
    return %c0_i32, %c0_i32_0 : i32, i32
  }
  func.func @transform_3(%arg0: i32) -> (i32, i32) {
    %c0_i32 = arith.constant 0 : i32
    %c0_i32_0 = arith.constant 0 : i32
    %c0_i32_1 = arith.constant 0 : i32
    return %c0_i32, %c0_i32_0 : i32, i32
  }
  func.func @transform_4(%arg0: i32) -> (i32, i32) {
    %c0_i32 = arith.constant 0 : i32
    %c0_i32_0 = arith.constant 0 : i32
    %c0_i32_1 = arith.constant 0 : i32
    return %c0_i32, %c0_i32_0 : i32, i32
  }
  func.func @transform_5(%arg0: i32) -> (i32, i32) {
    %c0_i32 = arith.constant 0 : i32
    %c0_i32_0 = arith.constant 0 : i32
    %c0_i32_1 = arith.constant 0 : i32
    return %c0_i32, %c0_i32_0 : i32, i32
  }
  func.func @transform_6(%arg0: i32) -> (i32, i32) {
    %c0_i32 = arith.constant 0 : i32
    %c0_i32_0 = arith.constant 0 : i32
    return %arg0, %c0_i32 : i32, i32
  }
}

module attributes {stable_mosaic.version = 11 : i64} {
  func.func @_attn_kernel(%arg0: i32, %arg1: i32, %arg2: memref<1x256x128xf32, #tpu.memory_space<vmem>>, %arg3: memref<1x4x128x32xbf16, #tpu.memory_space<vmem>>, %arg4: memref<1x4x128x32xbf16, #tpu.memory_space<vmem>>, %arg5: memref<1x256x128xbf16, #tpu.memory_space<vmem>>) attributes {dimension_semantics = [#tpu.dimension_semantics<parallel>, #tpu.dimension_semantics<arbitrary>], iteration_bounds = array<i64: 2, 1>, scalar_prefetch = 0 : i64, scratch_operands = 0 : i64, tpu.core_type = #tpu.core_type<tc>, window_params = [{transform_indices = @transform_0, window_bounds = array<i64: 1, 256, 128>}, {transform_indices = @transform_1, window_bounds = array<i64: 1, 4, 128, 32>}, {transform_indices = @transform_2, window_bounds = array<i64: 1, 4, 128, 32>}, {transform_indices = @transform_3, window_bounds = array<i64: 1, 256, 128>}]} {
    %0 = tpu.iota {dimensions = array<i32: 1>} : vector<1x128xi32>
    %c0 = arith.constant 0 : index
    %c0_0 = arith.constant 0 : index
    %c0_1 = arith.constant 0 : index
    %1 = vector.load %arg2[%c0, %c0_0, %c0_1] : memref<1x256x128xf32, #tpu.memory_space<vmem>>, vector<1x256x32xf32>
    %2 = vector.shape_cast %1 : vector<1x256x32xf32> to vector<256x32xf32>
    %3 = arith.truncf %2 : vector<256x32xf32> to vector<256x32xbf16>
    %c0_2 = arith.constant 0 : index
    %c0_3 = arith.constant 0 : index
    %c0_4 = arith.constant 0 : index
    %c0_5 = arith.constant 0 : index
    %4 = vector.load %arg3[%c0_2, %c0_3, %c0_4, %c0_5] : memref<1x4x128x32xbf16, #tpu.memory_space<vmem>>, vector<1x1x128x32xbf16>
    %5 = vector.shape_cast %4 : vector<1x1x128x32xbf16> to vector<128x32xbf16>
    %c0_6 = arith.constant 0 : index
    %c0_7 = arith.constant 0 : index
    %c0_8 = arith.constant 0 : index
    %c0_9 = arith.constant 0 : index
    %6 = vector.load %arg4[%c0_6, %c0_7, %c0_8, %c0_9] : memref<1x4x128x32xbf16, #tpu.memory_space<vmem>>, vector<1x1x128x32xbf16>
    %7 = vector.shape_cast %6 : vector<1x1x128x32xbf16> to vector<128x32xbf16>
    %cst = arith.constant dense<0.000000e+00> : vector<256x128xf32>
    %8 = tpu.matmul %3, %5, %cst {dimension_numbers = #tpu.dot_dimension_numbers<[1], [1], [0], [0], [0, 0, 1, 0], [], []>} : vector<256x32xbf16>, vector<128x32xbf16>, vector<256x128xf32> -> vector<256x128xf32>
    %c64_i32 = arith.constant 64 : i32
    %9 = vector.broadcast %c64_i32 : i32 to vector<1x128xi32>
    %10 = arith.cmpi slt, %0, %9 : vector<1x128xi32>
    %cst_10 = arith.constant -1.000000e+30 : f32
    %11 = vector.shape_cast %10 : vector<1x128xi1> to vector<1x128xi1>
    %12 = vector.broadcast %11 : vector<1x128xi1> to vector<256x128xi1>
    %13 = vector.broadcast %cst_10 : f32 to vector<256x128xf32>
    %14 = arith.select %12, %8, %13 : vector<256x128xi1>, vector<256x128xf32>
    %cst_11 = arith.constant dense<0xFF800000> : vector<256xf32>
    %15 = vector.multi_reduction <maximumf>, %14, %cst_11 [1] : vector<256x128xf32> to vector<256xf32>
    %16 = vector.shape_cast %15 : vector<256xf32> to vector<256x1xf32>
    %17 = vector.broadcast %16 : vector<256x1xf32> to vector<256x128xf32>
    %18 = arith.subf %14, %17 : vector<256x128xf32>
    %19 = math.exp %18 : vector<256x128xf32>
    %cst_12 = arith.constant dense<0.000000e+00> : vector<256xf32>
    %20 = vector.multi_reduction <add>, %19, %cst_12 [1] : vector<256x128xf32> to vector<256xf32>
    %21 = vector.shape_cast %20 : vector<256xf32> to vector<256x1xf32>
    %22 = tpu.reciprocal %21 {approx = true} : vector<256x1xf32> -> vector<256x1xf32>
    %23 = arith.truncf %19 : vector<256x128xf32> to vector<256x128xbf16>
    %cst_13 = arith.constant dense<0.000000e+00> : vector<256x32xf32>
    %24 = tpu.matmul %23, %7, %cst_13 {dimension_numbers = #tpu.dot_dimension_numbers<[1], [0], [0], [1], [0, 0, 1, 1], [], []>} : vector<256x128xbf16>, vector<128x32xbf16>, vector<256x32xf32> -> vector<256x32xf32>
    %25 = vector.broadcast %22 : vector<256x1xf32> to vector<256x32xf32>
    %26 = arith.mulf %24, %25 : vector<256x32xf32>
    %c0_14 = arith.constant 0 : index
    %c0_15 = arith.constant 0 : index
    %c32 = arith.constant 32 : index
    %27 = vector.load %arg2[%c0_14, %c0_15, %c32] : memref<1x256x128xf32, #tpu.memory_space<vmem>>, vector<1x256x32xf32>
    %28 = vector.shape_cast %27 : vector<1x256x32xf32> to vector<256x32xf32>
    %29 = arith.truncf %28 : vector<256x32xf32> to vector<256x32xbf16>
    %c0_16 = arith.constant 0 : index
    %c1 = arith.constant 1 : index
    %c0_17 = arith.constant 0 : index
    %c0_18 = arith.constant 0 : index
    %30 = vector.load %arg3[%c0_16, %c1, %c0_17, %c0_18] : memref<1x4x128x32xbf16, #tpu.memory_space<vmem>>, vector<1x1x128x32xbf16>
    %31 = vector.shape_cast %30 : vector<1x1x128x32xbf16> to vector<128x32xbf16>
    %c0_19 = arith.constant 0 : index
    %c1_20 = arith.constant 1 : index
    %c0_21 = arith.constant 0 : index
    %c0_22 = arith.constant 0 : index
    %32 = vector.load %arg4[%c0_19, %c1_20, %c0_21, %c0_22] : memref<1x4x128x32xbf16, #tpu.memory_space<vmem>>, vector<1x1x128x32xbf16>
    %33 = vector.shape_cast %32 : vector<1x1x128x32xbf16> to vector<128x32xbf16>
    %cst_23 = arith.constant dense<0.000000e+00> : vector<256x128xf32>
    %34 = tpu.matmul %29, %31, %cst_23 {dimension_numbers = #tpu.dot_dimension_numbers<[1], [1], [0], [0], [0, 0, 1, 0], [], []>} : vector<256x32xbf16>, vector<128x32xbf16>, vector<256x128xf32> -> vector<256x128xf32>
    %c64_i32_24 = arith.constant 64 : i32
    %35 = vector.broadcast %c64_i32_24 : i32 to vector<1x128xi32>
    %36 = arith.cmpi slt, %0, %35 : vector<1x128xi32>
    %cst_25 = arith.constant -1.000000e+30 : f32
    %37 = vector.shape_cast %36 : vector<1x128xi1> to vector<1x128xi1>
    %38 = vector.broadcast %37 : vector<1x128xi1> to vector<256x128xi1>
    %39 = vector.broadcast %cst_25 : f32 to vector<256x128xf32>
    %40 = arith.select %38, %34, %39 : vector<256x128xi1>, vector<256x128xf32>
    %cst_26 = arith.constant dense<0xFF800000> : vector<256xf32>
    %41 = vector.multi_reduction <maximumf>, %40, %cst_26 [1] : vector<256x128xf32> to vector<256xf32>
    %42 = vector.shape_cast %41 : vector<256xf32> to vector<256x1xf32>
    %43 = vector.broadcast %42 : vector<256x1xf32> to vector<256x128xf32>
    %44 = arith.subf %40, %43 : vector<256x128xf32>
    %45 = math.exp %44 : vector<256x128xf32>
    %cst_27 = arith.constant dense<0.000000e+00> : vector<256xf32>
    %46 = vector.multi_reduction <add>, %45, %cst_27 [1] : vector<256x128xf32> to vector<256xf32>
    %47 = vector.shape_cast %46 : vector<256xf32> to vector<256x1xf32>
    %48 = tpu.reciprocal %47 {approx = true} : vector<256x1xf32> -> vector<256x1xf32>
    %49 = arith.truncf %45 : vector<256x128xf32> to vector<256x128xbf16>
    %cst_28 = arith.constant dense<0.000000e+00> : vector<256x32xf32>
    %50 = tpu.matmul %49, %33, %cst_28 {dimension_numbers = #tpu.dot_dimension_numbers<[1], [0], [0], [1], [0, 0, 1, 1], [], []>} : vector<256x128xbf16>, vector<128x32xbf16>, vector<256x32xf32> -> vector<256x32xf32>
    %51 = vector.broadcast %48 : vector<256x1xf32> to vector<256x32xf32>
    %52 = arith.mulf %50, %51 : vector<256x32xf32>
    %c0_29 = arith.constant 0 : index
    %c0_30 = arith.constant 0 : index
    %c64 = arith.constant 64 : index
    %53 = vector.load %arg2[%c0_29, %c0_30, %c64] : memref<1x256x128xf32, #tpu.memory_space<vmem>>, vector<1x256x32xf32>
    %54 = vector.shape_cast %53 : vector<1x256x32xf32> to vector<256x32xf32>
    %55 = arith.truncf %54 : vector<256x32xf32> to vector<256x32xbf16>
    %c0_31 = arith.constant 0 : index
    %c2 = arith.constant 2 : index
    %c0_32 = arith.constant 0 : index
    %c0_33 = arith.constant 0 : index
    %56 = vector.load %arg3[%c0_31, %c2, %c0_32, %c0_33] : memref<1x4x128x32xbf16, #tpu.memory_space<vmem>>, vector<1x1x128x32xbf16>
    %57 = vector.shape_cast %56 : vector<1x1x128x32xbf16> to vector<128x32xbf16>
    %c0_34 = arith.constant 0 : index
    %c2_35 = arith.constant 2 : index
    %c0_36 = arith.constant 0 : index
    %c0_37 = arith.constant 0 : index
    %58 = vector.load %arg4[%c0_34, %c2_35, %c0_36, %c0_37] : memref<1x4x128x32xbf16, #tpu.memory_space<vmem>>, vector<1x1x128x32xbf16>
    %59 = vector.shape_cast %58 : vector<1x1x128x32xbf16> to vector<128x32xbf16>
    %cst_38 = arith.constant dense<0.000000e+00> : vector<256x128xf32>
    %60 = tpu.matmul %55, %57, %cst_38 {dimension_numbers = #tpu.dot_dimension_numbers<[1], [1], [0], [0], [0, 0, 1, 0], [], []>} : vector<256x32xbf16>, vector<128x32xbf16>, vector<256x128xf32> -> vector<256x128xf32>
    %c64_i32_39 = arith.constant 64 : i32
    %61 = vector.broadcast %c64_i32_39 : i32 to vector<1x128xi32>
    %62 = arith.cmpi slt, %0, %61 : vector<1x128xi32>
    %cst_40 = arith.constant -1.000000e+30 : f32
    %63 = vector.shape_cast %62 : vector<1x128xi1> to vector<1x128xi1>
    %64 = vector.broadcast %63 : vector<1x128xi1> to vector<256x128xi1>
    %65 = vector.broadcast %cst_40 : f32 to vector<256x128xf32>
    %66 = arith.select %64, %60, %65 : vector<256x128xi1>, vector<256x128xf32>
    %cst_41 = arith.constant dense<0xFF800000> : vector<256xf32>
    %67 = vector.multi_reduction <maximumf>, %66, %cst_41 [1] : vector<256x128xf32> to vector<256xf32>
    %68 = vector.shape_cast %67 : vector<256xf32> to vector<256x1xf32>
    %69 = vector.broadcast %68 : vector<256x1xf32> to vector<256x128xf32>
    %70 = arith.subf %66, %69 : vector<256x128xf32>
    %71 = math.exp %70 : vector<256x128xf32>
    %cst_42 = arith.constant dense<0.000000e+00> : vector<256xf32>
    %72 = vector.multi_reduction <add>, %71, %cst_42 [1] : vector<256x128xf32> to vector<256xf32>
    %73 = vector.shape_cast %72 : vector<256xf32> to vector<256x1xf32>
    %74 = tpu.reciprocal %73 {approx = true} : vector<256x1xf32> -> vector<256x1xf32>
    %75 = arith.truncf %71 : vector<256x128xf32> to vector<256x128xbf16>
    %cst_43 = arith.constant dense<0.000000e+00> : vector<256x32xf32>
    %76 = tpu.matmul %75, %59, %cst_43 {dimension_numbers = #tpu.dot_dimension_numbers<[1], [0], [0], [1], [0, 0, 1, 1], [], []>} : vector<256x128xbf16>, vector<128x32xbf16>, vector<256x32xf32> -> vector<256x32xf32>
    %77 = vector.broadcast %74 : vector<256x1xf32> to vector<256x32xf32>
    %78 = arith.mulf %76, %77 : vector<256x32xf32>
    %c0_44 = arith.constant 0 : index
    %c0_45 = arith.constant 0 : index
    %c96 = arith.constant 96 : index
    %79 = vector.load %arg2[%c0_44, %c0_45, %c96] : memref<1x256x128xf32, #tpu.memory_space<vmem>>, vector<1x256x32xf32>
    %80 = vector.shape_cast %79 : vector<1x256x32xf32> to vector<256x32xf32>
    %81 = arith.truncf %80 : vector<256x32xf32> to vector<256x32xbf16>
    %c0_46 = arith.constant 0 : index
    %c3 = arith.constant 3 : index
    %c0_47 = arith.constant 0 : index
    %c0_48 = arith.constant 0 : index
    %82 = vector.load %arg3[%c0_46, %c3, %c0_47, %c0_48] : memref<1x4x128x32xbf16, #tpu.memory_space<vmem>>, vector<1x1x128x32xbf16>
    %83 = vector.shape_cast %82 : vector<1x1x128x32xbf16> to vector<128x32xbf16>
    %c0_49 = arith.constant 0 : index
    %c3_50 = arith.constant 3 : index
    %c0_51 = arith.constant 0 : index
    %c0_52 = arith.constant 0 : index
    %84 = vector.load %arg4[%c0_49, %c3_50, %c0_51, %c0_52] : memref<1x4x128x32xbf16, #tpu.memory_space<vmem>>, vector<1x1x128x32xbf16>
    %85 = vector.shape_cast %84 : vector<1x1x128x32xbf16> to vector<128x32xbf16>
    %cst_53 = arith.constant dense<0.000000e+00> : vector<256x128xf32>
    %86 = tpu.matmul %81, %83, %cst_53 {dimension_numbers = #tpu.dot_dimension_numbers<[1], [1], [0], [0], [0, 0, 1, 0], [], []>} : vector<256x32xbf16>, vector<128x32xbf16>, vector<256x128xf32> -> vector<256x128xf32>
    %c64_i32_54 = arith.constant 64 : i32
    %87 = vector.broadcast %c64_i32_54 : i32 to vector<1x128xi32>
    %88 = arith.cmpi slt, %0, %87 : vector<1x128xi32>
    %cst_55 = arith.constant -1.000000e+30 : f32
    %89 = vector.shape_cast %88 : vector<1x128xi1> to vector<1x128xi1>
    %90 = vector.broadcast %89 : vector<1x128xi1> to vector<256x128xi1>
    %91 = vector.broadcast %cst_55 : f32 to vector<256x128xf32>
    %92 = arith.select %90, %86, %91 : vector<256x128xi1>, vector<256x128xf32>
    %cst_56 = arith.constant dense<0xFF800000> : vector<256xf32>
    %93 = vector.multi_reduction <maximumf>, %92, %cst_56 [1] : vector<256x128xf32> to vector<256xf32>
    %94 = vector.shape_cast %93 : vector<256xf32> to vector<256x1xf32>
    %95 = vector.broadcast %94 : vector<256x1xf32> to vector<256x128xf32>
    %96 = arith.subf %92, %95 : vector<256x128xf32>
    %97 = math.exp %96 : vector<256x128xf32>
    %cst_57 = arith.constant dense<0.000000e+00> : vector<256xf32>
    %98 = vector.multi_reduction <add>, %97, %cst_57 [1] : vector<256x128xf32> to vector<256xf32>
    %99 = vector.shape_cast %98 : vector<256xf32> to vector<256x1xf32>
    %100 = tpu.reciprocal %99 {approx = true} : vector<256x1xf32> -> vector<256x1xf32>
    %101 = arith.truncf %97 : vector<256x128xf32> to vector<256x128xbf16>
    %cst_58 = arith.constant dense<0.000000e+00> : vector<256x32xf32>
    %102 = tpu.matmul %101, %85, %cst_58 {dimension_numbers = #tpu.dot_dimension_numbers<[1], [0], [0], [1], [0, 0, 1, 1], [], []>} : vector<256x128xbf16>, vector<128x32xbf16>, vector<256x32xf32> -> vector<256x32xf32>
    %103 = vector.broadcast %100 : vector<256x1xf32> to vector<256x32xf32>
    %104 = arith.mulf %102, %103 : vector<256x32xf32>
    %105 = tpu.concatenate %26, %52, %78, %104 in 1 : vector<256x32xf32>, vector<256x32xf32>, vector<256x32xf32>, vector<256x32xf32> -> vector<256x128xf32>
    %106 = arith.truncf %105 : vector<256x128xf32> to vector<256x128xbf16>
    %c0_59 = arith.constant 0 : index
    %c0_60 = arith.constant 0 : index
    %c0_61 = arith.constant 0 : index
    %107 = vector.load %arg5[%c0_59, %c0_60, %c0_61] : memref<1x256x128xbf16, #tpu.memory_space<vmem>>, vector<1x256x128xbf16>
    %108 = vector.shape_cast %107 : vector<1x256x128xbf16> to vector<256x128xbf16>
    %109 = vector.shape_cast %106 : vector<256x128xbf16> to vector<1x256x128xbf16>
    tpu.vector_store %arg5[%c0_59, %c0_60, %c0_61], %109 {strides = array<i32>} : memref<1x256x128xbf16, #tpu.memory_space<vmem>>, vector<1x256x128xbf16>,
    return
  }
  func.func @transform_0(%arg0: i32, %arg1: i32) -> (i32, i32, i32) {
    %c0_i32 = arith.constant 0 : i32
    %c0_i32_0 = arith.constant 0 : i32
    return %arg0, %arg1, %c0_i32 : i32, i32, i32
  }
  func.func @transform_1(%arg0: i32, %arg1: i32) -> (i32, i32, i32, i32) {
    %c0_i32 = arith.constant 0 : i32
    %c0_i32_0 = arith.constant 0 : i32
    %c0_i32_1 = arith.constant 0 : i32
    %c0_i32_2 = arith.constant 0 : i32
    return %arg0, %c0_i32, %c0_i32_0, %c0_i32_1 : i32, i32, i32, i32
  }
  func.func @transform_2(%arg0: i32, %arg1: i32) -> (i32, i32, i32, i32) {
    %c0_i32 = arith.constant 0 : i32
    %c0_i32_0 = arith.constant 0 : i32
    %c0_i32_1 = arith.constant 0 : i32
    %c0_i32_2 = arith.constant 0 : i32
    return %arg0, %c0_i32, %c0_i32_0, %c0_i32_1 : i32, i32, i32, i32
  }
  func.func @transform_3(%arg0: i32, %arg1: i32) -> (i32, i32, i32) {
    %c0_i32 = arith.constant 0 : i32
    %c0_i32_0 = arith.constant 0 : i32
    return %arg0, %arg1, %c0_i32 : i32, i32, i32
  }
}

module attributes {stable_mosaic.version = 11 : i64} {
  func.func @_matmul_bias_kernel(%arg0: i32, %arg1: memref<512x128xbf16, #tpu.memory_space<vmem>>, %arg2: memref<128x64xbf16, #tpu.memory_space<vmem>>, %arg3: memref<1x64xf32, #tpu.memory_space<vmem>>, %arg4: memref<512x64xf32, #tpu.memory_space<vmem>>) attributes {dimension_semantics = [#tpu.dimension_semantics<parallel>], iteration_bounds = array<i64: 1>, scalar_prefetch = 0 : i64, scratch_operands = 0 : i64, tpu.core_type = #tpu.core_type<tc>, window_params = [{transform_indices = @transform_0, window_bounds = array<i64: 512, 128>}, {pipeline_mode = #tpu.pipeline_mode<synchronous>, transform_indices = @transform_1, window_bounds = array<i64: 128, 64>}, {pipeline_mode = #tpu.pipeline_mode<synchronous>, transform_indices = @transform_2, window_bounds = array<i64: 1, 64>}, {transform_indices = @transform_3, window_bounds = array<i64: 512, 64>}]} {
    %c0 = arith.constant 0 : index
    %c0_0 = arith.constant 0 : index
    %0 = vector.load %arg1[%c0, %c0_0] : memref<512x128xbf16, #tpu.memory_space<vmem>>, vector<512x128xbf16>
    %c0_1 = arith.constant 0 : index
    %c0_2 = arith.constant 0 : index
    %1 = vector.load %arg2[%c0_1, %c0_2] : memref<128x64xbf16, #tpu.memory_space<vmem>>, vector<128x64xbf16>
    %cst = arith.constant dense<0.000000e+00> : vector<512x64xf32>
    %2 = tpu.matmul %0, %1, %cst {dimension_numbers = #tpu.dot_dimension_numbers<[1], [0], [0], [1], [0, 0, 1, 1], [], []>} : vector<512x128xbf16>, vector<128x64xbf16>, vector<512x64xf32> -> vector<512x64xf32>
    %c0_3 = arith.constant 0 : index
    %c0_4 = arith.constant 0 : index
    %3 = vector.load %arg3[%c0_3, %c0_4] : memref<1x64xf32, #tpu.memory_space<vmem>>, vector<1x64xf32>
    %4 = vector.broadcast %3 : vector<1x64xf32> to vector<512x64xf32>
    %5 = arith.addf %2, %4 : vector<512x64xf32>
    %c0_5 = arith.constant 0 : index
    %c0_6 = arith.constant 0 : index
    %6 = vector.load %arg4[%c0_5, %c0_6] : memref<512x64xf32, #tpu.memory_space<vmem>>, vector<512x64xf32>
    tpu.vector_store %arg4[%c0_5, %c0_6], %5 {strides = array<i32>} : memref<512x64xf32, #tpu.memory_space<vmem>>, vector<512x64xf32>,
    return
  }
  func.func @transform_0(%arg0: i32) -> (i32, i32) {
    %c0_i32 = arith.constant 0 : i32
    %c0_i32_0 = arith.constant 0 : i32
    return %arg0, %c0_i32 : i32, i32
  }
  func.func @transform_1(%arg0: i32) -> (i32, i32) {
    %c0_i32 = arith.constant 0 : i32
    %c0_i32_0 = arith.constant 0 : i32
    %c0_i32_1 = arith.constant 0 : i32
    return %c0_i32, %c0_i32_0 : i32, i32
  }
  func.func @transform_2(%arg0: i32) -> (i32, i32) {
    %c0_i32 = arith.constant 0 : i32
    %c0_i32_0 = arith.constant 0 : i32
    %c0_i32_1 = arith.constant 0 : i32
    return %c0_i32, %c0_i32_0 : i32, i32
  }
  func.func @transform_3(%arg0: i32) -> (i32, i32) {
    %c0_i32 = arith.constant 0 : i32
    %c0_i32_0 = arith.constant 0 : i32
    return %arg0, %c0_i32 : i32, i32
  }
}

</mosaic_0001>

<llo_original>
// kernel: dpsa_forward.3
$region0: #{dpsa_forward.3}
  #allocation0 [shape = 'u32[]', space=smem, size = 0x4, offset = 0x4, fixed_abs, tag = 'smem constant byte address 0x4 - core index']
  #allocation1 [shape = 'u32[144,128]{1,0:T(1,128)}', space=vmem, size = 0x12000, scoped, tag = 'internal scratch']
  %s0 = inlined_call_operand.hbm [shape: f32[512,64], index: 0, kind: input, shape index: {}]
  %s1 = inlined_call_operand.hbm [shape: f32[1,64], index: 1, kind: input, shape index: {}]
  %s2 = inlined_call_operand.hbm [shape: f32[1,64], index: 2, kind: input, shape index: {}]
  %s3 = inlined_call_operand.hbm [shape: f32[64,384], index: 3, kind: input, shape index: {}]
  %s4 = inlined_call_operand.vmem [shape: f32[256,8], index: 4, kind: input, shape index: {}]
  %s5 = inlined_call_operand.vmem [shape: f32[8,256], index: 5, kind: input, shape index: {}]
  %s6 = inlined_call_operand.vmem [shape: f32[512,384], index: 6, kind: output, shape index: {}]
  %s7 = sld [smem:[#allocation0]]
  $region50: #{dpsa_forward.3} parent=0
    _
  %s9 = ssub.s32 1, %s7
  %s10 = scalar_select 0, %s9, %s7
  $region1: #{dpsa_forward.3} parent=0
    #allocation2 [shape = 'u8[262144]{0}', space=vmem, size = 0x40000, scoped, tag = 'input window, operand 0, single buffered']
    #allocation3 [shape = 's32[1]{0}', space=sflag, size = 0x4, scoped, tag = 'scoped memory for dpsa_forward.3']
    #allocation4 [shape = 'u8[512]{0}', space=vmem, size = 0x400, scoped, tag = 'input window, operand 1, single buffered']
    #allocation5 [shape = 's32[1]{0}', space=sflag, size = 0x4, scoped, tag = 'scoped memory for dpsa_forward.3']
    #allocation6 [shape = 'u8[512]{0}', space=vmem, size = 0x400, scoped, tag = 'input window, operand 2, single buffered']
    #allocation7 [shape = 'u8[98304]{0}', space=vmem, size = 0x18000, scoped, tag = 'input window, operand 3, single buffered']
    #allocation8 [shape = 's32[1]{0}', space=sflag, size = 0x4, scoped, tag = 'scoped memory for dpsa_forward.3']
    %11 = vsyncpa [#allocation3], 0
    %12 = vsyncpa [#allocation5], 0
    %13 = vsyncpa [#allocation8], 0
    // Predicated region
    $region2: #{dpsa_forward.3} parent=1 // pred_check
      _
    $region3: #{dpsa_forward.3} parent=1 // pred_check_branch
      %15 = sbr.rel (0) target = $region5
    $region4: #{dpsa_forward.3} parent=1 // pred_region
      %s17 = ssub.s32 8192, 8192
      %18 = vsyncadd [#allocation3], %s17
      %s19 = sshll.u32 [#allocation2], 4
      %s20 = int_to_ptr.vmem [resolvable:$true] %s19
      %25 = dma.hbm_to_vmem [thread:$0]  %s0, 8192, %s20, [#allocation3], 128, 128, 8
    $region5: #{dpsa_forward.3} parent=1 // pred_fallthru
      _
    // Predicated region
    $region6: #{dpsa_forward.3} parent=1 // pred_check
      _
    $region7: #{dpsa_forward.3} parent=1 // pred_check_branch
      %27 = sbr.rel (0) target = $region9
    $region8: #{dpsa_forward.3} parent=1 // pred_region
      %s29 = ssub.s32 16, 16
      %30 = vsyncadd [#allocation5], %s29
      %s32 = sshll.u32 [#allocation4], 4
      %s33 = int_to_ptr.vmem [resolvable:$true] %s32
      %35 = dma.hbm_to_vmem [thread:$0]  %s1, 16, %s33, [#allocation5]
    $region9: #{dpsa_forward.3} parent=1 // pred_fallthru
      _
    // Predicated region
    $region10: #{dpsa_forward.3} parent=1 // pred_check
      _
    $region11: #{dpsa_forward.3} parent=1 // pred_check_branch
      %37 = sbr.rel (0) target = $region13
    $region12: #{dpsa_forward.3} parent=1 // pred_region
      %s39 = ssub.s32 16, 16
      %40 = vsyncadd [#allocation5], %s39
      %s42 = sshll.u32 [#allocation6], 4
      %s43 = int_to_ptr.vmem [resolvable:$true] %s42
      %45 = dma.hbm_to_vmem [thread:$0]  %s2, 16, %s43, [#allocation5]
    $region13: #{dpsa_forward.3} parent=1 // pred_fallthru
      _
    // Predicated region
    $region14: #{dpsa_forward.3} parent=1 // pred_check
      _
    $region15: #{dpsa_forward.3} parent=1 // pred_check_branch
      %47 = sbr.rel (0) target = $region17
    $region16: #{dpsa_forward.3} parent=1 // pred_region
      %s49 = ssub.s32 3072, 3072
      %50 = vsyncadd [#allocation8], %s49
      %s51 = sshll.u32 [#allocation7], 4
      %s52 = int_to_ptr.vmem [resolvable:$true] %s51
      %57 = dma.hbm_to_vmem [thread:$0]  %s3, 3072, %s52, [#allocation8], 384, 384, 24
    $region17: #{dpsa_forward.3} parent=1 // pred_fallthru
      _
    // Predicated region
    $region18: #{dpsa_forward.3} parent=1 // pred_check
      _
    $region19: #{dpsa_forward.3} parent=1 // pred_check_branch
      %59 = sbr.rel (0) target = $region21
    $region20: #{dpsa_forward.3} parent=1 // pred_region
      _
    $region21: #{dpsa_forward.3} parent=1 // pred_fallthru
      _
    // Predicated region
    $region22: #{dpsa_forward.3} parent=1 // pred_check
      _
    $region23: #{dpsa_forward.3} parent=1 // pred_check_branch
      %61 = sbr.rel (0) target = $region25
    $region24: #{dpsa_forward.3} parent=1 // pred_region
      _
    $region25: #{dpsa_forward.3} parent=1 // pred_fallthru
      _
    // Predicated region
    $region26: #{dpsa_forward.3} parent=1 // pred_check
      _
    $region27: #{dpsa_forward.3} parent=1 // pred_check_branch
      %63 = sbr.rel (0) target = $region29
    $region28: #{dpsa_forward.3} parent=1 // pred_region
      %64 = dma.done [#allocation3], 8192
    $region29: #{dpsa_forward.3} parent=1 // pred_fallthru
      _
    // Predicated region
    $region30: #{dpsa_forward.3} parent=1 // pred_check
      _
    $region31: #{dpsa_forward.3} parent=1 // pred_check_branch
      %66 = sbr.rel (0) target = $region33
    $region32: #{dpsa_forward.3} parent=1 // pred_region
      %67 = dma.done [#allocation5], 16
    $region33: #{dpsa_forward.3} parent=1 // pred_fallthru
      _
    // Predicated region
    $region34: #{dpsa_forward.3} parent=1 // pred_check
      _
    $region35: #{dpsa_forward.3} parent=1 // pred_check_branch
      %69 = sbr.rel (0) target = $region37
    $region36: #{dpsa_forward.3} parent=1 // pred_region
      %70 = dma.done [#allocation5], 16
    $region37: #{dpsa_forward.3} parent=1 // pred_fallthru
      _
    // Predicated region
    $region38: #{dpsa_forward.3} parent=1 // pred_check
      _
    $region39: #{dpsa_forward.3} parent=1 // pred_check_branch
      %72 = sbr.rel (0) target = $region41
    $region40: #{dpsa_forward.3} parent=1 // pred_region
      %73 = dma.done [#allocation8], 3072
    $region41: #{dpsa_forward.3} parent=1 // pred_fallthru
      _
    %v74 = vld [vmem:[#allocation2] sm:$0xff]
    %v75 = vld [vmem:[#allocation2 + $0x8] sm:$0xff]
    %v76 = vld [vmem:[#allocation2 + $0x10] sm:$0xff]
    %v77 = vld [vmem:[#allocation2 + $0x18] sm:$0xff]
    %v78 = vld [vmem:[#allocation2 + $0x20] sm:$0xff]
    %v79 = vld [vmem:[#allocation2 + $0x28] sm:$0xff]
    %v80 = vld [vmem:[#allocation2 + $0x30] sm:$0xff]
    %v81 = vld [vmem:[#allocation2 + $0x38] sm:$0xff]
    %v82 = vld [vmem:[#allocation2 + $0x40] sm:$0xff]
    %v83 = vld [vmem:[#allocation2 + $0x48] sm:$0xff]
    %v84 = vld [vmem:[#allocation2 + $0x50] sm:$0xff]
    %v85 = vld [vmem:[#allocation2 + $0x58] sm:$0xff]
    %v86 = vld [vmem:[#allocation2 + $0x60] sm:$0xff]
    %v87 = vld [vmem:[#allocation2 + $0x68] sm:$0xff]
    %v88 = vld [vmem:[#allocation2 + $0x70] sm:$0xff]
    %v89 = vld [vmem:[#allocation2 + $0x78] sm:$0xff]
    %v90 = vld [vmem:[#allocation2 + $0x80] sm:$0xff]
    %v91 = vld [vmem:[#allocation2 + $0x88] sm:$0xff]
    %v92 = vld [vmem:[#allocation2 + $0x90] sm:$0xff]
    %v93 = vld [vmem:[#allocation2 + $0x98] sm:$0xff]
    %v94 = vld [vmem:[#allocation2 + $0xa0] sm:$0xff]
    %v95 = vld [vmem:[#allocation2 + $0xa8] sm:$0xff]
    %v96 = vld [vmem:[#allocation2 + $0xb0] sm:$0xff]
    %v97 = vld [vmem:[#allocation2 + $0xb8] sm:$0xff]
    %v98 = vld [vmem:[#allocation2 + $0xc0] sm:$0xff]
    %v99 = vld [vmem:[#allocation2 + $0xc8] sm:$0xff]
    %v100 = vld [vmem:[#allocation2 + $0xd0] sm:$0xff]
    %v101 = vld [vmem:[#allocation2 + $0xd8] sm:$0xff]
    %v102 = vld [vmem:[#allocation2 + $0xe0] sm:$0xff]
    %v103 = vld [vmem:[#allocation2 + $0xe8] sm:$0xff]
    %v104 = vld [vmem:[#allocation2 + $0xf0] sm:$0xff]
    %v105 = vld [vmem:[#allocation2 + $0xf8] sm:$0xff]
    %v106 = vld [vmem:[#allocation2 + $0x100] sm:$0xff]
    %v107 = vld [vmem:[#allocation2 + $0x108] sm:$0xff]
    %v108 = vld [vmem:[#allocation2 + $0x110] sm:$0xff]
    %v109 = vld [vmem:[#allocation2 + $0x118] sm:$0xff]
    %v110 = vld [vmem:[#allocation2 + $0x120] sm:$0xff]
    %v111 = vld [vmem:[#allocation2 + $0x128] sm:$0xff]
    %v112 = vld [vmem:[#allocation2 + $0x130] sm:$0xff]
    %v113 = vld [vmem:[#allocation2 + $0x138] sm:$0xff]
    %v114 = vld [vmem:[#allocation2 + $0x140] sm:$0xff]
    %v115 = vld [vmem:[#allocation2 + $0x148] sm:$0xff]
    %v116 = vld [vmem:[#allocation2 + $0x150] sm:$0xff]
    %v117 = vld [vmem:[#allocation2 + $0x158] sm:$0xff]
    %v118 = vld [vmem:[#allocation2 + $0x160] sm:$0xff]
    %v119 = vld [vmem:[#allocation2 + $0x168] sm:$0xff]
    %v120 = vld [vmem:[#allocation2 + $0x170] sm:$0xff]
    %v121 = vld [vmem:[#allocation2 + $0x178] sm:$0xff]
    %v122 = vld [vmem:[#allocation2 + $0x180] sm:$0xff]
    %v123 = vld [vmem:[#allocation2 + $0x188] sm:$0xff]
    %v124 = vld [vmem:[#allocation2 + $0x190] sm:$0xff]
    %v125 = vld [vmem:[#allocation2 + $0x198] sm:$0xff]
    %v126 = vld [vmem:[#allocation2 + $0x1a0] sm:$0xff]
    %v127 = vld [vmem:[#allocation2 + $0x1a8] sm:$0xff]
    %v128 = vld [vmem:[#allocation2 + $0x1b0] sm:$0xff]
    %v129 = vld [vmem:[#allocation2 + $0x1b8] sm:$0xff]
    %v130 = vld [vmem:[#allocation2 + $0x1c0] sm:$0xff]
    %v131 = vld [vmem:[#allocation2 + $0x1c8] sm:$0xff]
    %v132 = vld [vmem:[#allocation2 + $0x1d0] sm:$0xff]
    %v133 = vld [vmem:[#allocation2 + $0x1d8] sm:$0xff]
    %v134 = vld [vmem:[#allocation2 + $0x1e0] sm:$0xff]
    %v135 = vld [vmem:[#allocation2 + $0x1e8] sm:$0xff]
    %v136 = vld [vmem:[#allocation2 + $0x1f0] sm:$0xff]
    %v137 = vld [vmem:[#allocation2 + $0x1f8] sm:$0xff]
    %vm138 = vcmask 523264
    %v139 = vsel %vm138, %v74, 0.0
    %140 = vadd.xlane.f32.xlu0 %v139
    %v141 = vpop.xlane.xlu0 %140
    %v142 = vsel %vm138, %v75, 0.0
    %143 = vadd.xlane.f32.xlu0 %v142
    %v144 = vpop.xlane.xlu0 %143
    %v145 = vsel %vm138, %v76, 0.0
    %146 = vadd.xlane.f32.xlu0 %v145
    %v147 = vpop.xlane.xlu0 %146
    %v148 = vsel %vm138, %v77, 0.0
    %149 = vadd.xlane.f32.xlu0 %v148
    %v150 = vpop.xlane.xlu0 %149
    %v151 = vsel %vm138, %v78, 0.0
    %152 = vadd.xlane.f32.xlu0 %v151
    %v153 = vpop.xlane.xlu0 %152
    %v154 = vsel %vm138, %v79, 0.0
    %155 = vadd.xlane.f32.xlu0 %v154
    %v156 = vpop.xlane.xlu0 %155
    %v157 = vsel %vm138, %v80, 0.0
    %158 = vadd.xlane.f32.xlu0 %v157
    %v159 = vpop.xlane.xlu0 %158
    %v160 = vsel %vm138, %v81, 0.0
    %161 = vadd.xlane.f32.xlu0 %v160
    %v162 = vpop.xlane.xlu0 %161
    %v163 = vsel %vm138, %v82, 0.0
    %164 = vadd.xlane.f32.xlu0 %v163
    %v165 = vpop.xlane.xlu0 %164
    %v166 = vsel %vm138, %v83, 0.0
    %167 = vadd.xlane.f32.xlu0 %v166
    %v168 = vpop.xlane.xlu0 %167
    %v169 = vsel %vm138, %v84, 0.0
    %170 = vadd.xlane.f32.xlu0 %v169
    %v171 = vpop.xlane.xlu0 %170
    %v172 = vsel %vm138, %v85, 0.0
    %173 = vadd.xlane.f32.xlu0 %v172
    %v174 = vpop.xlane.xlu0 %173
    %v175 = vsel %vm138, %v86, 0.0
    %176 = vadd.xlane.f32.xlu0 %v175
    %v177 = vpop.xlane.xlu0 %176
    %v178 = vsel %vm138, %v87, 0.0
    %179 = vadd.xlane.f32.xlu0 %v178
    %v180 = vpop.xlane.xlu0 %179
    %v181 = vsel %vm138, %v88, 0.0
    %182 = vadd.xlane.f32.xlu0 %v181
    %v183 = vpop.xlane.xlu0 %182
    %v184 = vsel %vm138, %v89, 0.0
    %185 = vadd.xlane.f32.xlu0 %v184
    %v186 = vpop.xlane.xlu0 %185
    %v187 = vsel %vm138, %v90, 0.0
    %188 = vadd.xlane.f32.xlu0 %v187
    %v189 = vpop.xlane.xlu0 %188
    %v190 = vsel %vm138, %v91, 0.0
    %191 = vadd.xlane.f32.xlu0 %v190
    %v192 = vpop.xlane.xlu0 %191
    %v193 = vsel %vm138, %v92, 0.0
    %194 = vadd.xlane.f32.xlu0 %v193
    %v195 = vpop.xlane.xlu0 %194
    %v196 = vsel %vm138, %v93, 0.0
    %197 = vadd.xlane.f32.xlu0 %v196
    %v198 = vpop.xlane.xlu0 %197
    %v199 = vsel %vm138, %v94, 0.0
    %200 = vadd.xlane.f32.xlu0 %v199
    %v201 = vpop.xlane.xlu0 %200
    %v202 = vsel %vm138, %v95, 0.0
    %203 = vadd.xlane.f32.xlu0 %v202
    %v204 = vpop.xlane.xlu0 %203
    %v205 = vsel %vm138, %v96, 0.0
    %206 = vadd.xlane.f32.xlu0 %v205
    %v207 = vpop.xlane.xlu0 %206
    %v208 = vsel %vm138, %v97, 0.0
    %209 = vadd.xlane.f32.xlu0 %v208
    %v210 = vpop.xlane.xlu0 %209
    %v211 = vsel %vm138, %v98, 0.0
    %212 = vadd.xlane.f32.xlu0 %v211
    %v213 = vpop.xlane.xlu0 %212
    %v214 = vsel %vm138, %v99, 0.0
    %215 = vadd.xlane.f32.xlu0 %v214
    %v216 = vpop.xlane.xlu0 %215
    %v217 = vsel %vm138, %v100, 0.0
    %218 = vadd.xlane.f32.xlu0 %v217
    %v219 = vpop.xlane.xlu0 %218
    %v220 = vsel %vm138, %v101, 0.0
    %221 = vadd.xlane.f32.xlu0 %v220
    %v222 = vpop.xlane.xlu0 %221
    %v223 = vsel %vm138, %v102, 0.0
    %224 = vadd.xlane.f32.xlu0 %v223
    %v225 = vpop.xlane.xlu0 %224
    %v226 = vsel %vm138, %v103, 0.0
    %227 = vadd.xlane.f32.xlu0 %v226
    %v228 = vpop.xlane.xlu0 %227
    %v229 = vsel %vm138, %v104, 0.0
    %230 = vadd.xlane.f32.xlu0 %v229
    %v231 = vpop.xlane.xlu0 %230
    %v232 = vsel %vm138, %v105, 0.0
    %233 = vadd.xlane.f32.xlu0 %v232
    %v234 = vpop.xlane.xlu0 %233
    %v235 = vsel %vm138, %v106, 0.0
    %236 = vadd.xlane.f32.xlu0 %v235
    %v237 = vpop.xlane.xlu0 %236
    %v238 = vsel %vm138, %v107, 0.0
    %239 = vadd.xlane.f32.xlu0 %v238
    %v240 = vpop.xlane.xlu0 %239
    %v241 = vsel %vm138, %v108, 0.0
    %242 = vadd.xlane.f32.xlu0 %v241
    %v243 = vpop.xlane.xlu0 %242
    %v244 = vsel %vm138, %v109, 0.0
    %245 = vadd.xlane.f32.xlu0 %v244
    %v246 = vpop.xlane.xlu0 %245
    %v247 = vsel %vm138, %v110, 0.0
    %248 = vadd.xlane.f32.xlu0 %v247
    %v249 = vpop.xlane.xlu0 %248
    %v250 = vsel %vm138, %v111, 0.0
    %251 = vadd.xlane.f32.xlu0 %v250
    %v252 = vpop.xlane.xlu0 %251
    %v253 = vsel %vm138, %v112, 0.0
    %254 = vadd.xlane.f32.xlu0 %v253
    %v255 = vpop.xlane.xlu0 %254
    %v256 = vsel %vm138, %v113, 0.0
    %257 = vadd.xlane.f32.xlu0 %v256
    %v258 = vpop.xlane.xlu0 %257
    %v259 = vsel %vm138, %v114, 0.0
    %260 = vadd.xlane.f32.xlu0 %v259
    %v261 = vpop.xlane.xlu0 %260
    %v262 = vsel %vm138, %v115, 0.0
    %263 = vadd.xlane.f32.xlu0 %v262
    %v264 = vpop.xlane.xlu0 %263
    %v265 = vsel %vm138, %v116, 0.0
    %266 = vadd.xlane.f32.xlu0 %v265
    %v267 = vpop.xlane.xlu0 %266
    %v268 = vsel %vm138, %v117, 0.0
    %269 = vadd.xlane.f32.xlu0 %v268
    %v270 = vpop.xlane.xlu0 %269
    %v271 = vsel %vm138, %v118, 0.0
    %272 = vadd.xlane.f32.xlu0 %v271
    %v273 = vpop.xlane.xlu0 %272
    %v274 = vsel %vm138, %v119, 0.0
    %275 = vadd.xlane.f32.xlu0 %v274
    %v276 = vpop.xlane.xlu0 %275
    %v277 = vsel %vm138, %v120, 0.0
    %278 = vadd.xlane.f32.xlu0 %v277
    %v279 = vpop.xlane.xlu0 %278
    %v280 = vsel %vm138, %v121, 0.0
    %281 = vadd.xlane.f32.xlu0 %v280
    %v282 = vpop.xlane.xlu0 %281
    %v283 = vsel %vm138, %v122, 0.0
    %284 = vadd.xlane.f32.xlu0 %v283
    %v285 = vpop.xlane.xlu0 %284
    %v286 = vsel %vm138, %v123, 0.0
    %287 = vadd.xlane.f32.xlu0 %v286
    %v288 = vpop.xlane.xlu0 %287
    %v289 = vsel %vm138, %v124, 0.0
    %290 = vadd.xlane.f32.xlu0 %v289
    %v291 = vpop.xlane.xlu0 %290
    %v292 = vsel %vm138, %v125, 0.0
    %293 = vadd.xlane.f32.xlu0 %v292
    %v294 = vpop.xlane.xlu0 %293
    %v295 = vsel %vm138, %v126, 0.0
    %296 = vadd.xlane.f32.xlu0 %v295
    %v297 = vpop.xlane.xlu0 %296
    %v298 = vsel %vm138, %v127, 0.0
    %299 = vadd.xlane.f32.xlu0 %v298
    %v300 = vpop.xlane.xlu0 %299
    %v301 = vsel %vm138, %v128, 0.0
    %302 = vadd.xlane.f32.xlu0 %v301
    %v303 = vpop.xlane.xlu0 %302
    %v304 = vsel %vm138, %v129, 0.0
    %305 = vadd.xlane.f32.xlu0 %v304
    %v306 = vpop.xlane.xlu0 %305
    %v307 = vsel %vm138, %v130, 0.0
    %308 = vadd.xlane.f32.xlu0 %v307
    %v309 = vpop.xlane.xlu0 %308
    %v310 = vsel %vm138, %v131, 0.0
    %311 = vadd.xlane.f32.xlu0 %v310
    %v312 = vpop.xlane.xlu0 %311
    %v313 = vsel %vm138, %v132, 0.0
    %314 = vadd.xlane.f32.xlu0 %v313
    %v315 = vpop.xlane.xlu0 %314
    %v316 = vsel %vm138, %v133, 0.0
    %317 = vadd.xlane.f32.xlu0 %v316
    %v318 = vpop.xlane.xlu0 %317
    %v319 = vsel %vm138, %v134, 0.0
    %320 = vadd.xlane.f32.xlu0 %v319
    %v321 = vpop.xlane.xlu0 %320
    %v322 = vsel %vm138, %v135, 0.0
    %323 = vadd.xlane.f32.xlu0 %v322
    %v324 = vpop.xlane.xlu0 %323
    %v325 = vsel %vm138, %v136, 0.0
    %326 = vadd.xlane.f32.xlu0 %v325
    %v327 = vpop.xlane.xlu0 %326
    %v328 = vsel %vm138, %v137, 0.0
    %329 = vadd.xlane.f32.xlu0 %v328
    %v330 = vpop.xlane.xlu0 %329
    %v331 = vrcp.pop 64.0
    %v332 = vmul.f32 %v141, %v331
    %v333 = vmul.f32 %v144, %v331
    %v334 = vmul.f32 %v147, %v331
    %v335 = vmul.f32 %v150, %v331
    %v336 = vmul.f32 %v153, %v331
    %v337 = vmul.f32 %v156, %v331
    %v338 = vmul.f32 %v159, %v331
    %v339 = vmul.f32 %v162, %v331
    %v340 = vmul.f32 %v165, %v331
    %v341 = vmul.f32 %v168, %v331
    %v342 = vmul.f32 %v171, %v331
    %v343 = vmul.f32 %v174, %v331
    %v344 = vmul.f32 %v177, %v331
    %v345 = vmul.f32 %v180, %v331
    %v346 = vmul.f32 %v183, %v331
    %v347 = vmul.f32 %v186, %v331
    %v348 = vmul.f32 %v189, %v331
    %v349 = vmul.f32 %v192, %v331
    %v350 = vmul.f32 %v195, %v331
    %v351 = vmul.f32 %v198, %v331
    %v352 = vmul.f32 %v201, %v331
    %v353 = vmul.f32 %v204, %v331
    %v354 = vmul.f32 %v207, %v331
    %v355 = vmul.f32 %v210, %v331
    %v356 = vmul.f32 %v213, %v331
    %v357 = vmul.f32 %v216, %v331
    %v358 = vmul.f32 %v219, %v331
    %v359 = vmul.f32 %v222, %v331
    %v360 = vmul.f32 %v225, %v331
    %v361 = vmul.f32 %v228, %v331
    %v362 = vmul.f32 %v231, %v331
    %v363 = vmul.f32 %v234, %v331
    %v364 = vmul.f32 %v237, %v331
    %v365 = vmul.f32 %v240, %v331
    %v366 = vmul.f32 %v243, %v331
    %v367 = vmul.f32 %v246, %v331
    %v368 = vmul.f32 %v249, %v331
    %v369 = vmul.f32 %v252, %v331
    %v370 = vmul.f32 %v255, %v331
    %v371 = vmul.f32 %v258, %v331
    %v372 = vmul.f32 %v261, %v331
    %v373 = vmul.f32 %v264, %v331
    %v374 = vmul.f32 %v267, %v331
    %v375 = vmul.f32 %v270, %v331
    %v376 = vmul.f32 %v273, %v331
    %v377 = vmul.f32 %v276, %v331
    %v378 = vmul.f32 %v279, %v331
    %v379 = vmul.f32 %v282, %v331
    %v380 = vmul.f32 %v285, %v331
    %v381 = vmul.f32 %v288, %v331
    %v382 = vmul.f32 %v291, %v331
    %v383 = vmul.f32 %v294, %v331
    %v384 = vmul.f32 %v297, %v331
    %v385 = vmul.f32 %v300, %v331
    %v386 = vmul.f32 %v303, %v331
    %v387 = vmul.f32 %v306, %v331
    %v388 = vmul.f32 %v309, %v331
    %v389 = vmul.f32 %v312, %v331
    %v390 = vmul.f32 %v315, %v331
    %v391 = vmul.f32 %v318, %v331
    %v392 = vmul.f32 %v321, %v331
    %v393 = vmul.f32 %v324, %v331
    %v394 = vmul.f32 %v327, %v331
    %v395 = vmul.f32 %v330, %v331
    %v396 = vsub.f32 %v74, %v332
    %v397 = vsub.f32 %v75, %v333
    %v398 = vsub.f32 %v76, %v334
    %v399 = vsub.f32 %v77, %v335
    %v400 = vsub.f32 %v78, %v336
    %v401 = vsub.f32 %v79, %v337
    %v402 = vsub.f32 %v80, %v338
    %v403 = vsub.f32 %v81, %v339
    %v404 = vsub.f32 %v82, %v340
    %v405 = vsub.f32 %v83, %v341
    %v406 = vsub.f32 %v84, %v342
    %v407 = vsub.f32 %v85, %v343
    %v408 = vsub.f32 %v86, %v344
    %v409 = vsub.f32 %v87, %v345
    %v410 = vsub.f32 %v88, %v346
    %v411 = vsub.f32 %v89, %v347
    %v412 = vsub.f32 %v90, %v348
    %v413 = vsub.f32 %v91, %v349
    %v414 = vsub.f32 %v92, %v350
    %v415 = vsub.f32 %v93, %v351
    %v416 = vsub.f32 %v94, %v352
    %v417 = vsub.f32 %v95, %v353
    %v418 = vsub.f32 %v96, %v354
    %v419 = vsub.f32 %v97, %v355
    %v420 = vsub.f32 %v98, %v356
    %v421 = vsub.f32 %v99, %v357
    %v422 = vsub.f32 %v100, %v358
    %v423 = vsub.f32 %v101, %v359
    %v424 = vsub.f32 %v102, %v360
    %v425 = vsub.f32 %v103, %v361
    %v426 = vsub.f32 %v104, %v362
    %v427 = vsub.f32 %v105, %v363
    %v428 = vsub.f32 %v106, %v364
    %v429 = vsub.f32 %v107, %v365
    %v430 = vsub.f32 %v108, %v366
    %v431 = vsub.f32 %v109, %v367
    %v432 = vsub.f32 %v110, %v368
    %v433 = vsub.f32 %v111, %v369
    %v434 = vsub.f32 %v112, %v370
    %v435 = vsub.f32 %v113, %v371
    %v436 = vsub.f32 %v114, %v372
    %v437 = vsub.f32 %v115, %v373
    %v438 = vsub.f32 %v116, %v374
    %v439 = vsub.f32 %v117, %v375
    %v440 = vsub.f32 %v118, %v376
    %v441 = vsub.f32 %v119, %v377
    %v442 = vsub.f32 %v120, %v378
    %v443 = vsub.f32 %v121, %v379
    %v444 = vsub.f32 %v122, %v380
    %v445 = vsub.f32 %v123, %v381
    %v446 = vsub.f32 %v124, %v382
    %v447 = vsub.f32 %v125, %v383
    %v448 = vsub.f32 %v126, %v384
    %v449 = vsub.f32 %v127, %v385
    %v450 = vsub.f32 %v128, %v386
    %v451 = vsub.f32 %v129, %v387
    %v452 = vsub.f32 %v130, %v388
    %v453 = vsub.f32 %v131, %v389
    %v454 = vsub.f32 %v132, %v390
    %v455 = vsub.f32 %v133, %v391
    %v456 = vsub.f32 %v134, %v392
    %v457 = vsub.f32 %v135, %v393
    %v458 = vsub.f32 %v136, %v394
    %v459 = vsub.f32 %v137, %v395
    %v460 = vmul.f32 %v396, %v396
    %v461 = vmul.f32 %v397, %v397
    %v462 = vmul.f32 %v398, %v398
    %v463 = vmul.f32 %v399, %v399
    %v464 = vmul.f32 %v400, %v400
    %v465 = vmul.f32 %v401, %v401
    %v466 = vmul.f32 %v402, %v402
    %v467 = vmul.f32 %v403, %v403
    %v468 = vmul.f32 %v404, %v404
    %v469 = vmul.f32 %v405, %v405
    %v470 = vmul.f32 %v406, %v406
    %v471 = vmul.f32 %v407, %v407
    %v472 = vmul.f32 %v408, %v408
    %v473 = vmul.f32 %v409, %v409
    %v474 = vmul.f32 %v410, %v410
    %v475 = vmul.f32 %v411, %v411
    %v476 = vmul.f32 %v412, %v412
    %v477 = vmul.f32 %v413, %v413
    %v478 = vmul.f32 %v414, %v414
    %v479 = vmul.f32 %v415, %v415
    %v480 = vmul.f32 %v416, %v416
    %v481 = vmul.f32 %v417, %v417
    %v482 = vmul.f32 %v418, %v418
    %v483 = vmul.f32 %v419, %v419
    %v484 = vmul.f32 %v420, %v420
    %v485 = vmul.f32 %v421, %v421
    %v486 = vmul.f32 %v422, %v422
    %v487 = vmul.f32 %v423, %v423
    %v488 = vmul.f32 %v424, %v424
    %v489 = vmul.f32 %v425, %v425
    %v490 = vmul.f32 %v426, %v426
    %v491 = vmul.f32 %v427, %v427
    %v492 = vmul.f32 %v428, %v428
    %v493 = vmul.f32 %v429, %v429
    %v494 = vmul.f32 %v430, %v430
    %v495 = vmul.f32 %v431, %v431
    %v496 = vmul.f32 %v432, %v432
    %v497 = vmul.f32 %v433, %v433
    %v498 = vmul.f32 %v434, %v434
    %v499 = vmul.f32 %v435, %v435
    %v500 = vmul.f32 %v436, %v436
    %v501 = vmul.f32 %v437, %v437
    %v502 = vmul.f32 %v438, %v438
    %v503 = vmul.f32 %v439, %v439
    %v504 = vmul.f32 %v440, %v440
    %v505 = vmul.f32 %v441, %v441
    %v506 = vmul.f32 %v442, %v442
    %v507 = vmul.f32 %v443, %v443
    %v508 = vmul.f32 %v444, %v444
    %v509 = vmul.f32 %v445, %v445
    %v510 = vmul.f32 %v446, %v446
    %v511 = vmul.f32 %v447, %v447
    %v512 = vmul.f32 %v448, %v448
    %v513 = vmul.f32 %v449, %v449
    %v514 = vmul.f32 %v450, %v450
    %v515 = vmul.f32 %v451, %v451
    %v516 = vmul.f32 %v452, %v452
    %v517 = vmul.f32 %v453, %v453
    %v518 = vmul.f32 %v454, %v454
    %v519 = vmul.f32 %v455, %v455
    %v520 = vmul.f32 %v456, %v456
    %v521 = vmul.f32 %v457, %v457
    %v522 = vmul.f32 %v458, %v458
    %v523 = vmul.f32 %v459, %v459
    %v524 = vsel %vm138, %v460, 0.0
    %525 = vadd.xlane.f32.xlu0 %v524
    %v526 = vpop.xlane.xlu0 %525
    %v527 = vsel %vm138, %v461, 0.0
    %528 = vadd.xlane.f32.xlu0 %v527
    %v529 = vpop.xlane.xlu0 %528
    %v530 = vsel %vm138, %v462, 0.0
    %531 = vadd.xlane.f32.xlu0 %v530
    %v532 = vpop.xlane.xlu0 %531
    %v533 = vsel %vm138, %v463, 0.0
    %534 = vadd.xlane.f32.xlu0 %v533
    %v535 = vpop.xlane.xlu0 %534
    %v536 = vsel %vm138, %v464, 0.0
    %537 = vadd.xlane.f32.xlu0 %v536
    %v538 = vpop.xlane.xlu0 %537
    %v539 = vsel %vm138, %v465, 0.0
    %540 = vadd.xlane.f32.xlu0 %v539
    %v541 = vpop.xlane.xlu0 %540
    %v542 = vsel %vm138, %v466, 0.0
    %543 = vadd.xlane.f32.xlu0 %v542
    %v544 = vpop.xlane.xlu0 %543
    %v545 = vsel %vm138, %v467, 0.0
    %546 = vadd.xlane.f32.xlu0 %v545
    %v547 = vpop.xlane.xlu0 %546
    %v548 = vsel %vm138, %v468, 0.0
    %549 = vadd.xlane.f32.xlu0 %v548
    %v550 = vpop.xlane.xlu0 %549
    %v551 = vsel %vm138, %v469, 0.0
    %552 = vadd.xlane.f32.xlu0 %v551
    %v553 = vpop.xlane.xlu0 %552
    %v554 = vsel %vm138, %v470, 0.0
    %555 = vadd.xlane.f32.xlu0 %v554
    %v556 = vpop.xlane.xlu0 %555
    %v557 = vsel %vm138, %v471, 0.0
    %558 = vadd.xlane.f32.xlu0 %v557
    %v559 = vpop.xlane.xlu0 %558
    %v560 = vsel %vm138, %v472, 0.0
    %561 = vadd.xlane.f32.xlu0 %v560
    %v562 = vpop.xlane.xlu0 %561
    %v563 = vsel %vm138, %v473, 0.0
    %564 = vadd.xlane.f32.xlu0 %v563
    %v565 = vpop.xlane.xlu0 %564
    %v566 = vsel %vm138, %v474, 0.0
    %567 = vadd.xlane.f32.xlu0 %v566
    %v568 = vpop.xlane.xlu0 %567
    %v569 = vsel %vm138, %v475, 0.0
    %570 = vadd.xlane.f32.xlu0 %v569
    %v571 = vpop.xlane.xlu0 %570
    %v572 = vsel %vm138, %v476, 0.0
    %573 = vadd.xlane.f32.xlu0 %v572
    %v574 = vpop.xlane.xlu0 %573
    %v575 = vsel %vm138, %v477, 0.0
    %576 = vadd.xlane.f32.xlu0 %v575
    %v577 = vpop.xlane.xlu0 %576
    %v578 = vsel %vm138, %v478, 0.0
    %579 = vadd.xlane.f32.xlu0 %v578
    %v580 = vpop.xlane.xlu0 %579
    %v581 = vsel %vm138, %v479, 0.0
    %582 = vadd.xlane.f32.xlu0 %v581
    %v583 = vpop.xlane.xlu0 %582
    %v584 = vsel %vm138, %v480, 0.0
    %585 = vadd.xlane.f32.xlu0 %v584
    %v586 = vpop.xlane.xlu0 %585
    %v587 = vsel %vm138, %v481, 0.0
    %588 = vadd.xlane.f32.xlu0 %v587
    %v589 = vpop.xlane.xlu0 %588
    %v590 = vsel %vm138, %v482, 0.0
    %591 = vadd.xlane.f32.xlu0 %v590
    %v592 = vpop.xlane.xlu0 %591
    %v593 = vsel %vm138, %v483, 0.0
    %594 = vadd.xlane.f32.xlu0 %v593
    %v595 = vpop.xlane.xlu0 %594
    %v596 = vsel %vm138, %v484, 0.0
    %597 = vadd.xlane.f32.xlu0 %v596
    %v598 = vpop.xlane.xlu0 %597
    %v599 = vsel %vm138, %v485, 0.0
    %600 = vadd.xlane.f32.xlu0 %v599
    %v601 = vpop.xlane.xlu0 %600
    %v602 = vsel %vm138, %v486, 0.0
    %603 = vadd.xlane.f32.xlu0 %v602
    %v604 = vpop.xlane.xlu0 %603
    %v605 = vsel %vm138, %v487, 0.0
    %606 = vadd.xlane.f32.xlu0 %v605
    %v607 = vpop.xlane.xlu0 %606
    %v608 = vsel %vm138, %v488, 0.0
    %609 = vadd.xlane.f32.xlu0 %v608
    %v610 = vpop.xlane.xlu0 %609
    %v611 = vsel %vm138, %v489, 0.0
    %612 = vadd.xlane.f32.xlu0 %v611
    %v613 = vpop.xlane.xlu0 %612
    %v614 = vsel %vm138, %v490, 0.0
    %615 = vadd.xlane.f32.xlu0 %v614
    %v616 = vpop.xlane.xlu0 %615
    %v617 = vsel %vm138, %v491, 0.0
    %618 = vadd.xlane.f32.xlu0 %v617
    %v619 = vpop.xlane.xlu0 %618
    %v620 = vsel %vm138, %v492, 0.0
    %621 = vadd.xlane.f32.xlu0 %v620
    %v622 = vpop.xlane.xlu0 %621
    %v623 = vsel %vm138, %v493, 0.0
    %624 = vadd.xlane.f32.xlu0 %v623
    %v625 = vpop.xlane.xlu0 %624
    %v626 = vsel %vm138, %v494, 0.0
    %627 = vadd.xlane.f32.xlu0 %v626
    %v628 = vpop.xlane.xlu0 %627
    %v629 = vsel %vm138, %v495, 0.0
    %630 = vadd.xlane.f32.xlu0 %v629
    %v631 = vpop.xlane.xlu0 %630
    %v632 = vsel %vm138, %v496, 0.0
    %633 = vadd.xlane.f32.xlu0 %v632
    %v634 = vpop.xlane.xlu0 %633
    %v635 = vsel %vm138, %v497, 0.0
    %636 = vadd.xlane.f32.xlu0 %v635
    %v637 = vpop.xlane.xlu0 %636
    %v638 = vsel %vm138, %v498, 0.0
    %639 = vadd.xlane.f32.xlu0 %v638
    %v640 = vpop.xlane.xlu0 %639
    %v641 = vsel %vm138, %v499, 0.0
    %642 = vadd.xlane.f32.xlu0 %v641
    %v643 = vpop.xlane.xlu0 %642
    %v644 = vsel %vm138, %v500, 0.0
    %645 = vadd.xlane.f32.xlu0 %v644
    %v646 = vpop.xlane.xlu0 %645
    %v647 = vsel %vm138, %v501, 0.0
    %648 = vadd.xlane.f32.xlu0 %v647
    %v649 = vpop.xlane.xlu0 %648
    %v650 = vsel %vm138, %v502, 0.0
    %651 = vadd.xlane.f32.xlu0 %v650
    %v652 = vpop.xlane.xlu0 %651
    %v653 = vsel %vm138, %v503, 0.0
    %654 = vadd.xlane.f32.xlu0 %v653
    %v655 = vpop.xlane.xlu0 %654
    %v656 = vsel %vm138, %v504, 0.0
    %657 = vadd.xlane.f32.xlu0 %v656
    %v658 = vpop.xlane.xlu0 %657
    %v659 = vsel %vm138, %v505, 0.0
    %660 = vadd.xlane.f32.xlu0 %v659
    %v661 = vpop.xlane.xlu0 %660
    %v662 = vsel %vm138, %v506, 0.0
    %663 = vadd.xlane.f32.xlu0 %v662
    %v664 = vpop.xlane.xlu0 %663
    %v665 = vsel %vm138, %v507, 0.0
    %666 = vadd.xlane.f32.xlu0 %v665
    %v667 = vpop.xlane.xlu0 %666
    %v668 = vsel %vm138, %v508, 0.0
    %669 = vadd.xlane.f32.xlu0 %v668
    %v670 = vpop.xlane.xlu0 %669
    %v671 = vsel %vm138, %v509, 0.0
    %672 = vadd.xlane.f32.xlu0 %v671
    %v673 = vpop.xlane.xlu0 %672
    %v674 = vsel %vm138, %v510, 0.0
    %675 = vadd.xlane.f32.xlu0 %v674
    %v676 = vpop.xlane.xlu0 %675
    %v677 = vsel %vm138, %v511, 0.0
    %678 = vadd.xlane.f32.xlu0 %v677
    %v679 = vpop.xlane.xlu0 %678
    %v680 = vsel %vm138, %v512, 0.0
    %681 = vadd.xlane.f32.xlu0 %v680
    %v682 = vpop.xlane.xlu0 %681
    %v683 = vsel %vm138, %v513, 0.0
    %684 = vadd.xlane.f32.xlu0 %v683
    %v685 = vpop.xlane.xlu0 %684
    %v686 = vsel %vm138, %v514, 0.0
    %687 = vadd.xlane.f32.xlu0 %v686
    %v688 = vpop.xlane.xlu0 %687
    %v689 = vsel %vm138, %v515, 0.0
    %690 = vadd.xlane.f32.xlu0 %v689
    %v691 = vpop.xlane.xlu0 %690
    %v692 = vsel %vm138, %v516, 0.0
    %693 = vadd.xlane.f32.xlu0 %v692
    %v694 = vpop.xlane.xlu0 %693
    %v695 = vsel %vm138, %v517, 0.0
    %696 = vadd.xlane.f32.xlu0 %v695
    %v697 = vpop.xlane.xlu0 %696
    %v698 = vsel %vm138, %v518, 0.0
    %699 = vadd.xlane.f32.xlu0 %v698
    %v700 = vpop.xlane.xlu0 %699
    %v701 = vsel %vm138, %v519, 0.0
    %702 = vadd.xlane.f32.xlu0 %v701
    %v703 = vpop.xlane.xlu0 %702
    %v704 = vsel %vm138, %v520, 0.0
    %705 = vadd.xlane.f32.xlu0 %v704
    %v706 = vpop.xlane.xlu0 %705
    %v707 = vsel %vm138, %v521, 0.0
    %708 = vadd.xlane.f32.xlu0 %v707
    %v709 = vpop.xlane.xlu0 %708
    %v710 = vsel %vm138, %v522, 0.0
    %711 = vadd.xlane.f32.xlu0 %v710
    %v712 = vpop.xlane.xlu0 %711
    %v713 = vsel %vm138, %v523, 0.0
    %714 = vadd.xlane.f32.xlu0 %v713
    %v715 = vpop.xlane.xlu0 %714
    %v716 = vmul.f32 %v526, %v331
    %v717 = vmul.f32 %v529, %v331
    %v718 = vmul.f32 %v532, %v331
    %v719 = vmul.f32 %v535, %v331
    %v720 = vmul.f32 %v538, %v331
    %v721 = vmul.f32 %v541, %v331
    %v722 = vmul.f32 %v544, %v331
    %v723 = vmul.f32 %v547, %v331
    %v724 = vmul.f32 %v550, %v331
    %v725 = vmul.f32 %v553, %v331
    %v726 = vmul.f32 %v556, %v331
    %v727 = vmul.f32 %v559, %v331
    %v728 = vmul.f32 %v562, %v331
    %v729 = vmul.f32 %v565, %v331
    %v730 = vmul.f32 %v568, %v331
    %v731 = vmul.f32 %v571, %v331
    %v732 = vmul.f32 %v574, %v331
    %v733 = vmul.f32 %v577, %v331
    %v734 = vmul.f32 %v580, %v331
    %v735 = vmul.f32 %v583, %v331
    %v736 = vmul.f32 %v586, %v331
    %v737 = vmul.f32 %v589, %v331
    %v738 = vmul.f32 %v592, %v331
    %v739 = vmul.f32 %v595, %v331
    %v740 = vmul.f32 %v598, %v331
    %v741 = vmul.f32 %v601, %v331
    %v742 = vmul.f32 %v604, %v331
    %v743 = vmul.f32 %v607, %v331
    %v744 = vmul.f32 %v610, %v331
    %v745 = vmul.f32 %v613, %v331
    %v746 = vmul.f32 %v616, %v331
    %v747 = vmul.f32 %v619, %v331
    %v748 = vmul.f32 %v622, %v331
    %v749 = vmul.f32 %v625, %v331
    %v750 = vmul.f32 %v628, %v331
    %v751 = vmul.f32 %v631, %v331
    %v752 = vmul.f32 %v634, %v331
    %v753 = vmul.f32 %v637, %v331
    %v754 = vmul.f32 %v640, %v331
    %v755 = vmul.f32 %v643, %v331
    %v756 = vmul.f32 %v646, %v331
    %v757 = vmul.f32 %v649, %v331
    %v758 = vmul.f32 %v652, %v331
    %v759 = vmul.f32 %v655, %v331
    %v760 = vmul.f32 %v658, %v331
    %v761 = vmul.f32 %v661, %v331
    %v762 = vmul.f32 %v664, %v331
    %v763 = vmul.f32 %v667, %v331
    %v764 = vmul.f32 %v670, %v331
    %v765 = vmul.f32 %v673, %v331
    %v766 = vmul.f32 %v676, %v331
    %v767 = vmul.f32 %v679, %v331
    %v768 = vmul.f32 %v682, %v331
    %v769 = vmul.f32 %v685, %v331
    %v770 = vmul.f32 %v688, %v331
    %v771 = vmul.f32 %v691, %v331
    %v772 = vmul.f32 %v694, %v331
    %v773 = vmul.f32 %v697, %v331
    %v774 = vmul.f32 %v700, %v331
    %v775 = vmul.f32 %v703, %v331
    %v776 = vmul.f32 %v706, %v331
    %v777 = vmul.f32 %v709, %v331
    %v778 = vmul.f32 %v712, %v331
    %v779 = vmul.f32 %v715, %v331
    %v780 = vadd.f32 %v716, 1e-05
    %v781 = vadd.f32 %v717, 1e-05
    %v782 = vadd.f32 %v718, 1e-05
    %v783 = vadd.f32 %v719, 1e-05
    %v784 = vadd.f32 %v720, 1e-05
    %v785 = vadd.f32 %v721, 1e-05
    %v786 = vadd.f32 %v722, 1e-05
    %v787 = vadd.f32 %v723, 1e-05
    %v788 = vadd.f32 %v724, 1e-05
    %v789 = vadd.f32 %v725, 1e-05
    %v790 = vadd.f32 %v726, 1e-05
    %v791 = vadd.f32 %v727, 1e-05
    %v792 = vadd.f32 %v728, 1e-05
    %v793 = vadd.f32 %v729, 1e-05
    %v794 = vadd.f32 %v730, 1e-05
    %v795 = vadd.f32 %v731, 1e-05
    %v796 = vadd.f32 %v732, 1e-05
    %v797 = vadd.f32 %v733, 1e-05
    %v798 = vadd.f32 %v734, 1e-05
    %v799 = vadd.f32 %v735, 1e-05
    %v800 = vadd.f32 %v736, 1e-05
    %v801 = vadd.f32 %v737, 1e-05
    %v802 = vadd.f32 %v738, 1e-05
    %v803 = vadd.f32 %v739, 1e-05
    %v804 = vadd.f32 %v740, 1e-05
    %v805 = vadd.f32 %v741, 1e-05
    %v806 = vadd.f32 %v742, 1e-05
    %v807 = vadd.f32 %v743, 1e-05
    %v808 = vadd.f32 %v744, 1e-05
    %v809 = vadd.f32 %v745, 1e-05
    %v810 = vadd.f32 %v746, 1e-05
    %v811 = vadd.f32 %v747, 1e-05
    %v812 = vadd.f32 %v748, 1e-05
    %v813 = vadd.f32 %v749, 1e-05
    %v814 = vadd.f32 %v750, 1e-05
    %v815 = vadd.f32 %v751, 1e-05
    %v816 = vadd.f32 %v752, 1e-05
    %v817 = vadd.f32 %v753, 1e-05
    %v818 = vadd.f32 %v754, 1e-05
    %v819 = vadd.f32 %v755, 1e-05
    %v820 = vadd.f32 %v756, 1e-05
    %v821 = vadd.f32 %v757, 1e-05
    %v822 = vadd.f32 %v758, 1e-05
    %v823 = vadd.f32 %v759, 1e-05
    %v824 = vadd.f32 %v760, 1e-05
    %v825 = vadd.f32 %v761, 1e-05
    %v826 = vadd.f32 %v762, 1e-05
    %v827 = vadd.f32 %v763, 1e-05
    %v828 = vadd.f32 %v764, 1e-05
    %v829 = vadd.f32 %v765, 1e-05
    %v830 = vadd.f32 %v766, 1e-05
    %v831 = vadd.f32 %v767, 1e-05
    %v832 = vadd.f32 %v768, 1e-05
    %v833 = vadd.f32 %v769, 1e-05
    %v834 = vadd.f32 %v770, 1e-05
    %v835 = vadd.f32 %v771, 1e-05
    %v836 = vadd.f32 %v772, 1e-05
    %v837 = vadd.f32 %v773, 1e-05
    %v838 = vadd.f32 %v774, 1e-05
    %v839 = vadd.f32 %v775, 1e-05
    %v840 = vadd.f32 %v776, 1e-05
    %v841 = vadd.f32 %v777, 1e-05
    %v842 = vadd.f32 %v778, 1e-05
    %v843 = vadd.f32 %v779, 1e-05
    %v844 = vrsqrt.pop %v780
    %v845 = vrsqrt.pop %v781
    %v846 = vrsqrt.pop %v782
    %v847 = vrsqrt.pop %v783
    %v848 = vrsqrt.pop %v784
    %v849 = vrsqrt.pop %v785
    %v850 = vrsqrt.pop %v786
    %v851 = vrsqrt.pop %v787
    %v852 = vrsqrt.pop %v788
    %v853 = vrsqrt.pop %v789
    %v854 = vrsqrt.pop %v790
    %v855 = vrsqrt.pop %v791
    %v856 = vrsqrt.pop %v792
    %v857 = vrsqrt.pop %v793
    %v858 = vrsqrt.pop %v794
    %v859 = vrsqrt.pop %v795
    %v860 = vrsqrt.pop %v796
    %v861 = vrsqrt.pop %v797
    %v862 = vrsqrt.pop %v798
    %v863 = vrsqrt.pop %v799
    %v864 = vrsqrt.pop %v800
    %v865 = vrsqrt.pop %v801
    %v866 = vrsqrt.pop %v802
    %v867 = vrsqrt.pop %v803
    %v868 = vrsqrt.pop %v804
    %v869 = vrsqrt.pop %v805
    %v870 = vrsqrt.pop %v806
    %v871 = vrsqrt.pop %v807
    %v872 = vrsqrt.pop %v808
    %v873 = vrsqrt.pop %v809
    %v874 = vrsqrt.pop %v810
    %v875 = vrsqrt.pop %v811
    %v876 = vrsqrt.pop %v812
    %v877 = vrsqrt.pop %v813
    %v878 = vrsqrt.pop %v814
    %v879 = vrsqrt.pop %v815
    %v880 = vrsqrt.pop %v816
    %v881 = vrsqrt.pop %v817
    %v882 = vrsqrt.pop %v818
    %v883 = vrsqrt.pop %v819
    %v884 = vrsqrt.pop %v820
    %v885 = vrsqrt.pop %v821
    %v886 = vrsqrt.pop %v822
    %v887 = vrsqrt.pop %v823
    %v888 = vrsqrt.pop %v824
    %v889 = vrsqrt.pop %v825
    %v890 = vrsqrt.pop %v826
    %v891 = vrsqrt.pop %v827
    %v892 = vrsqrt.pop %v828
    %v893 = vrsqrt.pop %v829
    %v894 = vrsqrt.pop %v830
    %v895 = vrsqrt.pop %v831
    %v896 = vrsqrt.pop %v832
    %v897 = vrsqrt.pop %v833
    %v898 = vrsqrt.pop %v834
    %v899 = vrsqrt.pop %v835
    %v900 = vrsqrt.pop %v836
    %v901 = vrsqrt.pop %v837
    %v902 = vrsqrt.pop %v838
    %v903 = vrsqrt.pop %v839
    %v904 = vrsqrt.pop %v840
    %v905 = vrsqrt.pop %v841
    %v906 = vrsqrt.pop %v842
    %v907 = vrsqrt.pop %v843
    %v908 = vmul.f32 %v396, %v844
    %v909 = vmul.f32 %v397, %v845
    %v910 = vmul.f32 %v398, %v846
    %v911 = vmul.f32 %v399, %v847
    %v912 = vmul.f32 %v400, %v848
    %v913 = vmul.f32 %v401, %v849
    %v914 = vmul.f32 %v402, %v850
    %v915 = vmul.f32 %v403, %v851
    %v916 = vmul.f32 %v404, %v852
    %v917 = vmul.f32 %v405, %v853
    %v918 = vmul.f32 %v406, %v854
    %v919 = vmul.f32 %v407, %v855
    %v920 = vmul.f32 %v408, %v856
    %v921 = vmul.f32 %v409, %v857
    %v922 = vmul.f32 %v410, %v858
    %v923 = vmul.f32 %v411, %v859
    %v924 = vmul.f32 %v412, %v860
    %v925 = vmul.f32 %v413, %v861
    %v926 = vmul.f32 %v414, %v862
    %v927 = vmul.f32 %v415, %v863
    %v928 = vmul.f32 %v416, %v864
    %v929 = vmul.f32 %v417, %v865
    %v930 = vmul.f32 %v418, %v866
    %v931 = vmul.f32 %v419, %v867
    %v932 = vmul.f32 %v420, %v868
    %v933 = vmul.f32 %v421, %v869
    %v934 = vmul.f32 %v422, %v870
    %v935 = vmul.f32 %v423, %v871
    %v936 = vmul.f32 %v424, %v872
    %v937 = vmul.f32 %v425, %v873
    %v938 = vmul.f32 %v426, %v874
    %v939 = vmul.f32 %v427, %v875
    %v940 = vmul.f32 %v428, %v876
    %v941 = vmul.f32 %v429, %v877
    %v942 = vmul.f32 %v430, %v878
    %v943 = vmul.f32 %v431, %v879
    %v944 = vmul.f32 %v432, %v880
    %v945 = vmul.f32 %v433, %v881
    %v946 = vmul.f32 %v434, %v882
    %v947 = vmul.f32 %v435, %v883
    %v948 = vmul.f32 %v436, %v884
    %v949 = vmul.f32 %v437, %v885
    %v950 = vmul.f32 %v438, %v886
    %v951 = vmul.f32 %v439, %v887
    %v952 = vmul.f32 %v440, %v888
    %v953 = vmul.f32 %v441, %v889
    %v954 = vmul.f32 %v442, %v890
    %v955 = vmul.f32 %v443, %v891
    %v956 = vmul.f32 %v444, %v892
    %v957 = vmul.f32 %v445, %v893
    %v958 = vmul.f32 %v446, %v894
    %v959 = vmul.f32 %v447, %v895
    %v960 = vmul.f32 %v448, %v896
    %v961 = vmul.f32 %v449, %v897
    %v962 = vmul.f32 %v450, %v898
    %v963 = vmul.f32 %v451, %v899
    %v964 = vmul.f32 %v452, %v900
    %v965 = vmul.f32 %v453, %v901
    %v966 = vmul.f32 %v454, %v902
    %v967 = vmul.f32 %v455, %v903
    %v968 = vmul.f32 %v456, %v904
    %v969 = vmul.f32 %v457, %v905
    %v970 = vmul.f32 %v458, %v906
    %v971 = vmul.f32 %v459, %v907
    %v972 = vld [vmem:[#allocation4] sm:$0x1]
    %v974 = vlaneseq
    %v975 = vshrl.u32 %v974, 7
    %v976 = vsub.s32 0, %v975
    %v977 = vrot.slane %v972, %v976
    %v979 = vmul.f32 %v908, %v977
    %v980 = vmul.f32 %v909, %v977
    %v981 = vmul.f32 %v910, %v977
    %v982 = vmul.f32 %v911, %v977
    %v983 = vmul.f32 %v912, %v977
    %v984 = vmul.f32 %v913, %v977
    %v985 = vmul.f32 %v914, %v977
    %v986 = vmul.f32 %v915, %v977
    %v987 = vmul.f32 %v916, %v977
    %v988 = vmul.f32 %v917, %v977
    %v989 = vmul.f32 %v918, %v977
    %v990 = vmul.f32 %v919, %v977
    %v991 = vmul.f32 %v920, %v977
    %v992 = vmul.f32 %v921, %v977
    %v993 = vmul.f32 %v922, %v977
    %v994 = vmul.f32 %v923, %v977
    %v995 = vmul.f32 %v924, %v977
    %v996 = vmul.f32 %v925, %v977
    %v997 = vmul.f32 %v926, %v977
    %v998 = vmul.f32 %v927, %v977
    %v999 = vmul.f32 %v928, %v977
    %v1000 = vmul.f32 %v929, %v977
    %v1001 = vmul.f32 %v930, %v977
    %v1002 = vmul.f32 %v931, %v977
    %v1003 = vmul.f32 %v932, %v977
    %v1004 = vmul.f32 %v933, %v977
    %v1005 = vmul.f32 %v934, %v977
    %v1006 = vmul.f32 %v935, %v977
    %v1007 = vmul.f32 %v936, %v977
    %v1008 = vmul.f32 %v937, %v977
    %v1009 = vmul.f32 %v938, %v977
    %v1010 = vmul.f32 %v939, %v977
    %v1011 = vmul.f32 %v940, %v977
    %v1012 = vmul.f32 %v941, %v977
    %v1013 = vmul.f32 %v942, %v977
    %v1014 = vmul.f32 %v943, %v977
    %v1015 = vmul.f32 %v944, %v977
    %v1016 = vmul.f32 %v945, %v977
    %v1017 = vmul.f32 %v946, %v977
    %v1018 = vmul.f32 %v947, %v977
    %v1019 = vmul.f32 %v948, %v977
    %v1020 = vmul.f32 %v949, %v977
    %v1021 = vmul.f32 %v950, %v977
    %v1022 = vmul.f32 %v951, %v977
    %v1023 = vmul.f32 %v952, %v977
    %v1024 = vmul.f32 %v953, %v977
    %v1025 = vmul.f32 %v954, %v977
    %v1026 = vmul.f32 %v955, %v977
    %v1027 = vmul.f32 %v956, %v977
    %v1028 = vmul.f32 %v957, %v977
    %v1029 = vmul.f32 %v958, %v977
    %v1030 = vmul.f32 %v959, %v977
    %v1031 = vmul.f32 %v960, %v977
    %v1032 = vmul.f32 %v961, %v977
    %v1033 = vmul.f32 %v962, %v977
    %v1034 = vmul.f32 %v963, %v977
    %v1035 = vmul.f32 %v964, %v977
    %v1036 = vmul.f32 %v965, %v977
    %v1037 = vmul.f32 %v966, %v977
    %v1038 = vmul.f32 %v967, %v977
    %v1039 = vmul.f32 %v968, %v977
    %v1040 = vmul.f32 %v969, %v977
    %v1041 = vmul.f32 %v970, %v977
    %v1042 = vmul.f32 %v971, %v977
    %v1043 = vld [vmem:[#allocation6] sm:$0x1]
    %v1045 = vlaneseq
    %v1046 = vshrl.u32 %v1045, 7
    %v1047 = vsub.s32 0, %v1046
    %v1048 = vrot.slane %v1043, %v1047
    %v1050 = vadd.f32 %v979, %v1048
    %v1051 = vadd.f32 %v980, %v1048
    %v1052 = vadd.f32 %v981, %v1048
    %v1053 = vadd.f32 %v982, %v1048
    %v1054 = vadd.f32 %v983, %v1048
    %v1055 = vadd.f32 %v984, %v1048
    %v1056 = vadd.f32 %v985, %v1048
    %v1057 = vadd.f32 %v986, %v1048
    %v1058 = vadd.f32 %v987, %v1048
    %v1059 = vadd.f32 %v988, %v1048
    %v1060 = vadd.f32 %v989, %v1048
    %v1061 = vadd.f32 %v990, %v1048
    %v1062 = vadd.f32 %v991, %v1048
    %v1063 = vadd.f32 %v992, %v1048
    %v1064 = vadd.f32 %v993, %v1048
    %v1065 = vadd.f32 %v994, %v1048
    %v1066 = vadd.f32 %v995, %v1048
    %v1067 = vadd.f32 %v996, %v1048
    %v1068 = vadd.f32 %v997, %v1048
    %v1069 = vadd.f32 %v998, %v1048
    %v1070 = vadd.f32 %v999, %v1048
    %v1071 = vadd.f32 %v1000, %v1048
    %v1072 = vadd.f32 %v1001, %v1048
    %v1073 = vadd.f32 %v1002, %v1048
    %v1074 = vadd.f32 %v1003, %v1048
    %v1075 = vadd.f32 %v1004, %v1048
    %v1076 = vadd.f32 %v1005, %v1048
    %v1077 = vadd.f32 %v1006, %v1048
    %v1078 = vadd.f32 %v1007, %v1048
    %v1079 = vadd.f32 %v1008, %v1048
    %v1080 = vadd.f32 %v1009, %v1048
    %v1081 = vadd.f32 %v1010, %v1048
    %v1082 = vadd.f32 %v1011, %v1048
    %v1083 = vadd.f32 %v1012, %v1048
    %v1084 = vadd.f32 %v1013, %v1048
    %v1085 = vadd.f32 %v1014, %v1048
    %v1086 = vadd.f32 %v1015, %v1048
    %v1087 = vadd.f32 %v1016, %v1048
    %v1088 = vadd.f32 %v1017, %v1048
    %v1089 = vadd.f32 %v1018, %v1048
    %v1090 = vadd.f32 %v1019, %v1048
    %v1091 = vadd.f32 %v1020, %v1048
    %v1092 = vadd.f32 %v1021, %v1048
    %v1093 = vadd.f32 %v1022, %v1048
    %v1094 = vadd.f32 %v1023, %v1048
    %v1095 = vadd.f32 %v1024, %v1048
    %v1096 = vadd.f32 %v1025, %v1048
    %v1097 = vadd.f32 %v1026, %v1048
    %v1098 = vadd.f32 %v1027, %v1048
    %v1099 = vadd.f32 %v1028, %v1048
    %v1100 = vadd.f32 %v1029, %v1048
    %v1101 = vadd.f32 %v1030, %v1048
    %v1102 = vadd.f32 %v1031, %v1048
    %v1103 = vadd.f32 %v1032, %v1048
    %v1104 = vadd.f32 %v1033, %v1048
    %v1105 = vadd.f32 %v1034, %v1048
    %v1106 = vadd.f32 %v1035, %v1048
    %v1107 = vadd.f32 %v1036, %v1048
    %v1108 = vadd.f32 %v1037, %v1048
    %v1109 = vadd.f32 %v1038, %v1048
    %v1110 = vadd.f32 %v1039, %v1048
    %v1111 = vadd.f32 %v1040, %v1048
    %v1112 = vadd.f32 %v1041, %v1048
    %v1113 = vadd.f32 %v1042, %v1048
    %v1114 = vld [vmem:[#allocation7] sm:$0xff]
    %v1115 = vld [vmem:[#allocation7 + $0x8] sm:$0xff]
    %v1116 = vld [vmem:[#allocation7 + $0x10] sm:$0xff]
    %v1117 = vld [vmem:[#allocation7 + $0x18] sm:$0xff]
    %v1118 = vld [vmem:[#allocation7 + $0x20] sm:$0xff]
    %v1119 = vld [vmem:[#allocation7 + $0x28] sm:$0xff]
    %v1120 = vld [vmem:[#allocation7 + $0x30] sm:$0xff]
    %v1121 = vld [vmem:[#allocation7 + $0x38] sm:$0xff]
    %v1122 = vld [vmem:[#allocation7 + $0x40] sm:$0xff]
    %v1123 = vld [vmem:[#allocation7 + $0x48] sm:$0xff]
    %v1124 = vld [vmem:[#allocation7 + $0x50] sm:$0xff]
    %v1125 = vld [vmem:[#allocation7 + $0x58] sm:$0xff]
    %v1126 = vld [vmem:[#allocation7 + $0x60] sm:$0xff]
    %v1127 = vld [vmem:[#allocation7 + $0x68] sm:$0xff]
    %v1128 = vld [vmem:[#allocation7 + $0x70] sm:$0xff]
    %v1129 = vld [vmem:[#allocation7 + $0x78] sm:$0xff]
    %v1130 = vld [vmem:[#allocation7 + $0x80] sm:$0xff]
    %v1131 = vld [vmem:[#allocation7 + $0x88] sm:$0xff]
    %v1132 = vld [vmem:[#allocation7 + $0x90] sm:$0xff]
    %v1133 = vld [vmem:[#allocation7 + $0x98] sm:$0xff]
    %v1134 = vld [vmem:[#allocation7 + $0xa0] sm:$0xff]
    %v1135 = vld [vmem:[#allocation7 + $0xa8] sm:$0xff]
    %v1136 = vld [vmem:[#allocation7 + $0xb0] sm:$0xff]
    %v1137 = vld [vmem:[#allocation7 + $0xb8] sm:$0xff]
    %v1139 = vsel %vm138, %v1050, 0
    %v1142 = vsel %vm138, %v1051, 0
    %v1145 = vsel %vm138, %v1052, 0
    %v1148 = vsel %vm138, %v1053, 0
    %v1151 = vsel %vm138, %v1054, 0
    %v1154 = vsel %vm138, %v1055, 0
    %v1157 = vsel %vm138, %v1056, 0
    %v1160 = vsel %vm138, %v1057, 0
    %v1163 = vsel %vm138, %v1058, 0
    %v1166 = vsel %vm138, %v1059, 0
    %v1169 = vsel %vm138, %v1060, 0
    %v1172 = vsel %vm138, %v1061, 0
    %v1175 = vsel %vm138, %v1062, 0
    %v1178 = vsel %vm138, %v1063, 0
    %v1181 = vsel %vm138, %v1064, 0
    %v1184 = vsel %vm138, %v1065, 0
    %v1187 = vsel %vm138, %v1066, 0
    %v1190 = vsel %vm138, %v1067, 0
    %v1193 = vsel %vm138, %v1068, 0
    %v1196 = vsel %vm138, %v1069, 0
    %v1199 = vsel %vm138, %v1070, 0
    %v1202 = vsel %vm138, %v1071, 0
    %v1205 = vsel %vm138, %v1072, 0
    %v1208 = vsel %vm138, %v1073, 0
    %v1211 = vsel %vm138, %v1074, 0
    %v1214 = vsel %vm138, %v1075, 0
    %v1217 = vsel %vm138, %v1076, 0
    %v1220 = vsel %vm138, %v1077, 0
    %v1223 = vsel %vm138, %v1078, 0
    %v1226 = vsel %vm138, %v1079, 0
    %v1229 = vsel %vm138, %v1080, 0
    %v1232 = vsel %vm138, %v1081, 0
    %v1235 = vsel %vm138, %v1082, 0
    %v1238 = vsel %vm138, %v1083, 0
    %v1241 = vsel %vm138, %v1084, 0
    %v1244 = vsel %vm138, %v1085, 0
    %v1247 = vsel %vm138, %v1086, 0
    %v1250 = vsel %vm138, %v1087, 0
    %v1253 = vsel %vm138, %v1088, 0
    %v1256 = vsel %vm138, %v1089, 0
    %v1259 = vsel %vm138, %v1090, 0
    %v1262 = vsel %vm138, %v1091, 0
    %v1265 = vsel %vm138, %v1092, 0
    %v1268 = vsel %vm138, %v1093, 0
    %v1271 = vsel %vm138, %v1094, 0
    %v1274 = vsel %vm138, %v1095, 0
    %v1277 = vsel %vm138, %v1096, 0
    %v1280 = vsel %vm138, %v1097, 0
    %v1283 = vsel %vm138, %v1098, 0
    %v1286 = vsel %vm138, %v1099, 0
    %v1289 = vsel %vm138, %v1100, 0
    %v1292 = vsel %vm138, %v1101, 0
    %v1295 = vsel %vm138, %v1102, 0
    %v1298 = vsel %vm138, %v1103, 0
    %v1301 = vsel %vm138, %v1104, 0
    %v1304 = vsel %vm138, %v1105, 0
    %v1307 = vsel %vm138, %v1106, 0
    %v1310 = vsel %vm138, %v1107, 0
    %v1313 = vsel %vm138, %v1108, 0
    %v1316 = vsel %vm138, %v1109, 0
    %v1319 = vsel %vm138, %v1110, 0
    %v1322 = vsel %vm138, %v1111, 0
    %v1325 = vsel %vm138, %v1112, 0
    %v1328 = vsel %vm138, %v1113, 0
    %1330 = vmatprep.subr.mxu0 %v1115
    %1331 = vmatpush1.msra.mxu0 %v1114
    %1332 = vmatprep.subr.mxu0 %v1118
    %1333 = vmatpush1.msra.mxu0 %v1117
    %1334 = vmatprep.subr.mxu0 %v1121
    %1335 = vmatpush1.msra.mxu0 %v1120
    %1336 = vmatprep.subr.mxu0 %v1124
    %1337 = vmatpush1.msra.mxu0 %v1123
    %1338 = vmatprep.subr.mxu0 %v1127
    %1339 = vmatpush1.msra.mxu0 %v1126
    %1340 = vmatprep.subr.mxu0 %v1130
    %1341 = vmatpush1.msra.mxu0 %v1129
    %1342 = vmatprep.subr.mxu0 %v1133
    %1343 = vmatpush1.msra.mxu0 %v1132
    %1344 = vmatprep.subr.mxu0 %v1136
    %1345 = vmatpush1.msra.mxu0 %v1135
    %1346 = vmatprep.subr.mxu0 0.0
    %1347 = vmatpush1.msra.mxu0 0.0
    %1348 = vmatprep.subr.mxu0 0.0
    %1349 = vmatpush1.msra.mxu0 0.0
    %1350 = vmatprep.subr.mxu0 0.0
    %1351 = vmatpush1.msra.mxu0 0.0
    %1352 = vmatprep.subr.mxu0 0.0
    %1353 = vmatpush1.msra.mxu0 0.0
    %1354 = vmatprep.subr.mxu0 0.0
    %1355 = vmatpush1.msra.mxu0 0.0
    %1356 = vmatprep.subr.mxu0 0.0
    %1357 = vmatpush1.msra.mxu0 0.0
    %1358 = vmatprep.subr.mxu0 0.0
    %1359 = vmatpush1.msra.mxu0 0.0
    %1360 = vmatprep.subr.mxu0 0.0
    %1361 = vmatpush1.msra.mxu0 0.0
    %1362 = vmatprep.subr.mxu0 0.0
    %1363 = vmatpush1.msra.mxu0 0.0
    %1364 = vmatprep.subr.mxu0 0.0
    %1365 = vmatpush1.msra.mxu0 0.0
    %1366 = vmatprep.subr.mxu0 0.0
    %1367 = vmatpush1.msra.mxu0 0.0
    %1368 = vmatprep.subr.mxu0 0.0
    %1369 = vmatpush1.msra.mxu0 0.0
    %1370 = vmatprep.subr.mxu0 0.0
    %1371 = vmatpush1.msra.mxu0 0.0
    %1372 = vmatprep.subr.mxu0 0.0
    %1373 = vmatpush1.msra.mxu0 0.0
    %1374 = vmatprep.subr.mxu0 0.0
    %1375 = vmatpush1.msra.mxu0 0.0
    %1376 = vmatprep.subr.mxu0 0.0
    %1377 = vmatpush1.msra.mxu0 0.0
    %1378 = vmatprep.subr.mxu0 0.0
    %1379 = vmatpush1.msra.mxu0 0.0
    %1380 = vmatprep.subr.mxu0 0.0
    %1381 = vmatpush1.msra.mxu0 0.0
    %1382 = vmatprep.subr.mxu0 0.0
    %1383 = vmatpush1.msra.mxu0 0.0
    %1384 = vmatprep.subr.mxu0 0.0
    %1385 = vmatpush1.msra.mxu0 0.0
    %1386 = vmatprep.subr.mxu0 0.0
    %1387 = vmatpush1.msra.mxu0 0.0
    %1388 = vmatprep.subr.mxu0 0.0
    %1389 = vmatpush1.msra.mxu0 0.0
    %1390 = vmatprep.subr.mxu0 0.0
    %1391 = vmatpush1.msra.mxu0 0.0
    %1392 = vmatprep.subr.mxu0 0.0
    %1393 = vmatpush1.msra.mxu0 0.0
    %1394 = vmatprep.mubr.f32.mxu0 0.0
    %1395 = vmatmul.mubr.f32.gmra.mrb[0].mxu0 %v1139
    %v1396 = vpop.f32.mrb[0].mxu0
    %v1397 = vadd.f32 0.0, %v1396
    %v1398 = vpop.f32.mrb[0].mxu0
    %v1399 = vadd.f32 0.0, %v1398
    %1400 = vmatprep.mubr.f32.mxu0 0.0
    %1401 = vmatmul.mubr.f32.gmra.mrb[0].mxu0 %v1142
    %v1402 = vpop.f32.mrb[0].mxu0
    %v1403 = vadd.f32 0.0, %v1402
    %v1404 = vpop.f32.mrb[0].mxu0
    %v1405 = vadd.f32 0.0, %v1404
    %1406 = vmatprep.mubr.f32.mxu0 0.0
    %1407 = vmatmul.mubr.f32.gmra.mrb[0].mxu0 %v1145
    %v1408 = vpop.f32.mrb[0].mxu0
    %v1409 = vadd.f32 0.0, %v1408
    %v1410 = vpop.f32.mrb[0].mxu0
    %v1411 = vadd.f32 0.0, %v1410
    %1412 = vmatprep.mubr.f32.mxu0 0.0
    %1413 = vmatmul.mubr.f32.gmra.mrb[0].mxu0 %v1148
    %v1414 = vpop.f32.mrb[0].mxu0
    %v1415 = vadd.f32 0.0, %v1414
    %v1416 = vpop.f32.mrb[0].mxu0
    %v1417 = vadd.f32 0.0, %v1416
    %1418 = vmatprep.mubr.f32.mxu0 0.0
    %1419 = vmatmul.mubr.f32.gmra.mrb[0].mxu0 %v1151
    %v1420 = vpop.f32.mrb[0].mxu0
    %v1421 = vadd.f32 0.0, %v1420
    %v1422 = vpop.f32.mrb[0].mxu0
    %v1423 = vadd.f32 0.0, %v1422
    %1424 = vmatprep.mubr.f32.mxu0 0.0
    %1425 = vmatmul.mubr.f32.gmra.mrb[0].mxu0 %v1154
    %v1426 = vpop.f32.mrb[0].mxu0
    %v1427 = vadd.f32 0.0, %v1426
    %v1428 = vpop.f32.mrb[0].mxu0
    %v1429 = vadd.f32 0.0, %v1428
    %1430 = vmatprep.mubr.f32.mxu0 0.0
    %1431 = vmatmul.mubr.f32.gmra.mrb[0].mxu0 %v1157
    %v1432 = vpop.f32.mrb[0].mxu0
    %v1433 = vadd.f32 0.0, %v1432
    %v1434 = vpop.f32.mrb[0].mxu0
    %v1435 = vadd.f32 0.0, %v1434
    %1436 = vmatprep.mubr.f32.mxu0 0.0
    %1437 = vmatmul.mubr.f32.gmra.mrb[0].mxu0 %v1160
    %v1438 = vpop.f32.mrb[0].mxu0
    %v1439 = vadd.f32 0.0, %v1438
    %v1440 = vpop.f32.mrb[0].mxu0
    %v1441 = vadd.f32 0.0, %v1440
    %1442 = vmatprep.mubr.f32.mxu0 0.0
    %1443 = vmatmul.mubr.f32.gmra.mrb[0].mxu0 %v1163
    %v1444 = vpop.f32.mrb[0].mxu0
    %v1445 = vadd.f32 0.0, %v1444
    %v1446 = vpop.f32.mrb[0].mxu0
    %v1447 = vadd.f32 0.0, %v1446
    %1448 = vmatprep.mubr.f32.mxu0 0.0
    %1449 = vmatmul.mubr.f32.gmra.mrb[0].mxu0 %v1166
    %v1450 = vpop.f32.mrb[0].mxu0
    %v1451 = vadd.f32 0.0, %v1450
    %v1452 = vpop.f32.mrb[0].mxu0
    %v1453 = vadd.f32 0.0, %v1452
    %1454 = vmatprep.mubr.f32.mxu0 0.0
    %1455 = vmatmul.mubr.f32.gmra.mrb[0].mxu0 %v1169
    %v1456 = vpop.f32.mrb[0].mxu0
    %v1457 = vadd.f32 0.0, %v1456
    %v1458 = vpop.f32.mrb[0].mxu0
    %v1459 = vadd.f32 0.0, %v1458
    %1460 = vmatprep.mubr.f32.mxu0 0.0
    %1461 = vmatmul.mubr.f32.gmra.mrb[0].mxu0 %v1172
    %v1462 = vpop.f32.mrb[0].mxu0
    %v1463 = vadd.f32 0.0, %v1462
    %v1464 = vpop.f32.mrb[0].mxu0
    %v1465 = vadd.f32 0.0, %v1464
    %1466 = vmatprep.mubr.f32.mxu0 0.0
    %1467 = vmatmul.mubr.f32.gmra.mrb[0].mxu0 %v1175
    %v1468 = vpop.f32.mrb[0].mxu0
    %v1469 = vadd.f32 0.0, %v1468
    %v1470 = vpop.f32.mrb[0].mxu0
    %v1471 = vadd.f32 0.0, %v1470
    %1472 = vmatprep.mubr.f32.mxu0 0.0
    %1473 = vmatmul.mubr.f32.gmra.mrb[0].mxu0 %v1178
    %v1474 = vpop.f32.mrb[0].mxu0
    %v1475 = vadd.f32 0.0, %v1474
    %v1476 = vpop.f32.mrb[0].mxu0
    %v1477 = vadd.f32 0.0, %v1476
    %1478 = vmatprep.mubr.f32.mxu0 0.0
    %1479 = vmatmul.mubr.f32.gmra.mrb[0].mxu0 %v1181
    %v1480 = vpop.f32.mrb[0].mxu0
    %v1481 = vadd.f32 0.0, %v1480
    %v1482 = vpop.f32.mrb[0].mxu0
    %v1483 = vadd.f32 0.0, %v1482
    %1484 = vmatprep.mubr.f32.mxu0 0.0
    %1485 = vmatmul.mubr.f32.gmra.mrb[0].mxu0 %v1184
    %v1486 = vpop.f32.mrb[0].mxu0
    %v1487 = vadd.f32 0.0, %v1486
    %v1488 = vpop.f32.mrb[0].mxu0
    %v1489 = vadd.f32 0.0, %v1488
    %1490 = vmatprep.mubr.f32.mxu0 0.0
    %1491 = vmatmul.mubr.f32.gmra.mrb[0].mxu0 %v1187
    %v1492 = vpop.f32.mrb[0].mxu0
    %v1493 = vadd.f32 0.0, %v1492
    %v1494 = vpop.f32.mrb[0].mxu0
    %v1495 = vadd.f32 0.0, %v1494
    %1496 = vmatprep.mubr.f32.mxu0 0.0
    %1497 = vmatmul.mubr.f32.gmra.mrb[0].mxu0 %v1190
    %v1498 = vpop.f32.mrb[0].mxu0
    %v1499 = vadd.f32 0.0, %v1498
    %v1500 = vpop.f32.mrb[0].mxu0
    %v1501 = vadd.f32 0.0, %v1500
    %1502 = vmatprep.mubr.f32.mxu0 0.0
    %1503 = vmatmul.mubr.f32.gmra.mrb[0].mxu0 %v1193
    %v1504 = vpop.f32.mrb[0].mxu0
    %v1505 = vadd.f32 0.0, %v1504
    %v1506 = vpop.f32.mrb[0].mxu0
    %v1507 = vadd.f32 0.0, %v1506
    %1508 = vmatprep.mubr.f32.mxu0 0.0
    %1509 = vmatmul.mubr.f32.gmra.mrb[0].mxu0 %v1196
    %v1510 = vpop.f32.mrb[0].mxu0
    %v1511 = vadd.f32 0.0, %v1510
    %v1512 = vpop.f32.mrb[0].mxu0
    %v1513 = vadd.f32 0.0, %v1512
    %1514 = vmatprep.mubr.f32.mxu0 0.0
    %1515 = vmatmul.mubr.f32.gmra.mrb[0].mxu0 %v1199
    %v1516 = vpop.f32.mrb[0].mxu0
    %v1517 = vadd.f32 0.0, %v1516
    %v1518 = vpop.f32.mrb[0].mxu0
    %v1519 = vadd.f32 0.0, %v1518
    %1520 = vmatprep.mubr.f32.mxu0 0.0
    %1521 = vmatmul.mubr.f32.gmra.mrb[0].mxu0 %v1202
    %v1522 = vpop.f32.mrb[0].mxu0
    %v1523 = vadd.f32 0.0, %v1522
    %v1524 = vpop.f32.mrb[0].mxu0
    %v1525 = vadd.f32 0.0, %v1524
    %1526 = vmatprep.mubr.f32.mxu0 0.0
    %1527 = vmatmul.mubr.f32.gmra.mrb[0].mxu0 %v1205
    %v1528 = vpop.f32.mrb[0].mxu0
    %v1529 = vadd.f32 0.0, %v1528
    %v1530 = vpop.f32.mrb[0].mxu0
    %v1531 = vadd.f32 0.0, %v1530
    %1532 = vmatprep.mubr.f32.mxu0 0.0
    %1533 = vmatmul.mubr.f32.gmra.mrb[0].mxu0 %v1208
    %v1534 = vpop.f32.mrb[0].mxu0
    %v1535 = vadd.f32 0.0, %v1534
    %v1536 = vpop.f32.mrb[0].mxu0
    %v1537 = vadd.f32 0.0, %v1536
    %1538 = vmatprep.mubr.f32.mxu0 0.0
    %1539 = vmatmul.mubr.f32.gmra.mrb[0].mxu0 %v1211
    %v1540 = vpop.f32.mrb[0].mxu0
    %v1541 = vadd.f32 0.0, %v1540
    %v1542 = vpop.f32.mrb[0].mxu0
    %v1543 = vadd.f32 0.0, %v1542
    %1544 = vmatprep.mubr.f32.mxu0 0.0
    %1545 = vmatmul.mubr.f32.gmra.mrb[0].mxu0 %v1214
    %v1546 = vpop.f32.mrb[0].mxu0
    %v1547 = vadd.f32 0.0, %v1546
    %v1548 = vpop.f32.mrb[0].mxu0
    %v1549 = vadd.f32 0.0, %v1548
    %1550 = vmatprep.mubr.f32.mxu0 0.0
    %1551 = vmatmul.mubr.f32.gmra.mrb[0].mxu0 %v1217
    %v1552 = vpop.f32.mrb[0].mxu0
    %v1553 = vadd.f32 0.0, %v1552
    %v1554 = vpop.f32.mrb[0].mxu0
    %v1555 = vadd.f32 0.0, %v1554
    %1556 = vmatprep.mubr.f32.mxu0 0.0
    %1557 = vmatmul.mubr.f32.gmra.mrb[0].mxu0 %v1220
    %v1558 = vpop.f32.mrb[0].mxu0
    %v1559 = vadd.f32 0.0, %v1558
    %v1560 = vpop.f32.mrb[0].mxu0
    %v1561 = vadd.f32 0.0, %v1560
    %1562 = vmatprep.mubr.f32.mxu0 0.0
    %1563 = vmatmul.mubr.f32.gmra.mrb[0].mxu0 %v1223
    %v1564 = vpop.f32.mrb[0].mxu0
    %v1565 = vadd.f32 0.0, %v1564
    %v1566 = vpop.f32.mrb[0].mxu0
    %v1567 = vadd.f32 0.0, %v1566
    %1568 = vmatprep.mubr.f32.mxu0 0.0
    %1569 = vmatmul.mubr.f32.gmra.mrb[0].mxu0 %v1226
    %v1570 = vpop.f32.mrb[0].mxu0
    %v1571 = vadd.f32 0.0, %v1570
    %v1572 = vpop.f32.mrb[0].mxu0
    %v1573 = vadd.f32 0.0, %v1572
    %1574 = vmatprep.mubr.f32.mxu0 0.0
    %1575 = vmatmul.mubr.f32.gmra.mrb[0].mxu0 %v1229
    %v1576 = vpop.f32.mrb[0].mxu0
    %v1577 = vadd.f32 0.0, %v1576
    %v1578 = vpop.f32.mrb[0].mxu0
    %v1579 = vadd.f32 0.0, %v1578
    %1580 = vmatprep.mubr.f32.mxu0 0.0
    %1581 = vmatmul.mubr.f32.gmra.mrb[0].mxu0 %v1232
    %v1582 = vpop.f32.mrb[0].mxu0
    %v1583 = vadd.f32 0.0, %v1582
    %v1584 = vpop.f32.mrb[0].mxu0
    %v1585 = vadd.f32 0.0, %v1584
    %1586 = vmatprep.mubr.f32.mxu0 0.0
    %1587 = vmatmul.mubr.f32.gmra.mrb[0].mxu0 %v1235
    %v1588 = vpop.f32.mrb[0].mxu0
    %v1589 = vadd.f32 0.0, %v1588
    %v1590 = vpop.f32.mrb[0].mxu0
    %v1591 = vadd.f32 0.0, %v1590
    %1592 = vmatprep.mubr.f32.mxu0 0.0
    %1593 = vmatmul.mubr.f32.gmra.mrb[0].mxu0 %v1238
    %v1594 = vpop.f32.mrb[0].mxu0
    %v1595 = vadd.f32 0.0, %v1594
    %v1596 = vpop.f32.mrb[0].mxu0
    %v1597 = vadd.f32 0.0, %v1596
    %1598 = vmatprep.mubr.f32.mxu0 0.0
    %1599 = vmatmul.mubr.f32.gmra.mrb[0].mxu0 %v1241
    %v1600 = vpop.f32.mrb[0].mxu0
    %v1601 = vadd.f32 0.0, %v1600
    %v1602 = vpop.f32.mrb[0].mxu0
    %v1603 = vadd.f32 0.0, %v1602
    %1604 = vmatprep.mubr.f32.mxu0 0.0
    %1605 = vmatmul.mubr.f32.gmra.mrb[0].mxu0 %v1244
    %v1606 = vpop.f32.mrb[0].mxu0
    %v1607 = vadd.f32 0.0, %v1606
    %v1608 = vpop.f32.mrb[0].mxu0
    %v1609 = vadd.f32 0.0, %v1608
    %1610 = vmatprep.mubr.f32.mxu0 0.0
    %1611 = vmatmul.mubr.f32.gmra.mrb[0].mxu0 %v1247
    %v1612 = vpop.f32.mrb[0].mxu0
    %v1613 = vadd.f32 0.0, %v1612
    %v1614 = vpop.f32.mrb[0].mxu0
    %v1615 = vadd.f32 0.0, %v1614
    %1616 = vmatprep.mubr.f32.mxu0 0.0
    %1617 = vmatmul.mubr.f32.gmra.mrb[0].mxu0 %v1250
    %v1618 = vpop.f32.mrb[0].mxu0
    %v1619 = vadd.f32 0.0, %v1618
    %v1620 = vpop.f32.mrb[0].mxu0
    %v1621 = vadd.f32 0.0, %v1620
    %1622 = vmatprep.mubr.f32.mxu0 0.0
    %1623 = vmatmul.mubr.f32.gmra.mrb[0].mxu0 %v1253
    %v1624 = vpop.f32.mrb[0].mxu0
    %v1625 = vadd.f32 0.0, %v1624
    %v1626 = vpop.f32.mrb[0].mxu0
    %v1627 = vadd.f32 0.0, %v1626
    %1628 = vmatprep.mubr.f32.mxu0 0.0
    %1629 = vmatmul.mubr.f32.gmra.mrb[0].mxu0 %v1256
    %v1630 = vpop.f32.mrb[0].mxu0
    %v1631 = vadd.f32 0.0, %v1630
    %v1632 = vpop.f32.mrb[0].mxu0
    %v1633 = vadd.f32 0.0, %v1632
    %1634 = vmatprep.mubr.f32.mxu0 0.0
    %1635 = vmatmul.mubr.f32.gmra.mrb[0].mxu0 %v1259
    %v1636 = vpop.f32.mrb[0].mxu0
    %v1637 = vadd.f32 0.0, %v1636
    %v1638 = vpop.f32.mrb[0].mxu0
    %v1639 = vadd.f32 0.0, %v1638
    %1640 = vmatprep.mubr.f32.mxu0 0.0
    %1641 = vmatmul.mubr.f32.gmra.mrb[0].mxu0 %v1262
    %v1642 = vpop.f32.mrb[0].mxu0
    %v1643 = vadd.f32 0.0, %v1642
    %v1644 = vpop.f32.mrb[0].mxu0
    %v1645 = vadd.f32 0.0, %v1644
    %1646 = vmatprep.mubr.f32.mxu0 0.0
    %1647 = vmatmul.mubr.f32.gmra.mrb[0].mxu0 %v1265
    %v1648 = vpop.f32.mrb[0].mxu0
    %v1649 = vadd.f32 0.0, %v1648
    %v1650 = vpop.f32.mrb[0].mxu0
    %v1651 = vadd.f32 0.0, %v1650
    %1652 = vmatprep.mubr.f32.mxu0 0.0
    %1653 = vmatmul.mubr.f32.gmra.mrb[0].mxu0 %v1268
    %v1654 = vpop.f32.mrb[0].mxu0
    %v1655 = vadd.f32 0.0, %v1654
    %v1656 = vpop.f32.mrb[0].mxu0
    %v1657 = vadd.f32 0.0, %v1656
    %1658 = vmatprep.mubr.f32.mxu0 0.0
    %1659 = vmatmul.mubr.f32.gmra.mrb[0].mxu0 %v1271
    %v1660 = vpop.f32.mrb[0].mxu0
    %v1661 = vadd.f32 0.0, %v1660
    %v1662 = vpop.f32.mrb[0].mxu0
    %v1663 = vadd.f32 0.0, %v1662
    %1664 = vmatprep.mubr.f32.mxu0 0.0
    %1665 = vmatmul.mubr.f32.gmra.mrb[0].mxu0 %v1274
    %v1666 = vpop.f32.mrb[0].mxu0
    %v1667 = vadd.f32 0.0, %v1666
    %v1668 = vpop.f32.mrb[0].mxu0
    %v1669 = vadd.f32 0.0, %v1668
    %1670 = vmatprep.mubr.f32.mxu0 0.0
    %1671 = vmatmul.mubr.f32.gmra.mrb[0].mxu0 %v1277
    %v1672 = vpop.f32.mrb[0].mxu0
    %v1673 = vadd.f32 0.0, %v1672
    %v1674 = vpop.f32.mrb[0].mxu0
    %v1675 = vadd.f32 0.0, %v1674
    %1676 = vmatprep.mubr.f32.mxu0 0.0
    %1677 = vmatmul.mubr.f32.gmra.mrb[0].mxu0 %v1280
    %v1678 = vpop.f32.mrb[0].mxu0
    %v1679 = vadd.f32 0.0, %v1678
    %v1680 = vpop.f32.mrb[0].mxu0
    %v1681 = vadd.f32 0.0, %v1680
    %1682 = vmatprep.mubr.f32.mxu0 0.0
    %1683 = vmatmul.mubr.f32.gmra.mrb[0].mxu0 %v1283
    %v1684 = vpop.f32.mrb[0].mxu0
    %v1685 = vadd.f32 0.0, %v1684
    %v1686 = vpop.f32.mrb[0].mxu0
    %v1687 = vadd.f32 0.0, %v1686
    %1688 = vmatprep.mubr.f32.mxu0 0.0
    %1689 = vmatmul.mubr.f32.gmra.mrb[0].mxu0 %v1286
    %v1690 = vpop.f32.mrb[0].mxu0
    %v1691 = vadd.f32 0.0, %v1690
    %v1692 = vpop.f32.mrb[0].mxu0
    %v1693 = vadd.f32 0.0, %v1692
    %1694 = vmatprep.mubr.f32.mxu0 0.0
    %1695 = vmatmul.mubr.f32.gmra.mrb[0].mxu0 %v1289
    %v1696 = vpop.f32.mrb[0].mxu0
    %v1697 = vadd.f32 0.0, %v1696
    %v1698 = vpop.f32.mrb[0].mxu0
    %v1699 = vadd.f32 0.0, %v1698
    %1700 = vmatprep.mubr.f32.mxu0 0.0
    %1701 = vmatmul.mubr.f32.gmra.mrb[0].mxu0 %v1292
    %v1702 = vpop.f32.mrb[0].mxu0
    %v1703 = vadd.f32 0.0, %v1702
    %v1704 = vpop.f32.mrb[0].mxu0
    %v1705 = vadd.f32 0.0, %v1704
    %1706 = vmatprep.mubr.f32.mxu0 0.0
    %1707 = vmatmul.mubr.f32.gmra.mrb[0].mxu0 %v1295
    %v1708 = vpop.f32.mrb[0].mxu0
    %v1709 = vadd.f32 0.0, %v1708
    %v1710 = vpop.f32.mrb[0].mxu0
    %v1711 = vadd.f32 0.0, %v1710
    %1712 = vmatprep.mubr.f32.mxu0 0.0
    %1713 = vmatmul.mubr.f32.gmra.mrb[0].mxu0 %v1298
    %v1714 = vpop.f32.mrb[0].mxu0
    %v1715 = vadd.f32 0.0, %v1714
    %v1716 = vpop.f32.mrb[0].mxu0
    %v1717 = vadd.f32 0.0, %v1716
    %1718 = vmatprep.mubr.f32.mxu0 0.0
    %1719 = vmatmul.mubr.f32.gmra.mrb[0].mxu0 %v1301
    %v1720 = vpop.f32.mrb[0].mxu0
    %v1721 = vadd.f32 0.0, %v1720
    %v1722 = vpop.f32.mrb[0].mxu0
    %v1723 = vadd.f32 0.0, %v1722
    %1724 = vmatprep.mubr.f32.mxu0 0.0
    %1725 = vmatmul.mubr.f32.gmra.mrb[0].mxu0 %v1304
    %v1726 = vpop.f32.mrb[0].mxu0
    %v1727 = vadd.f32 0.0, %v1726
    %v1728 = vpop.f32.mrb[0].mxu0
    %v1729 = vadd.f32 0.0, %v1728
    %1730 = vmatprep.mubr.f32.mxu0 0.0
    %1731 = vmatmul.mubr.f32.gmra.mrb[0].mxu0 %v1307
    %v1732 = vpop.f32.mrb[0].mxu0
    %v1733 = vadd.f32 0.0, %v1732
    %v1734 = vpop.f32.mrb[0].mxu0
    %v1735 = vadd.f32 0.0, %v1734
    %1736 = vmatprep.mubr.f32.mxu0 0.0
    %1737 = vmatmul.mubr.f32.gmra.mrb[0].mxu0 %v1310
    %v1738 = vpop.f32.mrb[0].mxu0
    %v1739 = vadd.f32 0.0, %v1738
    %v1740 = vpop.f32.mrb[0].mxu0
    %v1741 = vadd.f32 0.0, %v1740
    %1742 = vmatprep.mubr.f32.mxu0 0.0
    %1743 = vmatmul.mubr.f32.gmra.mrb[0].mxu0 %v1313
    %v1744 = vpop.f32.mrb[0].mxu0
    %v1745 = vadd.f32 0.0, %v1744
    %v1746 = vpop.f32.mrb[0].mxu0
    %v1747 = vadd.f32 0.0, %v1746
    %1748 = vmatprep.mubr.f32.mxu0 0.0
    %1749 = vmatmul.mubr.f32.gmra.mrb[0].mxu0 %v1316
    %v1750 = vpop.f32.mrb[0].mxu0
    %v1751 = vadd.f32 0.0, %v1750
    %v1752 = vpop.f32.mrb[0].mxu0
    %v1753 = vadd.f32 0.0, %v1752
    %1754 = vmatprep.mubr.f32.mxu0 0.0
    %1755 = vmatmul.mubr.f32.gmra.mrb[0].mxu0 %v1319
    %v1756 = vpop.f32.mrb[0].mxu0
    %v1757 = vadd.f32 0.0, %v1756
    %v1758 = vpop.f32.mrb[0].mxu0
    %v1759 = vadd.f32 0.0, %v1758
    %1760 = vmatprep.mubr.f32.mxu0 0.0
    %1761 = vmatmul.mubr.f32.gmra.mrb[0].mxu0 %v1322
    %v1762 = vpop.f32.mrb[0].mxu0
    %v1763 = vadd.f32 0.0, %v1762
    %v1764 = vpop.f32.mrb[0].mxu0
    %v1765 = vadd.f32 0.0, %v1764
    %1766 = vmatprep.mubr.f32.mxu0 0.0
    %1767 = vmatmul.mubr.f32.gmra.mrb[0].mxu0 %v1325
    %v1768 = vpop.f32.mrb[0].mxu0
    %v1769 = vadd.f32 0.0, %v1768
    %v1770 = vpop.f32.mrb[0].mxu0
    %v1771 = vadd.f32 0.0, %v1770
    %1772 = vmatprep.mubr.f32.mxu0 0.0
    %1773 = vmatmul.mubr.f32.gmra.mrb[0].mxu0 %v1328
    %v1774 = vpop.f32.mrb[0].mxu0
    %v1775 = vadd.f32 0.0, %v1774
    %v1776 = vpop.f32.mrb[0].mxu0
    %v1777 = vadd.f32 0.0, %v1776
    %1778 = vdwg.mxu0
    %1779 = vmatprep.subr.mxu0 0.0
    %1780 = vmatpush1.msra.mxu0 %v1116
    %1781 = vmatprep.subr.mxu0 0.0
    %1782 = vmatpush1.msra.mxu0 %v1119
    %1783 = vmatprep.subr.mxu0 0.0
    %1784 = vmatpush1.msra.mxu0 %v1122
    %1785 = vmatprep.subr.mxu0 0.0
    %1786 = vmatpush1.msra.mxu0 %v1125
    %1787 = vmatprep.subr.mxu0 0.0
    %1788 = vmatpush1.msra.mxu0 %v1128
    %1789 = vmatprep.subr.mxu0 0.0
    %1790 = vmatpush1.msra.mxu0 %v1131
    %1791 = vmatprep.subr.mxu0 0.0
    %1792 = vmatpush1.msra.mxu0 %v1134
    %1793 = vmatprep.subr.mxu0 0.0
    %1794 = vmatpush1.msra.mxu0 %v1137
    %1795 = vmatprep.subr.mxu0 0.0
    %1796 = vmatpush1.msra.mxu0 0.0
    %1797 = vmatprep.subr.mxu0 0.0
    %1798 = vmatpush1.msra.mxu0 0.0
    %1799 = vmatprep.subr.mxu0 0.0
    %1800 = vmatpush1.msra.mxu0 0.0
    %1801 = vmatprep.subr.mxu0 0.0
    %1802 = vmatpush1.msra.mxu0 0.0
    %1803 = vmatprep.subr.mxu0 0.0
    %1804 = vmatpush1.msra.mxu0 0.0
    %1805 = vmatprep.subr.mxu0 0.0
    %1806 = vmatpush1.msra.mxu0 0.0
    %1807 = vmatprep.subr.mxu0 0.0
    %1808 = vmatpush1.msra.mxu0 0.0
    %1809 = vmatprep.subr.mxu0 0.0
    %1810 = vmatpush1.msra.mxu0 0.0
    %1811 = vmatprep.subr.mxu0 0.0
    %1812 = vmatpush1.msra.mxu0 0.0
    %1813 = vmatprep.subr.mxu0 0.0
    %1814 = vmatpush1.msra.mxu0 0.0
    %1815 = vmatprep.subr.mxu0 0.0
    %1816 = vmatpush1.msra.mxu0 0.0
    %1817 = vmatprep.subr.mxu0 0.0
    %1818 = vmatpush1.msra.mxu0 0.0
    %1819 = vmatprep.subr.mxu0 0.0
    %1820 = vmatpush1.msra.mxu0 0.0
    %1821 = vmatprep.subr.mxu0 0.0
    %1822 = vmatpush1.msra.mxu0 0.0
    %1823 = vmatprep.subr.mxu0 0.0
    %1824 = vmatpush1.msra.mxu0 0.0
    %1825 = vmatprep.subr.mxu0 0.0
    %1826 = vmatpush1.msra.mxu0 0.0
    %1827 = vmatprep.subr.mxu0 0.0
    %1828 = vmatpush1.msra.mxu0 0.0
    %1829 = vmatprep.subr.mxu0 0.0
    %1830 = vmatpush1.msra.mxu0 0.0
    %1831 = vmatprep.subr.mxu0 0.0
    %1832 = vmatpush1.msra.mxu0 0.0
    %1833 = vmatprep.subr.mxu0 0.0
    %1834 = vmatpush1.msra.mxu0 0.0
    %1835 = vmatprep.subr.mxu0 0.0
    %1836 = vmatpush1.msra.mxu0 0.0
    %1837 = vmatprep.subr.mxu0 0.0
    %1838 = vmatpush1.msra.mxu0 0.0
    %1839 = vmatprep.subr.mxu0 0.0
    %1840 = vmatpush1.msra.mxu0 0.0
    %1841 = vmatprep.subr.mxu0 0.0
    %1842 = vmatpush1.msra.mxu0 0.0
    %1843 = vmatprep.mubr.f32.mxu0 0.0
    %1844 = vmatmul.mubr.f32.gmra.mrb[0].mxu0 %v1139
    %v1845 = vpop.f32.mrb[0].mxu0
    %v1846 = vadd.f32 0.0, %v1845
    %v1847 = vpop.f32.mrb[0].mxu0
    %1848 = vmatprep.mubr.f32.mxu0 0.0
    %1849 = vmatmul.mubr.f32.gmra.mrb[0].mxu0 %v1142
    %v1850 = vpop.f32.mrb[0].mxu0
    %v1851 = vadd.f32 0.0, %v1850
    %v1852 = vpop.f32.mrb[0].mxu0
    %1853 = vmatprep.mubr.f32.mxu0 0.0
    %1854 = vmatmul.mubr.f32.gmra.mrb[0].mxu0 %v1145
    %v1855 = vpop.f32.mrb[0].mxu0
    %v1856 = vadd.f32 0.0, %v1855
    %v1857 = vpop.f32.mrb[0].mxu0
    %1858 = vmatprep.mubr.f32.mxu0 0.0
    %1859 = vmatmul.mubr.f32.gmra.mrb[0].mxu0 %v1148
    %v1860 = vpop.f32.mrb[0].mxu0
    %v1861 = vadd.f32 0.0, %v1860
    %v1862 = vpop.f32.mrb[0].mxu0
    %1863 = vmatprep.mubr.f32.mxu0 0.0
    %1864 = vmatmul.mubr.f32.gmra.mrb[0].mxu0 %v1151
    %v1865 = vpop.f32.mrb[0].mxu0
    %v1866 = vadd.f32 0.0, %v1865
    %v1867 = vpop.f32.mrb[0].mxu0
    %1868 = vmatprep.mubr.f32.mxu0 0.0
    %1869 = vmatmul.mubr.f32.gmra.mrb[0].mxu0 %v1154
    %v1870 = vpop.f32.mrb[0].mxu0
    %v1871 = vadd.f32 0.0, %v1870
    %v1872 = vpop.f32.mrb[0].mxu0
    %1873 = vmatprep.mubr.f32.mxu0 0.0
    %1874 = vmatmul.mubr.f32.gmra.mrb[0].mxu0 %v1157
    %v1875 = vpop.f32.mrb[0].mxu0
    %v1876 = vadd.f32 0.0, %v1875
    %v1877 = vpop.f32.mrb[0].mxu0
    %1878 = vmatprep.mubr.f32.mxu0 0.0
    %1879 = vmatmul.mubr.f32.gmra.mrb[0].mxu0 %v1160
    %v1880 = vpop.f32.mrb[0].mxu0
    %v1881 = vadd.f32 0.0, %v1880
    %v1882 = vpop.f32.mrb[0].mxu0
    %1883 = vmatprep.mubr.f32.mxu0 0.0
    %1884 = vmatmul.mubr.f32.gmra.mrb[0].mxu0 %v1163
    %v1885 = vpop.f32.mrb[0].mxu0
    %v1886 = vadd.f32 0.0, %v1885
    %v1887 = vpop.f32.mrb[0].mxu0
    %1888 = vmatprep.mubr.f32.mxu0 0.0
    %1889 = vmatmul.mubr.f32.gmra.mrb[0].mxu0 %v1166
    %v1890 = vpop.f32.mrb[0].mxu0
    %v1891 = vadd.f32 0.0, %v1890
    %v1892 = vpop.f32.mrb[0].mxu0
    %1893 = vmatprep.mubr.f32.mxu0 0.0
    %1894 = vmatmul.mubr.f32.gmra.mrb[0].mxu0 %v1169
    %v1895 = vpop.f32.mrb[0].mxu0
    %v1896 = vadd.f32 0.0, %v1895
    %v1897 = vpop.f32.mrb[0].mxu0
    %1898 = vmatprep.mubr.f32.mxu0 0.0
    %1899 = vmatmul.mubr.f32.gmra.mrb[0].mxu0 %v1172
    %v1900 = vpop.f32.mrb[0].mxu0
    %v1901 = vadd.f32 0.0, %v1900
    %v1902 = vpop.f32.mrb[0].mxu0
    %1903 = vmatprep.mubr.f32.mxu0 0.0
    %1904 = vmatmul.mubr.f32.gmra.mrb[0].mxu0 %v1175
    %v1905 = vpop.f32.mrb[0].mxu0
    %v1906 = vadd.f32 0.0, %v1905
    %v1907 = vpop.f32.mrb[0].mxu0
    %1908 = vmatprep.mubr.f32.mxu0 0.0
    %1909 = vmatmul.mubr.f32.gmra.mrb[0].mxu0 %v1178
    %v1910 = vpop.f32.mrb[0].mxu0
    %v1911 = vadd.f32 0.0, %v1910
    %v1912 = vpop.f32.mrb[0].mxu0
    %1913 = vmatprep.mubr.f32.mxu0 0.0
    %1914 = vmatmul.mubr.f32.gmra.mrb[0].mxu0 %v1181
    %v1915 = vpop.f32.mrb[0].mxu0
    %v1916 = vadd.f32 0.0, %v1915
    %v1917 = vpop.f32.mrb[0].mxu0
    %1918 = vmatprep.mubr.f32.mxu0 0.0
    %1919 = vmatmul.mubr.f32.gmra.mrb[0].mxu0 %v1184
    %v1920 = vpop.f32.mrb[0].mxu0
    %v1921 = vadd.f32 0.0, %v1920
    %v1922 = vpop.f32.mrb[0].mxu0
    %1923 = vmatprep.mubr.f32.mxu0 0.0
    %1924 = vmatmul.mubr.f32.gmra.mrb[0].mxu0 %v1187
    %v1925 = vpop.f32.mrb[0].mxu0
    %v1926 = vadd.f32 0.0, %v1925
    %v1927 = vpop.f32.mrb[0].mxu0
    %1928 = vmatprep.mubr.f32.mxu0 0.0
    %1929 = vmatmul.mubr.f32.gmra.mrb[0].mxu0 %v1190
    %v1930 = vpop.f32.mrb[0].mxu0
    %v1931 = vadd.f32 0.0, %v1930
    %v1932 = vpop.f32.mrb[0].mxu0
    %1933 = vmatprep.mubr.f32.mxu0 0.0
    %1934 = vmatmul.mubr.f32.gmra.mrb[0].mxu0 %v1193
    %v1935 = vpop.f32.mrb[0].mxu0
    %v1936 = vadd.f32 0.0, %v1935
    %v1937 = vpop.f32.mrb[0].mxu0
    %1938 = vmatprep.mubr.f32.mxu0 0.0
    %1939 = vmatmul.mubr.f32.gmra.mrb[0].mxu0 %v1196
    %v1940 = vpop.f32.mrb[0].mxu0
    %v1941 = vadd.f32 0.0, %v1940
    %v1942 = vpop.f32.mrb[0].mxu0
    %1943 = vmatprep.mubr.f32.mxu0 0.0
    %1944 = vmatmul.mubr.f32.gmra.mrb[0].mxu0 %v1199
    %v1945 = vpop.f32.mrb[0].mxu0
    %v1946 = vadd.f32 0.0, %v1945
    %v1947 = vpop.f32.mrb[0].mxu0
    %1948 = vmatprep.mubr.f32.mxu0 0.0
    %1949 = vmatmul.mubr.f32.gmra.mrb[0].mxu0 %v1202
    %v1950 = vpop.f32.mrb[0].mxu0
    %v1951 = vadd.f32 0.0, %v1950
    %v1952 = vpop.f32.mrb[0].mxu0
    %1953 = vmatprep.mubr.f32.mxu0 0.0
    %1954 = vmatmul.mubr.f32.gmra.mrb[0].mxu0 %v1205
    %v1955 = vpop.f32.mrb[0].mxu0
    %v1956 = vadd.f32 0.0, %v1955
    %v1957 = vpop.f32.mrb[0].mxu0
    %1958 = vmatprep.mubr.f32.mxu0 0.0
    %1959 = vmatmul.mubr.f32.gmra.mrb[0].mxu0 %v1208
    %v1960 = vpop.f32.mrb[0].mxu0
    %v1961 = vadd.f32 0.0, %v1960
    %v1962 = vpop.f32.mrb[0].mxu0
    %1963 = vmatprep.mubr.f32.mxu0 0.0
    %1964 = vmatmul.mubr.f32.gmra.mrb[0].mxu0 %v1211
    %v1965 = vpop.f32.mrb[0].mxu0
    %v1966 = vadd.f32 0.0, %v1965
    %v1967 = vpop.f32.mrb[0].mxu0
    %1968 = vmatprep.mubr.f32.mxu0 0.0
    %1969 = vmatmul.mubr.f32.gmra.mrb[0].mxu0 %v1214
    %v1970 = vpop.f32.mrb[0].mxu0
    %v1971 = vadd.f32 0.0, %v1970
    %v1972 = vpop.f32.mrb[0].mxu0
    %1973 = vmatprep.mubr.f32.mxu0 0.0
    %1974 = vmatmul.mubr.f32.gmra.mrb[0].mxu0 %v1217
    %v1975 = vpop.f32.mrb[0].mxu0
    %v1976 = vadd.f32 0.0, %v1975
    %v1977 = vpop.f32.mrb[0].mxu0
    %1978 = vmatprep.mubr.f32.mxu0 0.0
    %1979 = vmatmul.mubr.f32.gmra.mrb[0].mxu0 %v1220
    %v1980 = vpop.f32.mrb[0].mxu0
    %v1981 = vadd.f32 0.0, %v1980
    %v1982 = vpop.f32.mrb[0].mxu0
    %1983 = vmatprep.mubr.f32.mxu0 0.0
    %1984 = vmatmul.mubr.f32.gmra.mrb[0].mxu0 %v1223
    %v1985 = vpop.f32.mrb[0].mxu0
    %v1986 = vadd.f32 0.0, %v1985
    %v1987 = vpop.f32.mrb[0].mxu0
    %1988 = vmatprep.mubr.f32.mxu0 0.0
    %1989 = vmatmul.mubr.f32.gmra.mrb[0].mxu0 %v1226
    %v1990 = vpop.f32.mrb[0].mxu0
    %v1991 = vadd.f32 0.0, %v1990
    %v1992 = vpop.f32.mrb[0].mxu0
    %1993 = vmatprep.mubr.f32.mxu0 0.0
    %1994 = vmatmul.mubr.f32.gmra.mrb[0].mxu0 %v1229
    %v1995 = vpop.f32.mrb[0].mxu0
    %v1996 = vadd.f32 0.0, %v1995
    %v1997 = vpop.f32.mrb[0].mxu0
    %1998 = vmatprep.mubr.f32.mxu0 0.0
    %1999 = vmatmul.mubr.f32.gmra.mrb[0].mxu0 %v1232
    %v2000 = vpop.f32.mrb[0].mxu0
    %v2001 = vadd.f32 0.0, %v2000
    %v2002 = vpop.f32.mrb[0].mxu0
    %2003 = vmatprep.mubr.f32.mxu0 0.0
    %2004 = vmatmul.mubr.f32.gmra.mrb[0].mxu0 %v1235
    %v2005 = vpop.f32.mrb[0].mxu0
    %v2006 = vadd.f32 0.0, %v2005
    %v2007 = vpop.f32.mrb[0].mxu0
    %2008 = vmatprep.mubr.f32.mxu0 0.0
    %2009 = vmatmul.mubr.f32.gmra.mrb[0].mxu0 %v1238
    %v2010 = vpop.f32.mrb[0].mxu0
    %v2011 = vadd.f32 0.0, %v2010
    %v2012 = vpop.f32.mrb[0].mxu0
    %2013 = vmatprep.mubr.f32.mxu0 0.0
    %2014 = vmatmul.mubr.f32.gmra.mrb[0].mxu0 %v1241
    %v2015 = vpop.f32.mrb[0].mxu0
    %v2016 = vadd.f32 0.0, %v2015
    %v2017 = vpop.f32.mrb[0].mxu0
    %2018 = vmatprep.mubr.f32.mxu0 0.0
    %2019 = vmatmul.mubr.f32.gmra.mrb[0].mxu0 %v1244
    %v2020 = vpop.f32.mrb[0].mxu0
    %v2021 = vadd.f32 0.0, %v2020
    %v2022 = vpop.f32.mrb[0].mxu0
    %2023 = vmatprep.mubr.f32.mxu0 0.0
    %2024 = vmatmul.mubr.f32.gmra.mrb[0].mxu0 %v1247
    %v2025 = vpop.f32.mrb[0].mxu0
    %v2026 = vadd.f32 0.0, %v2025
    %v2027 = vpop.f32.mrb[0].mxu0
    %2028 = vmatprep.mubr.f32.mxu0 0.0
    %2029 = vmatmul.mubr.f32.gmra.mrb[0].mxu0 %v1250
    %v2030 = vpop.f32.mrb[0].mxu0
    %v2031 = vadd.f32 0.0, %v2030
    %v2032 = vpop.f32.mrb[0].mxu0
    %2033 = vmatprep.mubr.f32.mxu0 0.0
    %2034 = vmatmul.mubr.f32.gmra.mrb[0].mxu0 %v1253
    %v2035 = vpop.f32.mrb[0].mxu0
    %v2036 = vadd.f32 0.0, %v2035
    %v2037 = vpop.f32.mrb[0].mxu0
    %2038 = vmatprep.mubr.f32.mxu0 0.0
    %2039 = vmatmul.mubr.f32.gmra.mrb[0].mxu0 %v1256
    %v2040 = vpop.f32.mrb[0].mxu0
    %v2041 = vadd.f32 0.0, %v2040
    %v2042 = vpop.f32.mrb[0].mxu0
    %2043 = vmatprep.mubr.f32.mxu0 0.0
    %2044 = vmatmul.mubr.f32.gmra.mrb[0].mxu0 %v1259
    %v2045 = vpop.f32.mrb[0].mxu0
    %v2046 = vadd.f32 0.0, %v2045
    %v2047 = vpop.f32.mrb[0].mxu0
    %2048 = vmatprep.mubr.f32.mxu0 0.0
    %2049 = vmatmul.mubr.f32.gmra.mrb[0].mxu0 %v1262
    %v2050 = vpop.f32.mrb[0].mxu0
    %v2051 = vadd.f32 0.0, %v2050
    %v2052 = vpop.f32.mrb[0].mxu0
    %2053 = vmatprep.mubr.f32.mxu0 0.0
    %2054 = vmatmul.mubr.f32.gmra.mrb[0].mxu0 %v1265
    %v2055 = vpop.f32.mrb[0].mxu0
    %v2056 = vadd.f32 0.0, %v2055
    %v2057 = vpop.f32.mrb[0].mxu0
    %2058 = vmatprep.mubr.f32.mxu0 0.0
    %2059 = vmatmul.mubr.f32.gmra.mrb[0].mxu0 %v1268
    %v2060 = vpop.f32.mrb[0].mxu0
    %v2061 = vadd.f32 0.0, %v2060
    %v2062 = vpop.f32.mrb[0].mxu0
    %2063 = vmatprep.mubr.f32.mxu0 0.0
    %2064 = vmatmul.mubr.f32.gmra.mrb[0].mxu0 %v1271
    %v2065 = vpop.f32.mrb[0].mxu0
    %v2066 = vadd.f32 0.0, %v2065
    %v2067 = vpop.f32.mrb[0].mxu0
    %2068 = vmatprep.mubr.f32.mxu0 0.0
    %2069 = vmatmul.mubr.f32.gmra.mrb[0].mxu0 %v1274
    %v2070 = vpop.f32.mrb[0].mxu0
    %v2071 = vadd.f32 0.0, %v2070
    %v2072 = vpop.f32.mrb[0].mxu0
    %2073 = vmatprep.mubr.f32.mxu0 0.0
    %2074 = vmatmul.mubr.f32.gmra.mrb[0].mxu0 %v1277
    %v2075 = vpop.f32.mrb[0].mxu0
    %v2076 = vadd.f32 0.0, %v2075
    %v2077 = vpop.f32.mrb[0].mxu0
    %2078 = vmatprep.mubr.f32.mxu0 0.0
    %2079 = vmatmul.mubr.f32.gmra.mrb[0].mxu0 %v1280
    %v2080 = vpop.f32.mrb[0].mxu0
    %v2081 = vadd.f32 0.0, %v2080
    %v2082 = vpop.f32.mrb[0].mxu0
    %2083 = vmatprep.mubr.f32.mxu0 0.0
    %2084 = vmatmul.mubr.f32.gmra.mrb[0].mxu0 %v1283
    %v2085 = vpop.f32.mrb[0].mxu0
    %v2086 = vadd.f32 0.0, %v2085
    %v2087 = vpop.f32.mrb[0].mxu0
    %2088 = vmatprep.mubr.f32.mxu0 0.0
    %2089 = vmatmul.mubr.f32.gmra.mrb[0].mxu0 %v1286
    %v2090 = vpop.f32.mrb[0].mxu0
    %v2091 = vadd.f32 0.0, %v2090
    %v2092 = vpop.f32.mrb[0].mxu0
    %2093 = vmatprep.mubr.f32.mxu0 0.0
    %2094 = vmatmul.mubr.f32.gmra.mrb[0].mxu0 %v1289
    %v2095 = vpop.f32.mrb[0].mxu0
    %v2096 = vadd.f32 0.0, %v2095
    %v2097 = vpop.f32.mrb[0].mxu0
    %2098 = vmatprep.mubr.f32.mxu0 0.0
    %2099 = vmatmul.mubr.f32.gmra.mrb[0].mxu0 %v1292
    %v2100 = vpop.f32.mrb[0].mxu0
    %v2101 = vadd.f32 0.0, %v2100
    %v2102 = vpop.f32.mrb[0].mxu0
    %2103 = vmatprep.mubr.f32.mxu0 0.0
    %2104 = vmatmul.mubr.f32.gmra.mrb[0].mxu0 %v1295
    %v2105 = vpop.f32.mrb[0].mxu0
    %v2106 = vadd.f32 0.0, %v2105
    %v2107 = vpop.f32.mrb[0].mxu0
    %2108 = vmatprep.mubr.f32.mxu0 0.0
    %2109 = vmatmul.mubr.f32.gmra.mrb[0].mxu0 %v1298
    %v2110 = vpop.f32.mrb[0].mxu0
    %v2111 = vadd.f32 0.0, %v2110
    %v2112 = vpop.f32.mrb[0].mxu0
    %2113 = vmatprep.mubr.f32.mxu0 0.0
    %2114 = vmatmul.mubr.f32.gmra.mrb[0].mxu0 %v1301
    %v2115 = vpop.f32.mrb[0].mxu0
    %v2116 = vadd.f32 0.0, %v2115
    %v2117 = vpop.f32.mrb[0].mxu0
    %2118 = vmatprep.mubr.f32.mxu0 0.0
    %2119 = vmatmul.mubr.f32.gmra.mrb[0].mxu0 %v1304
    %v2120 = vpop.f32.mrb[0].mxu0
    %v2121 = vadd.f32 0.0, %v2120
    %v2122 = vpop.f32.mrb[0].mxu0
    %2123 = vmatprep.mubr.f32.mxu0 0.0
    %2124 = vmatmul.mubr.f32.gmra.mrb[0].mxu0 %v1307
    %v2125 = vpop.f32.mrb[0].mxu0
    %v2126 = vadd.f32 0.0, %v2125
    %v2127 = vpop.f32.mrb[0].mxu0
    %2128 = vmatprep.mubr.f32.mxu0 0.0
    %2129 = vmatmul.mubr.f32.gmra.mrb[0].mxu0 %v1310
    %v2130 = vpop.f32.mrb[0].mxu0
    %v2131 = vadd.f32 0.0, %v2130
    %v2132 = vpop.f32.mrb[0].mxu0
    %2133 = vmatprep.mubr.f32.mxu0 0.0
    %2134 = vmatmul.mubr.f32.gmra.mrb[0].mxu0 %v1313
    %v2135 = vpop.f32.mrb[0].mxu0
    %v2136 = vadd.f32 0.0, %v2135
    %v2137 = vpop.f32.mrb[0].mxu0
    %2138 = vmatprep.mubr.f32.mxu0 0.0
    %2139 = vmatmul.mubr.f32.gmra.mrb[0].mxu0 %v1316
    %v2140 = vpop.f32.mrb[0].mxu0
    %v2141 = vadd.f32 0.0, %v2140
    %v2142 = vpop.f32.mrb[0].mxu0
    %2143 = vmatprep.mubr.f32.mxu0 0.0
    %2144 = vmatmul.mubr.f32.gmra.mrb[0].mxu0 %v1319
    %v2145 = vpop.f32.mrb[0].mxu0
    %v2146 = vadd.f32 0.0, %v2145
    %v2147 = vpop.f32.mrb[0].mxu0
    %2148 = vmatprep.mubr.f32.mxu0 0.0
    %2149 = vmatmul.mubr.f32.gmra.mrb[0].mxu0 %v1322
    %v2150 = vpop.f32.mrb[0].mxu0
    %v2151 = vadd.f32 0.0, %v2150
    %v2152 = vpop.f32.mrb[0].mxu0
    %2153 = vmatprep.mubr.f32.mxu0 0.0
    %2154 = vmatmul.mubr.f32.gmra.mrb[0].mxu0 %v1325
    %v2155 = vpop.f32.mrb[0].mxu0
    %v2156 = vadd.f32 0.0, %v2155
    %v2157 = vpop.f32.mrb[0].mxu0
    %2158 = vmatprep.mubr.f32.mxu0 0.0
    %2159 = vmatmul.mubr.f32.gmra.mrb[0].mxu0 %v1328
    %v2160 = vpop.f32.mrb[0].mxu0
    %v2161 = vadd.f32 0.0, %v2160
    %v2162 = vpop.f32.mrb[0].mxu0
    %2163 = vdwg.mxu0
    %v2164 = vmul.f32 %v1397, %v1397
    %v2165 = vmul.f32 %v1399, %v1399
    %v2166 = vmul.f32 %v1403, %v1403
    %v2167 = vmul.f32 %v1405, %v1405
    %v2168 = vmul.f32 %v1409, %v1409
    %v2169 = vmul.f32 %v1411, %v1411
    %v2170 = vmul.f32 %v1415, %v1415
    %v2171 = vmul.f32 %v1417, %v1417
    %v2172 = vmul.f32 %v1421, %v1421
    %v2173 = vmul.f32 %v1423, %v1423
    %v2174 = vmul.f32 %v1427, %v1427
    %v2175 = vmul.f32 %v1429, %v1429
    %v2176 = vmul.f32 %v1433, %v1433
    %v2177 = vmul.f32 %v1435, %v1435
    %v2178 = vmul.f32 %v1439, %v1439
    %v2179 = vmul.f32 %v1441, %v1441
    %v2180 = vmul.f32 %v1445, %v1445
    %v2181 = vmul.f32 %v1447, %v1447
    %v2182 = vmul.f32 %v1451, %v1451
    %v2183 = vmul.f32 %v1453, %v1453
    %v2184 = vmul.f32 %v1457, %v1457
    %v2185 = vmul.f32 %v1459, %v1459
    %v2186 = vmul.f32 %v1463, %v1463
    %v2187 = vmul.f32 %v1465, %v1465
    %v2188 = vmul.f32 %v1469, %v1469
    %v2189 = vmul.f32 %v1471, %v1471
    %v2190 = vmul.f32 %v1475, %v1475
    %v2191 = vmul.f32 %v1477, %v1477
    %v2192 = vmul.f32 %v1481, %v1481
    %v2193 = vmul.f32 %v1483, %v1483
    %v2194 = vmul.f32 %v1487, %v1487
    %v2195 = vmul.f32 %v1489, %v1489
    %v2196 = vmul.f32 %v1493, %v1493
    %v2197 = vmul.f32 %v1495, %v1495
    %v2198 = vmul.f32 %v1499, %v1499
    %v2199 = vmul.f32 %v1501, %v1501
    %v2200 = vmul.f32 %v1505, %v1505
    %v2201 = vmul.f32 %v1507, %v1507
    %v2202 = vmul.f32 %v1511, %v1511
    %v2203 = vmul.f32 %v1513, %v1513
    %v2204 = vmul.f32 %v1517, %v1517
    %v2205 = vmul.f32 %v1519, %v1519
    %v2206 = vmul.f32 %v1523, %v1523
    %v2207 = vmul.f32 %v1525, %v1525
    %v2208 = vmul.f32 %v1529, %v1529
    %v2209 = vmul.f32 %v1531, %v1531
    %v2210 = vmul.f32 %v1535, %v1535
    %v2211 = vmul.f32 %v1537, %v1537
    %v2212 = vmul.f32 %v1541, %v1541
    %v2213 = vmul.f32 %v1543, %v1543
    %v2214 = vmul.f32 %v1547, %v1547
    %v2215 = vmul.f32 %v1549, %v1549
    %v2216 = vmul.f32 %v1553, %v1553
    %v2217 = vmul.f32 %v1555, %v1555
    %v2218 = vmul.f32 %v1559, %v1559
    %v2219 = vmul.f32 %v1561, %v1561
    %v2220 = vmul.f32 %v1565, %v1565
    %v2221 = vmul.f32 %v1567, %v1567
    %v2222 = vmul.f32 %v1571, %v1571
    %v2223 = vmul.f32 %v1573, %v1573
    %v2224 = vmul.f32 %v1577, %v1577
    %v2225 = vmul.f32 %v1579, %v1579
    %v2226 = vmul.f32 %v1583, %v1583
    %v2227 = vmul.f32 %v1585, %v1585
    %v2228 = vmul.f32 %v1589, %v1589
    %v2229 = vmul.f32 %v1591, %v1591
    %v2230 = vmul.f32 %v1595, %v1595
    %v2231 = vmul.f32 %v1597, %v1597
    %v2232 = vmul.f32 %v1601, %v1601
    %v2233 = vmul.f32 %v1603, %v1603
    %v2234 = vmul.f32 %v1607, %v1607
    %v2235 = vmul.f32 %v1609, %v1609
    %v2236 = vmul.f32 %v1613, %v1613
    %v2237 = vmul.f32 %v1615, %v1615
    %v2238 = vmul.f32 %v1619, %v1619
    %v2239 = vmul.f32 %v1621, %v1621
    %v2240 = vmul.f32 %v1625, %v1625
    %v2241 = vmul.f32 %v1627, %v1627
    %v2242 = vmul.f32 %v1631, %v1631
    %v2243 = vmul.f32 %v1633, %v1633
    %v2244 = vmul.f32 %v1637, %v1637
    %v2245 = vmul.f32 %v1639, %v1639
    %v2246 = vmul.f32 %v1643, %v1643
    %v2247 = vmul.f32 %v1645, %v1645
    %v2248 = vmul.f32 %v1649, %v1649
    %v2249 = vmul.f32 %v1651, %v1651
    %v2250 = vmul.f32 %v1655, %v1655
    %v2251 = vmul.f32 %v1657, %v1657
    %v2252 = vmul.f32 %v1661, %v1661
    %v2253 = vmul.f32 %v1663, %v1663
    %v2254 = vmul.f32 %v1667, %v1667
    %v2255 = vmul.f32 %v1669, %v1669
    %v2256 = vmul.f32 %v1673, %v1673
    %v2257 = vmul.f32 %v1675, %v1675
    %v2258 = vmul.f32 %v1679, %v1679
    %v2259 = vmul.f32 %v1681, %v1681
    %v2260 = vmul.f32 %v1685, %v1685
    %v2261 = vmul.f32 %v1687, %v1687
    %v2262 = vmul.f32 %v1691, %v1691
    %v2263 = vmul.f32 %v1693, %v1693
    %v2264 = vmul.f32 %v1697, %v1697
    %v2265 = vmul.f32 %v1699, %v1699
    %v2266 = vmul.f32 %v1703, %v1703
    %v2267 = vmul.f32 %v1705, %v1705
    %v2268 = vmul.f32 %v1709, %v1709
    %v2269 = vmul.f32 %v1711, %v1711
    %v2270 = vmul.f32 %v1715, %v1715
    %v2271 = vmul.f32 %v1717, %v1717
    %v2272 = vmul.f32 %v1721, %v1721
    %v2273 = vmul.f32 %v1723, %v1723
    %v2274 = vmul.f32 %v1727, %v1727
    %v2275 = vmul.f32 %v1729, %v1729
    %v2276 = vmul.f32 %v1733, %v1733
    %v2277 = vmul.f32 %v1735, %v1735
    %v2278 = vmul.f32 %v1739, %v1739
    %v2279 = vmul.f32 %v1741, %v1741
    %v2280 = vmul.f32 %v1745, %v1745
    %v2281 = vmul.f32 %v1747, %v1747
    %v2282 = vmul.f32 %v1751, %v1751
    %v2283 = vmul.f32 %v1753, %v1753
    %v2284 = vmul.f32 %v1757, %v1757
    %v2285 = vmul.f32 %v1759, %v1759
    %v2286 = vmul.f32 %v1763, %v1763
    %v2287 = vmul.f32 %v1765, %v1765
    %v2288 = vmul.f32 %v1769, %v1769
    %v2289 = vmul.f32 %v1771, %v1771
    %v2290 = vmul.f32 %v1775, %v1775
    %v2291 = vmul.f32 %v1777, %v1777
    %v2292 = vld [vmem:[%s4] sm:$0xff]
    %v2293 = vld [vmem:[%s4 + $0x8] sm:$0xff]
    %v2294 = vld [vmem:[%s4 + $0x10] sm:$0xff]
    %v2295 = vld [vmem:[%s4 + $0x18] sm:$0xff]
    %v2296 = vld [vmem:[%s4 + $0x20] sm:$0xff]
    %v2297 = vld [vmem:[%s4 + $0x28] sm:$0xff]
    %v2298 = vld [vmem:[%s4 + $0x30] sm:$0xff]
    %v2299 = vld [vmem:[%s4 + $0x38] sm:$0xff]
    %v2300 = vld [vmem:[%s4 + $0x40] sm:$0xff]
    %v2301 = vld [vmem:[%s4 + $0x48] sm:$0xff]
    %v2302 = vld [vmem:[%s4 + $0x50] sm:$0xff]
    %v2303 = vld [vmem:[%s4 + $0x58] sm:$0xff]
    %v2304 = vld [vmem:[%s4 + $0x60] sm:$0xff]
    %v2305 = vld [vmem:[%s4 + $0x68] sm:$0xff]
    %v2306 = vld [vmem:[%s4 + $0x70] sm:$0xff]
    %v2307 = vld [vmem:[%s4 + $0x78] sm:$0xff]
    %v2308 = vld [vmem:[%s4 + $0x80] sm:$0xff]
    %v2309 = vld [vmem:[%s4 + $0x88] sm:$0xff]
    %v2310 = vld [vmem:[%s4 + $0x90] sm:$0xff]
    %v2311 = vld [vmem:[%s4 + $0x98] sm:$0xff]
    %v2312 = vld [vmem:[%s4 + $0xa0] sm:$0xff]
    %v2313 = vld [vmem:[%s4 + $0xa8] sm:$0xff]
    %v2314 = vld [vmem:[%s4 + $0xb0] sm:$0xff]
    %v2315 = vld [vmem:[%s4 + $0xb8] sm:$0xff]
    %v2316 = vld [vmem:[%s4 + $0xc0] sm:$0xff]
    %v2317 = vld [vmem:[%s4 + $0xc8] sm:$0xff]
    %v2318 = vld [vmem:[%s4 + $0xd0] sm:$0xff]
    %v2319 = vld [vmem:[%s4 + $0xd8] sm:$0xff]
    %v2320 = vld [vmem:[%s4 + $0xe0] sm:$0xff]
    %v2321 = vld [vmem:[%s4 + $0xe8] sm:$0xff]
    %v2322 = vld [vmem:[%s4 + $0xf0] sm:$0xff]
    %v2323 = vld [vmem:[%s4 + $0xf8] sm:$0xff]
    %2324 = vmatprep.subr.mxu0 0.0
    %2325 = vmatpush1.msra.mxu0 %v2292
    %2326 = vmatprep.subr.mxu0 0.0
    %2327 = vmatpush1.msra.mxu0 %v2293
    %2328 = vmatprep.subr.mxu0 0.0
    %2329 = vmatpush1.msra.mxu0 %v2294
    %2330 = vmatprep.subr.mxu0 0.0
    %2331 = vmatpush1.msra.mxu0 %v2295
    %2332 = vmatprep.subr.mxu0 0.0
    %2333 = vmatpush1.msra.mxu0 %v2296
    %2334 = vmatprep.subr.mxu0 0.0
    %2335 = vmatpush1.msra.mxu0 %v2297
    %2336 = vmatprep.subr.mxu0 0.0
    %2337 = vmatpush1.msra.mxu0 %v2298
    %2338 = vmatprep.subr.mxu0 0.0
    %2339 = vmatpush1.msra.mxu0 %v2299
    %2340 = vmatprep.subr.mxu0 0.0
    %2341 = vmatpush1.msra.mxu0 %v2300
    %2342 = vmatprep.subr.mxu0 0.0
    %2343 = vmatpush1.msra.mxu0 %v2301
    %2344 = vmatprep.subr.mxu0 0.0
    %2345 = vmatpush1.msra.mxu0 %v2302
    %2346 = vmatprep.subr.mxu0 0.0
    %2347 = vmatpush1.msra.mxu0 %v2303
    %2348 = vmatprep.subr.mxu0 0.0
    %2349 = vmatpush1.msra.mxu0 %v2304
    %2350 = vmatprep.subr.mxu0 0.0
    %2351 = vmatpush1.msra.mxu0 %v2305
    %2352 = vmatprep.subr.mxu0 0.0
    %2353 = vmatpush1.msra.mxu0 %v2306
    %2354 = vmatprep.subr.mxu0 0.0
    %2355 = vmatpush1.msra.mxu0 %v2307
    %2356 = vmatprep.subr.mxu0 0.0
    %2357 = vmatpush1.msra.mxu0 %v2308
    %2358 = vmatprep.subr.mxu0 0.0
    %2359 = vmatpush1.msra.mxu0 %v2309
    %2360 = vmatprep.subr.mxu0 0.0
    %2361 = vmatpush1.msra.mxu0 %v2310
    %2362 = vmatprep.subr.mxu0 0.0
    %2363 = vmatpush1.msra.mxu0 %v2311
    %2364 = vmatprep.subr.mxu0 0.0
    %2365 = vmatpush1.msra.mxu0 %v2312
    %2366 = vmatprep.subr.mxu0 0.0
    %2367 = vmatpush1.msra.mxu0 %v2313
    %2368 = vmatprep.subr.mxu0 0.0
    %2369 = vmatpush1.msra.mxu0 %v2314
    %2370 = vmatprep.subr.mxu0 0.0
    %2371 = vmatpush1.msra.mxu0 %v2315
    %2372 = vmatprep.subr.mxu0 0.0
    %2373 = vmatpush1.msra.mxu0 %v2316
    %2374 = vmatprep.subr.mxu0 0.0
    %2375 = vmatpush1.msra.mxu0 %v2317
    %2376 = vmatprep.subr.mxu0 0.0
    %2377 = vmatpush1.msra.mxu0 %v2318
    %2378 = vmatprep.subr.mxu0 0.0
    %2379 = vmatpush1.msra.mxu0 %v2319
    %2380 = vmatprep.subr.mxu0 0.0
    %2381 = vmatpush1.msra.mxu0 %v2320
    %2382 = vmatprep.subr.mxu0 0.0
    %2383 = vmatpush1.msra.mxu0 %v2321
    %2384 = vmatprep.subr.mxu0 0.0
    %2385 = vmatpush1.msra.mxu0 %v2322
    %2386 = vmatprep.subr.mxu0 0.0
    %2387 = vmatpush1.msra.mxu0 %v2323
    %2388 = vmatprep.mubr.f32.mxu0 %v2165
    %2389 = vmatmul.mubr.f32.gmra.mrb[0].mxu0 %v2164
    %v2390 = vpop.f32.mrb[0].mxu0
    %v2391 = vadd.f32 0.0, %v2390
    %v2392 = vpop.f32.mrb[0].mxu0
    %2393 = vmatprep.mubr.f32.mxu0 %v2167
    %2394 = vmatmul.mubr.f32.gmra.mrb[0].mxu0 %v2166
    %v2395 = vpop.f32.mrb[0].mxu0
    %v2396 = vadd.f32 0.0, %v2395
    %v2397 = vpop.f32.mrb[0].mxu0
    %2398 = vmatprep.mubr.f32.mxu0 %v2169
    %2399 = vmatmul.mubr.f32.gmra.mrb[0].mxu0 %v2168
    %v2400 = vpop.f32.mrb[0].mxu0
    %v2401 = vadd.f32 0.0, %v2400
    %v2402 = vpop.f32.mrb[0].mxu0
    %2403 = vmatprep.mubr.f32.mxu0 %v2171
    %2404 = vmatmul.mubr.f32.gmra.mrb[0].mxu0 %v2170
    %v2405 = vpop.f32.mrb[0].mxu0
    %v2406 = vadd.f32 0.0, %v2405
    %v2407 = vpop.f32.mrb[0].mxu0
    %2408 = vmatprep.mubr.f32.mxu0 %v2173
    %2409 = vmatmul.mubr.f32.gmra.mrb[0].mxu0 %v2172
    %v2410 = vpop.f32.mrb[0].mxu0
    %v2411 = vadd.f32 0.0, %v2410
    %v2412 = vpop.f32.mrb[0].mxu0
    %2413 = vmatprep.mubr.f32.mxu0 %v2175
    %2414 = vmatmul.mubr.f32.gmra.mrb[0].mxu0 %v2174
    %v2415 = vpop.f32.mrb[0].mxu0
    %v2416 = vadd.f32 0.0, %v2415
    %v2417 = vpop.f32.mrb[0].mxu0
    %2418 = vmatprep.mubr.f32.mxu0 %v2177
    %2419 = vmatmul.mubr.f32.gmra.mrb[0].mxu0 %v2176
    %v2420 = vpop.f32.mrb[0].mxu0
    %v2421 = vadd.f32 0.0, %v2420
    %v2422 = vpop.f32.mrb[0].mxu0
    %2423 = vmatprep.mubr.f32.mxu0 %v2179
    %2424 = vmatmul.mubr.f32.gmra.mrb[0].mxu0 %v2178
    %v2425 = vpop.f32.mrb[0].mxu0
    %v2426 = vadd.f32 0.0, %v2425
    %v2427 = vpop.f32.mrb[0].mxu0
    %2428 = vmatprep.mubr.f32.mxu0 %v2181
    %2429 = vmatmul.mubr.f32.gmra.mrb[0].mxu0 %v2180
    %v2430 = vpop.f32.mrb[0].mxu0
    %v2431 = vadd.f32 0.0, %v2430
    %v2432 = vpop.f32.mrb[0].mxu0
    %2433 = vmatprep.mubr.f32.mxu0 %v2183
    %2434 = vmatmul.mubr.f32.gmra.mrb[0].mxu0 %v2182
    %v2435 = vpop.f32.mrb[0].mxu0
    %v2436 = vadd.f32 0.0, %v2435
    %v2437 = vpop.f32.mrb[0].mxu0
    %2438 = vmatprep.mubr.f32.mxu0 %v2185
    %2439 = vmatmul.mubr.f32.gmra.mrb[0].mxu0 %v2184
    %v2440 = vpop.f32.mrb[0].mxu0
    %v2441 = vadd.f32 0.0, %v2440
    %v2442 = vpop.f32.mrb[0].mxu0
    %2443 = vmatprep.mubr.f32.mxu0 %v2187
    %2444 = vmatmul.mubr.f32.gmra.mrb[0].mxu0 %v2186
    %v2445 = vpop.f32.mrb[0].mxu0
    %v2446 = vadd.f32 0.0, %v2445
    %v2447 = vpop.f32.mrb[0].mxu0
    %2448 = vmatprep.mubr.f32.mxu0 %v2189
    %2449 = vmatmul.mubr.f32.gmra.mrb[0].mxu0 %v2188
    %v2450 = vpop.f32.mrb[0].mxu0
    %v2451 = vadd.f32 0.0, %v2450
    %v2452 = vpop.f32.mrb[0].mxu0
    %2453 = vmatprep.mubr.f32.mxu0 %v2191
    %2454 = vmatmul.mubr.f32.gmra.mrb[0].mxu0 %v2190
    %v2455 = vpop.f32.mrb[0].mxu0
    %v2456 = vadd.f32 0.0, %v2455
    %v2457 = vpop.f32.mrb[0].mxu0
    %2458 = vmatprep.mubr.f32.mxu0 %v2193
    %2459 = vmatmul.mubr.f32.gmra.mrb[0].mxu0 %v2192
    %v2460 = vpop.f32.mrb[0].mxu0
    %v2461 = vadd.f32 0.0, %v2460
    %v2462 = vpop.f32.mrb[0].mxu0
    %2463 = vmatprep.mubr.f32.mxu0 %v2195
    %2464 = vmatmul.mubr.f32.gmra.mrb[0].mxu0 %v2194
    %v2465 = vpop.f32.mrb[0].mxu0
    %v2466 = vadd.f32 0.0, %v2465
    %v2467 = vpop.f32.mrb[0].mxu0
    %2468 = vmatprep.mubr.f32.mxu0 %v2197
    %2469 = vmatmul.mubr.f32.gmra.mrb[0].mxu0 %v2196
    %v2470 = vpop.f32.mrb[0].mxu0
    %v2471 = vadd.f32 0.0, %v2470
    %v2472 = vpop.f32.mrb[0].mxu0
    %2473 = vmatprep.mubr.f32.mxu0 %v2199
    %2474 = vmatmul.mubr.f32.gmra.mrb[0].mxu0 %v2198
    %v2475 = vpop.f32.mrb[0].mxu0
    %v2476 = vadd.f32 0.0, %v2475
    %v2477 = vpop.f32.mrb[0].mxu0
    %2478 = vmatprep.mubr.f32.mxu0 %v2201
    %2479 = vmatmul.mubr.f32.gmra.mrb[0].mxu0 %v2200
    %v2480 = vpop.f32.mrb[0].mxu0
    %v2481 = vadd.f32 0.0, %v2480
    %v2482 = vpop.f32.mrb[0].mxu0
    %2483 = vmatprep.mubr.f32.mxu0 %v2203
    %2484 = vmatmul.mubr.f32.gmra.mrb[0].mxu0 %v2202
    %v2485 = vpop.f32.mrb[0].mxu0
    %v2486 = vadd.f32 0.0, %v2485
    %v2487 = vpop.f32.mrb[0].mxu0
    %2488 = vmatprep.mubr.f32.mxu0 %v2205
    %2489 = vmatmul.mubr.f32.gmra.mrb[0].mxu0 %v2204
    %v2490 = vpop.f32.mrb[0].mxu0
    %v2491 = vadd.f32 0.0, %v2490
    %v2492 = vpop.f32.mrb[0].mxu0
    %2493 = vmatprep.mubr.f32.mxu0 %v2207
    %2494 = vmatmul.mubr.f32.gmra.mrb[0].mxu0 %v2206
    %v2495 = vpop.f32.mrb[0].mxu0
    %v2496 = vadd.f32 0.0, %v2495
    %v2497 = vpop.f32.mrb[0].mxu0
    %2498 = vmatprep.mubr.f32.mxu0 %v2209
    %2499 = vmatmul.mubr.f32.gmra.mrb[0].mxu0 %v2208
    %v2500 = vpop.f32.mrb[0].mxu0
    %v2501 = vadd.f32 0.0, %v2500
    %v2502 = vpop.f32.mrb[0].mxu0
    %2503 = vmatprep.mubr.f32.mxu0 %v2211
    %2504 = vmatmul.mubr.f32.gmra.mrb[0].mxu0 %v2210
    %v2505 = vpop.f32.mrb[0].mxu0
    %v2506 = vadd.f32 0.0, %v2505
    %v2507 = vpop.f32.mrb[0].mxu0
    %2508 = vmatprep.mubr.f32.mxu0 %v2213
    %2509 = vmatmul.mubr.f32.gmra.mrb[0].mxu0 %v2212
    %v2510 = vpop.f32.mrb[0].mxu0
    %v2511 = vadd.f32 0.0, %v2510
    %v2512 = vpop.f32.mrb[0].mxu0
    %2513 = vmatprep.mubr.f32.mxu0 %v2215
    %2514 = vmatmul.mubr.f32.gmra.mrb[0].mxu0 %v2214
    %v2515 = vpop.f32.mrb[0].mxu0
    %v2516 = vadd.f32 0.0, %v2515
    %v2517 = vpop.f32.mrb[0].mxu0
    %2518 = vmatprep.mubr.f32.mxu0 %v2217
    %2519 = vmatmul.mubr.f32.gmra.mrb[0].mxu0 %v2216
    %v2520 = vpop.f32.mrb[0].mxu0
    %v2521 = vadd.f32 0.0, %v2520
    %v2522 = vpop.f32.mrb[0].mxu0
    %2523 = vmatprep.mubr.f32.mxu0 %v2219
    %2524 = vmatmul.mubr.f32.gmra.mrb[0].mxu0 %v2218
    %v2525 = vpop.f32.mrb[0].mxu0
    %v2526 = vadd.f32 0.0, %v2525
    %v2527 = vpop.f32.mrb[0].mxu0
    %2528 = vmatprep.mubr.f32.mxu0 %v2221
    %2529 = vmatmul.mubr.f32.gmra.mrb[0].mxu0 %v2220
    %v2530 = vpop.f32.mrb[0].mxu0
    %v2531 = vadd.f32 0.0, %v2530
    %v2532 = vpop.f32.mrb[0].mxu0
    %2533 = vmatprep.mubr.f32.mxu0 %v2223
    %2534 = vmatmul.mubr.f32.gmra.mrb[0].mxu0 %v2222
    %v2535 = vpop.f32.mrb[0].mxu0
    %v2536 = vadd.f32 0.0, %v2535
    %v2537 = vpop.f32.mrb[0].mxu0
    %2538 = vmatprep.mubr.f32.mxu0 %v2225
    %2539 = vmatmul.mubr.f32.gmra.mrb[0].mxu0 %v2224
    %v2540 = vpop.f32.mrb[0].mxu0
    %v2541 = vadd.f32 0.0, %v2540
    %v2542 = vpop.f32.mrb[0].mxu0
    %2543 = vmatprep.mubr.f32.mxu0 %v2227
    %2544 = vmatmul.mubr.f32.gmra.mrb[0].mxu0 %v2226
    %v2545 = vpop.f32.mrb[0].mxu0
    %v2546 = vadd.f32 0.0, %v2545
    %v2547 = vpop.f32.mrb[0].mxu0
    %2548 = vmatprep.mubr.f32.mxu0 %v2229
    %2549 = vmatmul.mubr.f32.gmra.mrb[0].mxu0 %v2228
    %v2550 = vpop.f32.mrb[0].mxu0
    %v2551 = vadd.f32 0.0, %v2550
    %v2552 = vpop.f32.mrb[0].mxu0
    %2553 = vmatprep.mubr.f32.mxu0 %v2231
    %2554 = vmatmul.mubr.f32.gmra.mrb[0].mxu0 %v2230
    %v2555 = vpop.f32.mrb[0].mxu0
    %v2556 = vadd.f32 0.0, %v2555
    %v2557 = vpop.f32.mrb[0].mxu0
    %2558 = vmatprep.mubr.f32.mxu0 %v2233
    %2559 = vmatmul.mubr.f32.gmra.mrb[0].mxu0 %v2232
    %v2560 = vpop.f32.mrb[0].mxu0
    %v2561 = vadd.f32 0.0, %v2560
    %v2562 = vpop.f32.mrb[0].mxu0
    %2563 = vmatprep.mubr.f32.mxu0 %v2235
    %2564 = vmatmul.mubr.f32.gmra.mrb[0].mxu0 %v2234
    %v2565 = vpop.f32.mrb[0].mxu0
    %v2566 = vadd.f32 0.0, %v2565
    %v2567 = vpop.f32.mrb[0].mxu0
    %2568 = vmatprep.mubr.f32.mxu0 %v2237
    %2569 = vmatmul.mubr.f32.gmra.mrb[0].mxu0 %v2236
    %v2570 = vpop.f32.mrb[0].mxu0
    %v2571 = vadd.f32 0.0, %v2570
    %v2572 = vpop.f32.mrb[0].mxu0
    %2573 = vmatprep.mubr.f32.mxu0 %v2239
    %2574 = vmatmul.mubr.f32.gmra.mrb[0].mxu0 %v2238
    %v2575 = vpop.f32.mrb[0].mxu0
    %v2576 = vadd.f32 0.0, %v2575
    %v2577 = vpop.f32.mrb[0].mxu0
    %2578 = vmatprep.mubr.f32.mxu0 %v2241
    %2579 = vmatmul.mubr.f32.gmra.mrb[0].mxu0 %v2240
    %v2580 = vpop.f32.mrb[0].mxu0
    %v2581 = vadd.f32 0.0, %v2580
    %v2582 = vpop.f32.mrb[0].mxu0
    %2583 = vmatprep.mubr.f32.mxu0 %v2243
    %2584 = vmatmul.mubr.f32.gmra.mrb[0].mxu0 %v2242
    %v2585 = vpop.f32.mrb[0].mxu0
    %v2586 = vadd.f32 0.0, %v2585
    %v2587 = vpop.f32.mrb[0].mxu0
    %2588 = vmatprep.mubr.f32.mxu0 %v2245
    %2589 = vmatmul.mubr.f32.gmra.mrb[0].mxu0 %v2244
    %v2590 = vpop.f32.mrb[0].mxu0
    %v2591 = vadd.f32 0.0, %v2590
    %v2592 = vpop.f32.mrb[0].mxu0
    %2593 = vmatprep.mubr.f32.mxu0 %v2247
    %2594 = vmatmul.mubr.f32.gmra.mrb[0].mxu0 %v2246
    %v2595 = vpop.f32.mrb[0].mxu0
    %v2596 = vadd.f32 0.0, %v2595
    %v2597 = vpop.f32.mrb[0].mxu0
    %2598 = vmatprep.mubr.f32.mxu0 %v2249
    %2599 = vmatmul.mubr.f32.gmra.mrb[0].mxu0 %v2248
    %v2600 = vpop.f32.mrb[0].mxu0
    %v2601 = vadd.f32 0.0, %v2600
    %v2602 = vpop.f32.mrb[0].mxu0
    %2603 = vmatprep.mubr.f32.mxu0 %v2251
    %2604 = vmatmul.mubr.f32.gmra.mrb[0].mxu0 %v2250
    %v2605 = vpop.f32.mrb[0].mxu0
    %v2606 = vadd.f32 0.0, %v2605
    %v2607 = vpop.f32.mrb[0].mxu0
    %2608 = vmatprep.mubr.f32.mxu0 %v2253
    %2609 = vmatmul.mubr.f32.gmra.mrb[0].mxu0 %v2252
    %v2610 = vpop.f32.mrb[0].mxu0
    %v2611 = vadd.f32 0.0, %v2610
    %v2612 = vpop.f32.mrb[0].mxu0
    %2613 = vmatprep.mubr.f32.mxu0 %v2255
    %2614 = vmatmul.mubr.f32.gmra.mrb[0].mxu0 %v2254
    %v2615 = vpop.f32.mrb[0].mxu0
    %v2616 = vadd.f32 0.0, %v2615
    %v2617 = vpop.f32.mrb[0].mxu0
    %2618 = vmatprep.mubr.f32.mxu0 %v2257
    %2619 = vmatmul.mubr.f32.gmra.mrb[0].mxu0 %v2256
    %v2620 = vpop.f32.mrb[0].mxu0
    %v2621 = vadd.f32 0.0, %v2620
    %v2622 = vpop.f32.mrb[0].mxu0
    %2623 = vmatprep.mubr.f32.mxu0 %v2259
    %2624 = vmatmul.mubr.f32.gmra.mrb[0].mxu0 %v2258
    %v2625 = vpop.f32.mrb[0].mxu0
    %v2626 = vadd.f32 0.0, %v2625
    %v2627 = vpop.f32.mrb[0].mxu0
    %2628 = vmatprep.mubr.f32.mxu0 %v2261
    %2629 = vmatmul.mubr.f32.gmra.mrb[0].mxu0 %v2260
    %v2630 = vpop.f32.mrb[0].mxu0
    %v2631 = vadd.f32 0.0, %v2630
    %v2632 = vpop.f32.mrb[0].mxu0
    %2633 = vmatprep.mubr.f32.mxu0 %v2263
    %2634 = vmatmul.mubr.f32.gmra.mrb[0].mxu0 %v2262
    %v2635 = vpop.f32.mrb[0].mxu0
    %v2636 = vadd.f32 0.0, %v2635
    %v2637 = vpop.f32.mrb[0].mxu0
    %2638 = vmatprep.mubr.f32.mxu0 %v2265
    %2639 = vmatmul.mubr.f32.gmra.mrb[0].mxu0 %v2264
    %v2640 = vpop.f32.mrb[0].mxu0
    %v2641 = vadd.f32 0.0, %v2640
    %v2642 = vpop.f32.mrb[0].mxu0
    %2643 = vmatprep.mubr.f32.mxu0 %v2267
    %2644 = vmatmul.mubr.f32.gmra.mrb[0].mxu0 %v2266
    %v2645 = vpop.f32.mrb[0].mxu0
    %v2646 = vadd.f32 0.0, %v2645
    %v2647 = vpop.f32.mrb[0].mxu0
    %2648 = vmatprep.mubr.f32.mxu0 %v2269
    %2649 = vmatmul.mubr.f32.gmra.mrb[0].mxu0 %v2268
    %v2650 = vpop.f32.mrb[0].mxu0
    %v2651 = vadd.f32 0.0, %v2650
    %v2652 = vpop.f32.mrb[0].mxu0
    %2653 = vmatprep.mubr.f32.mxu0 %v2271
    %2654 = vmatmul.mubr.f32.gmra.mrb[0].mxu0 %v2270
    %v2655 = vpop.f32.mrb[0].mxu0
    %v2656 = vadd.f32 0.0, %v2655
    %v2657 = vpop.f32.mrb[0].mxu0
    %2658 = vmatprep.mubr.f32.mxu0 %v2273
    %2659 = vmatmul.mubr.f32.gmra.mrb[0].mxu0 %v2272
    %v2660 = vpop.f32.mrb[0].mxu0
    %v2661 = vadd.f32 0.0, %v2660
    %v2662 = vpop.f32.mrb[0].mxu0
    %2663 = vmatprep.mubr.f32.mxu0 %v2275
    %2664 = vmatmul.mubr.f32.gmra.mrb[0].mxu0 %v2274
    %v2665 = vpop.f32.mrb[0].mxu0
    %v2666 = vadd.f32 0.0, %v2665
    %v2667 = vpop.f32.mrb[0].mxu0
    %2668 = vmatprep.mubr.f32.mxu0 %v2277
    %2669 = vmatmul.mubr.f32.gmra.mrb[0].mxu0 %v2276
    %v2670 = vpop.f32.mrb[0].mxu0
    %v2671 = vadd.f32 0.0, %v2670
    %v2672 = vpop.f32.mrb[0].mxu0
    %2673 = vmatprep.mubr.f32.mxu0 %v2279
    %2674 = vmatmul.mubr.f32.gmra.mrb[0].mxu0 %v2278
    %v2675 = vpop.f32.mrb[0].mxu0
    %v2676 = vadd.f32 0.0, %v2675
    %v2677 = vpop.f32.mrb[0].mxu0
    %2678 = vmatprep.mubr.f32.mxu0 %v2281
    %2679 = vmatmul.mubr.f32.gmra.mrb[0].mxu0 %v2280
    %v2680 = vpop.f32.mrb[0].mxu0
    %v2681 = vadd.f32 0.0, %v2680
    %v2682 = vpop.f32.mrb[0].mxu0
    %2683 = vmatprep.mubr.f32.mxu0 %v2283
    %2684 = vmatmul.mubr.f32.gmra.mrb[0].mxu0 %v2282
    %v2685 = vpop.f32.mrb[0].mxu0
    %v2686 = vadd.f32 0.0, %v2685
    %v2687 = vpop.f32.mrb[0].mxu0
    %2688 = vmatprep.mubr.f32.mxu0 %v2285
    %2689 = vmatmul.mubr.f32.gmra.mrb[0].mxu0 %v2284
    %v2690 = vpop.f32.mrb[0].mxu0
    %v2691 = vadd.f32 0.0, %v2690
    %v2692 = vpop.f32.mrb[0].mxu0
    %2693 = vmatprep.mubr.f32.mxu0 %v2287
    %2694 = vmatmul.mubr.f32.gmra.mrb[0].mxu0 %v2286
    %v2695 = vpop.f32.mrb[0].mxu0
    %v2696 = vadd.f32 0.0, %v2695
    %v2697 = vpop.f32.mrb[0].mxu0
    %2698 = vmatprep.mubr.f32.mxu0 %v2289
    %2699 = vmatmul.mubr.f32.gmra.mrb[0].mxu0 %v2288
    %v2700 = vpop.f32.mrb[0].mxu0
    %v2701 = vadd.f32 0.0, %v2700
    %v2702 = vpop.f32.mrb[0].mxu0
    %2703 = vmatprep.mubr.f32.mxu0 %v2291
    %2704 = vmatmul.mubr.f32.gmra.mrb[0].mxu0 %v2290
    %v2705 = vpop.f32.mrb[0].mxu0
    %v2706 = vadd.f32 0.0, %v2705
    %v2707 = vpop.f32.mrb[0].mxu0
    %2708 = vdwg.mxu0
    %v2709 = vrsqrt.pop %v2391
    %v2710 = vmul.f32 %v2391, %v2709
    %vm2711 = vcmp.eq.f32.partialorder %v2391, inf
    %v2712 = vsel %vm2711, %v2391, %v2710
    %vm2713 = vcmp.eq.f32.partialorder %v2391, 0.0
    %v2714 = vand.u32 %v2391, 2147483648
    %v2715 = vsel %vm2713, %v2714, %v2712
    %v2716 = vrsqrt.pop %v2396
    %v2717 = vmul.f32 %v2396, %v2716
    %vm2718 = vcmp.eq.f32.partialorder %v2396, inf
    %v2719 = vsel %vm2718, %v2396, %v2717
    %vm2720 = vcmp.eq.f32.partialorder %v2396, 0.0
    %v2721 = vand.u32 %v2396, 2147483648
    %v2722 = vsel %vm2720, %v2721, %v2719
    %v2723 = vrsqrt.pop %v2401
    %v2724 = vmul.f32 %v2401, %v2723
    %vm2725 = vcmp.eq.f32.partialorder %v2401, inf
    %v2726 = vsel %vm2725, %v2401, %v2724
    %vm2727 = vcmp.eq.f32.partialorder %v2401, 0.0
    %v2728 = vand.u32 %v2401, 2147483648
    %v2729 = vsel %vm2727, %v2728, %v2726
    %v2730 = vrsqrt.pop %v2406
    %v2731 = vmul.f32 %v2406, %v2730
    %vm2732 = vcmp.eq.f32.partialorder %v2406, inf
    %v2733 = vsel %vm2732, %v2406, %v2731
    %vm2734 = vcmp.eq.f32.partialorder %v2406, 0.0
    %v2735 = vand.u32 %v2406, 2147483648
    %v2736 = vsel %vm2734, %v2735, %v2733
    %v2737 = vrsqrt.pop %v2411
    %v2738 = vmul.f32 %v2411, %v2737
    %vm2739 = vcmp.eq.f32.partialorder %v2411, inf
    %v2740 = vsel %vm2739, %v2411, %v2738
    %vm2741 = vcmp.eq.f32.partialorder %v2411, 0.0
    %v2742 = vand.u32 %v2411, 2147483648
    %v2743 = vsel %vm2741, %v2742, %v2740
    %v2744 = vrsqrt.pop %v2416
    %v2745 = vmul.f32 %v2416, %v2744
    %vm2746 = vcmp.eq.f32.partialorder %v2416, inf
    %v2747 = vsel %vm2746, %v2416, %v2745
    %vm2748 = vcmp.eq.f32.partialorder %v2416, 0.0
    %v2749 = vand.u32 %v2416, 2147483648
    %v2750 = vsel %vm2748, %v2749, %v2747
    %v2751 = vrsqrt.pop %v2421
    %v2752 = vmul.f32 %v2421, %v2751
    %vm2753 = vcmp.eq.f32.partialorder %v2421, inf
    %v2754 = vsel %vm2753, %v2421, %v2752
    %vm2755 = vcmp.eq.f32.partialorder %v2421, 0.0
    %v2756 = vand.u32 %v2421, 2147483648
    %v2757 = vsel %vm2755, %v2756, %v2754
    %v2758 = vrsqrt.pop %v2426
    %v2759 = vmul.f32 %v2426, %v2758
    %vm2760 = vcmp.eq.f32.partialorder %v2426, inf
    %v2761 = vsel %vm2760, %v2426, %v2759
    %vm2762 = vcmp.eq.f32.partialorder %v2426, 0.0
    %v2763 = vand.u32 %v2426, 2147483648
    %v2764 = vsel %vm2762, %v2763, %v2761
    %v2765 = vrsqrt.pop %v2431
    %v2766 = vmul.f32 %v2431, %v2765
    %vm2767 = vcmp.eq.f32.partialorder %v2431, inf
    %v2768 = vsel %vm2767, %v2431, %v2766
    %vm2769 = vcmp.eq.f32.partialorder %v2431, 0.0
    %v2770 = vand.u32 %v2431, 2147483648
    %v2771 = vsel %vm2769, %v2770, %v2768
    %v2772 = vrsqrt.pop %v2436
    %v2773 = vmul.f32 %v2436, %v2772
    %vm2774 = vcmp.eq.f32.partialorder %v2436, inf
    %v2775 = vsel %vm2774, %v2436, %v2773
    %vm2776 = vcmp.eq.f32.partialorder %v2436, 0.0
    %v2777 = vand.u32 %v2436, 2147483648
    %v2778 = vsel %vm2776, %v2777, %v2775
    %v2779 = vrsqrt.pop %v2441
    %v2780 = vmul.f32 %v2441, %v2779
    %vm2781 = vcmp.eq.f32.partialorder %v2441, inf
    %v2782 = vsel %vm2781, %v2441, %v2780
    %vm2783 = vcmp.eq.f32.partialorder %v2441, 0.0
    %v2784 = vand.u32 %v2441, 2147483648
    %v2785 = vsel %vm2783, %v2784, %v2782
    %v2786 = vrsqrt.pop %v2446
    %v2787 = vmul.f32 %v2446, %v2786
    %vm2788 = vcmp.eq.f32.partialorder %v2446, inf
    %v2789 = vsel %vm2788, %v2446, %v2787
    %vm2790 = vcmp.eq.f32.partialorder %v2446, 0.0
    %v2791 = vand.u32 %v2446, 2147483648
    %v2792 = vsel %vm2790, %v2791, %v2789
    %v2793 = vrsqrt.pop %v2451
    %v2794 = vmul.f32 %v2451, %v2793
    %vm2795 = vcmp.eq.f32.partialorder %v2451, inf
    %v2796 = vsel %vm2795, %v2451, %v2794
    %vm2797 = vcmp.eq.f32.partialorder %v2451, 0.0
    %v2798 = vand.u32 %v2451, 2147483648
    %v2799 = vsel %vm2797, %v2798, %v2796
    %v2800 = vrsqrt.pop %v2456
    %v2801 = vmul.f32 %v2456, %v2800
    %vm2802 = vcmp.eq.f32.partialorder %v2456, inf
    %v2803 = vsel %vm2802, %v2456, %v2801
    %vm2804 = vcmp.eq.f32.partialorder %v2456, 0.0
    %v2805 = vand.u32 %v2456, 2147483648
    %v2806 = vsel %vm2804, %v2805, %v2803
    %v2807 = vrsqrt.pop %v2461
    %v2808 = vmul.f32 %v2461, %v2807
    %vm2809 = vcmp.eq.f32.partialorder %v2461, inf
    %v2810 = vsel %vm2809, %v2461, %v2808
    %vm2811 = vcmp.eq.f32.partialorder %v2461, 0.0
    %v2812 = vand.u32 %v2461, 2147483648
    %v2813 = vsel %vm2811, %v2812, %v2810
    %v2814 = vrsqrt.pop %v2466
    %v2815 = vmul.f32 %v2466, %v2814
    %vm2816 = vcmp.eq.f32.partialorder %v2466, inf
    %v2817 = vsel %vm2816, %v2466, %v2815
    %vm2818 = vcmp.eq.f32.partialorder %v2466, 0.0
    %v2819 = vand.u32 %v2466, 2147483648
    %v2820 = vsel %vm2818, %v2819, %v2817
    %v2821 = vrsqrt.pop %v2471
    %v2822 = vmul.f32 %v2471, %v2821
    %vm2823 = vcmp.eq.f32.partialorder %v2471, inf
    %v2824 = vsel %vm2823, %v2471, %v2822
    %vm2825 = vcmp.eq.f32.partialorder %v2471, 0.0
    %v2826 = vand.u32 %v2471, 2147483648
    %v2827 = vsel %vm2825, %v2826, %v2824
    %v2828 = vrsqrt.pop %v2476
    %v2829 = vmul.f32 %v2476, %v2828
    %vm2830 = vcmp.eq.f32.partialorder %v2476, inf
    %v2831 = vsel %vm2830, %v2476, %v2829
    %vm2832 = vcmp.eq.f32.partialorder %v2476, 0.0
    %v2833 = vand.u32 %v2476, 2147483648
    %v2834 = vsel %vm2832, %v2833, %v2831
    %v2835 = vrsqrt.pop %v2481
    %v2836 = vmul.f32 %v2481, %v2835
    %vm2837 = vcmp.eq.f32.partialorder %v2481, inf
    %v2838 = vsel %vm2837, %v2481, %v2836
    %vm2839 = vcmp.eq.f32.partialorder %v2481, 0.0
    %v2840 = vand.u32 %v2481, 2147483648
    %v2841 = vsel %vm2839, %v2840, %v2838
    %v2842 = vrsqrt.pop %v2486
    %v2843 = vmul.f32 %v2486, %v2842
    %vm2844 = vcmp.eq.f32.partialorder %v2486, inf
    %v2845 = vsel %vm2844, %v2486, %v2843
    %vm2846 = vcmp.eq.f32.partialorder %v2486, 0.0
    %v2847 = vand.u32 %v2486, 2147483648
    %v2848 = vsel %vm2846, %v2847, %v2845
    %v2849 = vrsqrt.pop %v2491
    %v2850 = vmul.f32 %v2491, %v2849
    %vm2851 = vcmp.eq.f32.partialorder %v2491, inf
    %v2852 = vsel %vm2851, %v2491, %v2850
    %vm2853 = vcmp.eq.f32.partialorder %v2491, 0.0
    %v2854 = vand.u32 %v2491, 2147483648
    %v2855 = vsel %vm2853, %v2854, %v2852
    %v2856 = vrsqrt.pop %v2496
    %v2857 = vmul.f32 %v2496, %v2856
    %vm2858 = vcmp.eq.f32.partialorder %v2496, inf
    %v2859 = vsel %vm2858, %v2496, %v2857
    %vm2860 = vcmp.eq.f32.partialorder %v2496, 0.0
    %v2861 = vand.u32 %v2496, 2147483648
    %v2862 = vsel %vm2860, %v2861, %v2859
    %v2863 = vrsqrt.pop %v2501
    %v2864 = vmul.f32 %v2501, %v2863
    %vm2865 = vcmp.eq.f32.partialorder %v2501, inf
    %v2866 = vsel %vm2865, %v2501, %v2864
    %vm2867 = vcmp.eq.f32.partialorder %v2501, 0.0
    %v2868 = vand.u32 %v2501, 2147483648
    %v2869 = vsel %vm2867, %v2868, %v2866
    %v2870 = vrsqrt.pop %v2506
    %v2871 = vmul.f32 %v2506, %v2870
    %vm2872 = vcmp.eq.f32.partialorder %v2506, inf
    %v2873 = vsel %vm2872, %v2506, %v2871
    %vm2874 = vcmp.eq.f32.partialorder %v2506, 0.0
    %v2875 = vand.u32 %v2506, 2147483648
    %v2876 = vsel %vm2874, %v2875, %v2873
    %v2877 = vrsqrt.pop %v2511
    %v2878 = vmul.f32 %v2511, %v2877
    %vm2879 = vcmp.eq.f32.partialorder %v2511, inf
    %v2880 = vsel %vm2879, %v2511, %v2878
    %vm2881 = vcmp.eq.f32.partialorder %v2511, 0.0
    %v2882 = vand.u32 %v2511, 2147483648
    %v2883 = vsel %vm2881, %v2882, %v2880
    %v2884 = vrsqrt.pop %v2516
    %v2885 = vmul.f32 %v2516, %v2884
    %vm2886 = vcmp.eq.f32.partialorder %v2516, inf
    %v2887 = vsel %vm2886, %v2516, %v2885
    %vm2888 = vcmp.eq.f32.partialorder %v2516, 0.0
    %v2889 = vand.u32 %v2516, 2147483648
    %v2890 = vsel %vm2888, %v2889, %v2887
    %v2891 = vrsqrt.pop %v2521
    %v2892 = vmul.f32 %v2521, %v2891
    %vm2893 = vcmp.eq.f32.partialorder %v2521, inf
    %v2894 = vsel %vm2893, %v2521, %v2892
    %vm2895 = vcmp.eq.f32.partialorder %v2521, 0.0
    %v2896 = vand.u32 %v2521, 2147483648
    %v2897 = vsel %vm2895, %v2896, %v2894
    %v2898 = vrsqrt.pop %v2526
    %v2899 = vmul.f32 %v2526, %v2898
    %vm2900 = vcmp.eq.f32.partialorder %v2526, inf
    %v2901 = vsel %vm2900, %v2526, %v2899
    %vm2902 = vcmp.eq.f32.partialorder %v2526, 0.0
    %v2903 = vand.u32 %v2526, 2147483648
    %v2904 = vsel %vm2902, %v2903, %v2901
    %v2905 = vrsqrt.pop %v2531
    %v2906 = vmul.f32 %v2531, %v2905
    %vm2907 = vcmp.eq.f32.partialorder %v2531, inf
    %v2908 = vsel %vm2907, %v2531, %v2906
    %vm2909 = vcmp.eq.f32.partialorder %v2531, 0.0
    %v2910 = vand.u32 %v2531, 2147483648
    %v2911 = vsel %vm2909, %v2910, %v2908
    %v2912 = vrsqrt.pop %v2536
    %v2913 = vmul.f32 %v2536, %v2912
    %vm2914 = vcmp.eq.f32.partialorder %v2536, inf
    %v2915 = vsel %vm2914, %v2536, %v2913
    %vm2916 = vcmp.eq.f32.partialorder %v2536, 0.0
    %v2917 = vand.u32 %v2536, 2147483648
    %v2918 = vsel %vm2916, %v2917, %v2915
    %v2919 = vrsqrt.pop %v2541
    %v2920 = vmul.f32 %v2541, %v2919
    %vm2921 = vcmp.eq.f32.partialorder %v2541, inf
    %v2922 = vsel %vm2921, %v2541, %v2920
    %vm2923 = vcmp.eq.f32.partialorder %v2541, 0.0
    %v2924 = vand.u32 %v2541, 2147483648
    %v2925 = vsel %vm2923, %v2924, %v2922
    %v2926 = vrsqrt.pop %v2546
    %v2927 = vmul.f32 %v2546, %v2926
    %vm2928 = vcmp.eq.f32.partialorder %v2546, inf
    %v2929 = vsel %vm2928, %v2546, %v2927
    %vm2930 = vcmp.eq.f32.partialorder %v2546, 0.0
    %v2931 = vand.u32 %v2546, 2147483648
    %v2932 = vsel %vm2930, %v2931, %v2929
    %v2933 = vrsqrt.pop %v2551
    %v2934 = vmul.f32 %v2551, %v2933
    %vm2935 = vcmp.eq.f32.partialorder %v2551, inf
    %v2936 = vsel %vm2935, %v2551, %v2934
    %vm2937 = vcmp.eq.f32.partialorder %v2551, 0.0
    %v2938 = vand.u32 %v2551, 2147483648
    %v2939 = vsel %vm2937, %v2938, %v2936
    %v2940 = vrsqrt.pop %v2556
    %v2941 = vmul.f32 %v2556, %v2940
    %vm2942 = vcmp.eq.f32.partialorder %v2556, inf
    %v2943 = vsel %vm2942, %v2556, %v2941
    %vm2944 = vcmp.eq.f32.partialorder %v2556, 0.0
    %v2945 = vand.u32 %v2556, 2147483648
    %v2946 = vsel %vm2944, %v2945, %v2943
    %v2947 = vrsqrt.pop %v2561
    %v2948 = vmul.f32 %v2561, %v2947
    %vm2949 = vcmp.eq.f32.partialorder %v2561, inf
    %v2950 = vsel %vm2949, %v2561, %v2948
    %vm2951 = vcmp.eq.f32.partialorder %v2561, 0.0
    %v2952 = vand.u32 %v2561, 2147483648
    %v2953 = vsel %vm2951, %v2952, %v2950
    %v2954 = vrsqrt.pop %v2566
    %v2955 = vmul.f32 %v2566, %v2954
    %vm2956 = vcmp.eq.f32.partialorder %v2566, inf
    %v2957 = vsel %vm2956, %v2566, %v2955
    %vm2958 = vcmp.eq.f32.partialorder %v2566, 0.0
    %v2959 = vand.u32 %v2566, 2147483648
    %v2960 = vsel %vm2958, %v2959, %v2957
    %v2961 = vrsqrt.pop %v2571
    %v2962 = vmul.f32 %v2571, %v2961
    %vm2963 = vcmp.eq.f32.partialorder %v2571, inf
    %v2964 = vsel %vm2963, %v2571, %v2962
    %vm2965 = vcmp.eq.f32.partialorder %v2571, 0.0
    %v2966 = vand.u32 %v2571, 2147483648
    %v2967 = vsel %vm2965, %v2966, %v2964
    %v2968 = vrsqrt.pop %v2576
    %v2969 = vmul.f32 %v2576, %v2968
    %vm2970 = vcmp.eq.f32.partialorder %v2576, inf
    %v2971 = vsel %vm2970, %v2576, %v2969
    %vm2972 = vcmp.eq.f32.partialorder %v2576, 0.0
    %v2973 = vand.u32 %v2576, 2147483648
    %v2974 = vsel %vm2972, %v2973, %v2971
    %v2975 = vrsqrt.pop %v2581
    %v2976 = vmul.f32 %v2581, %v2975
    %vm2977 = vcmp.eq.f32.partialorder %v2581, inf
    %v2978 = vsel %vm2977, %v2581, %v2976
    %vm2979 = vcmp.eq.f32.partialorder %v2581, 0.0
    %v2980 = vand.u32 %v2581, 2147483648
    %v2981 = vsel %vm2979, %v2980, %v2978
    %v2982 = vrsqrt.pop %v2586
    %v2983 = vmul.f32 %v2586, %v2982
    %vm2984 = vcmp.eq.f32.partialorder %v2586, inf
    %v2985 = vsel %vm2984, %v2586, %v2983
    %vm2986 = vcmp.eq.f32.partialorder %v2586, 0.0
    %v2987 = vand.u32 %v2586, 2147483648
    %v2988 = vsel %vm2986, %v2987, %v2985
    %v2989 = vrsqrt.pop %v2591
    %v2990 = vmul.f32 %v2591, %v2989
    %vm2991 = vcmp.eq.f32.partialorder %v2591, inf
    %v2992 = vsel %vm2991, %v2591, %v2990
    %vm2993 = vcmp.eq.f32.partialorder %v2591, 0.0
    %v2994 = vand.u32 %v2591, 2147483648
    %v2995 = vsel %vm2993, %v2994, %v2992
    %v2996 = vrsqrt.pop %v2596
    %v2997 = vmul.f32 %v2596, %v2996
    %vm2998 = vcmp.eq.f32.partialorder %v2596, inf
    %v2999 = vsel %vm2998, %v2596, %v2997
    %vm3000 = vcmp.eq.f32.partialorder %v2596, 0.0
    %v3001 = vand.u32 %v2596, 2147483648
    %v3002 = vsel %vm3000, %v3001, %v2999
    %v3003 = vrsqrt.pop %v2601
    %v3004 = vmul.f32 %v2601, %v3003
    %vm3005 = vcmp.eq.f32.partialorder %v2601, inf
    %v3006 = vsel %vm3005, %v2601, %v3004
    %vm3007 = vcmp.eq.f32.partialorder %v2601, 0.0
    %v3008 = vand.u32 %v2601, 2147483648
    %v3009 = vsel %vm3007, %v3008, %v3006
    %v3010 = vrsqrt.pop %v2606
    %v3011 = vmul.f32 %v2606, %v3010
    %vm3012 = vcmp.eq.f32.partialorder %v2606, inf
    %v3013 = vsel %vm3012, %v2606, %v3011
    %vm3014 = vcmp.eq.f32.partialorder %v2606, 0.0
    %v3015 = vand.u32 %v2606, 2147483648
    %v3016 = vsel %vm3014, %v3015, %v3013
    %v3017 = vrsqrt.pop %v2611
    %v3018 = vmul.f32 %v2611, %v3017
    %vm3019 = vcmp.eq.f32.partialorder %v2611, inf
    %v3020 = vsel %vm3019, %v2611, %v3018
    %vm3021 = vcmp.eq.f32.partialorder %v2611, 0.0
    %v3022 = vand.u32 %v2611, 2147483648
    %v3023 = vsel %vm3021, %v3022, %v3020
    %v3024 = vrsqrt.pop %v2616
    %v3025 = vmul.f32 %v2616, %v3024
    %vm3026 = vcmp.eq.f32.partialorder %v2616, inf
    %v3027 = vsel %vm3026, %v2616, %v3025
    %vm3028 = vcmp.eq.f32.partialorder %v2616, 0.0
    %v3029 = vand.u32 %v2616, 2147483648
    %v3030 = vsel %vm3028, %v3029, %v3027
    %v3031 = vrsqrt.pop %v2621
    %v3032 = vmul.f32 %v2621, %v3031
    %vm3033 = vcmp.eq.f32.partialorder %v2621, inf
    %v3034 = vsel %vm3033, %v2621, %v3032
    %vm3035 = vcmp.eq.f32.partialorder %v2621, 0.0
    %v3036 = vand.u32 %v2621, 2147483648
    %v3037 = vsel %vm3035, %v3036, %v3034
    %v3038 = vrsqrt.pop %v2626
    %v3039 = vmul.f32 %v2626, %v3038
    %vm3040 = vcmp.eq.f32.partialorder %v2626, inf
    %v3041 = vsel %vm3040, %v2626, %v3039
    %vm3042 = vcmp.eq.f32.partialorder %v2626, 0.0
    %v3043 = vand.u32 %v2626, 2147483648
    %v3044 = vsel %vm3042, %v3043, %v3041
    %v3045 = vrsqrt.pop %v2631
    %v3046 = vmul.f32 %v2631, %v3045
    %vm3047 = vcmp.eq.f32.partialorder %v2631, inf
    %v3048 = vsel %vm3047, %v2631, %v3046
    %vm3049 = vcmp.eq.f32.partialorder %v2631, 0.0
    %v3050 = vand.u32 %v2631, 2147483648
    %v3051 = vsel %vm3049, %v3050, %v3048
    %v3052 = vrsqrt.pop %v2636
    %v3053 = vmul.f32 %v2636, %v3052
    %vm3054 = vcmp.eq.f32.partialorder %v2636, inf
    %v3055 = vsel %vm3054, %v2636, %v3053
    %vm3056 = vcmp.eq.f32.partialorder %v2636, 0.0
    %v3057 = vand.u32 %v2636, 2147483648
    %v3058 = vsel %vm3056, %v3057, %v3055
    %v3059 = vrsqrt.pop %v2641
    %v3060 = vmul.f32 %v2641, %v3059
    %vm3061 = vcmp.eq.f32.partialorder %v2641, inf
    %v3062 = vsel %vm3061, %v2641, %v3060
    %vm3063 = vcmp.eq.f32.partialorder %v2641, 0.0
    %v3064 = vand.u32 %v2641, 2147483648
    %v3065 = vsel %vm3063, %v3064, %v3062
    %v3066 = vrsqrt.pop %v2646
    %v3067 = vmul.f32 %v2646, %v3066
    %vm3068 = vcmp.eq.f32.partialorder %v2646, inf
    %v3069 = vsel %vm3068, %v2646, %v3067
    %vm3070 = vcmp.eq.f32.partialorder %v2646, 0.0
    %v3071 = vand.u32 %v2646, 2147483648
    %v3072 = vsel %vm3070, %v3071, %v3069
    %v3073 = vrsqrt.pop %v2651
    %v3074 = vmul.f32 %v2651, %v3073
    %vm3075 = vcmp.eq.f32.partialorder %v2651, inf
    %v3076 = vsel %vm3075, %v2651, %v3074
    %vm3077 = vcmp.eq.f32.partialorder %v2651, 0.0
    %v3078 = vand.u32 %v2651, 2147483648
    %v3079 = vsel %vm3077, %v3078, %v3076
    %v3080 = vrsqrt.pop %v2656
    %v3081 = vmul.f32 %v2656, %v3080
    %vm3082 = vcmp.eq.f32.partialorder %v2656, inf
    %v3083 = vsel %vm3082, %v2656, %v3081
    %vm3084 = vcmp.eq.f32.partialorder %v2656, 0.0
    %v3085 = vand.u32 %v2656, 2147483648
    %v3086 = vsel %vm3084, %v3085, %v3083
    %v3087 = vrsqrt.pop %v2661
    %v3088 = vmul.f32 %v2661, %v3087
    %vm3089 = vcmp.eq.f32.partialorder %v2661, inf
    %v3090 = vsel %vm3089, %v2661, %v3088
    %vm3091 = vcmp.eq.f32.partialorder %v2661, 0.0
    %v3092 = vand.u32 %v2661, 2147483648
    %v3093 = vsel %vm3091, %v3092, %v3090
    %v3094 = vrsqrt.pop %v2666
    %v3095 = vmul.f32 %v2666, %v3094
    %vm3096 = vcmp.eq.f32.partialorder %v2666, inf
    %v3097 = vsel %vm3096, %v2666, %v3095
    %vm3098 = vcmp.eq.f32.partialorder %v2666, 0.0
    %v3099 = vand.u32 %v2666, 2147483648
    %v3100 = vsel %vm3098, %v3099, %v3097
    %v3101 = vrsqrt.pop %v2671
    %v3102 = vmul.f32 %v2671, %v3101
    %vm3103 = vcmp.eq.f32.partialorder %v2671, inf
    %v3104 = vsel %vm3103, %v2671, %v3102
    %vm3105 = vcmp.eq.f32.partialorder %v2671, 0.0
    %v3106 = vand.u32 %v2671, 2147483648
    %v3107 = vsel %vm3105, %v3106, %v3104
    %v3108 = vrsqrt.pop %v2676
    %v3109 = vmul.f32 %v2676, %v3108
    %vm3110 = vcmp.eq.f32.partialorder %v2676, inf
    %v3111 = vsel %vm3110, %v2676, %v3109
    %vm3112 = vcmp.eq.f32.partialorder %v2676, 0.0
    %v3113 = vand.u32 %v2676, 2147483648
    %v3114 = vsel %vm3112, %v3113, %v3111
    %v3115 = vrsqrt.pop %v2681
    %v3116 = vmul.f32 %v2681, %v3115
    %vm3117 = vcmp.eq.f32.partialorder %v2681, inf
    %v3118 = vsel %vm3117, %v2681, %v3116
    %vm3119 = vcmp.eq.f32.partialorder %v2681, 0.0
    %v3120 = vand.u32 %v2681, 2147483648
    %v3121 = vsel %vm3119, %v3120, %v3118
    %v3122 = vrsqrt.pop %v2686
    %v3123 = vmul.f32 %v2686, %v3122
    %vm3124 = vcmp.eq.f32.partialorder %v2686, inf
    %v3125 = vsel %vm3124, %v2686, %v3123
    %vm3126 = vcmp.eq.f32.partialorder %v2686, 0.0
    %v3127 = vand.u32 %v2686, 2147483648
    %v3128 = vsel %vm3126, %v3127, %v3125
    %v3129 = vrsqrt.pop %v2691
    %v3130 = vmul.f32 %v2691, %v3129
    %vm3131 = vcmp.eq.f32.partialorder %v2691, inf
    %v3132 = vsel %vm3131, %v2691, %v3130
    %vm3133 = vcmp.eq.f32.partialorder %v2691, 0.0
    %v3134 = vand.u32 %v2691, 2147483648
    %v3135 = vsel %vm3133, %v3134, %v3132
    %v3136 = vrsqrt.pop %v2696
    %v3137 = vmul.f32 %v2696, %v3136
    %vm3138 = vcmp.eq.f32.partialorder %v2696, inf
    %v3139 = vsel %vm3138, %v2696, %v3137
    %vm3140 = vcmp.eq.f32.partialorder %v2696, 0.0
    %v3141 = vand.u32 %v2696, 2147483648
    %v3142 = vsel %vm3140, %v3141, %v3139
    %v3143 = vrsqrt.pop %v2701
    %v3144 = vmul.f32 %v2701, %v3143
    %vm3145 = vcmp.eq.f32.partialorder %v2701, inf
    %v3146 = vsel %vm3145, %v2701, %v3144
    %vm3147 = vcmp.eq.f32.partialorder %v2701, 0.0
    %v3148 = vand.u32 %v2701, 2147483648
    %v3149 = vsel %vm3147, %v3148, %v3146
    %v3150 = vrsqrt.pop %v2706
    %v3151 = vmul.f32 %v2706, %v3150
    %vm3152 = vcmp.eq.f32.partialorder %v2706, inf
    %v3153 = vsel %vm3152, %v2706, %v3151
    %vm3154 = vcmp.eq.f32.partialorder %v2706, 0.0
    %v3155 = vand.u32 %v2706, 2147483648
    %v3156 = vsel %vm3154, %v3155, %v3153
    %v3157 = vmax.f32 %v2715, 1e-12
    %v3158 = vmax.f32 %v2722, 1e-12
    %v3159 = vmax.f32 %v2729, 1e-12
    %v3160 = vmax.f32 %v2736, 1e-12
    %v3161 = vmax.f32 %v2743, 1e-12
    %v3162 = vmax.f32 %v2750, 1e-12
    %v3163 = vmax.f32 %v2757, 1e-12
    %v3164 = vmax.f32 %v2764, 1e-12
    %v3165 = vmax.f32 %v2771, 1e-12
    %v3166 = vmax.f32 %v2778, 1e-12
    %v3167 = vmax.f32 %v2785, 1e-12
    %v3168 = vmax.f32 %v2792, 1e-12
    %v3169 = vmax.f32 %v2799, 1e-12
    %v3170 = vmax.f32 %v2806, 1e-12
    %v3171 = vmax.f32 %v2813, 1e-12
    %v3172 = vmax.f32 %v2820, 1e-12
    %v3173 = vmax.f32 %v2827, 1e-12
    %v3174 = vmax.f32 %v2834, 1e-12
    %v3175 = vmax.f32 %v2841, 1e-12
    %v3176 = vmax.f32 %v2848, 1e-12
    %v3177 = vmax.f32 %v2855, 1e-12
    %v3178 = vmax.f32 %v2862, 1e-12
    %v3179 = vmax.f32 %v2869, 1e-12
    %v3180 = vmax.f32 %v2876, 1e-12
    %v3181 = vmax.f32 %v2883, 1e-12
    %v3182 = vmax.f32 %v2890, 1e-12
    %v3183 = vmax.f32 %v2897, 1e-12
    %v3184 = vmax.f32 %v2904, 1e-12
    %v3185 = vmax.f32 %v2911, 1e-12
    %v3186 = vmax.f32 %v2918, 1e-12
    %v3187 = vmax.f32 %v2925, 1e-12
    %v3188 = vmax.f32 %v2932, 1e-12
    %v3189 = vmax.f32 %v2939, 1e-12
    %v3190 = vmax.f32 %v2946, 1e-12
    %v3191 = vmax.f32 %v2953, 1e-12
    %v3192 = vmax.f32 %v2960, 1e-12
    %v3193 = vmax.f32 %v2967, 1e-12
    %v3194 = vmax.f32 %v2974, 1e-12
    %v3195 = vmax.f32 %v2981, 1e-12
    %v3196 = vmax.f32 %v2988, 1e-12
    %v3197 = vmax.f32 %v2995, 1e-12
    %v3198 = vmax.f32 %v3002, 1e-12
    %v3199 = vmax.f32 %v3009, 1e-12
    %v3200 = vmax.f32 %v3016, 1e-12
    %v3201 = vmax.f32 %v3023, 1e-12
    %v3202 = vmax.f32 %v3030, 1e-12
    %v3203 = vmax.f32 %v3037, 1e-12
    %v3204 = vmax.f32 %v3044, 1e-12
    %v3205 = vmax.f32 %v3051, 1e-12
    %v3206 = vmax.f32 %v3058, 1e-12
    %v3207 = vmax.f32 %v3065, 1e-12
    %v3208 = vmax.f32 %v3072, 1e-12
    %v3209 = vmax.f32 %v3079, 1e-12
    %v3210 = vmax.f32 %v3086, 1e-12
    %v3211 = vmax.f32 %v3093, 1e-12
    %v3212 = vmax.f32 %v3100, 1e-12
    %v3213 = vmax.f32 %v3107, 1e-12
    %v3214 = vmax.f32 %v3114, 1e-12
    %v3215 = vmax.f32 %v3121, 1e-12
    %v3216 = vmax.f32 %v3128, 1e-12
    %v3217 = vmax.f32 %v3135, 1e-12
    %v3218 = vmax.f32 %v3142, 1e-12
    %v3219 = vmax.f32 %v3149, 1e-12
    %v3220 = vmax.f32 %v3156, 1e-12
    %v3221 = vrcp.pop %v3157
    %v3222 = vmul.f32 1.0, %v3221
    %v3223 = vrcp.pop %v3158
    %v3224 = vmul.f32 1.0, %v3223
    %v3225 = vrcp.pop %v3159
    %v3226 = vmul.f32 1.0, %v3225
    %v3227 = vrcp.pop %v3160
    %v3228 = vmul.f32 1.0, %v3227
    %v3229 = vrcp.pop %v3161
    %v3230 = vmul.f32 1.0, %v3229
    %v3231 = vrcp.pop %v3162
    %v3232 = vmul.f32 1.0, %v3231
    %v3233 = vrcp.pop %v3163
    %v3234 = vmul.f32 1.0, %v3233
    %v3235 = vrcp.pop %v3164
    %v3236 = vmul.f32 1.0, %v3235
    %v3237 = vrcp.pop %v3165
    %v3238 = vmul.f32 1.0, %v3237
    %v3239 = vrcp.pop %v3166
    %v3240 = vmul.f32 1.0, %v3239
    %v3241 = vrcp.pop %v3167
    %v3242 = vmul.f32 1.0, %v3241
    %v3243 = vrcp.pop %v3168
    %v3244 = vmul.f32 1.0, %v3243
    %v3245 = vrcp.pop %v3169
    %v3246 = vmul.f32 1.0, %v3245
    %v3247 = vrcp.pop %v3170
    %v3248 = vmul.f32 1.0, %v3247
    %v3249 = vrcp.pop %v3171
    %v3250 = vmul.f32 1.0, %v3249
    %v3251 = vrcp.pop %v3172
    %v3252 = vmul.f32 1.0, %v3251
    %v3253 = vrcp.pop %v3173
    %v3254 = vmul.f32 1.0, %v3253
    %v3255 = vrcp.pop %v3174
    %v3256 = vmul.f32 1.0, %v3255
    %v3257 = vrcp.pop %v3175
    %v3258 = vmul.f32 1.0, %v3257
    %v3259 = vrcp.pop %v3176
    %v3260 = vmul.f32 1.0, %v3259
    %v3261 = vrcp.pop %v3177
    %v3262 = vmul.f32 1.0, %v3261
    %v3263 = vrcp.pop %v3178
    %v3264 = vmul.f32 1.0, %v3263
    %v3265 = vrcp.pop %v3179
    %v3266 = vmul.f32 1.0, %v3265
    %v3267 = vrcp.pop %v3180
    %v3268 = vmul.f32 1.0, %v3267
    %v3269 = vrcp.pop %v3181
    %v3270 = vmul.f32 1.0, %v3269
    %v3271 = vrcp.pop %v3182
    %v3272 = vmul.f32 1.0, %v3271
    %v3273 = vrcp.pop %v3183
    %v3274 = vmul.f32 1.0, %v3273
    %v3275 = vrcp.pop %v3184
    %v3276 = vmul.f32 1.0, %v3275
    %v3277 = vrcp.pop %v3185
    %v3278 = vmul.f32 1.0, %v3277
    %v3279 = vrcp.pop %v3186
    %v3280 = vmul.f32 1.0, %v3279
    %v3281 = vrcp.pop %v3187
    %v3282 = vmul.f32 1.0, %v3281
    %v3283 = vrcp.pop %v3188
    %v3284 = vmul.f32 1.0, %v3283
    %v3285 = vrcp.pop %v3189
    %v3286 = vmul.f32 1.0, %v3285
    %v3287 = vrcp.pop %v3190
    %v3288 = vmul.f32 1.0, %v3287
    %v3289 = vrcp.pop %v3191
    %v3290 = vmul.f32 1.0, %v3289
    %v3291 = vrcp.pop %v3192
    %v3292 = vmul.f32 1.0, %v3291
    %v3293 = vrcp.pop %v3193
    %v3294 = vmul.f32 1.0, %v3293
    %v3295 = vrcp.pop %v3194
    %v3296 = vmul.f32 1.0, %v3295
    %v3297 = vrcp.pop %v3195
    %v3298 = vmul.f32 1.0, %v3297
    %v3299 = vrcp.pop %v3196
    %v3300 = vmul.f32 1.0, %v3299
    %v3301 = vrcp.pop %v3197
    %v3302 = vmul.f32 1.0, %v3301
    %v3303 = vrcp.pop %v3198
    %v3304 = vmul.f32 1.0, %v3303
    %v3305 = vrcp.pop %v3199
    %v3306 = vmul.f32 1.0, %v3305
    %v3307 = vrcp.pop %v3200
    %v3308 = vmul.f32 1.0, %v3307
    %v3309 = vrcp.pop %v3201
    %v3310 = vmul.f32 1.0, %v3309
    %v3311 = vrcp.pop %v3202
    %v3312 = vmul.f32 1.0, %v3311
    %v3313 = vrcp.pop %v3203
    %v3314 = vmul.f32 1.0, %v3313
    %v3315 = vrcp.pop %v3204
    %v3316 = vmul.f32 1.0, %v3315
    %v3317 = vrcp.pop %v3205
    %v3318 = vmul.f32 1.0, %v3317
    %v3319 = vrcp.pop %v3206
    %v3320 = vmul.f32 1.0, %v3319
    %v3321 = vrcp.pop %v3207
    %v3322 = vmul.f32 1.0, %v3321
    %v3323 = vrcp.pop %v3208
    %v3324 = vmul.f32 1.0, %v3323
    %v3325 = vrcp.pop %v3209
    %v3326 = vmul.f32 1.0, %v3325
    %v3327 = vrcp.pop %v3210
    %v3328 = vmul.f32 1.0, %v3327
    %v3329 = vrcp.pop %v3211
    %v3330 = vmul.f32 1.0, %v3329
    %v3331 = vrcp.pop %v3212
    %v3332 = vmul.f32 1.0, %v3331
    %v3333 = vrcp.pop %v3213
    %v3334 = vmul.f32 1.0, %v3333
    %v3335 = vrcp.pop %v3214
    %v3336 = vmul.f32 1.0, %v3335
    %v3337 = vrcp.pop %v3215
    %v3338 = vmul.f32 1.0, %v3337
    %v3339 = vrcp.pop %v3216
    %v3340 = vmul.f32 1.0, %v3339
    %v3341 = vrcp.pop %v3217
    %v3342 = vmul.f32 1.0, %v3341
    %v3343 = vrcp.pop %v3218
    %v3344 = vmul.f32 1.0, %v3343
    %v3345 = vrcp.pop %v3219
    %v3346 = vmul.f32 1.0, %v3345
    %v3347 = vrcp.pop %v3220
    %v3348 = vmul.f32 1.0, %v3347
    %v3349 = vld [vmem:[%s5] sm:$0xff]
    %v3350 = vld [vmem:[%s5 + $0x8] sm:$0xff]
    %vm3351 = vcmask 64512
    %v3353 = vsel %vm3351, %v3222, 0
    %v3356 = vsel %vm3351, %v3224, 0
    %v3359 = vsel %vm3351, %v3226, 0
    %v3362 = vsel %vm3351, %v3228, 0
    %v3365 = vsel %vm3351, %v3230, 0
    %v3368 = vsel %vm3351, %v3232, 0
    %v3371 = vsel %vm3351, %v3234, 0
    %v3374 = vsel %vm3351, %v3236, 0
    %v3377 = vsel %vm3351, %v3238, 0
    %v3380 = vsel %vm3351, %v3240, 0
    %v3383 = vsel %vm3351, %v3242, 0
    %v3386 = vsel %vm3351, %v3244, 0
    %v3389 = vsel %vm3351, %v3246, 0
    %v3392 = vsel %vm3351, %v3248, 0
    %v3395 = vsel %vm3351, %v3250, 0
    %v3398 = vsel %vm3351, %v3252, 0
    %v3401 = vsel %vm3351, %v3254, 0
    %v3404 = vsel %vm3351, %v3256, 0
    %v3407 = vsel %vm3351, %v3258, 0
    %v3410 = vsel %vm3351, %v3260, 0
    %v3413 = vsel %vm3351, %v3262, 0
    %v3416 = vsel %vm3351, %v3264, 0
    %v3419 = vsel %vm3351, %v3266, 0
    %v3422 = vsel %vm3351, %v3268, 0
    %v3425 = vsel %vm3351, %v3270, 0
    %v3428 = vsel %vm3351, %v3272, 0
    %v3431 = vsel %vm3351, %v3274, 0
    %v3434 = vsel %vm3351, %v3276, 0
    %v3437 = vsel %vm3351, %v3278, 0
    %v3440 = vsel %vm3351, %v3280, 0
    %v3443 = vsel %vm3351, %v3282, 0
    %v3446 = vsel %vm3351, %v3284, 0
    %v3449 = vsel %vm3351, %v3286, 0
    %v3452 = vsel %vm3351, %v3288, 0
    %v3455 = vsel %vm3351, %v3290, 0
    %v3458 = vsel %vm3351, %v3292, 0
    %v3461 = vsel %vm3351, %v3294, 0
    %v3464 = vsel %vm3351, %v3296, 0
    %v3467 = vsel %vm3351, %v3298, 0
    %v3470 = vsel %vm3351, %v3300, 0
    %v3473 = vsel %vm3351, %v3302, 0
    %v3476 = vsel %vm3351, %v3304, 0
    %v3479 = vsel %vm3351, %v3306, 0
    %v3482 = vsel %vm3351, %v3308, 0
    %v3485 = vsel %vm3351, %v3310, 0
    %v3488 = vsel %vm3351, %v3312, 0
    %v3491 = vsel %vm3351, %v3314, 0
    %v3494 = vsel %vm3351, %v3316, 0
    %v3497 = vsel %vm3351, %v3318, 0
    %v3500 = vsel %vm3351, %v3320, 0
    %v3503 = vsel %vm3351, %v3322, 0
    %v3506 = vsel %vm3351, %v3324, 0
    %v3509 = vsel %vm3351, %v3326, 0
    %v3512 = vsel %vm3351, %v3328, 0
    %v3515 = vsel %vm3351, %v3330, 0
    %v3518 = vsel %vm3351, %v3332, 0
    %v3521 = vsel %vm3351, %v3334, 0
    %v3524 = vsel %vm3351, %v3336, 0
    %v3527 = vsel %vm3351, %v3338, 0
    %v3530 = vsel %vm3351, %v3340, 0
    %v3533 = vsel %vm3351, %v3342, 0
    %v3536 = vsel %vm3351, %v3344, 0
    %v3539 = vsel %vm3351, %v3346, 0
    %v3542 = vsel %vm3351, %v3348, 0
    %3544 = vmatprep.subr.mxu0 %v3350
    %3545 = vmatpush1.msra.mxu0 %v3349
    %3546 = vmatprep.subr.mxu0 0.0
    %3547 = vmatpush1.msra.mxu0 0.0
    %3548 = vmatprep.subr.mxu0 0.0
    %3549 = vmatpush1.msra.mxu0 0.0
    %3550 = vmatprep.subr.mxu0 0.0
    %3551 = vmatpush1.msra.mxu0 0.0
    %3552 = vmatprep.subr.mxu0 0.0
    %3553 = vmatpush1.msra.mxu0 0.0
    %3554 = vmatprep.subr.mxu0 0.0
    %3555 = vmatpush1.msra.mxu0 0.0
    %3556 = vmatprep.subr.mxu0 0.0
    %3557 = vmatpush1.msra.mxu0 0.0
    %3558 = vmatprep.subr.mxu0 0.0
    %3559 = vmatpush1.msra.mxu0 0.0
    %3560 = vmatprep.subr.mxu0 0.0
    %3561 = vmatpush1.msra.mxu0 0.0
    %3562 = vmatprep.subr.mxu0 0.0
    %3563 = vmatpush1.msra.mxu0 0.0
    %3564 = vmatprep.subr.mxu0 0.0
    %3565 = vmatpush1.msra.mxu0 0.0
    %3566 = vmatprep.subr.mxu0 0.0
    %3567 = vmatpush1.msra.mxu0 0.0
    %3568 = vmatprep.subr.mxu0 0.0
    %3569 = vmatpush1.msra.mxu0 0.0
    %3570 = vmatprep.subr.mxu0 0.0
    %3571 = vmatpush1.msra.mxu0 0.0
    %3572 = vmatprep.subr.mxu0 0.0
    %3573 = vmatpush1.msra.mxu0 0.0
    %3574 = vmatprep.subr.mxu0 0.0
    %3575 = vmatpush1.msra.mxu0 0.0
    %3576 = vmatprep.subr.mxu0 0.0
    %3577 = vmatpush1.msra.mxu0 0.0
    %3578 = vmatprep.subr.mxu0 0.0
    %3579 = vmatpush1.msra.mxu0 0.0
    %3580 = vmatprep.subr.mxu0 0.0
    %3581 = vmatpush1.msra.mxu0 0.0
    %3582 = vmatprep.subr.mxu0 0.0
    %3583 = vmatpush1.msra.mxu0 0.0
    %3584 = vmatprep.subr.mxu0 0.0
    %3585 = vmatpush1.msra.mxu0 0.0
    %3586 = vmatprep.subr.mxu0 0.0
    %3587 = vmatpush1.msra.mxu0 0.0
    %3588 = vmatprep.subr.mxu0 0.0
    %3589 = vmatpush1.msra.mxu0 0.0
    %3590 = vmatprep.subr.mxu0 0.0
    %3591 = vmatpush1.msra.mxu0 0.0
    %3592 = vmatprep.subr.mxu0 0.0
    %3593 = vmatpush1.msra.mxu0 0.0
    %3594 = vmatprep.subr.mxu0 0.0
    %3595 = vmatpush1.msra.mxu0 0.0
    %3596 = vmatprep.subr.mxu0 0.0
    %3597 = vmatpush1.msra.mxu0 0.0
    %3598 = vmatprep.subr.mxu0 0.0
    %3599 = vmatpush1.msra.mxu0 0.0
    %3600 = vmatprep.subr.mxu0 0.0
    %3601 = vmatpush1.msra.mxu0 0.0
    %3602 = vmatprep.subr.mxu0 0.0
    %3603 = vmatpush1.msra.mxu0 0.0
    %3604 = vmatprep.subr.mxu0 0.0
    %3605 = vmatpush1.msra.mxu0 0.0
    %3606 = vmatprep.subr.mxu0 0.0
    %3607 = vmatpush1.msra.mxu0 0.0
    %3608 = vmatprep.mubr.f32.mxu0 0.0
    %3609 = vmatmul.mubr.f32.gmra.mrb[0].mxu0 %v3353
    %v3610 = vpop.f32.mrb[0].mxu0
    %v3611 = vadd.f32 0.0, %v3610
    %v3612 = vpop.f32.mrb[0].mxu0
    %v3613 = vadd.f32 0.0, %v3612
    %3614 = vmatprep.mubr.f32.mxu0 0.0
    %3615 = vmatmul.mubr.f32.gmra.mrb[0].mxu0 %v3356
    %v3616 = vpop.f32.mrb[0].mxu0
    %v3617 = vadd.f32 0.0, %v3616
    %v3618 = vpop.f32.mrb[0].mxu0
    %v3619 = vadd.f32 0.0, %v3618
    %3620 = vmatprep.mubr.f32.mxu0 0.0
    %3621 = vmatmul.mubr.f32.gmra.mrb[0].mxu0 %v3359
    %v3622 = vpop.f32.mrb[0].mxu0
    %v3623 = vadd.f32 0.0, %v3622
    %v3624 = vpop.f32.mrb[0].mxu0
    %v3625 = vadd.f32 0.0, %v3624
    %3626 = vmatprep.mubr.f32.mxu0 0.0
    %3627 = vmatmul.mubr.f32.gmra.mrb[0].mxu0 %v3362
    %v3628 = vpop.f32.mrb[0].mxu0
    %v3629 = vadd.f32 0.0, %v3628
    %v3630 = vpop.f32.mrb[0].mxu0
    %v3631 = vadd.f32 0.0, %v3630
    %3632 = vmatprep.mubr.f32.mxu0 0.0
    %3633 = vmatmul.mubr.f32.gmra.mrb[0].mxu0 %v3365
    %v3634 = vpop.f32.mrb[0].mxu0
    %v3635 = vadd.f32 0.0, %v3634
    %v3636 = vpop.f32.mrb[0].mxu0
    %v3637 = vadd.f32 0.0, %v3636
    %3638 = vmatprep.mubr.f32.mxu0 0.0
    %3639 = vmatmul.mubr.f32.gmra.mrb[0].mxu0 %v3368
    %v3640 = vpop.f32.mrb[0].mxu0
    %v3641 = vadd.f32 0.0, %v3640
    %v3642 = vpop.f32.mrb[0].mxu0
    %v3643 = vadd.f32 0.0, %v3642
    %3644 = vmatprep.mubr.f32.mxu0 0.0
    %3645 = vmatmul.mubr.f32.gmra.mrb[0].mxu0 %v3371
    %v3646 = vpop.f32.mrb[0].mxu0
    %v3647 = vadd.f32 0.0, %v3646
    %v3648 = vpop.f32.mrb[0].mxu0
    %v3649 = vadd.f32 0.0, %v3648
    %3650 = vmatprep.mubr.f32.mxu0 0.0
    %3651 = vmatmul.mubr.f32.gmra.mrb[0].mxu0 %v3374
    %v3652 = vpop.f32.mrb[0].mxu0
    %v3653 = vadd.f32 0.0, %v3652
    %v3654 = vpop.f32.mrb[0].mxu0
    %v3655 = vadd.f32 0.0, %v3654
    %3656 = vmatprep.mubr.f32.mxu0 0.0
    %3657 = vmatmul.mubr.f32.gmra.mrb[0].mxu0 %v3377
    %v3658 = vpop.f32.mrb[0].mxu0
    %v3659 = vadd.f32 0.0, %v3658
    %v3660 = vpop.f32.mrb[0].mxu0
    %v3661 = vadd.f32 0.0, %v3660
    %3662 = vmatprep.mubr.f32.mxu0 0.0
    %3663 = vmatmul.mubr.f32.gmra.mrb[0].mxu0 %v3380
    %v3664 = vpop.f32.mrb[0].mxu0
    %v3665 = vadd.f32 0.0, %v3664
    %v3666 = vpop.f32.mrb[0].mxu0
    %v3667 = vadd.f32 0.0, %v3666
    %3668 = vmatprep.mubr.f32.mxu0 0.0
    %3669 = vmatmul.mubr.f32.gmra.mrb[0].mxu0 %v3383
    %v3670 = vpop.f32.mrb[0].mxu0
    %v3671 = vadd.f32 0.0, %v3670
    %v3672 = vpop.f32.mrb[0].mxu0
    %v3673 = vadd.f32 0.0, %v3672
    %3674 = vmatprep.mubr.f32.mxu0 0.0
    %3675 = vmatmul.mubr.f32.gmra.mrb[0].mxu0 %v3386
    %v3676 = vpop.f32.mrb[0].mxu0
    %v3677 = vadd.f32 0.0, %v3676
    %v3678 = vpop.f32.mrb[0].mxu0
    %v3679 = vadd.f32 0.0, %v3678
    %3680 = vmatprep.mubr.f32.mxu0 0.0
    %3681 = vmatmul.mubr.f32.gmra.mrb[0].mxu0 %v3389
    %v3682 = vpop.f32.mrb[0].mxu0
    %v3683 = vadd.f32 0.0, %v3682
    %v3684 = vpop.f32.mrb[0].mxu0
    %v3685 = vadd.f32 0.0, %v3684
    %3686 = vmatprep.mubr.f32.mxu0 0.0
    %3687 = vmatmul.mubr.f32.gmra.mrb[0].mxu0 %v3392
    %v3688 = vpop.f32.mrb[0].mxu0
    %v3689 = vadd.f32 0.0, %v3688
    %v3690 = vpop.f32.mrb[0].mxu0
    %v3691 = vadd.f32 0.0, %v3690
    %3692 = vmatprep.mubr.f32.mxu0 0.0
    %3693 = vmatmul.mubr.f32.gmra.mrb[0].mxu0 %v3395
    %v3694 = vpop.f32.mrb[0].mxu0
    %v3695 = vadd.f32 0.0, %v3694
    %v3696 = vpop.f32.mrb[0].mxu0
    %v3697 = vadd.f32 0.0, %v3696
    %3698 = vmatprep.mubr.f32.mxu0 0.0
    %3699 = vmatmul.mubr.f32.gmra.mrb[0].mxu0 %v3398
    %v3700 = vpop.f32.mrb[0].mxu0
    %v3701 = vadd.f32 0.0, %v3700
    %v3702 = vpop.f32.mrb[0].mxu0
    %v3703 = vadd.f32 0.0, %v3702
    %3704 = vmatprep.mubr.f32.mxu0 0.0
    %3705 = vmatmul.mubr.f32.gmra.mrb[0].mxu0 %v3401
    %v3706 = vpop.f32.mrb[0].mxu0
    %v3707 = vadd.f32 0.0, %v3706
    %v3708 = vpop.f32.mrb[0].mxu0
    %v3709 = vadd.f32 0.0, %v3708
    %3710 = vmatprep.mubr.f32.mxu0 0.0
    %3711 = vmatmul.mubr.f32.gmra.mrb[0].mxu0 %v3404
    %v3712 = vpop.f32.mrb[0].mxu0
    %v3713 = vadd.f32 0.0, %v3712
    %v3714 = vpop.f32.mrb[0].mxu0
    %v3715 = vadd.f32 0.0, %v3714
    %3716 = vmatprep.mubr.f32.mxu0 0.0
    %3717 = vmatmul.mubr.f32.gmra.mrb[0].mxu0 %v3407
    %v3718 = vpop.f32.mrb[0].mxu0
    %v3719 = vadd.f32 0.0, %v3718
    %v3720 = vpop.f32.mrb[0].mxu0
    %v3721 = vadd.f32 0.0, %v3720
    %3722 = vmatprep.mubr.f32.mxu0 0.0
    %3723 = vmatmul.mubr.f32.gmra.mrb[0].mxu0 %v3410
    %v3724 = vpop.f32.mrb[0].mxu0
    %v3725 = vadd.f32 0.0, %v3724
    %v3726 = vpop.f32.mrb[0].mxu0
    %v3727 = vadd.f32 0.0, %v3726
    %3728 = vmatprep.mubr.f32.mxu0 0.0
    %3729 = vmatmul.mubr.f32.gmra.mrb[0].mxu0 %v3413
    %v3730 = vpop.f32.mrb[0].mxu0
    %v3731 = vadd.f32 0.0, %v3730
    %v3732 = vpop.f32.mrb[0].mxu0
    %v3733 = vadd.f32 0.0, %v3732
    %3734 = vmatprep.mubr.f32.mxu0 0.0
    %3735 = vmatmul.mubr.f32.gmra.mrb[0].mxu0 %v3416
    %v3736 = vpop.f32.mrb[0].mxu0
    %v3737 = vadd.f32 0.0, %v3736
    %v3738 = vpop.f32.mrb[0].mxu0
    %v3739 = vadd.f32 0.0, %v3738
    %3740 = vmatprep.mubr.f32.mxu0 0.0
    %3741 = vmatmul.mubr.f32.gmra.mrb[0].mxu0 %v3419
    %v3742 = vpop.f32.mrb[0].mxu0
    %v3743 = vadd.f32 0.0, %v3742
    %v3744 = vpop.f32.mrb[0].mxu0
    %v3745 = vadd.f32 0.0, %v3744
    %3746 = vmatprep.mubr.f32.mxu0 0.0
    %3747 = vmatmul.mubr.f32.gmra.mrb[0].mxu0 %v3422
    %v3748 = vpop.f32.mrb[0].mxu0
    %v3749 = vadd.f32 0.0, %v3748
    %v3750 = vpop.f32.mrb[0].mxu0
    %v3751 = vadd.f32 0.0, %v3750
    %3752 = vmatprep.mubr.f32.mxu0 0.0
    %3753 = vmatmul.mubr.f32.gmra.mrb[0].mxu0 %v3425
    %v3754 = vpop.f32.mrb[0].mxu0
    %v3755 = vadd.f32 0.0, %v3754
    %v3756 = vpop.f32.mrb[0].mxu0
    %v3757 = vadd.f32 0.0, %v3756
    %3758 = vmatprep.mubr.f32.mxu0 0.0
    %3759 = vmatmul.mubr.f32.gmra.mrb[0].mxu0 %v3428
    %v3760 = vpop.f32.mrb[0].mxu0
    %v3761 = vadd.f32 0.0, %v3760
    %v3762 = vpop.f32.mrb[0].mxu0
    %v3763 = vadd.f32 0.0, %v3762
    %3764 = vmatprep.mubr.f32.mxu0 0.0
    %3765 = vmatmul.mubr.f32.gmra.mrb[0].mxu0 %v3431
    %v3766 = vpop.f32.mrb[0].mxu0
    %v3767 = vadd.f32 0.0, %v3766
    %v3768 = vpop.f32.mrb[0].mxu0
    %v3769 = vadd.f32 0.0, %v3768
    %3770 = vmatprep.mubr.f32.mxu0 0.0
    %3771 = vmatmul.mubr.f32.gmra.mrb[0].mxu0 %v3434
    %v3772 = vpop.f32.mrb[0].mxu0
    %v3773 = vadd.f32 0.0, %v3772
    %v3774 = vpop.f32.mrb[0].mxu0
    %v3775 = vadd.f32 0.0, %v3774
    %3776 = vmatprep.mubr.f32.mxu0 0.0
    %3777 = vmatmul.mubr.f32.gmra.mrb[0].mxu0 %v3437
    %v3778 = vpop.f32.mrb[0].mxu0
    %v3779 = vadd.f32 0.0, %v3778
    %v3780 = vpop.f32.mrb[0].mxu0
    %v3781 = vadd.f32 0.0, %v3780
    %3782 = vmatprep.mubr.f32.mxu0 0.0
    %3783 = vmatmul.mubr.f32.gmra.mrb[0].mxu0 %v3440
    %v3784 = vpop.f32.mrb[0].mxu0
    %v3785 = vadd.f32 0.0, %v3784
    %v3786 = vpop.f32.mrb[0].mxu0
    %v3787 = vadd.f32 0.0, %v3786
    %3788 = vmatprep.mubr.f32.mxu0 0.0
    %3789 = vmatmul.mubr.f32.gmra.mrb[0].mxu0 %v3443
    %v3790 = vpop.f32.mrb[0].mxu0
    %v3791 = vadd.f32 0.0, %v3790
    %v3792 = vpop.f32.mrb[0].mxu0
    %v3793 = vadd.f32 0.0, %v3792
    %3794 = vmatprep.mubr.f32.mxu0 0.0
    %3795 = vmatmul.mubr.f32.gmra.mrb[0].mxu0 %v3446
    %v3796 = vpop.f32.mrb[0].mxu0
    %v3797 = vadd.f32 0.0, %v3796
    %v3798 = vpop.f32.mrb[0].mxu0
    %v3799 = vadd.f32 0.0, %v3798
    %3800 = vmatprep.mubr.f32.mxu0 0.0
    %3801 = vmatmul.mubr.f32.gmra.mrb[0].mxu0 %v3449
    %v3802 = vpop.f32.mrb[0].mxu0
    %v3803 = vadd.f32 0.0, %v3802
    %v3804 = vpop.f32.mrb[0].mxu0
    %v3805 = vadd.f32 0.0, %v3804
    %3806 = vmatprep.mubr.f32.mxu0 0.0
    %3807 = vmatmul.mubr.f32.gmra.mrb[0].mxu0 %v3452
    %v3808 = vpop.f32.mrb[0].mxu0
    %v3809 = vadd.f32 0.0, %v3808
    %v3810 = vpop.f32.mrb[0].mxu0
    %v3811 = vadd.f32 0.0, %v3810
    %3812 = vmatprep.mubr.f32.mxu0 0.0
    %3813 = vmatmul.mubr.f32.gmra.mrb[0].mxu0 %v3455
    %v3814 = vpop.f32.mrb[0].mxu0
    %v3815 = vadd.f32 0.0, %v3814
    %v3816 = vpop.f32.mrb[0].mxu0
    %v3817 = vadd.f32 0.0, %v3816
    %3818 = vmatprep.mubr.f32.mxu0 0.0
    %3819 = vmatmul.mubr.f32.gmra.mrb[0].mxu0 %v3458
    %v3820 = vpop.f32.mrb[0].mxu0
    %v3821 = vadd.f32 0.0, %v3820
    %v3822 = vpop.f32.mrb[0].mxu0
    %v3823 = vadd.f32 0.0, %v3822
    %3824 = vmatprep.mubr.f32.mxu0 0.0
    %3825 = vmatmul.mubr.f32.gmra.mrb[0].mxu0 %v3461
    %v3826 = vpop.f32.mrb[0].mxu0
    %v3827 = vadd.f32 0.0, %v3826
    %v3828 = vpop.f32.mrb[0].mxu0
    %v3829 = vadd.f32 0.0, %v3828
    %3830 = vmatprep.mubr.f32.mxu0 0.0
    %3831 = vmatmul.mubr.f32.gmra.mrb[0].mxu0 %v3464
    %v3832 = vpop.f32.mrb[0].mxu0
    %v3833 = vadd.f32 0.0, %v3832
    %v3834 = vpop.f32.mrb[0].mxu0
    %v3835 = vadd.f32 0.0, %v3834
    %3836 = vmatprep.mubr.f32.mxu0 0.0
    %3837 = vmatmul.mubr.f32.gmra.mrb[0].mxu0 %v3467
    %v3838 = vpop.f32.mrb[0].mxu0
    %v3839 = vadd.f32 0.0, %v3838
    %v3840 = vpop.f32.mrb[0].mxu0
    %v3841 = vadd.f32 0.0, %v3840
    %3842 = vmatprep.mubr.f32.mxu0 0.0
    %3843 = vmatmul.mubr.f32.gmra.mrb[0].mxu0 %v3470
    %v3844 = vpop.f32.mrb[0].mxu0
    %v3845 = vadd.f32 0.0, %v3844
    %v3846 = vpop.f32.mrb[0].mxu0
    %v3847 = vadd.f32 0.0, %v3846
    %3848 = vmatprep.mubr.f32.mxu0 0.0
    %3849 = vmatmul.mubr.f32.gmra.mrb[0].mxu0 %v3473
    %v3850 = vpop.f32.mrb[0].mxu0
    %v3851 = vadd.f32 0.0, %v3850
    %v3852 = vpop.f32.mrb[0].mxu0
    %v3853 = vadd.f32 0.0, %v3852
    %3854 = vmatprep.mubr.f32.mxu0 0.0
    %3855 = vmatmul.mubr.f32.gmra.mrb[0].mxu0 %v3476
    %v3856 = vpop.f32.mrb[0].mxu0
    %v3857 = vadd.f32 0.0, %v3856
    %v3858 = vpop.f32.mrb[0].mxu0
    %v3859 = vadd.f32 0.0, %v3858
    %3860 = vmatprep.mubr.f32.mxu0 0.0
    %3861 = vmatmul.mubr.f32.gmra.mrb[0].mxu0 %v3479
    %v3862 = vpop.f32.mrb[0].mxu0
    %v3863 = vadd.f32 0.0, %v3862
    %v3864 = vpop.f32.mrb[0].mxu0
    %v3865 = vadd.f32 0.0, %v3864
    %3866 = vmatprep.mubr.f32.mxu0 0.0
    %3867 = vmatmul.mubr.f32.gmra.mrb[0].mxu0 %v3482
    %v3868 = vpop.f32.mrb[0].mxu0
    %v3869 = vadd.f32 0.0, %v3868
    %v3870 = vpop.f32.mrb[0].mxu0
    %v3871 = vadd.f32 0.0, %v3870
    %3872 = vmatprep.mubr.f32.mxu0 0.0
    %3873 = vmatmul.mubr.f32.gmra.mrb[0].mxu0 %v3485
    %v3874 = vpop.f32.mrb[0].mxu0
    %v3875 = vadd.f32 0.0, %v3874
    %v3876 = vpop.f32.mrb[0].mxu0
    %v3877 = vadd.f32 0.0, %v3876
    %3878 = vmatprep.mubr.f32.mxu0 0.0
    %3879 = vmatmul.mubr.f32.gmra.mrb[0].mxu0 %v3488
    %v3880 = vpop.f32.mrb[0].mxu0
    %v3881 = vadd.f32 0.0, %v3880
    %v3882 = vpop.f32.mrb[0].mxu0
    %v3883 = vadd.f32 0.0, %v3882
    %3884 = vmatprep.mubr.f32.mxu0 0.0
    %3885 = vmatmul.mubr.f32.gmra.mrb[0].mxu0 %v3491
    %v3886 = vpop.f32.mrb[0].mxu0
    %v3887 = vadd.f32 0.0, %v3886
    %v3888 = vpop.f32.mrb[0].mxu0
    %v3889 = vadd.f32 0.0, %v3888
    %3890 = vmatprep.mubr.f32.mxu0 0.0
    %3891 = vmatmul.mubr.f32.gmra.mrb[0].mxu0 %v3494
    %v3892 = vpop.f32.mrb[0].mxu0
    %v3893 = vadd.f32 0.0, %v3892
    %v3894 = vpop.f32.mrb[0].mxu0
    %v3895 = vadd.f32 0.0, %v3894
    %3896 = vmatprep.mubr.f32.mxu0 0.0
    %3897 = vmatmul.mubr.f32.gmra.mrb[0].mxu0 %v3497
    %v3898 = vpop.f32.mrb[0].mxu0
    %v3899 = vadd.f32 0.0, %v3898
    %v3900 = vpop.f32.mrb[0].mxu0
    %v3901 = vadd.f32 0.0, %v3900
    %3902 = vmatprep.mubr.f32.mxu0 0.0
    %3903 = vmatmul.mubr.f32.gmra.mrb[0].mxu0 %v3500
    %v3904 = vpop.f32.mrb[0].mxu0
    %v3905 = vadd.f32 0.0, %v3904
    %v3906 = vpop.f32.mrb[0].mxu0
    %v3907 = vadd.f32 0.0, %v3906
    %3908 = vmatprep.mubr.f32.mxu0 0.0
    %3909 = vmatmul.mubr.f32.gmra.mrb[0].mxu0 %v3503
    %v3910 = vpop.f32.mrb[0].mxu0
    %v3911 = vadd.f32 0.0, %v3910
    %v3912 = vpop.f32.mrb[0].mxu0
    %v3913 = vadd.f32 0.0, %v3912
    %3914 = vmatprep.mubr.f32.mxu0 0.0
    %3915 = vmatmul.mubr.f32.gmra.mrb[0].mxu0 %v3506
    %v3916 = vpop.f32.mrb[0].mxu0
    %v3917 = vadd.f32 0.0, %v3916
    %v3918 = vpop.f32.mrb[0].mxu0
    %v3919 = vadd.f32 0.0, %v3918
    %3920 = vmatprep.mubr.f32.mxu0 0.0
    %3921 = vmatmul.mubr.f32.gmra.mrb[0].mxu0 %v3509
    %v3922 = vpop.f32.mrb[0].mxu0
    %v3923 = vadd.f32 0.0, %v3922
    %v3924 = vpop.f32.mrb[0].mxu0
    %v3925 = vadd.f32 0.0, %v3924
    %3926 = vmatprep.mubr.f32.mxu0 0.0
    %3927 = vmatmul.mubr.f32.gmra.mrb[0].mxu0 %v3512
    %v3928 = vpop.f32.mrb[0].mxu0
    %v3929 = vadd.f32 0.0, %v3928
    %v3930 = vpop.f32.mrb[0].mxu0
    %v3931 = vadd.f32 0.0, %v3930
    %3932 = vmatprep.mubr.f32.mxu0 0.0
    %3933 = vmatmul.mubr.f32.gmra.mrb[0].mxu0 %v3515
    %v3934 = vpop.f32.mrb[0].mxu0
    %v3935 = vadd.f32 0.0, %v3934
    %v3936 = vpop.f32.mrb[0].mxu0
    %v3937 = vadd.f32 0.0, %v3936
    %3938 = vmatprep.mubr.f32.mxu0 0.0
    %3939 = vmatmul.mubr.f32.gmra.mrb[0].mxu0 %v3518
    %v3940 = vpop.f32.mrb[0].mxu0
    %v3941 = vadd.f32 0.0, %v3940
    %v3942 = vpop.f32.mrb[0].mxu0
    %v3943 = vadd.f32 0.0, %v3942
    %3944 = vmatprep.mubr.f32.mxu0 0.0
    %3945 = vmatmul.mubr.f32.gmra.mrb[0].mxu0 %v3521
    %v3946 = vpop.f32.mrb[0].mxu0
    %v3947 = vadd.f32 0.0, %v3946
    %v3948 = vpop.f32.mrb[0].mxu0
    %v3949 = vadd.f32 0.0, %v3948
    %3950 = vmatprep.mubr.f32.mxu0 0.0
    %3951 = vmatmul.mubr.f32.gmra.mrb[0].mxu0 %v3524
    %v3952 = vpop.f32.mrb[0].mxu0
    %v3953 = vadd.f32 0.0, %v3952
    %v3954 = vpop.f32.mrb[0].mxu0
    %v3955 = vadd.f32 0.0, %v3954
    %3956 = vmatprep.mubr.f32.mxu0 0.0
    %3957 = vmatmul.mubr.f32.gmra.mrb[0].mxu0 %v3527
    %v3958 = vpop.f32.mrb[0].mxu0
    %v3959 = vadd.f32 0.0, %v3958
    %v3960 = vpop.f32.mrb[0].mxu0
    %v3961 = vadd.f32 0.0, %v3960
    %3962 = vmatprep.mubr.f32.mxu0 0.0
    %3963 = vmatmul.mubr.f32.gmra.mrb[0].mxu0 %v3530
    %v3964 = vpop.f32.mrb[0].mxu0
    %v3965 = vadd.f32 0.0, %v3964
    %v3966 = vpop.f32.mrb[0].mxu0
    %v3967 = vadd.f32 0.0, %v3966
    %3968 = vmatprep.mubr.f32.mxu0 0.0
    %3969 = vmatmul.mubr.f32.gmra.mrb[0].mxu0 %v3533
    %v3970 = vpop.f32.mrb[0].mxu0
    %v3971 = vadd.f32 0.0, %v3970
    %v3972 = vpop.f32.mrb[0].mxu0
    %v3973 = vadd.f32 0.0, %v3972
    %3974 = vmatprep.mubr.f32.mxu0 0.0
    %3975 = vmatmul.mubr.f32.gmra.mrb[0].mxu0 %v3536
    %v3976 = vpop.f32.mrb[0].mxu0
    %v3977 = vadd.f32 0.0, %v3976
    %v3978 = vpop.f32.mrb[0].mxu0
    %v3979 = vadd.f32 0.0, %v3978
    %3980 = vmatprep.mubr.f32.mxu0 0.0
    %3981 = vmatmul.mubr.f32.gmra.mrb[0].mxu0 %v3539
    %v3982 = vpop.f32.mrb[0].mxu0
    %v3983 = vadd.f32 0.0, %v3982
    %v3984 = vpop.f32.mrb[0].mxu0
    %v3985 = vadd.f32 0.0, %v3984
    %3986 = vmatprep.mubr.f32.mxu0 0.0
    %3987 = vmatmul.mubr.f32.gmra.mrb[0].mxu0 %v3542
    %v3988 = vpop.f32.mrb[0].mxu0
    %v3989 = vadd.f32 0.0, %v3988
    %v3990 = vpop.f32.mrb[0].mxu0
    %v3991 = vadd.f32 0.0, %v3990
    %3992 = vdwg.mxu0
    %v3993 = vmul.f32 %v1397, %v3611
    %v3994 = vmul.f32 %v1399, %v3613
    %v3995 = vmul.f32 %v1403, %v3617
    %v3996 = vmul.f32 %v1405, %v3619
    %v3997 = vmul.f32 %v1409, %v3623
    %v3998 = vmul.f32 %v1411, %v3625
    %v3999 = vmul.f32 %v1415, %v3629
    %v4000 = vmul.f32 %v1417, %v3631
    %v4001 = vmul.f32 %v1421, %v3635
    %v4002 = vmul.f32 %v1423, %v3637
    %v4003 = vmul.f32 %v1427, %v3641
    %v4004 = vmul.f32 %v1429, %v3643
    %v4005 = vmul.f32 %v1433, %v3647
    %v4006 = vmul.f32 %v1435, %v3649
    %v4007 = vmul.f32 %v1439, %v3653
    %v4008 = vmul.f32 %v1441, %v3655
    %v4009 = vmul.f32 %v1445, %v3659
    %v4010 = vmul.f32 %v1447, %v3661
    %v4011 = vmul.f32 %v1451, %v3665
    %v4012 = vmul.f32 %v1453, %v3667
    %v4013 = vmul.f32 %v1457, %v3671
    %v4014 = vmul.f32 %v1459, %v3673
    %v4015 = vmul.f32 %v1463, %v3677
    %v4016 = vmul.f32 %v1465, %v3679
    %v4017 = vmul.f32 %v1469, %v3683
    %v4018 = vmul.f32 %v1471, %v3685
    %v4019 = vmul.f32 %v1475, %v3689
    %v4020 = vmul.f32 %v1477, %v3691
    %v4021 = vmul.f32 %v1481, %v3695
    %v4022 = vmul.f32 %v1483, %v3697
    %v4023 = vmul.f32 %v1487, %v3701
    %v4024 = vmul.f32 %v1489, %v3703
    %v4025 = vmul.f32 %v1493, %v3707
    %v4026 = vmul.f32 %v1495, %v3709
    %v4027 = vmul.f32 %v1499, %v3713
    %v4028 = vmul.f32 %v1501, %v3715
    %v4029 = vmul.f32 %v1505, %v3719
    %v4030 = vmul.f32 %v1507, %v3721
    %v4031 = vmul.f32 %v1511, %v3725
    %v4032 = vmul.f32 %v1513, %v3727
    %v4033 = vmul.f32 %v1517, %v3731
    %v4034 = vmul.f32 %v1519, %v3733
    %v4035 = vmul.f32 %v1523, %v3737
    %v4036 = vmul.f32 %v1525, %v3739
    %v4037 = vmul.f32 %v1529, %v3743
    %v4038 = vmul.f32 %v1531, %v3745
    %v4039 = vmul.f32 %v1535, %v3749
    %v4040 = vmul.f32 %v1537, %v3751
    %v4041 = vmul.f32 %v1541, %v3755
    %v4042 = vmul.f32 %v1543, %v3757
    %v4043 = vmul.f32 %v1547, %v3761
    %v4044 = vmul.f32 %v1549, %v3763
    %v4045 = vmul.f32 %v1553, %v3767
    %v4046 = vmul.f32 %v1555, %v3769
    %v4047 = vmul.f32 %v1559, %v3773
    %v4048 = vmul.f32 %v1561, %v3775
    %v4049 = vmul.f32 %v1565, %v3779
    %v4050 = vmul.f32 %v1567, %v3781
    %v4051 = vmul.f32 %v1571, %v3785
    %v4052 = vmul.f32 %v1573, %v3787
    %v4053 = vmul.f32 %v1577, %v3791
    %v4054 = vmul.f32 %v1579, %v3793
    %v4055 = vmul.f32 %v1583, %v3797
    %v4056 = vmul.f32 %v1585, %v3799
    %v4057 = vmul.f32 %v1589, %v3803
    %v4058 = vmul.f32 %v1591, %v3805
    %v4059 = vmul.f32 %v1595, %v3809
    %v4060 = vmul.f32 %v1597, %v3811
    %v4061 = vmul.f32 %v1601, %v3815
    %v4062 = vmul.f32 %v1603, %v3817
    %v4063 = vmul.f32 %v1607, %v3821
    %v4064 = vmul.f32 %v1609, %v3823
    %v4065 = vmul.f32 %v1613, %v3827
    %v4066 = vmul.f32 %v1615, %v3829
    %v4067 = vmul.f32 %v1619, %v3833
    %v4068 = vmul.f32 %v1621, %v3835
    %v4069 = vmul.f32 %v1625, %v3839
    %v4070 = vmul.f32 %v1627, %v3841
    %v4071 = vmul.f32 %v1631, %v3845
    %v4072 = vmul.f32 %v1633, %v3847
    %v4073 = vmul.f32 %v1637, %v3851
    %v4074 = vmul.f32 %v1639, %v3853
    %v4075 = vmul.f32 %v1643, %v3857
    %v4076 = vmul.f32 %v1645, %v3859
    %v4077 = vmul.f32 %v1649, %v3863
    %v4078 = vmul.f32 %v1651, %v3865
    %v4079 = vmul.f32 %v1655, %v3869
    %v4080 = vmul.f32 %v1657, %v3871
    %v4081 = vmul.f32 %v1661, %v3875
    %v4082 = vmul.f32 %v1663, %v3877
    %v4083 = vmul.f32 %v1667, %v3881
    %v4084 = vmul.f32 %v1669, %v3883
    %v4085 = vmul.f32 %v1673, %v3887
    %v4086 = vmul.f32 %v1675, %v3889
    %v4087 = vmul.f32 %v1679, %v3893
    %v4088 = vmul.f32 %v1681, %v3895
    %v4089 = vmul.f32 %v1685, %v3899
    %v4090 = vmul.f32 %v1687, %v3901
    %v4091 = vmul.f32 %v1691, %v3905
    %v4092 = vmul.f32 %v1693, %v3907
    %v4093 = vmul.f32 %v1697, %v3911
    %v4094 = vmul.f32 %v1699, %v3913
    %v4095 = vmul.f32 %v1703, %v3917
    %v4096 = vmul.f32 %v1705, %v3919
    %v4097 = vmul.f32 %v1709, %v3923
    %v4098 = vmul.f32 %v1711, %v3925
    %v4099 = vmul.f32 %v1715, %v3929
    %v4100 = vmul.f32 %v1717, %v3931
    %v4101 = vmul.f32 %v1721, %v3935
    %v4102 = vmul.f32 %v1723, %v3937
    %v4103 = vmul.f32 %v1727, %v3941
    %v4104 = vmul.f32 %v1729, %v3943
    %v4105 = vmul.f32 %v1733, %v3947
    %v4106 = vmul.f32 %v1735, %v3949
    %v4107 = vmul.f32 %v1739, %v3953
    %v4108 = vmul.f32 %v1741, %v3955
    %v4109 = vmul.f32 %v1745, %v3959
    %v4110 = vmul.f32 %v1747, %v3961
    %v4111 = vmul.f32 %v1751, %v3965
    %v4112 = vmul.f32 %v1753, %v3967
    %v4113 = vmul.f32 %v1757, %v3971
    %v4114 = vmul.f32 %v1759, %v3973
    %v4115 = vmul.f32 %v1763, %v3977
    %v4116 = vmul.f32 %v1765, %v3979
    %v4117 = vmul.f32 %v1769, %v3983
    %v4118 = vmul.f32 %v1771, %v3985
    %v4119 = vmul.f32 %v1775, %v3989
    %v4120 = vmul.f32 %v1777, %v3991
    %4121 = vst [vmem:[%s6] sm:$0xff] %v3993
    %4122 = vst [vmem:[%s6 + $0x8] sm:$0xff] %v3994
    %4123 = vst [vmem:[%s6 + $0x18] sm:$0xff] %v3995
    %4124 = vst [vmem:[%s6 + $0x20] sm:$0xff] %v3996
    %4125 = vst [vmem:[%s6 + $0x30] sm:$0xff] %v3997
    %4126 = vst [vmem:[%s6 + $0x38] sm:$0xff] %v3998
    %4127 = vst [vmem:[%s6 + $0x48] sm:$0xff] %v3999
    %4128 = vst [vmem:[%s6 + $0x50] sm:$0xff] %v4000
    %4129 = vst [vmem:[%s6 + $0x60] sm:$0xff] %v4001
    %4130 = vst [vmem:[%s6 + $0x68] sm:$0xff] %v4002
    %4131 = vst [vmem:[%s6 + $0x78] sm:$0xff] %v4003
    %4132 = vst [vmem:[%s6 + $0x80] sm:$0xff] %v4004
    %4133 = vst [vmem:[%s6 + $0x90] sm:$0xff] %v4005
    %4134 = vst [vmem:[%s6 + $0x98] sm:$0xff] %v4006
    %4135 = vst [vmem:[%s6 + $0xa8] sm:$0xff] %v4007
    %4136 = vst [vmem:[%s6 + $0xb0] sm:$0xff] %v4008
    %4137 = vst [vmem:[%s6 + $0xc0] sm:$0xff] %v4009
    %4138 = vst [vmem:[%s6 + $0xc8] sm:$0xff] %v4010
    %4139 = vst [vmem:[%s6 + $0xd8] sm:$0xff] %v4011
    %4140 = vst [vmem:[%s6 + $0xe0] sm:$0xff] %v4012
    %4141 = vst [vmem:[%s6 + $0xf0] sm:$0xff] %v4013
    %4142 = vst [vmem:[%s6 + $0xf8] sm:$0xff] %v4014
    %4143 = vst [vmem:[%s6 + $0x108] sm:$0xff] %v4015
    %4144 = vst [vmem:[%s6 + $0x110] sm:$0xff] %v4016
    %4145 = vst [vmem:[%s6 + $0x120] sm:$0xff] %v4017
    %4146 = vst [vmem:[%s6 + $0x128] sm:$0xff] %v4018
    %4147 = vst [vmem:[%s6 + $0x138] sm:$0xff] %v4019
    %4148 = vst [vmem:[%s6 + $0x140] sm:$0xff] %v4020
    %4149 = vst [vmem:[%s6 + $0x150] sm:$0xff] %v4021
    %4150 = vst [vmem:[%s6 + $0x158] sm:$0xff] %v4022
    %4151 = vst [vmem:[%s6 + $0x168] sm:$0xff] %v4023
    %4152 = vst [vmem:[%s6 + $0x170] sm:$0xff] %v4024
    %4153 = vst [vmem:[%s6 + $0x180] sm:$0xff] %v4025
    %4154 = vst [vmem:[%s6 + $0x188] sm:$0xff] %v4026
    %4155 = vst [vmem:[%s6 + $0x198] sm:$0xff] %v4027
    %4156 = vst [vmem:[%s6 + $0x1a0] sm:$0xff] %v4028
    %4157 = vst [vmem:[%s6 + $0x1b0] sm:$0xff] %v4029
    %4158 = vst [vmem:[%s6 + $0x1b8] sm:$0xff] %v4030
    %4159 = vst [vmem:[%s6 + $0x1c8] sm:$0xff] %v4031
    %4160 = vst [vmem:[%s6 + $0x1d0] sm:$0xff] %v4032
    %4161 = vst [vmem:[%s6 + $0x1e0] sm:$0xff] %v4033
    %4162 = vst [vmem:[%s6 + $0x1e8] sm:$0xff] %v4034
    %4163 = vst [vmem:[%s6 + $0x1f8] sm:$0xff] %v4035
    %4164 = vst [vmem:[%s6 + $0x200] sm:$0xff] %v4036
    %4165 = vst [vmem:[%s6 + $0x210] sm:$0xff] %v4037
    %4166 = vst [vmem:[%s6 + $0x218] sm:$0xff] %v4038
    %4167 = vst [vmem:[%s6 + $0x228] sm:$0xff] %v4039
    %4168 = vst [vmem:[%s6 + $0x230] sm:$0xff] %v4040
    %4169 = vst [vmem:[%s6 + $0x240] sm:$0xff] %v4041
    %4170 = vst [vmem:[%s6 + $0x248] sm:$0xff] %v4042
    %4171 = vst [vmem:[%s6 + $0x258] sm:$0xff] %v4043
    %4172 = vst [vmem:[%s6 + $0x260] sm:$0xff] %v4044
    %4173 = vst [vmem:[%s6 + $0x270] sm:$0xff] %v4045
    %4174 = vst [vmem:[%s6 + $0x278] sm:$0xff] %v4046
    %4175 = vst [vmem:[%s6 + $0x288] sm:$0xff] %v4047
    %4176 = vst [vmem:[%s6 + $0x290] sm:$0xff] %v4048
    %4177 = vst [vmem:[%s6 + $0x2a0] sm:$0xff] %v4049
    %4178 = vst [vmem:[%s6 + $0x2a8] sm:$0xff] %v4050
    %4179 = vst [vmem:[%s6 + $0x2b8] sm:$0xff] %v4051
    %4180 = vst [vmem:[%s6 + $0x2c0] sm:$0xff] %v4052
    %4181 = vst [vmem:[%s6 + $0x2d0] sm:$0xff] %v4053
    %4182 = vst [vmem:[%s6 + $0x2d8] sm:$0xff] %v4054
    %4183 = vst [vmem:[%s6 + $0x2e8] sm:$0xff] %v4055
    %4184 = vst [vmem:[%s6 + $0x2f0] sm:$0xff] %v4056
    %4185 = vst [vmem:[%s6 + $0x300] sm:$0xff] %v4057
    %4186 = vst [vmem:[%s6 + $0x308] sm:$0xff] %v4058
    %4187 = vst [vmem:[%s6 + $0x318] sm:$0xff] %v4059
    %4188 = vst [vmem:[%s6 + $0x320] sm:$0xff] %v4060
    %4189 = vst [vmem:[%s6 + $0x330] sm:$0xff] %v4061
    %4190 = vst [vmem:[%s6 + $0x338] sm:$0xff] %v4062
    %4191 = vst [vmem:[%s6 + $0x348] sm:$0xff] %v4063
    %4192 = vst [vmem:[%s6 + $0x350] sm:$0xff] %v4064
    %4193 = vst [vmem:[%s6 + $0x360] sm:$0xff] %v4065
    %4194 = vst [vmem:[%s6 + $0x368] sm:$0xff] %v4066
    %4195 = vst [vmem:[%s6 + $0x378] sm:$0xff] %v4067
    %4196 = vst [vmem:[%s6 + $0x380] sm:$0xff] %v4068
    %4197 = vst [vmem:[%s6 + $0x390] sm:$0xff] %v4069
    %4198 = vst [vmem:[%s6 + $0x398] sm:$0xff] %v4070
    %4199 = vst [vmem:[%s6 + $0x3a8] sm:$0xff] %v4071
    %4200 = vst [vmem:[%s6 + $0x3b0] sm:$0xff] %v4072
    %4201 = vst [vmem:[%s6 + $0x3c0] sm:$0xff] %v4073
    %4202 = vst [vmem:[%s6 + $0x3c8] sm:$0xff] %v4074
    %4203 = vst [vmem:[%s6 + $0x3d8] sm:$0xff] %v4075
    %4204 = vst [vmem:[%s6 + $0x3e0] sm:$0xff] %v4076
    %4205 = vst [vmem:[%s6 + $0x3f0] sm:$0xff] %v4077
    %4206 = vst [vmem:[%s6 + $0x3f8] sm:$0xff] %v4078
    %4207 = vst [vmem:[%s6 + $0x408] sm:$0xff] %v4079
    %4208 = vst [vmem:[%s6 + $0x410] sm:$0xff] %v4080
    %4209 = vst [vmem:[%s6 + $0x420] sm:$0xff] %v4081
    %4210 = vst [vmem:[%s6 + $0x428] sm:$0xff] %v4082
    %4211 = vst [vmem:[%s6 + $0x438] sm:$0xff] %v4083
    %4212 = vst [vmem:[%s6 + $0x440] sm:$0xff] %v4084
    %4213 = vst [vmem:[%s6 + $0x450] sm:$0xff] %v4085
    %4214 = vst [vmem:[%s6 + $0x458] sm:$0xff] %v4086
    %4215 = vst [vmem:[%s6 + $0x468] sm:$0xff] %v4087
    %4216 = vst [vmem:[%s6 + $0x470] sm:$0xff] %v4088
    %4217 = vst [vmem:[%s6 + $0x480] sm:$0xff] %v4089
    %4218 = vst [vmem:[%s6 + $0x488] sm:$0xff] %v4090
    %4219 = vst [vmem:[%s6 + $0x498] sm:$0xff] %v4091
    %4220 = vst [vmem:[%s6 + $0x4a0] sm:$0xff] %v4092
    %4221 = vst [vmem:[%s6 + $0x4b0] sm:$0xff] %v4093
    %4222 = vst [vmem:[%s6 + $0x4b8] sm:$0xff] %v4094
    %4223 = vst [vmem:[%s6 + $0x4c8] sm:$0xff] %v4095
    %4224 = vst [vmem:[%s6 + $0x4d0] sm:$0xff] %v4096
    %4225 = vst [vmem:[%s6 + $0x4e0] sm:$0xff] %v4097
    %4226 = vst [vmem:[%s6 + $0x4e8] sm:$0xff] %v4098
    %4227 = vst [vmem:[%s6 + $0x4f8] sm:$0xff] %v4099
    %4228 = vst [vmem:[%s6 + $0x500] sm:$0xff] %v4100
    %4229 = vst [vmem:[%s6 + $0x510] sm:$0xff] %v4101
    %4230 = vst [vmem:[%s6 + $0x518] sm:$0xff] %v4102
    %4231 = vst [vmem:[%s6 + $0x528] sm:$0xff] %v4103
    %4232 = vst [vmem:[%s6 + $0x530] sm:$0xff] %v4104
    %4233 = vst [vmem:[%s6 + $0x540] sm:$0xff] %v4105
    %4234 = vst [vmem:[%s6 + $0x548] sm:$0xff] %v4106
    %4235 = vst [vmem:[%s6 + $0x558] sm:$0xff] %v4107
    %4236 = vst [vmem:[%s6 + $0x560] sm:$0xff] %v4108
    %4237 = vst [vmem:[%s6 + $0x570] sm:$0xff] %v4109
    %4238 = vst [vmem:[%s6 + $0x578] sm:$0xff] %v4110
    %4239 = vst [vmem:[%s6 + $0x588] sm:$0xff] %v4111
    %4240 = vst [vmem:[%s6 + $0x590] sm:$0xff] %v4112
    %4241 = vst [vmem:[%s6 + $0x5a0] sm:$0xff] %v4113
    %4242 = vst [vmem:[%s6 + $0x5a8] sm:$0xff] %v4114
    %4243 = vst [vmem:[%s6 + $0x5b8] sm:$0xff] %v4115
    %4244 = vst [vmem:[%s6 + $0x5c0] sm:$0xff] %v4116
    %4245 = vst [vmem:[%s6 + $0x5d0] sm:$0xff] %v4117
    %4246 = vst [vmem:[%s6 + $0x5d8] sm:$0xff] %v4118
    %4247 = vst [vmem:[%s6 + $0x5e8] sm:$0xff] %v4119
    %4248 = vst [vmem:[%s6 + $0x5f0] sm:$0xff] %v4120
    %4249 = vst [vmem:[%s6 + $0x10] sm:$0xff] %v1846
    %4250 = vst [vmem:[%s6 + $0x28] sm:$0xff] %v1851
    %4251 = vst [vmem:[%s6 + $0x40] sm:$0xff] %v1856
    %4252 = vst [vmem:[%s6 + $0x58] sm:$0xff] %v1861
    %4253 = vst [vmem:[%s6 + $0x70] sm:$0xff] %v1866
    %4254 = vst [vmem:[%s6 + $0x88] sm:$0xff] %v1871
    %4255 = vst [vmem:[%s6 + $0xa0] sm:$0xff] %v1876
    %4256 = vst [vmem:[%s6 + $0xb8] sm:$0xff] %v1881
    %4257 = vst [vmem:[%s6 + $0xd0] sm:$0xff] %v1886
    %4258 = vst [vmem:[%s6 + $0xe8] sm:$0xff] %v1891
    %4259 = vst [vmem:[%s6 + $0x100] sm:$0xff] %v1896
    %4260 = vst [vmem:[%s6 + $0x118] sm:$0xff] %v1901
    %4261 = vst [vmem:[%s6 + $0x130] sm:$0xff] %v1906
    %4262 = vst [vmem:[%s6 + $0x148] sm:$0xff] %v1911
    %4263 = vst [vmem:[%s6 + $0x160] sm:$0xff] %v1916
    %4264 = vst [vmem:[%s6 + $0x178] sm:$0xff] %v1921
    %4265 = vst [vmem:[%s6 + $0x190] sm:$0xff] %v1926
    %4266 = vst [vmem:[%s6 + $0x1a8] sm:$0xff] %v1931
    %4267 = vst [vmem:[%s6 + $0x1c0] sm:$0xff] %v1936
    %4268 = vst [vmem:[%s6 + $0x1d8] sm:$0xff] %v1941
    %4269 = vst [vmem:[%s6 + $0x1f0] sm:$0xff] %v1946
    %4270 = vst [vmem:[%s6 + $0x208] sm:$0xff] %v1951
    %4271 = vst [vmem:[%s6 + $0x220] sm:$0xff] %v1956
    %4272 = vst [vmem:[%s6 + $0x238] sm:$0xff] %v1961
    %4273 = vst [vmem:[%s6 + $0x250] sm:$0xff] %v1966
    %4274 = vst [vmem:[%s6 + $0x268] sm:$0xff] %v1971
    %4275 = vst [vmem:[%s6 + $0x280] sm:$0xff] %v1976
    %4276 = vst [vmem:[%s6 + $0x298] sm:$0xff] %v1981
    %4277 = vst [vmem:[%s6 + $0x2b0] sm:$0xff] %v1986
    %4278 = vst [vmem:[%s6 + $0x2c8] sm:$0xff] %v1991
    %4279 = vst [vmem:[%s6 + $0x2e0] sm:$0xff] %v1996
    %4280 = vst [vmem:[%s6 + $0x2f8] sm:$0xff] %v2001
    %4281 = vst [vmem:[%s6 + $0x310] sm:$0xff] %v2006
    %4282 = vst [vmem:[%s6 + $0x328] sm:$0xff] %v2011
    %4283 = vst [vmem:[%s6 + $0x340] sm:$0xff] %v2016
    %4284 = vst [vmem:[%s6 + $0x358] sm:$0xff] %v2021
    %4285 = vst [vmem:[%s6 + $0x370] sm:$0xff] %v2026
    %4286 = vst [vmem:[%s6 + $0x388] sm:$0xff] %v2031
    %4287 = vst [vmem:[%s6 + $0x3a0] sm:$0xff] %v2036
    %4288 = vst [vmem:[%s6 + $0x3b8] sm:$0xff] %v2041
    %4289 = vst [vmem:[%s6 + $0x3d0] sm:$0xff] %v2046
    %4290 = vst [vmem:[%s6 + $0x3e8] sm:$0xff] %v2051
    %4291 = vst [vmem:[%s6 + $0x400] sm:$0xff] %v2056
    %4292 = vst [vmem:[%s6 + $0x418] sm:$0xff] %v2061
    %4293 = vst [vmem:[%s6 + $0x430] sm:$0xff] %v2066
    %4294 = vst [vmem:[%s6 + $0x448] sm:$0xff] %v2071
    %4295 = vst [vmem:[%s6 + $0x460] sm:$0xff] %v2076
    %4296 = vst [vmem:[%s6 + $0x478] sm:$0xff] %v2081
    %4297 = vst [vmem:[%s6 + $0x490] sm:$0xff] %v2086
    %4298 = vst [vmem:[%s6 + $0x4a8] sm:$0xff] %v2091
    %4299 = vst [vmem:[%s6 + $0x4c0] sm:$0xff] %v2096
    %4300 = vst [vmem:[%s6 + $0x4d8] sm:$0xff] %v2101
    %4301 = vst [vmem:[%s6 + $0x4f0] sm:$0xff] %v2106
    %4302 = vst [vmem:[%s6 + $0x508] sm:$0xff] %v2111
    %4303 = vst [vmem:[%s6 + $0x520] sm:$0xff] %v2116
    %4304 = vst [vmem:[%s6 + $0x538] sm:$0xff] %v2121
    %4305 = vst [vmem:[%s6 + $0x550] sm:$0xff] %v2126
    %4306 = vst [vmem:[%s6 + $0x568] sm:$0xff] %v2131
    %4307 = vst [vmem:[%s6 + $0x580] sm:$0xff] %v2136
    %4308 = vst [vmem:[%s6 + $0x598] sm:$0xff] %v2141
    %4309 = vst [vmem:[%s6 + $0x5b0] sm:$0xff] %v2146
    %4310 = vst [vmem:[%s6 + $0x5c8] sm:$0xff] %v2151
    %4311 = vst [vmem:[%s6 + $0x5e0] sm:$0xff] %v2156
    %4312 = vst [vmem:[%s6 + $0x5f8] sm:$0xff] %v2161
    // Predicated region
    $region42: #{dpsa_forward.3} parent=1 // pred_check
      _
    $region43: #{dpsa_forward.3} parent=1 // pred_check_branch
      %4314 = sbr.rel (0) target = $region45
    $region44: #{dpsa_forward.3} parent=1 // pred_region
      _
    $region45: #{dpsa_forward.3} parent=1 // pred_fallthru
      _
    // Predicated region
    $region46: #{dpsa_forward.3} parent=1 // pred_check
      _
    $region47: #{dpsa_forward.3} parent=1 // pred_check_branch
      %4316 = sbr.rel (0) target = $region49
    $region48: #{dpsa_forward.3} parent=1 // pred_region
      _
    $region49: #{dpsa_forward.3} parent=1 // pred_fallthru
      _
    %4317 = vsyncpa [#allocation3], 1
    %4318 = vsyncpa [#allocation5], 1
    %4319 = vsyncpa [#allocation8], 1

// kernel: dpsa_forward.5
$region0: #{dpsa_forward.5}
  #allocation0 [shape = 'u32[]', space=smem, size = 0x4, offset = 0x4, fixed_abs, tag = 'smem constant byte address 0x4 - core index']
  #allocation1 [shape = 'u32[144,128]{1,0:T(1,128)}', space=vmem, size = 0x12000, scoped, tag = 'internal scratch']
  %s0 = inlined_call_operand.vmem [shape: bf16[512,128], index: 0, kind: input, shape index: {}]
  %s1 = inlined_call_operand.vmem [shape: bf16[128,64], index: 1, kind: input, shape index: {}]
  %s2 = inlined_call_operand.vmem [shape: f32[1,64], index: 2, kind: input, shape index: {}]
  %s3 = inlined_call_operand.hbm [shape: f32[512,64], index: 3, kind: output, shape index: {}]
  %s4 = sld [smem:[#allocation0]]
  $region22: #{dpsa_forward.5} parent=0
    _
  %s6 = ssub.s32 1, %s4
  %s7 = scalar_select 0, %s6, %s4
  $region1: #{dpsa_forward.5} parent=0
    #allocation2 [shape = 'u8[262144]{0}', space=vmem, size = 0x40000, scoped, tag = 'output window, operand 0, single buffered']
    #allocation3 [shape = 's32[1]{0}', space=sflag, size = 0x4, scoped, tag = 'scoped memory for dpsa_forward.5']
    %8 = vsyncpa [#allocation3], 0
    // Predicated region
    $region2: #{dpsa_forward.5} parent=1 // pred_check
      _
    $region3: #{dpsa_forward.5} parent=1 // pred_check_branch
      %10 = sbr.rel (0) target = $region5
    $region4: #{dpsa_forward.5} parent=1 // pred_region
      _
    $region5: #{dpsa_forward.5} parent=1 // pred_fallthru
      _
    // Predicated region
    $region6: #{dpsa_forward.5} parent=1 // pred_check
      _
    $region7: #{dpsa_forward.5} parent=1 // pred_check_branch
      %12 = sbr.rel (0) target = $region9
    $region8: #{dpsa_forward.5} parent=1 // pred_region
      _
    $region9: #{dpsa_forward.5} parent=1 // pred_fallthru
      _
    // Predicated region
    $region10: #{dpsa_forward.5} parent=1 // pred_check
      _
    $region11: #{dpsa_forward.5} parent=1 // pred_check_branch
      %14 = sbr.rel (0) target = $region13
    $region12: #{dpsa_forward.5} parent=1 // pred_region
      _
    $region13: #{dpsa_forward.5} parent=1 // pred_fallthru
      _
    %v16 = vld [vmem:[%s0] sm:$0xf]
    %v17 = vld [vmem:[%s0 + $0x4] sm:$0xf]
    %v18 = vld [vmem:[%s0 + $0x8] sm:$0xf]
    %v19 = vld [vmem:[%s0 + $0xc] sm:$0xf]
    %v20 = vld [vmem:[%s0 + $0x10] sm:$0xf]
    %v21 = vld [vmem:[%s0 + $0x14] sm:$0xf]
    %v22 = vld [vmem:[%s0 + $0x18] sm:$0xf]
    %v23 = vld [vmem:[%s0 + $0x1c] sm:$0xf]
    %v24 = vld [vmem:[%s0 + $0x20] sm:$0xf]
    %v25 = vld [vmem:[%s0 + $0x24] sm:$0xf]
    %v26 = vld [vmem:[%s0 + $0x28] sm:$0xf]
    %v27 = vld [vmem:[%s0 + $0x2c] sm:$0xf]
    %v28 = vld [vmem:[%s0 + $0x30] sm:$0xf]
    %v29 = vld [vmem:[%s0 + $0x34] sm:$0xf]
    %v30 = vld [vmem:[%s0 + $0x38] sm:$0xf]
    %v31 = vld [vmem:[%s0 + $0x3c] sm:$0xf]
    %v32 = vld [vmem:[%s0 + $0x40] sm:$0xf]
    %v33 = vld [vmem:[%s0 + $0x44] sm:$0xf]
    %v34 = vld [vmem:[%s0 + $0x48] sm:$0xf]
    %v35 = vld [vmem:[%s0 + $0x4c] sm:$0xf]
    %v36 = vld [vmem:[%s0 + $0x50] sm:$0xf]
    %v37 = vld [vmem:[%s0 + $0x54] sm:$0xf]
    %v38 = vld [vmem:[%s0 + $0x58] sm:$0xf]
    %v39 = vld [vmem:[%s0 + $0x5c] sm:$0xf]
    %v40 = vld [vmem:[%s0 + $0x60] sm:$0xf]
    %v41 = vld [vmem:[%s0 + $0x64] sm:$0xf]
    %v42 = vld [vmem:[%s0 + $0x68] sm:$0xf]
    %v43 = vld [vmem:[%s0 + $0x6c] sm:$0xf]
    %v44 = vld [vmem:[%s0 + $0x70] sm:$0xf]
    %v45 = vld [vmem:[%s0 + $0x74] sm:$0xf]
    %v46 = vld [vmem:[%s0 + $0x78] sm:$0xf]
    %v47 = vld [vmem:[%s0 + $0x7c] sm:$0xf]
    %v48 = vld [vmem:[%s0 + $0x80] sm:$0xf]
    %v49 = vld [vmem:[%s0 + $0x84] sm:$0xf]
    %v50 = vld [vmem:[%s0 + $0x88] sm:$0xf]
    %v51 = vld [vmem:[%s0 + $0x8c] sm:$0xf]
    %v52 = vld [vmem:[%s0 + $0x90] sm:$0xf]
    %v53 = vld [vmem:[%s0 + $0x94] sm:$0xf]
    %v54 = vld [vmem:[%s0 + $0x98] sm:$0xf]
    %v55 = vld [vmem:[%s0 + $0x9c] sm:$0xf]
    %v56 = vld [vmem:[%s0 + $0xa0] sm:$0xf]
    %v57 = vld [vmem:[%s0 + $0xa4] sm:$0xf]
    %v58 = vld [vmem:[%s0 + $0xa8] sm:$0xf]
    %v59 = vld [vmem:[%s0 + $0xac] sm:$0xf]
    %v60 = vld [vmem:[%s0 + $0xb0] sm:$0xf]
    %v61 = vld [vmem:[%s0 + $0xb4] sm:$0xf]
    %v62 = vld [vmem:[%s0 + $0xb8] sm:$0xf]
    %v63 = vld [vmem:[%s0 + $0xbc] sm:$0xf]
    %v64 = vld [vmem:[%s0 + $0xc0] sm:$0xf]
    %v65 = vld [vmem:[%s0 + $0xc4] sm:$0xf]
    %v66 = vld [vmem:[%s0 + $0xc8] sm:$0xf]
    %v67 = vld [vmem:[%s0 + $0xcc] sm:$0xf]
    %v68 = vld [vmem:[%s0 + $0xd0] sm:$0xf]
    %v69 = vld [vmem:[%s0 + $0xd4] sm:$0xf]
    %v70 = vld [vmem:[%s0 + $0xd8] sm:$0xf]
    %v71 = vld [vmem:[%s0 + $0xdc] sm:$0xf]
    %v72 = vld [vmem:[%s0 + $0xe0] sm:$0xf]
    %v73 = vld [vmem:[%s0 + $0xe4] sm:$0xf]
    %v74 = vld [vmem:[%s0 + $0xe8] sm:$0xf]
    %v75 = vld [vmem:[%s0 + $0xec] sm:$0xf]
    %v76 = vld [vmem:[%s0 + $0xf0] sm:$0xf]
    %v77 = vld [vmem:[%s0 + $0xf4] sm:$0xf]
    %v78 = vld [vmem:[%s0 + $0xf8] sm:$0xf]
    %v79 = vld [vmem:[%s0 + $0xfc] sm:$0xf]
    %v80 = vld [vmem:[%s1] sm:$0xf]
    %v81 = vld [vmem:[%s1 + $0x4] sm:$0xf]
    %v82 = vld [vmem:[%s1 + $0x8] sm:$0xf]
    %v83 = vld [vmem:[%s1 + $0xc] sm:$0xf]
    %v84 = vld [vmem:[%s1 + $0x10] sm:$0xf]
    %v85 = vld [vmem:[%s1 + $0x14] sm:$0xf]
    %v86 = vld [vmem:[%s1 + $0x18] sm:$0xf]
    %v87 = vld [vmem:[%s1 + $0x1c] sm:$0xf]
    %v88 = vld [vmem:[%s1 + $0x20] sm:$0xf]
    %v89 = vld [vmem:[%s1 + $0x24] sm:$0xf]
    %v90 = vld [vmem:[%s1 + $0x28] sm:$0xf]
    %v91 = vld [vmem:[%s1 + $0x2c] sm:$0xf]
    %v92 = vld [vmem:[%s1 + $0x30] sm:$0xf]
    %v93 = vld [vmem:[%s1 + $0x34] sm:$0xf]
    %v94 = vld [vmem:[%s1 + $0x38] sm:$0xf]
    %v95 = vld [vmem:[%s1 + $0x3c] sm:$0xf]
    %v96 = vld [vmem:[%s2] sm:$0x1]
    %v98 = vlaneseq
    %v99 = vshrl.u32 %v98, 7
    %v100 = vsub.s32 0, %v99
    %v101 = vrot.slane %v96, %v100
    %v167 = vunpack.c.l.b16 %v16
    %v168 = vunpack.c.l.b16 %v17
    %v169 = vunpack.c.l.b16 %v18
    %v170 = vunpack.c.l.b16 %v19
    %v171 = vunpack.c.l.b16 %v20
    %v172 = vunpack.c.l.b16 %v21
    %v173 = vunpack.c.l.b16 %v22
    %v174 = vunpack.c.l.b16 %v23
    %v175 = vunpack.c.l.b16 %v24
    %v176 = vunpack.c.l.b16 %v25
    %v177 = vunpack.c.l.b16 %v26
    %v178 = vunpack.c.l.b16 %v27
    %v179 = vunpack.c.l.b16 %v28
    %v180 = vunpack.c.l.b16 %v29
    %v181 = vunpack.c.l.b16 %v30
    %v182 = vunpack.c.l.b16 %v31
    %v183 = vunpack.c.l.b16 %v32
    %v184 = vunpack.c.l.b16 %v33
    %v185 = vunpack.c.l.b16 %v34
    %v186 = vunpack.c.l.b16 %v35
    %v187 = vunpack.c.l.b16 %v36
    %v188 = vunpack.c.l.b16 %v37
    %v189 = vunpack.c.l.b16 %v38
    %v190 = vunpack.c.l.b16 %v39
    %v191 = vunpack.c.l.b16 %v40
    %v192 = vunpack.c.l.b16 %v41
    %v193 = vunpack.c.l.b16 %v42
    %v194 = vunpack.c.l.b16 %v43
    %v195 = vunpack.c.l.b16 %v44
    %v196 = vunpack.c.l.b16 %v45
    %v197 = vunpack.c.l.b16 %v46
    %v198 = vunpack.c.l.b16 %v47
    %v199 = vunpack.c.l.b16 %v48
    %v200 = vunpack.c.l.b16 %v49
    %v201 = vunpack.c.l.b16 %v50
    %v202 = vunpack.c.l.b16 %v51
    %v203 = vunpack.c.l.b16 %v52
    %v204 = vunpack.c.l.b16 %v53
    %v205 = vunpack.c.l.b16 %v54
    %v206 = vunpack.c.l.b16 %v55
    %v207 = vunpack.c.l.b16 %v56
    %v208 = vunpack.c.l.b16 %v57
    %v209 = vunpack.c.l.b16 %v58
    %v210 = vunpack.c.l.b16 %v59
    %v211 = vunpack.c.l.b16 %v60
    %v212 = vunpack.c.l.b16 %v61
    %v213 = vunpack.c.l.b16 %v62
    %v214 = vunpack.c.l.b16 %v63
    %v215 = vunpack.c.l.b16 %v64
    %v216 = vunpack.c.l.b16 %v65
    %v217 = vunpack.c.l.b16 %v66
    %v218 = vunpack.c.l.b16 %v67
    %v219 = vunpack.c.l.b16 %v68
    %v220 = vunpack.c.l.b16 %v69
    %v221 = vunpack.c.l.b16 %v70
    %v222 = vunpack.c.l.b16 %v71
    %v223 = vunpack.c.l.b16 %v72
    %v224 = vunpack.c.l.b16 %v73
    %v225 = vunpack.c.l.b16 %v74
    %v226 = vunpack.c.l.b16 %v75
    %v227 = vunpack.c.l.b16 %v76
    %v228 = vunpack.c.l.b16 %v77
    %v229 = vunpack.c.l.b16 %v78
    %v230 = vunpack.c.l.b16 %v79
    %v231 = vpack.c.b16 %v168, %v167
    %v232 = vpack.c.b16 %v170, %v169
    %v233 = vpack.c.b16 %v172, %v171
    %v234 = vpack.c.b16 %v174, %v173
    %v235 = vpack.c.b16 %v176, %v175
    %v236 = vpack.c.b16 %v178, %v177
    %v237 = vpack.c.b16 %v180, %v179
    %v238 = vpack.c.b16 %v182, %v181
    %v239 = vpack.c.b16 %v184, %v183
    %v240 = vpack.c.b16 %v186, %v185
    %v241 = vpack.c.b16 %v188, %v187
    %v242 = vpack.c.b16 %v190, %v189
    %v243 = vpack.c.b16 %v192, %v191
    %v244 = vpack.c.b16 %v194, %v193
    %v245 = vpack.c.b16 %v196, %v195
    %v246 = vpack.c.b16 %v198, %v197
    %v247 = vpack.c.b16 %v200, %v199
    %v248 = vpack.c.b16 %v202, %v201
    %v249 = vpack.c.b16 %v204, %v203
    %v250 = vpack.c.b16 %v206, %v205
    %v251 = vpack.c.b16 %v208, %v207
    %v252 = vpack.c.b16 %v210, %v209
    %v253 = vpack.c.b16 %v212, %v211
    %v254 = vpack.c.b16 %v214, %v213
    %v255 = vpack.c.b16 %v216, %v215
    %v256 = vpack.c.b16 %v218, %v217
    %v257 = vpack.c.b16 %v220, %v219
    %v258 = vpack.c.b16 %v222, %v221
    %v259 = vpack.c.b16 %v224, %v223
    %v260 = vpack.c.b16 %v226, %v225
    %v261 = vpack.c.b16 %v228, %v227
    %v262 = vpack.c.b16 %v230, %v229
    %v311 = vunpack.c.l.b16 %v80
    %v312 = vunpack.c.l.b16 %v81
    %v313 = vunpack.c.l.b16 %v82
    %v314 = vunpack.c.l.b16 %v83
    %v315 = vunpack.c.l.b16 %v84
    %v316 = vunpack.c.l.b16 %v85
    %v317 = vunpack.c.l.b16 %v86
    %v318 = vunpack.c.l.b16 %v87
    %v319 = vunpack.c.l.b16 %v88
    %v320 = vunpack.c.l.b16 %v89
    %v321 = vunpack.c.l.b16 %v90
    %v322 = vunpack.c.l.b16 %v91
    %v323 = vunpack.c.l.b16 %v92
    %v324 = vunpack.c.l.b16 %v93
    %v325 = vunpack.c.l.b16 %v94
    %v326 = vunpack.c.l.b16 %v95
    %v327 = vpack.c.b16 %v312, %v311
    %v328 = vpack.c.b16 %v314, %v313
    %v329 = vpack.c.b16 %v316, %v315
    %v330 = vpack.c.b16 %v318, %v317
    %v331 = vpack.c.b16 %v320, %v319
    %v332 = vpack.c.b16 %v322, %v321
    %v333 = vpack.c.b16 %v324, %v323
    %v334 = vpack.c.b16 %v326, %v325
    %343 = vmatprep.subr.bf16.mxu0 0
    %344 = vmatpush1.bf16.msra.mxu0 %v327
    %345 = vmatprep.subr.bf16.mxu0 0
    %346 = vmatpush1.bf16.msra.mxu0 %v328
    %347 = vmatprep.subr.bf16.mxu0 0
    %348 = vmatpush1.bf16.msra.mxu0 %v329
    %349 = vmatprep.subr.bf16.mxu0 0
    %350 = vmatpush1.bf16.msra.mxu0 %v330
    %351 = vmatprep.subr.bf16.mxu0 0
    %352 = vmatpush1.bf16.msra.mxu0 %v331
    %353 = vmatprep.subr.bf16.mxu0 0
    %354 = vmatpush1.bf16.msra.mxu0 %v332
    %355 = vmatprep.subr.bf16.mxu0 0
    %356 = vmatpush1.bf16.msra.mxu0 %v333
    %357 = vmatprep.subr.bf16.mxu0 0
    %358 = vmatpush1.bf16.msra.mxu0 %v334
    %359 = vmatprep.subr.bf16.mxu0 0
    %360 = vmatpush1.bf16.msra.mxu0 0
    %361 = vmatprep.subr.bf16.mxu0 0
    %362 = vmatpush1.bf16.msra.mxu0 0
    %363 = vmatprep.subr.bf16.mxu0 0
    %364 = vmatpush1.bf16.msra.mxu0 0
    %365 = vmatprep.subr.bf16.mxu0 0
    %366 = vmatpush1.bf16.msra.mxu0 0
    %367 = vmatprep.subr.bf16.mxu0 0
    %368 = vmatpush1.bf16.msra.mxu0 0
    %369 = vmatprep.subr.bf16.mxu0 0
    %370 = vmatpush1.bf16.msra.mxu0 0
    %371 = vmatprep.subr.bf16.mxu0 0
    %372 = vmatpush1.bf16.msra.mxu0 0
    %373 = vmatprep.subr.bf16.mxu0 0
    %374 = vmatpush1.bf16.msra.mxu0 0
    %375 = vmatprep.mubr.bf16.mxu0 0
    %376 = vmatmul.mubr.bf16.gmra.mrb[0].mxu0 %v231
    %v377 = vpop.f32.mrb[0].mxu0
    %v378 = vadd.f32 %v101, %v377
    %v379 = vpop.f32.mrb[0].mxu0
    %v380 = vpop.f32.mrb[0].mxu0
    %v381 = vadd.f32 %v101, %v380
    %v382 = vpop.f32.mrb[0].mxu0
    %383 = vmatprep.mubr.bf16.mxu0 0
    %384 = vmatmul.mubr.bf16.gmra.mrb[0].mxu0 %v232
    %v385 = vpop.f32.mrb[0].mxu0
    %v386 = vadd.f32 %v101, %v385
    %v387 = vpop.f32.mrb[0].mxu0
    %v388 = vpop.f32.mrb[0].mxu0
    %v389 = vadd.f32 %v101, %v388
    %v390 = vpop.f32.mrb[0].mxu0
    %391 = vmatprep.mubr.bf16.mxu0 0
    %392 = vmatmul.mubr.bf16.gmra.mrb[0].mxu0 %v233
    %v393 = vpop.f32.mrb[0].mxu0
    %v394 = vadd.f32 %v101, %v393
    %v395 = vpop.f32.mrb[0].mxu0
    %v396 = vpop.f32.mrb[0].mxu0
    %v397 = vadd.f32 %v101, %v396
    %v398 = vpop.f32.mrb[0].mxu0
    %399 = vmatprep.mubr.bf16.mxu0 0
    %400 = vmatmul.mubr.bf16.gmra.mrb[0].mxu0 %v234
    %v401 = vpop.f32.mrb[0].mxu0
    %v402 = vadd.f32 %v101, %v401
    %v403 = vpop.f32.mrb[0].mxu0
    %v404 = vpop.f32.mrb[0].mxu0
    %v405 = vadd.f32 %v101, %v404
    %v406 = vpop.f32.mrb[0].mxu0
    %407 = vmatprep.mubr.bf16.mxu0 0
    %408 = vmatmul.mubr.bf16.gmra.mrb[0].mxu0 %v235
    %v409 = vpop.f32.mrb[0].mxu0
    %v410 = vadd.f32 %v101, %v409
    %v411 = vpop.f32.mrb[0].mxu0
    %v412 = vpop.f32.mrb[0].mxu0
    %v413 = vadd.f32 %v101, %v412
    %v414 = vpop.f32.mrb[0].mxu0
    %415 = vmatprep.mubr.bf16.mxu0 0
    %416 = vmatmul.mubr.bf16.gmra.mrb[0].mxu0 %v236
    %v417 = vpop.f32.mrb[0].mxu0
    %v418 = vadd.f32 %v101, %v417
    %v419 = vpop.f32.mrb[0].mxu0
    %v420 = vpop.f32.mrb[0].mxu0
    %v421 = vadd.f32 %v101, %v420
    %v422 = vpop.f32.mrb[0].mxu0
    %423 = vmatprep.mubr.bf16.mxu0 0
    %424 = vmatmul.mubr.bf16.gmra.mrb[0].mxu0 %v237
    %v425 = vpop.f32.mrb[0].mxu0
    %v426 = vadd.f32 %v101, %v425
    %v427 = vpop.f32.mrb[0].mxu0
    %v428 = vpop.f32.mrb[0].mxu0
    %v429 = vadd.f32 %v101, %v428
    %v430 = vpop.f32.mrb[0].mxu0
    %431 = vmatprep.mubr.bf16.mxu0 0
    %432 = vmatmul.mubr.bf16.gmra.mrb[0].mxu0 %v238
    %v433 = vpop.f32.mrb[0].mxu0
    %v434 = vadd.f32 %v101, %v433
    %v435 = vpop.f32.mrb[0].mxu0
    %v436 = vpop.f32.mrb[0].mxu0
    %v437 = vadd.f32 %v101, %v436
    %v438 = vpop.f32.mrb[0].mxu0
    %439 = vmatprep.mubr.bf16.mxu0 0
    %440 = vmatmul.mubr.bf16.gmra.mrb[0].mxu0 %v239
    %v441 = vpop.f32.mrb[0].mxu0
    %v442 = vadd.f32 %v101, %v441
    %v443 = vpop.f32.mrb[0].mxu0
    %v444 = vpop.f32.mrb[0].mxu0
    %v445 = vadd.f32 %v101, %v444
    %v446 = vpop.f32.mrb[0].mxu0
    %447 = vmatprep.mubr.bf16.mxu0 0
    %448 = vmatmul.mubr.bf16.gmra.mrb[0].mxu0 %v240
    %v449 = vpop.f32.mrb[0].mxu0
    %v450 = vadd.f32 %v101, %v449
    %v451 = vpop.f32.mrb[0].mxu0
    %v452 = vpop.f32.mrb[0].mxu0
    %v453 = vadd.f32 %v101, %v452
    %v454 = vpop.f32.mrb[0].mxu0
    %455 = vmatprep.mubr.bf16.mxu0 0
    %456 = vmatmul.mubr.bf16.gmra.mrb[0].mxu0 %v241
    %v457 = vpop.f32.mrb[0].mxu0
    %v458 = vadd.f32 %v101, %v457
    %v459 = vpop.f32.mrb[0].mxu0
    %v460 = vpop.f32.mrb[0].mxu0
    %v461 = vadd.f32 %v101, %v460
    %v462 = vpop.f32.mrb[0].mxu0
    %463 = vmatprep.mubr.bf16.mxu0 0
    %464 = vmatmul.mubr.bf16.gmra.mrb[0].mxu0 %v242
    %v465 = vpop.f32.mrb[0].mxu0
    %v466 = vadd.f32 %v101, %v465
    %v467 = vpop.f32.mrb[0].mxu0
    %v468 = vpop.f32.mrb[0].mxu0
    %v469 = vadd.f32 %v101, %v468
    %v470 = vpop.f32.mrb[0].mxu0
    %471 = vmatprep.mubr.bf16.mxu0 0
    %472 = vmatmul.mubr.bf16.gmra.mrb[0].mxu0 %v243
    %v473 = vpop.f32.mrb[0].mxu0
    %v474 = vadd.f32 %v101, %v473
    %v475 = vpop.f32.mrb[0].mxu0
    %v476 = vpop.f32.mrb[0].mxu0
    %v477 = vadd.f32 %v101, %v476
    %v478 = vpop.f32.mrb[0].mxu0
    %479 = vmatprep.mubr.bf16.mxu0 0
    %480 = vmatmul.mubr.bf16.gmra.mrb[0].mxu0 %v244
    %v481 = vpop.f32.mrb[0].mxu0
    %v482 = vadd.f32 %v101, %v481
    %v483 = vpop.f32.mrb[0].mxu0
    %v484 = vpop.f32.mrb[0].mxu0
    %v485 = vadd.f32 %v101, %v484
    %v486 = vpop.f32.mrb[0].mxu0
    %487 = vmatprep.mubr.bf16.mxu0 0
    %488 = vmatmul.mubr.bf16.gmra.mrb[0].mxu0 %v245
    %v489 = vpop.f32.mrb[0].mxu0
    %v490 = vadd.f32 %v101, %v489
    %v491 = vpop.f32.mrb[0].mxu0
    %v492 = vpop.f32.mrb[0].mxu0
    %v493 = vadd.f32 %v101, %v492
    %v494 = vpop.f32.mrb[0].mxu0
    %495 = vmatprep.mubr.bf16.mxu0 0
    %496 = vmatmul.mubr.bf16.gmra.mrb[0].mxu0 %v246
    %v497 = vpop.f32.mrb[0].mxu0
    %v498 = vadd.f32 %v101, %v497
    %v499 = vpop.f32.mrb[0].mxu0
    %v500 = vpop.f32.mrb[0].mxu0
    %v501 = vadd.f32 %v101, %v500
    %v502 = vpop.f32.mrb[0].mxu0
    %503 = vmatprep.mubr.bf16.mxu0 0
    %504 = vmatmul.mubr.bf16.gmra.mrb[0].mxu0 %v247
    %v505 = vpop.f32.mrb[0].mxu0
    %v506 = vadd.f32 %v101, %v505
    %v507 = vpop.f32.mrb[0].mxu0
    %v508 = vpop.f32.mrb[0].mxu0
    %v509 = vadd.f32 %v101, %v508
    %v510 = vpop.f32.mrb[0].mxu0
    %511 = vmatprep.mubr.bf16.mxu0 0
    %512 = vmatmul.mubr.bf16.gmra.mrb[0].mxu0 %v248
    %v513 = vpop.f32.mrb[0].mxu0
    %v514 = vadd.f32 %v101, %v513
    %v515 = vpop.f32.mrb[0].mxu0
    %v516 = vpop.f32.mrb[0].mxu0
    %v517 = vadd.f32 %v101, %v516
    %v518 = vpop.f32.mrb[0].mxu0
    %519 = vmatprep.mubr.bf16.mxu0 0
    %520 = vmatmul.mubr.bf16.gmra.mrb[0].mxu0 %v249
    %v521 = vpop.f32.mrb[0].mxu0
    %v522 = vadd.f32 %v101, %v521
    %v523 = vpop.f32.mrb[0].mxu0
    %v524 = vpop.f32.mrb[0].mxu0
    %v525 = vadd.f32 %v101, %v524
    %v526 = vpop.f32.mrb[0].mxu0
    %527 = vmatprep.mubr.bf16.mxu0 0
    %528 = vmatmul.mubr.bf16.gmra.mrb[0].mxu0 %v250
    %v529 = vpop.f32.mrb[0].mxu0
    %v530 = vadd.f32 %v101, %v529
    %v531 = vpop.f32.mrb[0].mxu0
    %v532 = vpop.f32.mrb[0].mxu0
    %v533 = vadd.f32 %v101, %v532
    %v534 = vpop.f32.mrb[0].mxu0
    %535 = vmatprep.mubr.bf16.mxu0 0
    %536 = vmatmul.mubr.bf16.gmra.mrb[0].mxu0 %v251
    %v537 = vpop.f32.mrb[0].mxu0
    %v538 = vadd.f32 %v101, %v537
    %v539 = vpop.f32.mrb[0].mxu0
    %v540 = vpop.f32.mrb[0].mxu0
    %v541 = vadd.f32 %v101, %v540
    %v542 = vpop.f32.mrb[0].mxu0
    %543 = vmatprep.mubr.bf16.mxu0 0
    %544 = vmatmul.mubr.bf16.gmra.mrb[0].mxu0 %v252
    %v545 = vpop.f32.mrb[0].mxu0
    %v546 = vadd.f32 %v101, %v545
    %v547 = vpop.f32.mrb[0].mxu0
    %v548 = vpop.f32.mrb[0].mxu0
    %v549 = vadd.f32 %v101, %v548
    %v550 = vpop.f32.mrb[0].mxu0
    %551 = vmatprep.mubr.bf16.mxu0 0
    %552 = vmatmul.mubr.bf16.gmra.mrb[0].mxu0 %v253
    %v553 = vpop.f32.mrb[0].mxu0
    %v554 = vadd.f32 %v101, %v553
    %v555 = vpop.f32.mrb[0].mxu0
    %v556 = vpop.f32.mrb[0].mxu0
    %v557 = vadd.f32 %v101, %v556
    %v558 = vpop.f32.mrb[0].mxu0
    %559 = vmatprep.mubr.bf16.mxu0 0
    %560 = vmatmul.mubr.bf16.gmra.mrb[0].mxu0 %v254
    %v561 = vpop.f32.mrb[0].mxu0
    %v562 = vadd.f32 %v101, %v561
    %v563 = vpop.f32.mrb[0].mxu0
    %v564 = vpop.f32.mrb[0].mxu0
    %v565 = vadd.f32 %v101, %v564
    %v566 = vpop.f32.mrb[0].mxu0
    %567 = vmatprep.mubr.bf16.mxu0 0
    %568 = vmatmul.mubr.bf16.gmra.mrb[0].mxu0 %v255
    %v569 = vpop.f32.mrb[0].mxu0
    %v570 = vadd.f32 %v101, %v569
    %v571 = vpop.f32.mrb[0].mxu0
    %v572 = vpop.f32.mrb[0].mxu0
    %v573 = vadd.f32 %v101, %v572
    %v574 = vpop.f32.mrb[0].mxu0
    %575 = vmatprep.mubr.bf16.mxu0 0
    %576 = vmatmul.mubr.bf16.gmra.mrb[0].mxu0 %v256
    %v577 = vpop.f32.mrb[0].mxu0
    %v578 = vadd.f32 %v101, %v577
    %v579 = vpop.f32.mrb[0].mxu0
    %v580 = vpop.f32.mrb[0].mxu0
    %v581 = vadd.f32 %v101, %v580
    %v582 = vpop.f32.mrb[0].mxu0
    %583 = vmatprep.mubr.bf16.mxu0 0
    %584 = vmatmul.mubr.bf16.gmra.mrb[0].mxu0 %v257
    %v585 = vpop.f32.mrb[0].mxu0
    %v586 = vadd.f32 %v101, %v585
    %v587 = vpop.f32.mrb[0].mxu0
    %v588 = vpop.f32.mrb[0].mxu0
    %v589 = vadd.f32 %v101, %v588
    %v590 = vpop.f32.mrb[0].mxu0
    %591 = vmatprep.mubr.bf16.mxu0 0
    %592 = vmatmul.mubr.bf16.gmra.mrb[0].mxu0 %v258
    %v593 = vpop.f32.mrb[0].mxu0
    %v594 = vadd.f32 %v101, %v593
    %v595 = vpop.f32.mrb[0].mxu0
    %v596 = vpop.f32.mrb[0].mxu0
    %v597 = vadd.f32 %v101, %v596
    %v598 = vpop.f32.mrb[0].mxu0
    %599 = vmatprep.mubr.bf16.mxu0 0
    %600 = vmatmul.mubr.bf16.gmra.mrb[0].mxu0 %v259
    %v601 = vpop.f32.mrb[0].mxu0
    %v602 = vadd.f32 %v101, %v601
    %v603 = vpop.f32.mrb[0].mxu0
    %v604 = vpop.f32.mrb[0].mxu0
    %v605 = vadd.f32 %v101, %v604
    %v606 = vpop.f32.mrb[0].mxu0
    %607 = vmatprep.mubr.bf16.mxu0 0
    %608 = vmatmul.mubr.bf16.gmra.mrb[0].mxu0 %v260
    %v609 = vpop.f32.mrb[0].mxu0
    %v610 = vadd.f32 %v101, %v609
    %v611 = vpop.f32.mrb[0].mxu0
    %v612 = vpop.f32.mrb[0].mxu0
    %v613 = vadd.f32 %v101, %v612
    %v614 = vpop.f32.mrb[0].mxu0
    %615 = vmatprep.mubr.bf16.mxu0 0
    %616 = vmatmul.mubr.bf16.gmra.mrb[0].mxu0 %v261
    %v617 = vpop.f32.mrb[0].mxu0
    %v618 = vadd.f32 %v101, %v617
    %v619 = vpop.f32.mrb[0].mxu0
    %v620 = vpop.f32.mrb[0].mxu0
    %v621 = vadd.f32 %v101, %v620
    %v622 = vpop.f32.mrb[0].mxu0
    %623 = vmatprep.mubr.bf16.mxu0 0
    %624 = vmatmul.mubr.bf16.gmra.mrb[0].mxu0 %v262
    %v625 = vpop.f32.mrb[0].mxu0
    %v626 = vadd.f32 %v101, %v625
    %v627 = vpop.f32.mrb[0].mxu0
    %v628 = vpop.f32.mrb[0].mxu0
    %v629 = vadd.f32 %v101, %v628
    %v630 = vpop.f32.mrb[0].mxu0
    %631 = vdwg.mxu0
    %vm632 = vcmask 523264
    %633 = vst.msk [vmem:[#allocation2] sm:$0xff] %vm632, %v378
    %634 = vst.msk [vmem:[#allocation2 + $0x8] sm:$0xff] %vm632, %v381
    %635 = vst.msk [vmem:[#allocation2 + $0x10] sm:$0xff] %vm632, %v386
    %636 = vst.msk [vmem:[#allocation2 + $0x18] sm:$0xff] %vm632, %v389
    %637 = vst.msk [vmem:[#allocation2 + $0x20] sm:$0xff] %vm632, %v394
    %638 = vst.msk [vmem:[#allocation2 + $0x28] sm:$0xff] %vm632, %v397
    %639 = vst.msk [vmem:[#allocation2 + $0x30] sm:$0xff] %vm632, %v402
    %640 = vst.msk [vmem:[#allocation2 + $0x38] sm:$0xff] %vm632, %v405
    %641 = vst.msk [vmem:[#allocation2 + $0x40] sm:$0xff] %vm632, %v410
    %642 = vst.msk [vmem:[#allocation2 + $0x48] sm:$0xff] %vm632, %v413
    %643 = vst.msk [vmem:[#allocation2 + $0x50] sm:$0xff] %vm632, %v418
    %644 = vst.msk [vmem:[#allocation2 + $0x58] sm:$0xff] %vm632, %v421
    %645 = vst.msk [vmem:[#allocation2 + $0x60] sm:$0xff] %vm632, %v426
    %646 = vst.msk [vmem:[#allocation2 + $0x68] sm:$0xff] %vm632, %v429
    %647 = vst.msk [vmem:[#allocation2 + $0x70] sm:$0xff] %vm632, %v434
    %648 = vst.msk [vmem:[#allocation2 + $0x78] sm:$0xff] %vm632, %v437
    %649 = vst.msk [vmem:[#allocation2 + $0x80] sm:$0xff] %vm632, %v442
    %650 = vst.msk [vmem:[#allocation2 + $0x88] sm:$0xff] %vm632, %v445
    %651 = vst.msk [vmem:[#allocation2 + $0x90] sm:$0xff] %vm632, %v450
    %652 = vst.msk [vmem:[#allocation2 + $0x98] sm:$0xff] %vm632, %v453
    %653 = vst.msk [vmem:[#allocation2 + $0xa0] sm:$0xff] %vm632, %v458
    %654 = vst.msk [vmem:[#allocation2 + $0xa8] sm:$0xff] %vm632, %v461
    %655 = vst.msk [vmem:[#allocation2 + $0xb0] sm:$0xff] %vm632, %v466
    %656 = vst.msk [vmem:[#allocation2 + $0xb8] sm:$0xff] %vm632, %v469
    %657 = vst.msk [vmem:[#allocation2 + $0xc0] sm:$0xff] %vm632, %v474
    %658 = vst.msk [vmem:[#allocation2 + $0xc8] sm:$0xff] %vm632, %v477
    %659 = vst.msk [vmem:[#allocation2 + $0xd0] sm:$0xff] %vm632, %v482
    %660 = vst.msk [vmem:[#allocation2 + $0xd8] sm:$0xff] %vm632, %v485
    %661 = vst.msk [vmem:[#allocation2 + $0xe0] sm:$0xff] %vm632, %v490
    %662 = vst.msk [vmem:[#allocation2 + $0xe8] sm:$0xff] %vm632, %v493
    %663 = vst.msk [vmem:[#allocation2 + $0xf0] sm:$0xff] %vm632, %v498
    %664 = vst.msk [vmem:[#allocation2 + $0xf8] sm:$0xff] %vm632, %v501
    %665 = vst.msk [vmem:[#allocation2 + $0x100] sm:$0xff] %vm632, %v506
    %666 = vst.msk [vmem:[#allocation2 + $0x108] sm:$0xff] %vm632, %v509
    %667 = vst.msk [vmem:[#allocation2 + $0x110] sm:$0xff] %vm632, %v514
    %668 = vst.msk [vmem:[#allocation2 + $0x118] sm:$0xff] %vm632, %v517
    %669 = vst.msk [vmem:[#allocation2 + $0x120] sm:$0xff] %vm632, %v522
    %670 = vst.msk [vmem:[#allocation2 + $0x128] sm:$0xff] %vm632, %v525
    %671 = vst.msk [vmem:[#allocation2 + $0x130] sm:$0xff] %vm632, %v530
    %672 = vst.msk [vmem:[#allocation2 + $0x138] sm:$0xff] %vm632, %v533
    %673 = vst.msk [vmem:[#allocation2 + $0x140] sm:$0xff] %vm632, %v538
    %674 = vst.msk [vmem:[#allocation2 + $0x148] sm:$0xff] %vm632, %v541
    %675 = vst.msk [vmem:[#allocation2 + $0x150] sm:$0xff] %vm632, %v546
    %676 = vst.msk [vmem:[#allocation2 + $0x158] sm:$0xff] %vm632, %v549
    %677 = vst.msk [vmem:[#allocation2 + $0x160] sm:$0xff] %vm632, %v554
    %678 = vst.msk [vmem:[#allocation2 + $0x168] sm:$0xff] %vm632, %v557
    %679 = vst.msk [vmem:[#allocation2 + $0x170] sm:$0xff] %vm632, %v562
    %680 = vst.msk [vmem:[#allocation2 + $0x178] sm:$0xff] %vm632, %v565
    %681 = vst.msk [vmem:[#allocation2 + $0x180] sm:$0xff] %vm632, %v570
    %682 = vst.msk [vmem:[#allocation2 + $0x188] sm:$0xff] %vm632, %v573
    %683 = vst.msk [vmem:[#allocation2 + $0x190] sm:$0xff] %vm632, %v578
    %684 = vst.msk [vmem:[#allocation2 + $0x198] sm:$0xff] %vm632, %v581
    %685 = vst.msk [vmem:[#allocation2 + $0x1a0] sm:$0xff] %vm632, %v586
    %686 = vst.msk [vmem:[#allocation2 + $0x1a8] sm:$0xff] %vm632, %v589
    %687 = vst.msk [vmem:[#allocation2 + $0x1b0] sm:$0xff] %vm632, %v594
    %688 = vst.msk [vmem:[#allocation2 + $0x1b8] sm:$0xff] %vm632, %v597
    %689 = vst.msk [vmem:[#allocation2 + $0x1c0] sm:$0xff] %vm632, %v602
    %690 = vst.msk [vmem:[#allocation2 + $0x1c8] sm:$0xff] %vm632, %v605
    %691 = vst.msk [vmem:[#allocation2 + $0x1d0] sm:$0xff] %vm632, %v610
    %692 = vst.msk [vmem:[#allocation2 + $0x1d8] sm:$0xff] %vm632, %v613
    %693 = vst.msk [vmem:[#allocation2 + $0x1e0] sm:$0xff] %vm632, %v618
    %694 = vst.msk [vmem:[#allocation2 + $0x1e8] sm:$0xff] %vm632, %v621
    %695 = vst.msk [vmem:[#allocation2 + $0x1f0] sm:$0xff] %vm632, %v626
    %696 = vst.msk [vmem:[#allocation2 + $0x1f8] sm:$0xff] %vm632, %v629
    // Predicated region
    $region14: #{dpsa_forward.5} parent=1 // pred_check
      _
    $region15: #{dpsa_forward.5} parent=1 // pred_check_branch
      %698 = sbr.rel (0) target = $region17
    $region16: #{dpsa_forward.5} parent=1 // pred_region
      %s700 = ssub.s32 8192, 8192
      %701 = vsyncadd [#allocation3], %s700
      %s702 = sshll.u32 [#allocation2], 4
      %s703 = int_to_ptr.vmem [resolvable:$true] %s702
      %708 = dma.vmem_to_hbm [thread:$0]  %s703, 8192, %s3, [#allocation3], 128, 128, 8
    $region17: #{dpsa_forward.5} parent=1 // pred_fallthru
      _
    // Predicated region
    $region18: #{dpsa_forward.5} parent=1 // pred_check
      _
    $region19: #{dpsa_forward.5} parent=1 // pred_check_branch
      %710 = sbr.rel (0) target = $region21
    $region20: #{dpsa_forward.5} parent=1 // pred_region
      %711 = dma.done [#allocation3], 8192
    $region21: #{dpsa_forward.5} parent=1 // pred_fallthru
      _
    %712 = vsyncpa [#allocation3], 1

// kernel: dpsa_forward.4
$region0: #{dpsa_forward.4}
  #allocation0 [shape = 'u32[]', space=smem, size = 0x4, offset = 0x4, fixed_abs, tag = 'smem constant byte address 0x4 - core index']
  #allocation1 [shape = 'u32[144,128]{1,0:T(1,128)}', space=vmem, size = 0x12000, scoped, tag = 'internal scratch']
  %s0 = inlined_call_operand.vmem [shape: f32[2,256,384], index: 0, kind: input, shape index: {}]
  %s1 = inlined_call_operand.vmem [shape: bf16[2,4,128,32], index: 1, kind: input, shape index: {}]
  %s2 = inlined_call_operand.vmem [shape: bf16[2,4,128,32], index: 2, kind: input, shape index: {}]
  %s3 = inlined_call_operand.vmem [shape: bf16[2,256,128], index: 3, kind: output, shape index: {}]
  %s4 = sld [smem:[#allocation0]]
  $region83: #{dpsa_forward.4} parent=0
    _
  %s6 = ssub.s32 1, %s4
  %s7 = scalar_select 0, %s6, %s4
  $region1: #{dpsa_forward.4} parent=0
    #allocation2 [shape = 'u8[262144]{0}', space=vmem, size = 0x40000, scoped, tag = 'input window, operand 0']
    loop: start=0, step=1, limit=4
    $region2: #{dpsa_forward.4} parent=1 // loop_pre_header
      _
    $region3: #{dpsa_forward.4} parent=1 // loop_header
      %s9 = sphi 0, %s13
      %p10 = scmp.ge.s32.totalorder %s9, 4
      %s16 = sphi 0, %s28
      %s17 = sphi 0, %s24
      %s18 = sphi 0, %s16
      %s19 = sphi 0, %s17
      %s20 = sphi 0, %s18
      %s21 = sphi 0, %s19
      %s33 = sphi 0, %s35
      %s36 = sphi 0, %s33
      %s37 = sphi 0, %s36
      %s53 = sphi 0, %s37
      %s59 = sphi 0, %s61
      %s62 = sphi 0, %s59
      %s63 = sphi 0, %s62
      %s79 = sphi 0, %s63
      %s85 = sphi 0, %s87
      %s88 = sphi 0, %s85
      %s89 = sphi 0, %s88
      %s105 = sphi 0, %s89
      %s113 = sphi 0, %s115
      %s116 = sphi 0, %s113
      %s117 = sphi 0, %s116
      %s133 = sphi 0, %s117
    $region4: #{dpsa_forward.4} parent=1 // loop_header_branch
      %12 = sbr.rel (%p10) target = $region8
    $region5: #{dpsa_forward.4} parent=1 // loop_body
      %s14 = ssub.s32 %s9, 1
      %s15 = ssub.s32 %s9, 2
      %s22 = sadd.s32 1, %s17
      %p23 = scmp.ge.s32.totalorder %s22, 1
      %s24 = scalar_select %p23, 0, %s22
      %s25 = sadd.s32 1, %s16
      %s26 = scalar_select %p23, %s25, %s16
      %p27 = scmp.ge.s32.totalorder %s26, 2
      %s28 = scalar_select %p27, 0, %s26
      %s29 = ssub.s32 %s16, %s28
      %s30 = ssub.s32 %s17, %s24
      %s31 = sor.u32 %s29, %s30
      %p32 = scmp.eq.s32.totalorder %s31, 0
      %s34 = sadd.s32 %s33, 1
      %s35 = scalar_select %p32, %s33, %s34
      %p38 = pneg %p32
      %p39 = scmp.eq.s32.totalorder %s9, 1
      %p40 = por %p38, %p39
      %p41 = scmp.ne.s32.totalorder %s33, %s36
      %p42 = scmp.eq.s32.totalorder %s9, 0
      %p43 = por %p41, %p42
      %p44 = scmp.ne.s32.totalorder %s33, %s36
      %p45 = scmp.eq.s32.totalorder %s14, 1
      %p46 = por %p44, %p45
      %p47 = scmp.ne.s32.totalorder %s36, %s37
      %p48 = scmp.eq.s32.totalorder %s14, 0
      %p49 = por %p47, %p48
      %p50 = scmp.ne.s32.totalorder %s36, %s37
      %p51 = scmp.eq.s32.totalorder %s15, 1
      %p52 = por %p50, %p51
      %p54 = scmp.ne.s32.totalorder %s37, %s53
      %p55 = scmp.eq.s32.totalorder %s15, 0
      %p56 = por %p54, %p55
      %s57 = ssub.s32 %s16, %s28
      %p58 = scmp.eq.s32.totalorder %s57, 0
      %s60 = sadd.s32 %s59, 1
      %s61 = scalar_select %p58, %s59, %s60
      %p64 = pneg %p58
      %p65 = scmp.eq.s32.totalorder %s9, 1
      %p66 = por %p64, %p65
      %p67 = scmp.ne.s32.totalorder %s59, %s62
      %p68 = scmp.eq.s32.totalorder %s9, 0
      %p69 = por %p67, %p68
      %p70 = scmp.ne.s32.totalorder %s59, %s62
      %p71 = scmp.eq.s32.totalorder %s14, 1
      %p72 = por %p70, %p71
      %p73 = scmp.ne.s32.totalorder %s62, %s63
      %p74 = scmp.eq.s32.totalorder %s14, 0
      %p75 = por %p73, %p74
      %p76 = scmp.ne.s32.totalorder %s62, %s63
      %p77 = scmp.eq.s32.totalorder %s15, 1
      %p78 = por %p76, %p77
      %p80 = scmp.ne.s32.totalorder %s63, %s79
      %p81 = scmp.eq.s32.totalorder %s15, 0
      %p82 = por %p80, %p81
      %s83 = ssub.s32 %s16, %s28
      %p84 = scmp.eq.s32.totalorder %s83, 0
      %s86 = sadd.s32 %s85, 1
      %s87 = scalar_select %p84, %s85, %s86
      %p90 = pneg %p84
      %p91 = scmp.eq.s32.totalorder %s9, 1
      %p92 = por %p90, %p91
      %p93 = scmp.ne.s32.totalorder %s85, %s88
      %p94 = scmp.eq.s32.totalorder %s9, 0
      %p95 = por %p93, %p94
      %p96 = scmp.ne.s32.totalorder %s85, %s88
      %p97 = scmp.eq.s32.totalorder %s14, 1
      %p98 = por %p96, %p97
      %p99 = scmp.ne.s32.totalorder %s88, %s89
      %p100 = scmp.eq.s32.totalorder %s14, 0
      %p101 = por %p99, %p100
      %p102 = scmp.ne.s32.totalorder %s88, %s89
      %p103 = scmp.eq.s32.totalorder %s15, 1
      %p104 = por %p102, %p103
      %p106 = scmp.ne.s32.totalorder %s89, %s105
      %p107 = scmp.eq.s32.totalorder %s15, 0
      %p108 = por %p106, %p107
      %s109 = ssub.s32 %s16, %s28
      %s110 = ssub.s32 %s17, %s24
      %s111 = sor.u32 %s109, %s110
      %p112 = scmp.eq.s32.totalorder %s111, 0
      %s114 = sadd.s32 %s113, 1
      %s115 = scalar_select %p112, %s113, %s114
      %p118 = pneg %p112
      %p119 = scmp.eq.s32.totalorder %s9, 1
      %p120 = por %p118, %p119
      %p121 = scmp.ne.s32.totalorder %s113, %s116
      %p122 = scmp.eq.s32.totalorder %s9, 0
      %p123 = por %p121, %p122
      %p124 = scmp.ne.s32.totalorder %s113, %s116
      %p125 = scmp.eq.s32.totalorder %s14, 1
      %p126 = por %p124, %p125
      %p127 = scmp.ne.s32.totalorder %s116, %s117
      %p128 = scmp.eq.s32.totalorder %s14, 0
      %p129 = por %p127, %p128
      %p130 = scmp.ne.s32.totalorder %s116, %s117
      %p131 = scmp.eq.s32.totalorder %s15, 1
      %p132 = por %p130, %p131
      %p134 = scmp.ne.s32.totalorder %s117, %s133
      %p135 = scmp.eq.s32.totalorder %s15, 0
      %p136 = por %p134, %p135
      %p137 = scmp.le.s32.totalorder 1, %s9
      %p138 = scmp.lt.s32.totalorder %s9, 3
      %p139 = pnand %p137, %p138
      %p140 = pneg %p139
      // Predicated region
      $region9: #{dpsa_forward.4} parent=5 // pred_check
        _
      $region10: #{dpsa_forward.4} parent=5 // pred_check_branch
        %142 = sbr.rel (%p139) target = $region12
      $region11: #{dpsa_forward.4} parent=5 // pred_region
        %s143 = ssub.s32 %s9, 1
      $region12: #{dpsa_forward.4} parent=5 // pred_fallthru
        _
      %p144 = scmp.lt.s32.totalorder %s9, 2
      // Predicated region
      $region13: #{dpsa_forward.4} parent=5 // pred_check
        %p145 = pneg %p144
      $region14: #{dpsa_forward.4} parent=5 // pred_check_branch
        %147 = sbr.rel (%p145) target = $region16
      $region15: #{dpsa_forward.4} parent=5 // pred_region
        // Predicated region
        $region17: #{dpsa_forward.4} parent=15 // pred_check
          %p148 = pneg %p43
        $region18: #{dpsa_forward.4} parent=15 // pred_check_branch
          %150 = sbr.rel (%p148) target = $region20
        $region19: #{dpsa_forward.4} parent=15 // pred_region
          %s151 = sand.u32 %s33, 1
          %s152 = sand.u32 %s33, 1
          %s153 = smul.addr %s152, 256
          %s154 = scalar_lea.vmem [#allocation2], %s153
          %s155 = smul.u32 32, %s17
          %s156 = smul.addr %s155, 3
          %s157 = smul.addr %s16, 96
          %s158 = sadd.s32 %s156, %s157
          %s159 = smul.addr %s158, 8
          %s160 = scalar_lea.vmem %s0, %s159
          // Predicated region
          $region21: #{dpsa_forward.4} parent=19 // pred_check
            _
          $region22: #{dpsa_forward.4} parent=19 // pred_check_branch
            %162 = sbr.rel (0) target = $region24
          $region23: #{dpsa_forward.4} parent=19 // pred_region
            // Predicated region
            $region25: #{dpsa_forward.4} parent=23 // pred_check
              _
            $region26: #{dpsa_forward.4} parent=23 // pred_check_branch
              %164 = sbr.rel (0) target = $region28
            $region27: #{dpsa_forward.4} parent=23 // pred_region
              // Predicated region
              $region40: #{dpsa_forward.4} parent=27 // pred_check
                _
              $region41: #{dpsa_forward.4} parent=27 // pred_check_branch
                %241 = sbr.rel (0) target = $region43
              $region42: #{dpsa_forward.4} parent=27 // pred_region
                loop: start=0, step=1, limit=1
                $region44: #{dpsa_forward.4} parent=42 // loop_pre_header
                  _
                $region45: #{dpsa_forward.4} parent=42 // loop_header
                  %s243 = sphi 0, %s247
                  %p244 = scmp.ge.s32.totalorder %s243, 1
                  %s248 = sphi %s160, %s160
                  %s249 = sphi %s154, %s154
                $region46: #{dpsa_forward.4} parent=42 // loop_header_branch
                  %246 = sbr.rel (%p244) target = $region50
                $region47: #{dpsa_forward.4} parent=42 // loop_body
                  %v250 = vld [vmem:[%s248] sm:$0xff]
                  %251 = vst [vmem:[%s249] sm:$0xff] %v250
                  %v252 = vld [vmem:[%s248 + $0x18] sm:$0xff]
                  %253 = vst [vmem:[%s249 + $0x8] sm:$0xff] %v252
                  %v254 = vld [vmem:[%s248 + $0x30] sm:$0xff]
                  %255 = vst [vmem:[%s249 + $0x10] sm:$0xff] %v254
                  %v256 = vld [vmem:[%s248 + $0x48] sm:$0xff]
                  %257 = vst [vmem:[%s249 + $0x18] sm:$0xff] %v256
                  %v258 = vld [vmem:[%s248 + $0x60] sm:$0xff]
                  %259 = vst [vmem:[%s249 + $0x20] sm:$0xff] %v258
                  %v260 = vld [vmem:[%s248 + $0x78] sm:$0xff]
                  %261 = vst [vmem:[%s249 + $0x28] sm:$0xff] %v260
                  %v262 = vld [vmem:[%s248 + $0x90] sm:$0xff]
                  %263 = vst [vmem:[%s249 + $0x30] sm:$0xff] %v262
                  %v264 = vld [vmem:[%s248 + $0xa8] sm:$0xff]
                  %265 = vst [vmem:[%s249 + $0x38] sm:$0xff] %v264
                  %v266 = vld [vmem:[%s248 + $0xc0] sm:$0xff]
                  %267 = vst [vmem:[%s249 + $0x40] sm:$0xff] %v266
                  %v268 = vld [vmem:[%s248 + $0xd8] sm:$0xff]
                  %269 = vst [vmem:[%s249 + $0x48] sm:$0xff] %v268
                  %v270 = vld [vmem:[%s248 + $0xf0] sm:$0xff]
                  %271 = vst [vmem:[%s249 + $0x50] sm:$0xff] %v270
                  %v272 = vld [vmem:[%s248 + $0x108] sm:$0xff]
                  %273 = vst [vmem:[%s249 + $0x58] sm:$0xff] %v272
                  %v274 = vld [vmem:[%s248 + $0x120] sm:$0xff]
                  %275 = vst [vmem:[%s249 + $0x60] sm:$0xff] %v274
                  %v276 = vld [vmem:[%s248 + $0x138] sm:$0xff]
                  %277 = vst [vmem:[%s249 + $0x68] sm:$0xff] %v276
                  %v278 = vld [vmem:[%s248 + $0x150] sm:$0xff]
                  %279 = vst [vmem:[%s249 + $0x70] sm:$0xff] %v278
                  %v280 = vld [vmem:[%s248 + $0x168] sm:$0xff]
                  %281 = vst [vmem:[%s249 + $0x78] sm:$0xff] %v280
                  %v282 = vld [vmem:[%s248 + $0x180] sm:$0xff]
                  %283 = vst [vmem:[%s249 + $0x80] sm:$0xff] %v282
                  %v284 = vld [vmem:[%s248 + $0x198] sm:$0xff]
                  %285 = vst [vmem:[%s249 + $0x88] sm:$0xff] %v284
                  %v286 = vld [vmem:[%s248 + $0x1b0] sm:$0xff]
                  %287 = vst [vmem:[%s249 + $0x90] sm:$0xff] %v286
                  %v288 = vld [vmem:[%s248 + $0x1c8] sm:$0xff]
                  %289 = vst [vmem:[%s249 + $0x98] sm:$0xff] %v288
                  %v290 = vld [vmem:[%s248 + $0x1e0] sm:$0xff]
                  %291 = vst [vmem:[%s249 + $0xa0] sm:$0xff] %v290
                  %v292 = vld [vmem:[%s248 + $0x1f8] sm:$0xff]
                  %293 = vst [vmem:[%s249 + $0xa8] sm:$0xff] %v292
                  %v294 = vld [vmem:[%s248 + $0x210] sm:$0xff]
                  %295 = vst [vmem:[%s249 + $0xb0] sm:$0xff] %v294
                  %v296 = vld [vmem:[%s248 + $0x228] sm:$0xff]
                  %297 = vst [vmem:[%s249 + $0xb8] sm:$0xff] %v296
                  %v298 = vld [vmem:[%s248 + $0x240] sm:$0xff]
                  %299 = vst [vmem:[%s249 + $0xc0] sm:$0xff] %v298
                  %v300 = vld [vmem:[%s248 + $0x258] sm:$0xff]
                  %301 = vst [vmem:[%s249 + $0xc8] sm:$0xff] %v300
                  %v302 = vld [vmem:[%s248 + $0x270] sm:$0xff]
                  %303 = vst [vmem:[%s249 + $0xd0] sm:$0xff] %v302
                  %v304 = vld [vmem:[%s248 + $0x288] sm:$0xff]
                  %305 = vst [vmem:[%s249 + $0xd8] sm:$0xff] %v304
                  %v306 = vld [vmem:[%s248 + $0x2a0] sm:$0xff]
                  %307 = vst [vmem:[%s249 + $0xe0] sm:$0xff] %v306
                  %v308 = vld [vmem:[%s248 + $0x2b8] sm:$0xff]
                  %309 = vst [vmem:[%s249 + $0xe8] sm:$0xff] %v308
                  %v310 = vld [vmem:[%s248 + $0x2d0] sm:$0xff]
                  %311 = vst [vmem:[%s249 + $0xf0] sm:$0xff] %v310
                  %v312 = vld [vmem:[%s248 + $0x2e8] sm:$0xff]
                  %313 = vst [vmem:[%s249 + $0xf8] sm:$0xff] %v312
                $region48: #{dpsa_forward.4} parent=42 // loop_footer
                  %s247 = sadd.s32 1, %s243
                $region49: #{dpsa_forward.4} parent=42 // loop_footer_branch
                  %242 = sbr.rel target = $region45
                $region50: #{dpsa_forward.4} parent=42 // loop_exit
                  _
              $region43: #{dpsa_forward.4} parent=27 // pred_fallthru
                _
              // Predicated region
              $region51: #{dpsa_forward.4} parent=27 // pred_check
                _
              $region52: #{dpsa_forward.4} parent=27 // pred_check_branch
                %315 = sbr.rel target = $region54
              $region53: #{dpsa_forward.4} parent=27 // pred_region
                _
              $region54: #{dpsa_forward.4} parent=27 // pred_fallthru
                _
            $region28: #{dpsa_forward.4} parent=23 // pred_fallthru
              _
            // Predicated region
            $region29: #{dpsa_forward.4} parent=23 // pred_check
              _
            $region30: #{dpsa_forward.4} parent=23 // pred_check_branch
              %166 = sbr.rel target = $region32
            $region31: #{dpsa_forward.4} parent=23 // pred_region
              loop: start=0, step=1, limit=1
              $region33: #{dpsa_forward.4} parent=31 // loop_pre_header
                _
              $region34: #{dpsa_forward.4} parent=31 // loop_header
                %s169 = sphi 0, %s173
                %p170 = scmp.ge.s32.totalorder %s169, 1
                %s174 = sphi %s160, %s160
                %s175 = sphi %s154, %s154
              $region35: #{dpsa_forward.4} parent=31 // loop_header_branch
                %172 = sbr.rel (%p170) target = $region39
              $region36: #{dpsa_forward.4} parent=31 // loop_body
                %v176 = vld [vmem:[%s174] sm:$0xff]
                %177 = vst [vmem:[%s175] sm:$0xff] %v176
                %v178 = vld [vmem:[%s174 + $0x18] sm:$0xff]
                %179 = vst [vmem:[%s175 + $0x8] sm:$0xff] %v178
                %v180 = vld [vmem:[%s174 + $0x30] sm:$0xff]
                %181 = vst [vmem:[%s175 + $0x10] sm:$0xff] %v180
                %v182 = vld [vmem:[%s174 + $0x48] sm:$0xff]
                %183 = vst [vmem:[%s175 + $0x18] sm:$0xff] %v182
                %v184 = vld [vmem:[%s174 + $0x60] sm:$0xff]
                %185 = vst [vmem:[%s175 + $0x20] sm:$0xff] %v184
                %v186 = vld [vmem:[%s174 + $0x78] sm:$0xff]
                %187 = vst [vmem:[%s175 + $0x28] sm:$0xff] %v186
                %v188 = vld [vmem:[%s174 + $0x90] sm:$0xff]
                %189 = vst [vmem:[%s175 + $0x30] sm:$0xff] %v188
                %v190 = vld [vmem:[%s174 + $0xa8] sm:$0xff]
                %191 = vst [vmem:[%s175 + $0x38] sm:$0xff] %v190
                %v192 = vld [vmem:[%s174 + $0xc0] sm:$0xff]
                %193 = vst [vmem:[%s175 + $0x40] sm:$0xff] %v192
                %v194 = vld [vmem:[%s174 + $0xd8] sm:$0xff]
                %195 = vst [vmem:[%s175 + $0x48] sm:$0xff] %v194
                %v196 = vld [vmem:[%s174 + $0xf0] sm:$0xff]
                %197 = vst [vmem:[%s175 + $0x50] sm:$0xff] %v196
                %v198 = vld [vmem:[%s174 + $0x108] sm:$0xff]
                %199 = vst [vmem:[%s175 + $0x58] sm:$0xff] %v198
                %v200 = vld [vmem:[%s174 + $0x120] sm:$0xff]
                %201 = vst [vmem:[%s175 + $0x60] sm:$0xff] %v200
                %v202 = vld [vmem:[%s174 + $0x138] sm:$0xff]
                %203 = vst [vmem:[%s175 + $0x68] sm:$0xff] %v202
                %v204 = vld [vmem:[%s174 + $0x150] sm:$0xff]
                %205 = vst [vmem:[%s175 + $0x70] sm:$0xff] %v204
                %v206 = vld [vmem:[%s174 + $0x168] sm:$0xff]
                %207 = vst [vmem:[%s175 + $0x78] sm:$0xff] %v206
                %v208 = vld [vmem:[%s174 + $0x180] sm:$0xff]
                %209 = vst [vmem:[%s175 + $0x80] sm:$0xff] %v208
                %v210 = vld [vmem:[%s174 + $0x198] sm:$0xff]
                %211 = vst [vmem:[%s175 + $0x88] sm:$0xff] %v210
                %v212 = vld [vmem:[%s174 + $0x1b0] sm:$0xff]
                %213 = vst [vmem:[%s175 + $0x90] sm:$0xff] %v212
                %v214 = vld [vmem:[%s174 + $0x1c8] sm:$0xff]
                %215 = vst [vmem:[%s175 + $0x98] sm:$0xff] %v214
                %v216 = vld [vmem:[%s174 + $0x1e0] sm:$0xff]
                %217 = vst [vmem:[%s175 + $0xa0] sm:$0xff] %v216
                %v218 = vld [vmem:[%s174 + $0x1f8] sm:$0xff]
                %219 = vst [vmem:[%s175 + $0xa8] sm:$0xff] %v218
                %v220 = vld [vmem:[%s174 + $0x210] sm:$0xff]
                %221 = vst [vmem:[%s175 + $0xb0] sm:$0xff] %v220
                %v222 = vld [vmem:[%s174 + $0x228] sm:$0xff]
                %223 = vst [vmem:[%s175 + $0xb8] sm:$0xff] %v222
                %v224 = vld [vmem:[%s174 + $0x240] sm:$0xff]
                %225 = vst [vmem:[%s175 + $0xc0] sm:$0xff] %v224
                %v226 = vld [vmem:[%s174 + $0x258] sm:$0xff]
                %227 = vst [vmem:[%s175 + $0xc8] sm:$0xff] %v226
                %v228 = vld [vmem:[%s174 + $0x270] sm:$0xff]
                %229 = vst [vmem:[%s175 + $0xd0] sm:$0xff] %v228
                %v230 = vld [vmem:[%s174 + $0x288] sm:$0xff]
                %231 = vst [vmem:[%s175 + $0xd8] sm:$0xff] %v230
                %v232 = vld [vmem:[%s174 + $0x2a0] sm:$0xff]
                %233 = vst [vmem:[%s175 + $0xe0] sm:$0xff] %v232
                %v234 = vld [vmem:[%s174 + $0x2b8] sm:$0xff]
                %235 = vst [vmem:[%s175 + $0xe8] sm:$0xff] %v234
                %v236 = vld [vmem:[%s174 + $0x2d0] sm:$0xff]
                %237 = vst [vmem:[%s175 + $0xf0] sm:$0xff] %v236
                %v238 = vld [vmem:[%s174 + $0x2e8] sm:$0xff]
                %239 = vst [vmem:[%s175 + $0xf8] sm:$0xff] %v238
              $region37: #{dpsa_forward.4} parent=31 // loop_footer
                %s173 = sadd.s32 1, %s169
              $region38: #{dpsa_forward.4} parent=31 // loop_footer_branch
                %168 = sbr.rel target = $region34
              $region39: #{dpsa_forward.4} parent=31 // loop_exit
                _
            $region32: #{dpsa_forward.4} parent=23 // pred_fallthru
              _
          $region24: #{dpsa_forward.4} parent=19 // pred_fallthru
            _
          %316 = vnop
        $region20: #{dpsa_forward.4} parent=15 // pred_fallthru
          _
        // Predicated region
        $region55: #{dpsa_forward.4} parent=15 // pred_check
          %p317 = pneg %p69
        $region56: #{dpsa_forward.4} parent=15 // pred_check_branch
          %319 = sbr.rel (%p317) target = $region58
        $region57: #{dpsa_forward.4} parent=15 // pred_region
          %p320 = scmp.lt.s32.totalorder %s16, 1
          %s321 = scalar_select %p320, %s16, 1
          %s322 = smul.addr %s321, 64
          %s323 = smul.addr %s322, 4
          %s324 = scalar_lea.vmem %s1, %s323
        $region58: #{dpsa_forward.4} parent=15 // pred_fallthru
          _
        // Predicated region
        $region59: #{dpsa_forward.4} parent=15 // pred_check
          %p325 = pneg %p95
        $region60: #{dpsa_forward.4} parent=15 // pred_check_branch
          %327 = sbr.rel (%p325) target = $region62
        $region61: #{dpsa_forward.4} parent=15 // pred_region
          %p328 = scmp.lt.s32.totalorder %s16, 1
          %s329 = scalar_select %p328, %s16, 1
          %s330 = smul.addr %s329, 64
          %s331 = smul.addr %s330, 4
          %s332 = scalar_lea.vmem %s2, %s331
        $region62: #{dpsa_forward.4} parent=15 // pred_fallthru
          _
      $region16: #{dpsa_forward.4} parent=5 // pred_fallthru
        _
      %p333 = scmp.le.s32.totalorder 1, %s9
      %p334 = scmp.lt.s32.totalorder %s9, 3
      %p335 = pnand %p333, %p334
      %p336 = pneg %p335
      // Predicated region
      $region63: #{dpsa_forward.4} parent=5 // pred_check
        _
      $region64: #{dpsa_forward.4} parent=5 // pred_check_branch
        %338 = sbr.rel (%p335) target = $region66
      $region65: #{dpsa_forward.4} parent=5 // pred_region
        %s339 = ssub.s32 %s9, 1
        %s340 = sand.u32 %s36, 1
        %s341 = sand.u32 %s36, 1
        %s342 = smul.addr %s341, 256
        %s343 = scalar_lea.vmem [#allocation2], %s342
        // Predicated region
        $region67: #{dpsa_forward.4} parent=65 // pred_check
          %p344 = pneg %p49
        $region68: #{dpsa_forward.4} parent=65 // pred_check_branch
          %346 = sbr.rel (%p344) target = $region70
        $region69: #{dpsa_forward.4} parent=65 // pred_region
          _
        $region70: #{dpsa_forward.4} parent=65 // pred_fallthru
          _
        %s347 = sand.u32 %s36, 1
        %s348 = sand.u32 %s36, 1
        %s349 = smul.addr %s348, 256
        %s350 = scalar_lea.vmem [#allocation2], %s349
        %p351 = pneg %p49
        %p352 = pneg %p46
        %p353 = scmp.lt.s32.totalorder %s18, 1
        %s354 = scalar_select %p353, %s18, 1
        %s355 = smul.addr %s354, 64
        %s356 = smul.addr %s355, 4
        %s357 = scalar_lea.vmem %s1, %s356
        %p358 = pneg %p75
        %p359 = pneg %p72
        %p360 = scmp.lt.s32.totalorder %s18, 1
        %s361 = scalar_select %p360, %s18, 1
        %s362 = smul.addr %s361, 64
        %s363 = smul.addr %s362, 4
        %s364 = scalar_lea.vmem %s2, %s363
        %p365 = pneg %p101
        %p366 = pneg %p98
        %p367 = pneg %p129
        %p368 = pneg %p126
        %s369 = smul.u32 32, %s19
        %p370 = scmp.lt.s32.totalorder %s18, 1
        %s371 = scalar_select %p370, %s18, 1
        %p372 = scmp.lt.s32.totalorder %s369, 31
        %s373 = scalar_select %p372, %s369, 31
        %s374 = smul.addr %s371, 32
        %s375 = sadd.s32 %s373, %s374
        %s376 = smul.addr %s375, 4
        %s377 = scalar_lea.vmem %s3, %s376
        %s378 = smul.u32 32, %s19
        %p379 = scmp.lt.s32.totalorder %s18, 1
        %s380 = scalar_select %p379, %s18, 1
        %s381 = smul.addr %s380, 64
        %s382 = smul.addr %s381, 4
        %s383 = scalar_lea.vmem %s1, %s382
        %p384 = scmp.lt.s32.totalorder %s18, 1
        %s385 = scalar_select %p384, %s18, 1
        %s386 = smul.addr %s385, 64
        %s387 = smul.addr %s386, 4
        %s388 = scalar_lea.vmem %s2, %s387
        %s389 = smul.u32 32, %s19
        %p390 = scmp.lt.s32.totalorder %s18, 1
        %s391 = scalar_select %p390, %s18, 1
        %p392 = scmp.lt.s32.totalorder %s389, 31
        %s393 = scalar_select %p392, %s389, 31
        %s394 = smul.addr %s391, 32
        %s395 = sadd.s32 %s393, %s394
        %s396 = smul.addr %s395, 4
        %s397 = scalar_lea.vmem %s3, %s396
        %s398 = smul.u32 32, %s19
        %v400 = vlaneseq
        %v401 = vand.u32 %v400, 127
        %v402 = vld [vmem:[%s343] sm:$0xff]
        %v403 = vld [vmem:[%s343 + $0x8] sm:$0xff]
        %v404 = vld [vmem:[%s343 + $0x10] sm:$0xff]
        %v405 = vld [vmem:[%s343 + $0x18] sm:$0xff]
        %v406 = vld [vmem:[%s343 + $0x20] sm:$0xff]
        %v407 = vld [vmem:[%s343 + $0x28] sm:$0xff]
        %v408 = vld [vmem:[%s343 + $0x30] sm:$0xff]
        %v409 = vld [vmem:[%s343 + $0x38] sm:$0xff]
        %v410 = vld [vmem:[%s343 + $0x40] sm:$0xff]
        %v411 = vld [vmem:[%s343 + $0x48] sm:$0xff]
        %v412 = vld [vmem:[%s343 + $0x50] sm:$0xff]
        %v413 = vld [vmem:[%s343 + $0x58] sm:$0xff]
        %v414 = vld [vmem:[%s343 + $0x60] sm:$0xff]
        %v415 = vld [vmem:[%s343 + $0x68] sm:$0xff]
        %v416 = vld [vmem:[%s343 + $0x70] sm:$0xff]
        %v417 = vld [vmem:[%s343 + $0x78] sm:$0xff]
        %v418 = vld [vmem:[%s343 + $0x80] sm:$0xff]
        %v419 = vld [vmem:[%s343 + $0x88] sm:$0xff]
        %v420 = vld [vmem:[%s343 + $0x90] sm:$0xff]
        %v421 = vld [vmem:[%s343 + $0x98] sm:$0xff]
        %v422 = vld [vmem:[%s343 + $0xa0] sm:$0xff]
        %v423 = vld [vmem:[%s343 + $0xa8] sm:$0xff]
        %v424 = vld [vmem:[%s343 + $0xb0] sm:$0xff]
        %v425 = vld [vmem:[%s343 + $0xb8] sm:$0xff]
        %v426 = vld [vmem:[%s343 + $0xc0] sm:$0xff]
        %v427 = vld [vmem:[%s343 + $0xc8] sm:$0xff]
        %v428 = vld [vmem:[%s343 + $0xd0] sm:$0xff]
        %v429 = vld [vmem:[%s343 + $0xd8] sm:$0xff]
        %v430 = vld [vmem:[%s343 + $0xe0] sm:$0xff]
        %v431 = vld [vmem:[%s343 + $0xe8] sm:$0xff]
        %v432 = vld [vmem:[%s343 + $0xf0] sm:$0xff]
        %v433 = vld [vmem:[%s343 + $0xf8] sm:$0xff]
        %v434 = vpack.c.bf16 %v403, %v402
        %v435 = vpack.c.bf16 %v405, %v404
        %v436 = vpack.c.bf16 %v407, %v406
        %v437 = vpack.c.bf16 %v409, %v408
        %v438 = vpack.c.bf16 %v411, %v410
        %v439 = vpack.c.bf16 %v413, %v412
        %v440 = vpack.c.bf16 %v415, %v414
        %v441 = vpack.c.bf16 %v417, %v416
        %v442 = vpack.c.bf16 %v419, %v418
        %v443 = vpack.c.bf16 %v421, %v420
        %v444 = vpack.c.bf16 %v423, %v422
        %v445 = vpack.c.bf16 %v425, %v424
        %v446 = vpack.c.bf16 %v427, %v426
        %v447 = vpack.c.bf16 %v429, %v428
        %v448 = vpack.c.bf16 %v431, %v430
        %v449 = vpack.c.bf16 %v433, %v432
        %v450 = vld [vmem:[%s383] sm:$0xf]
        %v451 = vld [vmem:[%s383 + $0x4] sm:$0xf]
        %v452 = vld [vmem:[%s383 + $0x8] sm:$0xf]
        %v453 = vld [vmem:[%s383 + $0xc] sm:$0xf]
        %v454 = vld [vmem:[%s383 + $0x10] sm:$0xf]
        %v455 = vld [vmem:[%s383 + $0x14] sm:$0xf]
        %v456 = vld [vmem:[%s383 + $0x18] sm:$0xf]
        %v457 = vld [vmem:[%s383 + $0x1c] sm:$0xf]
        %v458 = vld [vmem:[%s383 + $0x20] sm:$0xf]
        %v459 = vld [vmem:[%s383 + $0x24] sm:$0xf]
        %v460 = vld [vmem:[%s383 + $0x28] sm:$0xf]
        %v461 = vld [vmem:[%s383 + $0x2c] sm:$0xf]
        %v462 = vld [vmem:[%s383 + $0x30] sm:$0xf]
        %v463 = vld [vmem:[%s383 + $0x34] sm:$0xf]
        %v464 = vld [vmem:[%s383 + $0x38] sm:$0xf]
        %v465 = vld [vmem:[%s383 + $0x3c] sm:$0xf]
        %v466 = vld [vmem:[%s388] sm:$0xf]
        %v467 = vld [vmem:[%s388 + $0x4] sm:$0xf]
        %v468 = vld [vmem:[%s388 + $0x8] sm:$0xf]
        %v469 = vld [vmem:[%s388 + $0xc] sm:$0xf]
        %v470 = vld [vmem:[%s388 + $0x10] sm:$0xf]
        %v471 = vld [vmem:[%s388 + $0x14] sm:$0xf]
        %v472 = vld [vmem:[%s388 + $0x18] sm:$0xf]
        %v473 = vld [vmem:[%s388 + $0x1c] sm:$0xf]
        %v474 = vld [vmem:[%s388 + $0x20] sm:$0xf]
        %v475 = vld [vmem:[%s388 + $0x24] sm:$0xf]
        %v476 = vld [vmem:[%s388 + $0x28] sm:$0xf]
        %v477 = vld [vmem:[%s388 + $0x2c] sm:$0xf]
        %v478 = vld [vmem:[%s388 + $0x30] sm:$0xf]
        %v479 = vld [vmem:[%s388 + $0x34] sm:$0xf]
        %v480 = vld [vmem:[%s388 + $0x38] sm:$0xf]
        %v481 = vld [vmem:[%s388 + $0x3c] sm:$0xf]
        %v498 = vunpack.c.l.b16 %v450
        %v499 = vunpack.c.l.b16 %v451
        %v500 = vunpack.c.l.b16 %v452
        %v501 = vunpack.c.l.b16 %v453
        %v502 = vunpack.c.l.b16 %v454
        %v503 = vunpack.c.l.b16 %v455
        %v504 = vunpack.c.l.b16 %v456
        %v505 = vunpack.c.l.b16 %v457
        %v506 = vunpack.c.l.b16 %v458
        %v507 = vunpack.c.l.b16 %v459
        %v508 = vunpack.c.l.b16 %v460
        %v509 = vunpack.c.l.b16 %v461
        %v510 = vunpack.c.l.b16 %v462
        %v511 = vunpack.c.l.b16 %v463
        %v512 = vunpack.c.l.b16 %v464
        %v513 = vunpack.c.l.b16 %v465
        %v514 = vpack.c.b16 %v499, %v498
        %v515 = vpack.c.b16 %v501, %v500
        %v516 = vpack.c.b16 %v503, %v502
        %v517 = vpack.c.b16 %v505, %v504
        %v518 = vpack.c.b16 %v507, %v506
        %v519 = vpack.c.b16 %v509, %v508
        %v520 = vpack.c.b16 %v511, %v510
        %v521 = vpack.c.b16 %v513, %v512
        %vm522 = vcmask 261120
        %v524 = vsel %vm522, %v434, 0
        %v527 = vsel %vm522, %v435, 0
        %v530 = vsel %vm522, %v436, 0
        %v533 = vsel %vm522, %v437, 0
        %v536 = vsel %vm522, %v438, 0
        %v539 = vsel %vm522, %v439, 0
        %v542 = vsel %vm522, %v440, 0
        %v545 = vsel %vm522, %v441, 0
        %v548 = vsel %vm522, %v442, 0
        %v551 = vsel %vm522, %v443, 0
        %v554 = vsel %vm522, %v444, 0
        %v557 = vsel %vm522, %v445, 0
        %v560 = vsel %vm522, %v446, 0
        %v563 = vsel %vm522, %v447, 0
        %v566 = vsel %vm522, %v448, 0
        %v569 = vsel %vm522, %v449, 0
        %v572 = vsel %vm522, %v514, 0
        %v575 = vsel %vm522, %v515, 0
        %v578 = vsel %vm522, %v516, 0
        %v581 = vsel %vm522, %v517, 0
        %v584 = vsel %vm522, %v518, 0
        %v587 = vsel %vm522, %v519, 0
        %v590 = vsel %vm522, %v520, 0
        %v593 = vsel %vm522, %v521, 0
        %595 = vmatprep.subr.bf16.mxu0 0
        %596 = vmatpush1.bf16.xpose.msra.mxu0 %v572
        %597 = vmatprep.subr.bf16.mxu0 0
        %598 = vmatpush1.bf16.xpose.msra.mxu0 %v575
        %599 = vmatprep.subr.bf16.mxu0 0
        %600 = vmatpush1.bf16.xpose.msra.mxu0 %v578
        %601 = vmatprep.subr.bf16.mxu0 0
        %602 = vmatpush1.bf16.xpose.msra.mxu0 %v581
        %603 = vmatprep.subr.bf16.mxu0 0
        %604 = vmatpush1.bf16.xpose.msra.mxu0 %v584
        %605 = vmatprep.subr.bf16.mxu0 0
        %606 = vmatpush1.bf16.xpose.msra.mxu0 %v587
        %607 = vmatprep.subr.bf16.mxu0 0
        %608 = vmatpush1.bf16.xpose.msra.mxu0 %v590
        %609 = vmatprep.subr.bf16.mxu0 0
        %610 = vmatpush1.bf16.xpose.msra.mxu0 %v593
        %611 = vmatprep.subr.bf16.mxu0 0
        %612 = vmatpush1.bf16.xpose.msra.mxu0 0
        %613 = vmatprep.subr.bf16.mxu0 0
        %614 = vmatpush1.bf16.xpose.msra.mxu0 0
        %615 = vmatprep.subr.bf16.mxu0 0
        %616 = vmatpush1.bf16.xpose.msra.mxu0 0
        %617 = vmatprep.subr.bf16.mxu0 0
        %618 = vmatpush1.bf16.xpose.msra.mxu0 0
        %619 = vmatprep.subr.bf16.mxu0 0
        %620 = vmatpush1.bf16.xpose.msra.mxu0 0
        %621 = vmatprep.subr.bf16.mxu0 0
        %622 = vmatpush1.bf16.xpose.msra.mxu0 0
        %623 = vmatprep.subr.bf16.mxu0 0
        %624 = vmatpush1.bf16.xpose.msra.mxu0 0
        %625 = vmatprep.subr.bf16.mxu0 0
        %626 = vmatpush1.bf16.xpose.msra.mxu0 0
        %627 = vmatprep.mubr.bf16.mxu0 0
        %628 = vmatmul.mubr.bf16.gmra.mrb[0].mxu0 %v524
        %v629 = vpop.f32.mrb[0].mxu0
        %v630 = vadd.f32 0.0, %v629
        %v631 = vpop.f32.mrb[0].mxu0
        %v632 = vpop.f32.mrb[0].mxu0
        %v633 = vadd.f32 0.0, %v632
        %v634 = vpop.f32.mrb[0].mxu0
        %635 = vmatprep.mubr.bf16.mxu0 0
        %636 = vmatmul.mubr.bf16.gmra.mrb[0].mxu0 %v527
        %v637 = vpop.f32.mrb[0].mxu0
        %v638 = vadd.f32 0.0, %v637
        %v639 = vpop.f32.mrb[0].mxu0
        %v640 = vpop.f32.mrb[0].mxu0
        %v641 = vadd.f32 0.0, %v640
        %v642 = vpop.f32.mrb[0].mxu0
        %643 = vmatprep.mubr.bf16.mxu0 0
        %644 = vmatmul.mubr.bf16.gmra.mrb[0].mxu0 %v530
        %v645 = vpop.f32.mrb[0].mxu0
        %v646 = vadd.f32 0.0, %v645
        %v647 = vpop.f32.mrb[0].mxu0
        %v648 = vpop.f32.mrb[0].mxu0
        %v649 = vadd.f32 0.0, %v648
        %v650 = vpop.f32.mrb[0].mxu0
        %651 = vmatprep.mubr.bf16.mxu0 0
        %652 = vmatmul.mubr.bf16.gmra.mrb[0].mxu0 %v533
        %v653 = vpop.f32.mrb[0].mxu0
        %v654 = vadd.f32 0.0, %v653
        %v655 = vpop.f32.mrb[0].mxu0
        %v656 = vpop.f32.mrb[0].mxu0
        %v657 = vadd.f32 0.0, %v656
        %v658 = vpop.f32.mrb[0].mxu0
        %659 = vmatprep.mubr.bf16.mxu0 0
        %660 = vmatmul.mubr.bf16.gmra.mrb[0].mxu0 %v536
        %v661 = vpop.f32.mrb[0].mxu0
        %v662 = vadd.f32 0.0, %v661
        %v663 = vpop.f32.mrb[0].mxu0
        %v664 = vpop.f32.mrb[0].mxu0
        %v665 = vadd.f32 0.0, %v664
        %v666 = vpop.f32.mrb[0].mxu0
        %667 = vmatprep.mubr.bf16.mxu0 0
        %668 = vmatmul.mubr.bf16.gmra.mrb[0].mxu0 %v539
        %v669 = vpop.f32.mrb[0].mxu0
        %v670 = vadd.f32 0.0, %v669
        %v671 = vpop.f32.mrb[0].mxu0
        %v672 = vpop.f32.mrb[0].mxu0
        %v673 = vadd.f32 0.0, %v672
        %v674 = vpop.f32.mrb[0].mxu0
        %675 = vmatprep.mubr.bf16.mxu0 0
        %676 = vmatmul.mubr.bf16.gmra.mrb[0].mxu0 %v542
        %v677 = vpop.f32.mrb[0].mxu0
        %v678 = vadd.f32 0.0, %v677
        %v679 = vpop.f32.mrb[0].mxu0
        %v680 = vpop.f32.mrb[0].mxu0
        %v681 = vadd.f32 0.0, %v680
        %v682 = vpop.f32.mrb[0].mxu0
        %683 = vmatprep.mubr.bf16.mxu0 0
        %684 = vmatmul.mubr.bf16.gmra.mrb[0].mxu0 %v545
        %v685 = vpop.f32.mrb[0].mxu0
        %v686 = vadd.f32 0.0, %v685
        %v687 = vpop.f32.mrb[0].mxu0
        %v688 = vpop.f32.mrb[0].mxu0
        %v689 = vadd.f32 0.0, %v688
        %v690 = vpop.f32.mrb[0].mxu0
        %691 = vmatprep.mubr.bf16.mxu0 0
        %692 = vmatmul.mubr.bf16.gmra.mrb[0].mxu0 %v548
        %v693 = vpop.f32.mrb[0].mxu0
        %v694 = vadd.f32 0.0, %v693
        %v695 = vpop.f32.mrb[0].mxu0
        %v696 = vpop.f32.mrb[0].mxu0
        %v697 = vadd.f32 0.0, %v696
        %v698 = vpop.f32.mrb[0].mxu0
        %699 = vmatprep.mubr.bf16.mxu0 0
        %700 = vmatmul.mubr.bf16.gmra.mrb[0].mxu0 %v551
        %v701 = vpop.f32.mrb[0].mxu0
        %v702 = vadd.f32 0.0, %v701
        %v703 = vpop.f32.mrb[0].mxu0
        %v704 = vpop.f32.mrb[0].mxu0
        %v705 = vadd.f32 0.0, %v704
        %v706 = vpop.f32.mrb[0].mxu0
        %707 = vmatprep.mubr.bf16.mxu0 0
        %708 = vmatmul.mubr.bf16.gmra.mrb[0].mxu0 %v554
        %v709 = vpop.f32.mrb[0].mxu0
        %v710 = vadd.f32 0.0, %v709
        %v711 = vpop.f32.mrb[0].mxu0
        %v712 = vpop.f32.mrb[0].mxu0
        %v713 = vadd.f32 0.0, %v712
        %v714 = vpop.f32.mrb[0].mxu0
        %715 = vmatprep.mubr.bf16.mxu0 0
        %716 = vmatmul.mubr.bf16.gmra.mrb[0].mxu0 %v557
        %v717 = vpop.f32.mrb[0].mxu0
        %v718 = vadd.f32 0.0, %v717
        %v719 = vpop.f32.mrb[0].mxu0
        %v720 = vpop.f32.mrb[0].mxu0
        %v721 = vadd.f32 0.0, %v720
        %v722 = vpop.f32.mrb[0].mxu0
        %723 = vmatprep.mubr.bf16.mxu0 0
        %724 = vmatmul.mubr.bf16.gmra.mrb[0].mxu0 %v560
        %v725 = vpop.f32.mrb[0].mxu0
        %v726 = vadd.f32 0.0, %v725
        %v727 = vpop.f32.mrb[0].mxu0
        %v728 = vpop.f32.mrb[0].mxu0
        %v729 = vadd.f32 0.0, %v728
        %v730 = vpop.f32.mrb[0].mxu0
        %731 = vmatprep.mubr.bf16.mxu0 0
        %732 = vmatmul.mubr.bf16.gmra.mrb[0].mxu0 %v563
        %v733 = vpop.f32.mrb[0].mxu0
        %v734 = vadd.f32 0.0, %v733
        %v735 = vpop.f32.mrb[0].mxu0
        %v736 = vpop.f32.mrb[0].mxu0
        %v737 = vadd.f32 0.0, %v736
        %v738 = vpop.f32.mrb[0].mxu0
        %739 = vmatprep.mubr.bf16.mxu0 0
        %740 = vmatmul.mubr.bf16.gmra.mrb[0].mxu0 %v566
        %v741 = vpop.f32.mrb[0].mxu0
        %v742 = vadd.f32 0.0, %v741
        %v743 = vpop.f32.mrb[0].mxu0
        %v744 = vpop.f32.mrb[0].mxu0
        %v745 = vadd.f32 0.0, %v744
        %v746 = vpop.f32.mrb[0].mxu0
        %747 = vmatprep.mubr.bf16.mxu0 0
        %748 = vmatmul.mubr.bf16.gmra.mrb[0].mxu0 %v569
        %v749 = vpop.f32.mrb[0].mxu0
        %v750 = vadd.f32 0.0, %v749
        %v751 = vpop.f32.mrb[0].mxu0
        %v752 = vpop.f32.mrb[0].mxu0
        %v753 = vadd.f32 0.0, %v752
        %v754 = vpop.f32.mrb[0].mxu0
        %755 = vdwg.mxu0
        %vm756 = vcmp.lt.s32.totalorder %v401, 64
        %v757 = vsel %vm756, 1, 0
        %vm758 = vcmp.eq.s32.totalorder %v757, 1
        %v759 = vsel %vm758, %v630, -1e+30
        %v760 = vsel %vm758, %v633, -1e+30
        %v761 = vsel %vm758, %v638, -1e+30
        %v762 = vsel %vm758, %v641, -1e+30
        %v763 = vsel %vm758, %v646, -1e+30
        %v764 = vsel %vm758, %v649, -1e+30
        %v765 = vsel %vm758, %v654, -1e+30
        %v766 = vsel %vm758, %v657, -1e+30
        %v767 = vsel %vm758, %v662, -1e+30
        %v768 = vsel %vm758, %v665, -1e+30
        %v769 = vsel %vm758, %v670, -1e+30
        %v770 = vsel %vm758, %v673, -1e+30
        %v771 = vsel %vm758, %v678, -1e+30
        %v772 = vsel %vm758, %v681, -1e+30
        %v773 = vsel %vm758, %v686, -1e+30
        %v774 = vsel %vm758, %v689, -1e+30
        %v775 = vsel %vm758, %v694, -1e+30
        %v776 = vsel %vm758, %v697, -1e+30
        %v777 = vsel %vm758, %v702, -1e+30
        %v778 = vsel %vm758, %v705, -1e+30
        %v779 = vsel %vm758, %v710, -1e+30
        %v780 = vsel %vm758, %v713, -1e+30
        %v781 = vsel %vm758, %v718, -1e+30
        %v782 = vsel %vm758, %v721, -1e+30
        %v783 = vsel %vm758, %v726, -1e+30
        %v784 = vsel %vm758, %v729, -1e+30
        %v785 = vsel %vm758, %v734, -1e+30
        %v786 = vsel %vm758, %v737, -1e+30
        %v787 = vsel %vm758, %v742, -1e+30
        %v788 = vsel %vm758, %v745, -1e+30
        %v789 = vsel %vm758, %v750, -1e+30
        %v790 = vsel %vm758, %v753, -1e+30
        %791 = vmax.xlane.f32.xlu0 %v759
        %v792 = vpop.xlane.xlu0 %791
        %793 = vmax.xlane.f32.xlu0 %v760
        %v794 = vpop.xlane.xlu0 %793
        %795 = vmax.xlane.f32.xlu0 %v761
        %v796 = vpop.xlane.xlu0 %795
        %797 = vmax.xlane.f32.xlu0 %v762
        %v798 = vpop.xlane.xlu0 %797
        %799 = vmax.xlane.f32.xlu0 %v763
        %v800 = vpop.xlane.xlu0 %799
        %801 = vmax.xlane.f32.xlu0 %v764
        %v802 = vpop.xlane.xlu0 %801
        %803 = vmax.xlane.f32.xlu0 %v765
        %v804 = vpop.xlane.xlu0 %803
        %805 = vmax.xlane.f32.xlu0 %v766
        %v806 = vpop.xlane.xlu0 %805
        %807 = vmax.xlane.f32.xlu0 %v767
        %v808 = vpop.xlane.xlu0 %807
        %809 = vmax.xlane.f32.xlu0 %v768
        %v810 = vpop.xlane.xlu0 %809
        %811 = vmax.xlane.f32.xlu0 %v769
        %v812 = vpop.xlane.xlu0 %811
        %813 = vmax.xlane.f32.xlu0 %v770
        %v814 = vpop.xlane.xlu0 %813
        %815 = vmax.xlane.f32.xlu0 %v771
        %v816 = vpop.xlane.xlu0 %815
        %817 = vmax.xlane.f32.xlu0 %v772
        %v818 = vpop.xlane.xlu0 %817
        %819 = vmax.xlane.f32.xlu0 %v773
        %v820 = vpop.xlane.xlu0 %819
        %821 = vmax.xlane.f32.xlu0 %v774
        %v822 = vpop.xlane.xlu0 %821
        %823 = vmax.xlane.f32.xlu0 %v775
        %v824 = vpop.xlane.xlu0 %823
        %825 = vmax.xlane.f32.xlu0 %v776
        %v826 = vpop.xlane.xlu0 %825
        %827 = vmax.xlane.f32.xlu0 %v777
        %v828 = vpop.xlane.xlu0 %827
        %829 = vmax.xlane.f32.xlu0 %v778
        %v830 = vpop.xlane.xlu0 %829
        %831 = vmax.xlane.f32.xlu0 %v779
        %v832 = vpop.xlane.xlu0 %831
        %833 = vmax.xlane.f32.xlu0 %v780
        %v834 = vpop.xlane.xlu0 %833
        %835 = vmax.xlane.f32.xlu0 %v781
        %v836 = vpop.xlane.xlu0 %835
        %837 = vmax.xlane.f32.xlu0 %v782
        %v838 = vpop.xlane.xlu0 %837
        %839 = vmax.xlane.f32.xlu0 %v783
        %v840 = vpop.xlane.xlu0 %839
        %841 = vmax.xlane.f32.xlu0 %v784
        %v842 = vpop.xlane.xlu0 %841
        %843 = vmax.xlane.f32.xlu0 %v785
        %v844 = vpop.xlane.xlu0 %843
        %845 = vmax.xlane.f32.xlu0 %v786
        %v846 = vpop.xlane.xlu0 %845
        %847 = vmax.xlane.f32.xlu0 %v787
        %v848 = vpop.xlane.xlu0 %847
        %849 = vmax.xlane.f32.xlu0 %v788
        %v850 = vpop.xlane.xlu0 %849
        %851 = vmax.xlane.f32.xlu0 %v789
        %v852 = vpop.xlane.xlu0 %851
        %853 = vmax.xlane.f32.xlu0 %v790
        %v854 = vpop.xlane.xlu0 %853
        %v855 = vsub.f32 %v759, %v792
        %v856 = vsub.f32 %v760, %v794
        %v857 = vsub.f32 %v761, %v796
        %v858 = vsub.f32 %v762, %v798
        %v859 = vsub.f32 %v763, %v800
        %v860 = vsub.f32 %v764, %v802
        %v861 = vsub.f32 %v765, %v804
        %v862 = vsub.f32 %v766, %v806
        %v863 = vsub.f32 %v767, %v808
        %v864 = vsub.f32 %v768, %v810
        %v865 = vsub.f32 %v769, %v812
        %v866 = vsub.f32 %v770, %v814
        %v867 = vsub.f32 %v771, %v816
        %v868 = vsub.f32 %v772, %v818
        %v869 = vsub.f32 %v773, %v820
        %v870 = vsub.f32 %v774, %v822
        %v871 = vsub.f32 %v775, %v824
        %v872 = vsub.f32 %v776, %v826
        %v873 = vsub.f32 %v777, %v828
        %v874 = vsub.f32 %v778, %v830
        %v875 = vsub.f32 %v779, %v832
        %v876 = vsub.f32 %v780, %v834
        %v877 = vsub.f32 %v781, %v836
        %v878 = vsub.f32 %v782, %v838
        %v879 = vsub.f32 %v783, %v840
        %v880 = vsub.f32 %v784, %v842
        %v881 = vsub.f32 %v785, %v844
        %v882 = vsub.f32 %v786, %v846
        %v883 = vsub.f32 %v787, %v848
        %v884 = vsub.f32 %v788, %v850
        %v885 = vsub.f32 %v789, %v852
        %v886 = vsub.f32 %v790, %v854
        %v887 = vmul.f32 %v855, 1.442695
        %v888 = vpow.pop %v887
        %v889 = vmul.f32 %v856, 1.442695
        %v890 = vpow.pop %v889
        %v891 = vmul.f32 %v857, 1.442695
        %v892 = vpow.pop %v891
        %v893 = vmul.f32 %v858, 1.442695
        %v894 = vpow.pop %v893
        %v895 = vmul.f32 %v859, 1.442695
        %v896 = vpow.pop %v895
        %v897 = vmul.f32 %v860, 1.442695
        %v898 = vpow.pop %v897
        %v899 = vmul.f32 %v861, 1.442695
        %v900 = vpow.pop %v899
        %v901 = vmul.f32 %v862, 1.442695
        %v902 = vpow.pop %v901
        %v903 = vmul.f32 %v863, 1.442695
        %v904 = vpow.pop %v903
        %v905 = vmul.f32 %v864, 1.442695
        %v906 = vpow.pop %v905
        %v907 = vmul.f32 %v865, 1.442695
        %v908 = vpow.pop %v907
        %v909 = vmul.f32 %v866, 1.442695
        %v910 = vpow.pop %v909
        %v911 = vmul.f32 %v867, 1.442695
        %v912 = vpow.pop %v911
        %v913 = vmul.f32 %v868, 1.442695
        %v914 = vpow.pop %v913
        %v915 = vmul.f32 %v869, 1.442695
        %v916 = vpow.pop %v915
        %v917 = vmul.f32 %v870, 1.442695
        %v918 = vpow.pop %v917
        %v919 = vmul.f32 %v871, 1.442695
        %v920 = vpow.pop %v919
        %v921 = vmul.f32 %v872, 1.442695
        %v922 = vpow.pop %v921
        %v923 = vmul.f32 %v873, 1.442695
        %v924 = vpow.pop %v923
        %v925 = vmul.f32 %v874, 1.442695
        %v926 = vpow.pop %v925
        %v927 = vmul.f32 %v875, 1.442695
        %v928 = vpow.pop %v927
        %v929 = vmul.f32 %v876, 1.442695
        %v930 = vpow.pop %v929
        %v931 = vmul.f32 %v877, 1.442695
        %v932 = vpow.pop %v931
        %v933 = vmul.f32 %v878, 1.442695
        %v934 = vpow.pop %v933
        %v935 = vmul.f32 %v879, 1.442695
        %v936 = vpow.pop %v935
        %v937 = vmul.f32 %v880, 1.442695
        %v938 = vpow.pop %v937
        %v939 = vmul.f32 %v881, 1.442695
        %v940 = vpow.pop %v939
        %v941 = vmul.f32 %v882, 1.442695
        %v942 = vpow.pop %v941
        %v943 = vmul.f32 %v883, 1.442695
        %v944 = vpow.pop %v943
        %v945 = vmul.f32 %v884, 1.442695
        %v946 = vpow.pop %v945
        %v947 = vmul.f32 %v885, 1.442695
        %v948 = vpow.pop %v947
        %v949 = vmul.f32 %v886, 1.442695
        %v950 = vpow.pop %v949
        %951 = vadd.xlane.f32.xlu0 %v888
        %v952 = vpop.xlane.xlu0 %951
        %953 = vadd.xlane.f32.xlu0 %v890
        %v954 = vpop.xlane.xlu0 %953
        %955 = vadd.xlane.f32.xlu0 %v892
        %v956 = vpop.xlane.xlu0 %955
        %957 = vadd.xlane.f32.xlu0 %v894
        %v958 = vpop.xlane.xlu0 %957
        %959 = vadd.xlane.f32.xlu0 %v896
        %v960 = vpop.xlane.xlu0 %959
        %961 = vadd.xlane.f32.xlu0 %v898
        %v962 = vpop.xlane.xlu0 %961
        %963 = vadd.xlane.f32.xlu0 %v900
        %v964 = vpop.xlane.xlu0 %963
        %965 = vadd.xlane.f32.xlu0 %v902
        %v966 = vpop.xlane.xlu0 %965
        %967 = vadd.xlane.f32.xlu0 %v904
        %v968 = vpop.xlane.xlu0 %967
        %969 = vadd.xlane.f32.xlu0 %v906
        %v970 = vpop.xlane.xlu0 %969
        %971 = vadd.xlane.f32.xlu0 %v908
        %v972 = vpop.xlane.xlu0 %971
        %973 = vadd.xlane.f32.xlu0 %v910
        %v974 = vpop.xlane.xlu0 %973
        %975 = vadd.xlane.f32.xlu0 %v912
        %v976 = vpop.xlane.xlu0 %975
        %977 = vadd.xlane.f32.xlu0 %v914
        %v978 = vpop.xlane.xlu0 %977
        %979 = vadd.xlane.f32.xlu0 %v916
        %v980 = vpop.xlane.xlu0 %979
        %981 = vadd.xlane.f32.xlu0 %v918
        %v982 = vpop.xlane.xlu0 %981
        %983 = vadd.xlane.f32.xlu0 %v920
        %v984 = vpop.xlane.xlu0 %983
        %985 = vadd.xlane.f32.xlu0 %v922
        %v986 = vpop.xlane.xlu0 %985
        %987 = vadd.xlane.f32.xlu0 %v924
        %v988 = vpop.xlane.xlu0 %987
        %989 = vadd.xlane.f32.xlu0 %v926
        %v990 = vpop.xlane.xlu0 %989
        %991 = vadd.xlane.f32.xlu0 %v928
        %v992 = vpop.xlane.xlu0 %991
        %993 = vadd.xlane.f32.xlu0 %v930
        %v994 = vpop.xlane.xlu0 %993
        %995 = vadd.xlane.f32.xlu0 %v932
        %v996 = vpop.xlane.xlu0 %995
        %997 = vadd.xlane.f32.xlu0 %v934
        %v998 = vpop.xlane.xlu0 %997
        %999 = vadd.xlane.f32.xlu0 %v936
        %v1000 = vpop.xlane.xlu0 %999
        %1001 = vadd.xlane.f32.xlu0 %v938
        %v1002 = vpop.xlane.xlu0 %1001
        %1003 = vadd.xlane.f32.xlu0 %v940
        %v1004 = vpop.xlane.xlu0 %1003
        %1005 = vadd.xlane.f32.xlu0 %v942
        %v1006 = vpop.xlane.xlu0 %1005
        %1007 = vadd.xlane.f32.xlu0 %v944
        %v1008 = vpop.xlane.xlu0 %1007
        %1009 = vadd.xlane.f32.xlu0 %v946
        %v1010 = vpop.xlane.xlu0 %1009
        %1011 = vadd.xlane.f32.xlu0 %v948
        %v1012 = vpop.xlane.xlu0 %1011
        %1013 = vadd.xlane.f32.xlu0 %v950
        %v1014 = vpop.xlane.xlu0 %1013
        %v1015 = vrcp.pop %v952
        %v1016 = vrcp.pop %v954
        %v1017 = vrcp.pop %v956
        %v1018 = vrcp.pop %v958
        %v1019 = vrcp.pop %v960
        %v1020 = vrcp.pop %v962
        %v1021 = vrcp.pop %v964
        %v1022 = vrcp.pop %v966
        %v1023 = vrcp.pop %v968
        %v1024 = vrcp.pop %v970
        %v1025 = vrcp.pop %v972
        %v1026 = vrcp.pop %v974
        %v1027 = vrcp.pop %v976
        %v1028 = vrcp.pop %v978
        %v1029 = vrcp.pop %v980
        %v1030 = vrcp.pop %v982
        %v1031 = vrcp.pop %v984
        %v1032 = vrcp.pop %v986
        %v1033 = vrcp.pop %v988
        %v1034 = vrcp.pop %v990
        %v1035 = vrcp.pop %v992
        %v1036 = vrcp.pop %v994
        %v1037 = vrcp.pop %v996
        %v1038 = vrcp.pop %v998
        %v1039 = vrcp.pop %v1000
        %v1040 = vrcp.pop %v1002
        %v1041 = vrcp.pop %v1004
        %v1042 = vrcp.pop %v1006
        %v1043 = vrcp.pop %v1008
        %v1044 = vrcp.pop %v1010
        %v1045 = vrcp.pop %v1012
        %v1046 = vrcp.pop %v1014
        %v1047 = vpack.c.bf16 %v890, %v888
        %v1048 = vpack.c.bf16 %v894, %v892
        %v1049 = vpack.c.bf16 %v898, %v896
        %v1050 = vpack.c.bf16 %v902, %v900
        %v1051 = vpack.c.bf16 %v906, %v904
        %v1052 = vpack.c.bf16 %v910, %v908
        %v1053 = vpack.c.bf16 %v914, %v912
        %v1054 = vpack.c.bf16 %v918, %v916
        %v1055 = vpack.c.bf16 %v922, %v920
        %v1056 = vpack.c.bf16 %v926, %v924
        %v1057 = vpack.c.bf16 %v930, %v928
        %v1058 = vpack.c.bf16 %v934, %v932
        %v1059 = vpack.c.bf16 %v938, %v936
        %v1060 = vpack.c.bf16 %v942, %v940
        %v1061 = vpack.c.bf16 %v946, %v944
        %v1062 = vpack.c.bf16 %v950, %v948
        %v1079 = vunpack.c.l.b16 %v466
        %v1080 = vunpack.c.l.b16 %v467
        %v1081 = vunpack.c.l.b16 %v468
        %v1082 = vunpack.c.l.b16 %v469
        %v1083 = vunpack.c.l.b16 %v470
        %v1084 = vunpack.c.l.b16 %v471
        %v1085 = vunpack.c.l.b16 %v472
        %v1086 = vunpack.c.l.b16 %v473
        %v1087 = vunpack.c.l.b16 %v474
        %v1088 = vunpack.c.l.b16 %v475
        %v1089 = vunpack.c.l.b16 %v476
        %v1090 = vunpack.c.l.b16 %v477
        %v1091 = vunpack.c.l.b16 %v478
        %v1092 = vunpack.c.l.b16 %v479
        %v1093 = vunpack.c.l.b16 %v480
        %v1094 = vunpack.c.l.b16 %v481
        %v1095 = vpack.c.b16 %v1080, %v1079
        %v1096 = vpack.c.b16 %v1082, %v1081
        %v1097 = vpack.c.b16 %v1084, %v1083
        %v1098 = vpack.c.b16 %v1086, %v1085
        %v1099 = vpack.c.b16 %v1088, %v1087
        %v1100 = vpack.c.b16 %v1090, %v1089
        %v1101 = vpack.c.b16 %v1092, %v1091
        %v1102 = vpack.c.b16 %v1094, %v1093
        %1111 = vmatprep.subr.bf16.mxu0 0
        %1112 = vmatpush1.bf16.msra.mxu0 %v1095
        %1113 = vmatprep.subr.bf16.mxu0 0
        %1114 = vmatpush1.bf16.msra.mxu0 %v1096
        %1115 = vmatprep.subr.bf16.mxu0 0
        %1116 = vmatpush1.bf16.msra.mxu0 %v1097
        %1117 = vmatprep.subr.bf16.mxu0 0
        %1118 = vmatpush1.bf16.msra.mxu0 %v1098
        %1119 = vmatprep.subr.bf16.mxu0 0
        %1120 = vmatpush1.bf16.msra.mxu0 %v1099
        %1121 = vmatprep.subr.bf16.mxu0 0
        %1122 = vmatpush1.bf16.msra.mxu0 %v1100
        %1123 = vmatprep.subr.bf16.mxu0 0
        %1124 = vmatpush1.bf16.msra.mxu0 %v1101
        %1125 = vmatprep.subr.bf16.mxu0 0
        %1126 = vmatpush1.bf16.msra.mxu0 %v1102
        %1127 = vmatprep.subr.bf16.mxu0 0
        %1128 = vmatpush1.bf16.msra.mxu0 0
        %1129 = vmatprep.subr.bf16.mxu0 0
        %1130 = vmatpush1.bf16.msra.mxu0 0
        %1131 = vmatprep.subr.bf16.mxu0 0
        %1132 = vmatpush1.bf16.msra.mxu0 0
        %1133 = vmatprep.subr.bf16.mxu0 0
        %1134 = vmatpush1.bf16.msra.mxu0 0
        %1135 = vmatprep.subr.bf16.mxu0 0
        %1136 = vmatpush1.bf16.msra.mxu0 0
        %1137 = vmatprep.subr.bf16.mxu0 0
        %1138 = vmatpush1.bf16.msra.mxu0 0
        %1139 = vmatprep.subr.bf16.mxu0 0
        %1140 = vmatpush1.bf16.msra.mxu0 0
        %1141 = vmatprep.subr.bf16.mxu0 0
        %1142 = vmatpush1.bf16.msra.mxu0 0
        %1143 = vmatprep.mubr.bf16.mxu0 0
        %1144 = vmatmul.mubr.bf16.gmra.mrb[0].mxu0 %v1047
        %v1145 = vpop.f32.mrb[0].mxu0
        %v1146 = vadd.f32 0.0, %v1145
        %v1147 = vpop.f32.mrb[0].mxu0
        %v1148 = vpop.f32.mrb[0].mxu0
        %v1149 = vadd.f32 0.0, %v1148
        %v1150 = vpop.f32.mrb[0].mxu0
        %1151 = vmatprep.mubr.bf16.mxu0 0
        %1152 = vmatmul.mubr.bf16.gmra.mrb[0].mxu0 %v1048
        %v1153 = vpop.f32.mrb[0].mxu0
        %v1154 = vadd.f32 0.0, %v1153
        %v1155 = vpop.f32.mrb[0].mxu0
        %v1156 = vpop.f32.mrb[0].mxu0
        %v1157 = vadd.f32 0.0, %v1156
        %v1158 = vpop.f32.mrb[0].mxu0
        %1159 = vmatprep.mubr.bf16.mxu0 0
        %1160 = vmatmul.mubr.bf16.gmra.mrb[0].mxu0 %v1049
        %v1161 = vpop.f32.mrb[0].mxu0
        %v1162 = vadd.f32 0.0, %v1161
        %v1163 = vpop.f32.mrb[0].mxu0
        %v1164 = vpop.f32.mrb[0].mxu0
        %v1165 = vadd.f32 0.0, %v1164
        %v1166 = vpop.f32.mrb[0].mxu0
        %1167 = vmatprep.mubr.bf16.mxu0 0
        %1168 = vmatmul.mubr.bf16.gmra.mrb[0].mxu0 %v1050
        %v1169 = vpop.f32.mrb[0].mxu0
        %v1170 = vadd.f32 0.0, %v1169
        %v1171 = vpop.f32.mrb[0].mxu0
        %v1172 = vpop.f32.mrb[0].mxu0
        %v1173 = vadd.f32 0.0, %v1172
        %v1174 = vpop.f32.mrb[0].mxu0
        %1175 = vmatprep.mubr.bf16.mxu0 0
        %1176 = vmatmul.mubr.bf16.gmra.mrb[0].mxu0 %v1051
        %v1177 = vpop.f32.mrb[0].mxu0
        %v1178 = vadd.f32 0.0, %v1177
        %v1179 = vpop.f32.mrb[0].mxu0
        %v1180 = vpop.f32.mrb[0].mxu0
        %v1181 = vadd.f32 0.0, %v1180
        %v1182 = vpop.f32.mrb[0].mxu0
        %1183 = vmatprep.mubr.bf16.mxu0 0
        %1184 = vmatmul.mubr.bf16.gmra.mrb[0].mxu0 %v1052
        %v1185 = vpop.f32.mrb[0].mxu0
        %v1186 = vadd.f32 0.0, %v1185
        %v1187 = vpop.f32.mrb[0].mxu0
        %v1188 = vpop.f32.mrb[0].mxu0
        %v1189 = vadd.f32 0.0, %v1188
        %v1190 = vpop.f32.mrb[0].mxu0
        %1191 = vmatprep.mubr.bf16.mxu0 0
        %1192 = vmatmul.mubr.bf16.gmra.mrb[0].mxu0 %v1053
        %v1193 = vpop.f32.mrb[0].mxu0
        %v1194 = vadd.f32 0.0, %v1193
        %v1195 = vpop.f32.mrb[0].mxu0
        %v1196 = vpop.f32.mrb[0].mxu0
        %v1197 = vadd.f32 0.0, %v1196
        %v1198 = vpop.f32.mrb[0].mxu0
        %1199 = vmatprep.mubr.bf16.mxu0 0
        %1200 = vmatmul.mubr.bf16.gmra.mrb[0].mxu0 %v1054
        %v1201 = vpop.f32.mrb[0].mxu0
        %v1202 = vadd.f32 0.0, %v1201
        %v1203 = vpop.f32.mrb[0].mxu0
        %v1204 = vpop.f32.mrb[0].mxu0
        %v1205 = vadd.f32 0.0, %v1204
        %v1206 = vpop.f32.mrb[0].mxu0
        %1207 = vmatprep.mubr.bf16.mxu0 0
        %1208 = vmatmul.mubr.bf16.gmra.mrb[0].mxu0 %v1055
        %v1209 = vpop.f32.mrb[0].mxu0
        %v1210 = vadd.f32 0.0, %v1209
        %v1211 = vpop.f32.mrb[0].mxu0
        %v1212 = vpop.f32.mrb[0].mxu0
        %v1213 = vadd.f32 0.0, %v1212
        %v1214 = vpop.f32.mrb[0].mxu0
        %1215 = vmatprep.mubr.bf16.mxu0 0
        %1216 = vmatmul.mubr.bf16.gmra.mrb[0].mxu0 %v1056
        %v1217 = vpop.f32.mrb[0].mxu0
        %v1218 = vadd.f32 0.0, %v1217
        %v1219 = vpop.f32.mrb[0].mxu0
        %v1220 = vpop.f32.mrb[0].mxu0
        %v1221 = vadd.f32 0.0, %v1220
        %v1222 = vpop.f32.mrb[0].mxu0
        %1223 = vmatprep.mubr.bf16.mxu0 0
        %1224 = vmatmul.mubr.bf16.gmra.mrb[0].mxu0 %v1057
        %v1225 = vpop.f32.mrb[0].mxu0
        %v1226 = vadd.f32 0.0, %v1225
        %v1227 = vpop.f32.mrb[0].mxu0
        %v1228 = vpop.f32.mrb[0].mxu0
        %v1229 = vadd.f32 0.0, %v1228
        %v1230 = vpop.f32.mrb[0].mxu0
        %1231 = vmatprep.mubr.bf16.mxu0 0
        %1232 = vmatmul.mubr.bf16.gmra.mrb[0].mxu0 %v1058
        %v1233 = vpop.f32.mrb[0].mxu0
        %v1234 = vadd.f32 0.0, %v1233
        %v1235 = vpop.f32.mrb[0].mxu0
        %v1236 = vpop.f32.mrb[0].mxu0
        %v1237 = vadd.f32 0.0, %v1236
        %v1238 = vpop.f32.mrb[0].mxu0
        %1239 = vmatprep.mubr.bf16.mxu0 0
        %1240 = vmatmul.mubr.bf16.gmra.mrb[0].mxu0 %v1059
        %v1241 = vpop.f32.mrb[0].mxu0
        %v1242 = vadd.f32 0.0, %v1241
        %v1243 = vpop.f32.mrb[0].mxu0
        %v1244 = vpop.f32.mrb[0].mxu0
        %v1245 = vadd.f32 0.0, %v1244
        %v1246 = vpop.f32.mrb[0].mxu0
        %1247 = vmatprep.mubr.bf16.mxu0 0
        %1248 = vmatmul.mubr.bf16.gmra.mrb[0].mxu0 %v1060
        %v1249 = vpop.f32.mrb[0].mxu0
        %v1250 = vadd.f32 0.0, %v1249
        %v1251 = vpop.f32.mrb[0].mxu0
        %v1252 = vpop.f32.mrb[0].mxu0
        %v1253 = vadd.f32 0.0, %v1252
        %v1254 = vpop.f32.mrb[0].mxu0
        %1255 = vmatprep.mubr.bf16.mxu0 0
        %1256 = vmatmul.mubr.bf16.gmra.mrb[0].mxu0 %v1061
        %v1257 = vpop.f32.mrb[0].mxu0
        %v1258 = vadd.f32 0.0, %v1257
        %v1259 = vpop.f32.mrb[0].mxu0
        %v1260 = vpop.f32.mrb[0].mxu0
        %v1261 = vadd.f32 0.0, %v1260
        %v1262 = vpop.f32.mrb[0].mxu0
        %1263 = vmatprep.mubr.bf16.mxu0 0
        %1264 = vmatmul.mubr.bf16.gmra.mrb[0].mxu0 %v1062
        %v1265 = vpop.f32.mrb[0].mxu0
        %v1266 = vadd.f32 0.0, %v1265
        %v1267 = vpop.f32.mrb[0].mxu0
        %v1268 = vpop.f32.mrb[0].mxu0
        %v1269 = vadd.f32 0.0, %v1268
        %v1270 = vpop.f32.mrb[0].mxu0
        %1271 = vdwg.mxu0
        %v1272 = vmul.f32 %v1146, %v1015
        %v1273 = vmul.f32 %v1149, %v1016
        %v1274 = vmul.f32 %v1154, %v1017
        %v1275 = vmul.f32 %v1157, %v1018
        %v1276 = vmul.f32 %v1162, %v1019
        %v1277 = vmul.f32 %v1165, %v1020
        %v1278 = vmul.f32 %v1170, %v1021
        %v1279 = vmul.f32 %v1173, %v1022
        %v1280 = vmul.f32 %v1178, %v1023
        %v1281 = vmul.f32 %v1181, %v1024
        %v1282 = vmul.f32 %v1186, %v1025
        %v1283 = vmul.f32 %v1189, %v1026
        %v1284 = vmul.f32 %v1194, %v1027
        %v1285 = vmul.f32 %v1197, %v1028
        %v1286 = vmul.f32 %v1202, %v1029
        %v1287 = vmul.f32 %v1205, %v1030
        %v1288 = vmul.f32 %v1210, %v1031
        %v1289 = vmul.f32 %v1213, %v1032
        %v1290 = vmul.f32 %v1218, %v1033
        %v1291 = vmul.f32 %v1221, %v1034
        %v1292 = vmul.f32 %v1226, %v1035
        %v1293 = vmul.f32 %v1229, %v1036
        %v1294 = vmul.f32 %v1234, %v1037
        %v1295 = vmul.f32 %v1237, %v1038
        %v1296 = vmul.f32 %v1242, %v1039
        %v1297 = vmul.f32 %v1245, %v1040
        %v1298 = vmul.f32 %v1250, %v1041
        %v1299 = vmul.f32 %v1253, %v1042
        %v1300 = vmul.f32 %v1258, %v1043
        %v1301 = vmul.f32 %v1261, %v1044
        %v1302 = vmul.f32 %v1266, %v1045
        %v1303 = vmul.f32 %v1269, %v1046
        %s1304 = scalar_lea.vmem %s383, 64
        %v1305 = vld [vmem:[%s1304] sm:$0xf]
        %v1306 = vld [vmem:[%s1304 + $0x4] sm:$0xf]
        %v1307 = vld [vmem:[%s1304 + $0x8] sm:$0xf]
        %v1308 = vld [vmem:[%s1304 + $0xc] sm:$0xf]
        %v1309 = vld [vmem:[%s1304 + $0x10] sm:$0xf]
        %v1310 = vld [vmem:[%s1304 + $0x14] sm:$0xf]
        %v1311 = vld [vmem:[%s1304 + $0x18] sm:$0xf]
        %v1312 = vld [vmem:[%s1304 + $0x1c] sm:$0xf]
        %v1313 = vld [vmem:[%s1304 + $0x20] sm:$0xf]
        %v1314 = vld [vmem:[%s1304 + $0x24] sm:$0xf]
        %v1315 = vld [vmem:[%s1304 + $0x28] sm:$0xf]
        %v1316 = vld [vmem:[%s1304 + $0x2c] sm:$0xf]
        %v1317 = vld [vmem:[%s1304 + $0x30] sm:$0xf]
        %v1318 = vld [vmem:[%s1304 + $0x34] sm:$0xf]
        %v1319 = vld [vmem:[%s1304 + $0x38] sm:$0xf]
        %v1320 = vld [vmem:[%s1304 + $0x3c] sm:$0xf]
        %s1321 = scalar_lea.vmem %s388, 64
        %v1322 = vld [vmem:[%s1321] sm:$0xf]
        %v1323 = vld [vmem:[%s1321 + $0x4] sm:$0xf]
        %v1324 = vld [vmem:[%s1321 + $0x8] sm:$0xf]
        %v1325 = vld [vmem:[%s1321 + $0xc] sm:$0xf]
        %v1326 = vld [vmem:[%s1321 + $0x10] sm:$0xf]
        %v1327 = vld [vmem:[%s1321 + $0x14] sm:$0xf]
        %v1328 = vld [vmem:[%s1321 + $0x18] sm:$0xf]
        %v1329 = vld [vmem:[%s1321 + $0x1c] sm:$0xf]
        %v1330 = vld [vmem:[%s1321 + $0x20] sm:$0xf]
        %v1331 = vld [vmem:[%s1321 + $0x24] sm:$0xf]
        %v1332 = vld [vmem:[%s1321 + $0x28] sm:$0xf]
        %v1333 = vld [vmem:[%s1321 + $0x2c] sm:$0xf]
        %v1334 = vld [vmem:[%s1321 + $0x30] sm:$0xf]
        %v1335 = vld [vmem:[%s1321 + $0x34] sm:$0xf]
        %v1336 = vld [vmem:[%s1321 + $0x38] sm:$0xf]
        %v1337 = vld [vmem:[%s1321 + $0x3c] sm:$0xf]
        %1354 = vrot.lane.b32.xlu0 %v434, 96
        %v1355 = vpop.permute.xlu0 %1354
        %1356 = vrot.lane.b32.xlu0 %v435, 96
        %v1357 = vpop.permute.xlu0 %1356
        %1358 = vrot.lane.b32.xlu0 %v436, 96
        %v1359 = vpop.permute.xlu0 %1358
        %1360 = vrot.lane.b32.xlu0 %v437, 96
        %v1361 = vpop.permute.xlu0 %1360
        %1362 = vrot.lane.b32.xlu0 %v438, 96
        %v1363 = vpop.permute.xlu0 %1362
        %1364 = vrot.lane.b32.xlu0 %v439, 96
        %v1365 = vpop.permute.xlu0 %1364
        %1366 = vrot.lane.b32.xlu0 %v440, 96
        %v1367 = vpop.permute.xlu0 %1366
        %1368 = vrot.lane.b32.xlu0 %v441, 96
        %v1369 = vpop.permute.xlu0 %1368
        %1370 = vrot.lane.b32.xlu0 %v442, 96
        %v1371 = vpop.permute.xlu0 %1370
        %1372 = vrot.lane.b32.xlu0 %v443, 96
        %v1373 = vpop.permute.xlu0 %1372
        %1374 = vrot.lane.b32.xlu0 %v444, 96
        %v1375 = vpop.permute.xlu0 %1374
        %1376 = vrot.lane.b32.xlu0 %v445, 96
        %v1377 = vpop.permute.xlu0 %1376
        %1378 = vrot.lane.b32.xlu0 %v446, 96
        %v1379 = vpop.permute.xlu0 %1378
        %1380 = vrot.lane.b32.xlu0 %v447, 96
        %v1381 = vpop.permute.xlu0 %1380
        %1382 = vrot.lane.b32.xlu0 %v448, 96
        %v1383 = vpop.permute.xlu0 %1382
        %1384 = vrot.lane.b32.xlu0 %v449, 96
        %v1385 = vpop.permute.xlu0 %1384
        %v1402 = vunpack.c.l.b16 %v1305
        %v1403 = vunpack.c.l.b16 %v1306
        %v1404 = vunpack.c.l.b16 %v1307
        %v1405 = vunpack.c.l.b16 %v1308
        %v1406 = vunpack.c.l.b16 %v1309
        %v1407 = vunpack.c.l.b16 %v1310
        %v1408 = vunpack.c.l.b16 %v1311
        %v1409 = vunpack.c.l.b16 %v1312
        %v1410 = vunpack.c.l.b16 %v1313
        %v1411 = vunpack.c.l.b16 %v1314
        %v1412 = vunpack.c.l.b16 %v1315
        %v1413 = vunpack.c.l.b16 %v1316
        %v1414 = vunpack.c.l.b16 %v1317
        %v1415 = vunpack.c.l.b16 %v1318
        %v1416 = vunpack.c.l.b16 %v1319
        %v1417 = vunpack.c.l.b16 %v1320
        %v1418 = vpack.c.b16 %v1403, %v1402
        %v1419 = vpack.c.b16 %v1405, %v1404
        %v1420 = vpack.c.b16 %v1407, %v1406
        %v1421 = vpack.c.b16 %v1409, %v1408
        %v1422 = vpack.c.b16 %v1411, %v1410
        %v1423 = vpack.c.b16 %v1413, %v1412
        %v1424 = vpack.c.b16 %v1415, %v1414
        %v1425 = vpack.c.b16 %v1417, %v1416
        %v1427 = vsel %vm522, %v1355, 0
        %v1430 = vsel %vm522, %v1357, 0
        %v1433 = vsel %vm522, %v1359, 0
        %v1436 = vsel %vm522, %v1361, 0
        %v1439 = vsel %vm522, %v1363, 0
        %v1442 = vsel %vm522, %v1365, 0
        %v1445 = vsel %vm522, %v1367, 0
        %v1448 = vsel %vm522, %v1369, 0
        %v1451 = vsel %vm522, %v1371, 0
        %v1454 = vsel %vm522, %v1373, 0
        %v1457 = vsel %vm522, %v1375, 0
        %v1460 = vsel %vm522, %v1377, 0
        %v1463 = vsel %vm522, %v1379, 0
        %v1466 = vsel %vm522, %v1381, 0
        %v1469 = vsel %vm522, %v1383, 0
        %v1472 = vsel %vm522, %v1385, 0
        %v1475 = vsel %vm522, %v1418, 0
        %v1478 = vsel %vm522, %v1419, 0
        %v1481 = vsel %vm522, %v1420, 0
        %v1484 = vsel %vm522, %v1421, 0
        %v1487 = vsel %vm522, %v1422, 0
        %v1490 = vsel %vm522, %v1423, 0
        %v1493 = vsel %vm522, %v1424, 0
        %v1496 = vsel %vm522, %v1425, 0
        %1498 = vmatprep.subr.bf16.mxu0 0
        %1499 = vmatpush1.bf16.xpose.msra.mxu0 %v1475
        %1500 = vmatprep.subr.bf16.mxu0 0
        %1501 = vmatpush1.bf16.xpose.msra.mxu0 %v1478
        %1502 = vmatprep.subr.bf16.mxu0 0
        %1503 = vmatpush1.bf16.xpose.msra.mxu0 %v1481
        %1504 = vmatprep.subr.bf16.mxu0 0
        %1505 = vmatpush1.bf16.xpose.msra.mxu0 %v1484
        %1506 = vmatprep.subr.bf16.mxu0 0
        %1507 = vmatpush1.bf16.xpose.msra.mxu0 %v1487
        %1508 = vmatprep.subr.bf16.mxu0 0
        %1509 = vmatpush1.bf16.xpose.msra.mxu0 %v1490
        %1510 = vmatprep.subr.bf16.mxu0 0
        %1511 = vmatpush1.bf16.xpose.msra.mxu0 %v1493
        %1512 = vmatprep.subr.bf16.mxu0 0
        %1513 = vmatpush1.bf16.xpose.msra.mxu0 %v1496
        %1514 = vmatprep.subr.bf16.mxu0 0
        %1515 = vmatpush1.bf16.xpose.msra.mxu0 0
        %1516 = vmatprep.subr.bf16.mxu0 0
        %1517 = vmatpush1.bf16.xpose.msra.mxu0 0
        %1518 = vmatprep.subr.bf16.mxu0 0
        %1519 = vmatpush1.bf16.xpose.msra.mxu0 0
        %1520 = vmatprep.subr.bf16.mxu0 0
        %1521 = vmatpush1.bf16.xpose.msra.mxu0 0
        %1522 = vmatprep.subr.bf16.mxu0 0
        %1523 = vmatpush1.bf16.xpose.msra.mxu0 0
        %1524 = vmatprep.subr.bf16.mxu0 0
        %1525 = vmatpush1.bf16.xpose.msra.mxu0 0
        %1526 = vmatprep.subr.bf16.mxu0 0
        %1527 = vmatpush1.bf16.xpose.msra.mxu0 0
        %1528 = vmatprep.subr.bf16.mxu0 0
        %1529 = vmatpush1.bf16.xpose.msra.mxu0 0
        %1530 = vmatprep.mubr.bf16.mxu0 0
        %1531 = vmatmul.mubr.bf16.gmra.mrb[0].mxu0 %v1427
        %v1532 = vpop.f32.mrb[0].mxu0
        %v1533 = vadd.f32 0.0, %v1532
        %v1534 = vpop.f32.mrb[0].mxu0
        %v1535 = vpop.f32.mrb[0].mxu0
        %v1536 = vadd.f32 0.0, %v1535
        %v1537 = vpop.f32.mrb[0].mxu0
        %1538 = vmatprep.mubr.bf16.mxu0 0
        %1539 = vmatmul.mubr.bf16.gmra.mrb[0].mxu0 %v1430
        %v1540 = vpop.f32.mrb[0].mxu0
        %v1541 = vadd.f32 0.0, %v1540
        %v1542 = vpop.f32.mrb[0].mxu0
        %v1543 = vpop.f32.mrb[0].mxu0
        %v1544 = vadd.f32 0.0, %v1543
        %v1545 = vpop.f32.mrb[0].mxu0
        %1546 = vmatprep.mubr.bf16.mxu0 0
        %1547 = vmatmul.mubr.bf16.gmra.mrb[0].mxu0 %v1433
        %v1548 = vpop.f32.mrb[0].mxu0
        %v1549 = vadd.f32 0.0, %v1548
        %v1550 = vpop.f32.mrb[0].mxu0
        %v1551 = vpop.f32.mrb[0].mxu0
        %v1552 = vadd.f32 0.0, %v1551
        %v1553 = vpop.f32.mrb[0].mxu0
        %1554 = vmatprep.mubr.bf16.mxu0 0
        %1555 = vmatmul.mubr.bf16.gmra.mrb[0].mxu0 %v1436
        %v1556 = vpop.f32.mrb[0].mxu0
        %v1557 = vadd.f32 0.0, %v1556
        %v1558 = vpop.f32.mrb[0].mxu0
        %v1559 = vpop.f32.mrb[0].mxu0
        %v1560 = vadd.f32 0.0, %v1559
        %v1561 = vpop.f32.mrb[0].mxu0
        %1562 = vmatprep.mubr.bf16.mxu0 0
        %1563 = vmatmul.mubr.bf16.gmra.mrb[0].mxu0 %v1439
        %v1564 = vpop.f32.mrb[0].mxu0
        %v1565 = vadd.f32 0.0, %v1564
        %v1566 = vpop.f32.mrb[0].mxu0
        %v1567 = vpop.f32.mrb[0].mxu0
        %v1568 = vadd.f32 0.0, %v1567
        %v1569 = vpop.f32.mrb[0].mxu0
        %1570 = vmatprep.mubr.bf16.mxu0 0
        %1571 = vmatmul.mubr.bf16.gmra.mrb[0].mxu0 %v1442
        %v1572 = vpop.f32.mrb[0].mxu0
        %v1573 = vadd.f32 0.0, %v1572
        %v1574 = vpop.f32.mrb[0].mxu0
        %v1575 = vpop.f32.mrb[0].mxu0
        %v1576 = vadd.f32 0.0, %v1575
        %v1577 = vpop.f32.mrb[0].mxu0
        %1578 = vmatprep.mubr.bf16.mxu0 0
        %1579 = vmatmul.mubr.bf16.gmra.mrb[0].mxu0 %v1445
        %v1580 = vpop.f32.mrb[0].mxu0
        %v1581 = vadd.f32 0.0, %v1580
        %v1582 = vpop.f32.mrb[0].mxu0
        %v1583 = vpop.f32.mrb[0].mxu0
        %v1584 = vadd.f32 0.0, %v1583
        %v1585 = vpop.f32.mrb[0].mxu0
        %1586 = vmatprep.mubr.bf16.mxu0 0
        %1587 = vmatmul.mubr.bf16.gmra.mrb[0].mxu0 %v1448
        %v1588 = vpop.f32.mrb[0].mxu0
        %v1589 = vadd.f32 0.0, %v1588
        %v1590 = vpop.f32.mrb[0].mxu0
        %v1591 = vpop.f32.mrb[0].mxu0
        %v1592 = vadd.f32 0.0, %v1591
        %v1593 = vpop.f32.mrb[0].mxu0
        %1594 = vmatprep.mubr.bf16.mxu0 0
        %1595 = vmatmul.mubr.bf16.gmra.mrb[0].mxu0 %v1451
        %v1596 = vpop.f32.mrb[0].mxu0
        %v1597 = vadd.f32 0.0, %v1596
        %v1598 = vpop.f32.mrb[0].mxu0
        %v1599 = vpop.f32.mrb[0].mxu0
        %v1600 = vadd.f32 0.0, %v1599
        %v1601 = vpop.f32.mrb[0].mxu0
        %1602 = vmatprep.mubr.bf16.mxu0 0
        %1603 = vmatmul.mubr.bf16.gmra.mrb[0].mxu0 %v1454
        %v1604 = vpop.f32.mrb[0].mxu0
        %v1605 = vadd.f32 0.0, %v1604
        %v1606 = vpop.f32.mrb[0].mxu0
        %v1607 = vpop.f32.mrb[0].mxu0
        %v1608 = vadd.f32 0.0, %v1607
        %v1609 = vpop.f32.mrb[0].mxu0
        %1610 = vmatprep.mubr.bf16.mxu0 0
        %1611 = vmatmul.mubr.bf16.gmra.mrb[0].mxu0 %v1457
        %v1612 = vpop.f32.mrb[0].mxu0
        %v1613 = vadd.f32 0.0, %v1612
        %v1614 = vpop.f32.mrb[0].mxu0
        %v1615 = vpop.f32.mrb[0].mxu0
        %v1616 = vadd.f32 0.0, %v1615
        %v1617 = vpop.f32.mrb[0].mxu0
        %1618 = vmatprep.mubr.bf16.mxu0 0
        %1619 = vmatmul.mubr.bf16.gmra.mrb[0].mxu0 %v1460
        %v1620 = vpop.f32.mrb[0].mxu0
        %v1621 = vadd.f32 0.0, %v1620
        %v1622 = vpop.f32.mrb[0].mxu0
        %v1623 = vpop.f32.mrb[0].mxu0
        %v1624 = vadd.f32 0.0, %v1623
        %v1625 = vpop.f32.mrb[0].mxu0
        %1626 = vmatprep.mubr.bf16.mxu0 0
        %1627 = vmatmul.mubr.bf16.gmra.mrb[0].mxu0 %v1463
        %v1628 = vpop.f32.mrb[0].mxu0
        %v1629 = vadd.f32 0.0, %v1628
        %v1630 = vpop.f32.mrb[0].mxu0
        %v1631 = vpop.f32.mrb[0].mxu0
        %v1632 = vadd.f32 0.0, %v1631
        %v1633 = vpop.f32.mrb[0].mxu0
        %1634 = vmatprep.mubr.bf16.mxu0 0
        %1635 = vmatmul.mubr.bf16.gmra.mrb[0].mxu0 %v1466
        %v1636 = vpop.f32.mrb[0].mxu0
        %v1637 = vadd.f32 0.0, %v1636
        %v1638 = vpop.f32.mrb[0].mxu0
        %v1639 = vpop.f32.mrb[0].mxu0
        %v1640 = vadd.f32 0.0, %v1639
        %v1641 = vpop.f32.mrb[0].mxu0
        %1642 = vmatprep.mubr.bf16.mxu0 0
        %1643 = vmatmul.mubr.bf16.gmra.mrb[0].mxu0 %v1469
        %v1644 = vpop.f32.mrb[0].mxu0
        %v1645 = vadd.f32 0.0, %v1644
        %v1646 = vpop.f32.mrb[0].mxu0
        %v1647 = vpop.f32.mrb[0].mxu0
        %v1648 = vadd.f32 0.0, %v1647
        %v1649 = vpop.f32.mrb[0].mxu0
        %1650 = vmatprep.mubr.bf16.mxu0 0
        %1651 = vmatmul.mubr.bf16.gmra.mrb[0].mxu0 %v1472
        %v1652 = vpop.f32.mrb[0].mxu0
        %v1653 = vadd.f32 0.0, %v1652
        %v1654 = vpop.f32.mrb[0].mxu0
        %v1655 = vpop.f32.mrb[0].mxu0
        %v1656 = vadd.f32 0.0, %v1655
        %v1657 = vpop.f32.mrb[0].mxu0
        %1658 = vdwg.mxu0
        %v1659 = vsel %vm758, %v1533, -1e+30
        %v1660 = vsel %vm758, %v1536, -1e+30
        %v1661 = vsel %vm758, %v1541, -1e+30
        %v1662 = vsel %vm758, %v1544, -1e+30
        %v1663 = vsel %vm758, %v1549, -1e+30
        %v1664 = vsel %vm758, %v1552, -1e+30
        %v1665 = vsel %vm758, %v1557, -1e+30
        %v1666 = vsel %vm758, %v1560, -1e+30
        %v1667 = vsel %vm758, %v1565, -1e+30
        %v1668 = vsel %vm758, %v1568, -1e+30
        %v1669 = vsel %vm758, %v1573, -1e+30
        %v1670 = vsel %vm758, %v1576, -1e+30
        %v1671 = vsel %vm758, %v1581, -1e+30
        %v1672 = vsel %vm758, %v1584, -1e+30
        %v1673 = vsel %vm758, %v1589, -1e+30
        %v1674 = vsel %vm758, %v1592, -1e+30
        %v1675 = vsel %vm758, %v1597, -1e+30
        %v1676 = vsel %vm758, %v1600, -1e+30
        %v1677 = vsel %vm758, %v1605, -1e+30
        %v1678 = vsel %vm758, %v1608, -1e+30
        %v1679 = vsel %vm758, %v1613, -1e+30
        %v1680 = vsel %vm758, %v1616, -1e+30
        %v1681 = vsel %vm758, %v1621, -1e+30
        %v1682 = vsel %vm758, %v1624, -1e+30
        %v1683 = vsel %vm758, %v1629, -1e+30
        %v1684 = vsel %vm758, %v1632, -1e+30
        %v1685 = vsel %vm758, %v1637, -1e+30
        %v1686 = vsel %vm758, %v1640, -1e+30
        %v1687 = vsel %vm758, %v1645, -1e+30
        %v1688 = vsel %vm758, %v1648, -1e+30
        %v1689 = vsel %vm758, %v1653, -1e+30
        %v1690 = vsel %vm758, %v1656, -1e+30
        %1691 = vmax.xlane.f32.xlu0 %v1659
        %v1692 = vpop.xlane.xlu0 %1691
        %1693 = vmax.xlane.f32.xlu0 %v1660
        %v1694 = vpop.xlane.xlu0 %1693
        %1695 = vmax.xlane.f32.xlu0 %v1661
        %v1696 = vpop.xlane.xlu0 %1695
        %1697 = vmax.xlane.f32.xlu0 %v1662
        %v1698 = vpop.xlane.xlu0 %1697
        %1699 = vmax.xlane.f32.xlu0 %v1663
        %v1700 = vpop.xlane.xlu0 %1699
        %1701 = vmax.xlane.f32.xlu0 %v1664
        %v1702 = vpop.xlane.xlu0 %1701
        %1703 = vmax.xlane.f32.xlu0 %v1665
        %v1704 = vpop.xlane.xlu0 %1703
        %1705 = vmax.xlane.f32.xlu0 %v1666
        %v1706 = vpop.xlane.xlu0 %1705
        %1707 = vmax.xlane.f32.xlu0 %v1667
        %v1708 = vpop.xlane.xlu0 %1707
        %1709 = vmax.xlane.f32.xlu0 %v1668
        %v1710 = vpop.xlane.xlu0 %1709
        %1711 = vmax.xlane.f32.xlu0 %v1669
        %v1712 = vpop.xlane.xlu0 %1711
        %1713 = vmax.xlane.f32.xlu0 %v1670
        %v1714 = vpop.xlane.xlu0 %1713
        %1715 = vmax.xlane.f32.xlu0 %v1671
        %v1716 = vpop.xlane.xlu0 %1715
        %1717 = vmax.xlane.f32.xlu0 %v1672
        %v1718 = vpop.xlane.xlu0 %1717
        %1719 = vmax.xlane.f32.xlu0 %v1673
        %v1720 = vpop.xlane.xlu0 %1719
        %1721 = vmax.xlane.f32.xlu0 %v1674
        %v1722 = vpop.xlane.xlu0 %1721
        %1723 = vmax.xlane.f32.xlu0 %v1675
        %v1724 = vpop.xlane.xlu0 %1723
        %1725 = vmax.xlane.f32.xlu0 %v1676
        %v1726 = vpop.xlane.xlu0 %1725
        %1727 = vmax.xlane.f32.xlu0 %v1677
        %v1728 = vpop.xlane.xlu0 %1727
        %1729 = vmax.xlane.f32.xlu0 %v1678
        %v1730 = vpop.xlane.xlu0 %1729
        %1731 = vmax.xlane.f32.xlu0 %v1679
        %v1732 = vpop.xlane.xlu0 %1731
        %1733 = vmax.xlane.f32.xlu0 %v1680
        %v1734 = vpop.xlane.xlu0 %1733
        %1735 = vmax.xlane.f32.xlu0 %v1681
        %v1736 = vpop.xlane.xlu0 %1735
        %1737 = vmax.xlane.f32.xlu0 %v1682
        %v1738 = vpop.xlane.xlu0 %1737
        %1739 = vmax.xlane.f32.xlu0 %v1683
        %v1740 = vpop.xlane.xlu0 %1739
        %1741 = vmax.xlane.f32.xlu0 %v1684
        %v1742 = vpop.xlane.xlu0 %1741
        %1743 = vmax.xlane.f32.xlu0 %v1685
        %v1744 = vpop.xlane.xlu0 %1743
        %1745 = vmax.xlane.f32.xlu0 %v1686
        %v1746 = vpop.xlane.xlu0 %1745
        %1747 = vmax.xlane.f32.xlu0 %v1687
        %v1748 = vpop.xlane.xlu0 %1747
        %1749 = vmax.xlane.f32.xlu0 %v1688
        %v1750 = vpop.xlane.xlu0 %1749
        %1751 = vmax.xlane.f32.xlu0 %v1689
        %v1752 = vpop.xlane.xlu0 %1751
        %1753 = vmax.xlane.f32.xlu0 %v1690
        %v1754 = vpop.xlane.xlu0 %1753
        %v1755 = vsub.f32 %v1659, %v1692
        %v1756 = vsub.f32 %v1660, %v1694
        %v1757 = vsub.f32 %v1661, %v1696
        %v1758 = vsub.f32 %v1662, %v1698
        %v1759 = vsub.f32 %v1663, %v1700
        %v1760 = vsub.f32 %v1664, %v1702
        %v1761 = vsub.f32 %v1665, %v1704
        %v1762 = vsub.f32 %v1666, %v1706
        %v1763 = vsub.f32 %v1667, %v1708
        %v1764 = vsub.f32 %v1668, %v1710
        %v1765 = vsub.f32 %v1669, %v1712
        %v1766 = vsub.f32 %v1670, %v1714
        %v1767 = vsub.f32 %v1671, %v1716
        %v1768 = vsub.f32 %v1672, %v1718
        %v1769 = vsub.f32 %v1673, %v1720
        %v1770 = vsub.f32 %v1674, %v1722
        %v1771 = vsub.f32 %v1675, %v1724
        %v1772 = vsub.f32 %v1676, %v1726
        %v1773 = vsub.f32 %v1677, %v1728
        %v1774 = vsub.f32 %v1678, %v1730
        %v1775 = vsub.f32 %v1679, %v1732
        %v1776 = vsub.f32 %v1680, %v1734
        %v1777 = vsub.f32 %v1681, %v1736
        %v1778 = vsub.f32 %v1682, %v1738
        %v1779 = vsub.f32 %v1683, %v1740
        %v1780 = vsub.f32 %v1684, %v1742
        %v1781 = vsub.f32 %v1685, %v1744
        %v1782 = vsub.f32 %v1686, %v1746
        %v1783 = vsub.f32 %v1687, %v1748
        %v1784 = vsub.f32 %v1688, %v1750
        %v1785 = vsub.f32 %v1689, %v1752
        %v1786 = vsub.f32 %v1690, %v1754
        %v1787 = vmul.f32 %v1755, 1.442695
        %v1788 = vpow.pop %v1787
        %v1789 = vmul.f32 %v1756, 1.442695
        %v1790 = vpow.pop %v1789
        %v1791 = vmul.f32 %v1757, 1.442695
        %v1792 = vpow.pop %v1791
        %v1793 = vmul.f32 %v1758, 1.442695
        %v1794 = vpow.pop %v1793
        %v1795 = vmul.f32 %v1759, 1.442695
        %v1796 = vpow.pop %v1795
        %v1797 = vmul.f32 %v1760, 1.442695
        %v1798 = vpow.pop %v1797
        %v1799 = vmul.f32 %v1761, 1.442695
        %v1800 = vpow.pop %v1799
        %v1801 = vmul.f32 %v1762, 1.442695
        %v1802 = vpow.pop %v1801
        %v1803 = vmul.f32 %v1763, 1.442695
        %v1804 = vpow.pop %v1803
        %v1805 = vmul.f32 %v1764, 1.442695
        %v1806 = vpow.pop %v1805
        %v1807 = vmul.f32 %v1765, 1.442695
        %v1808 = vpow.pop %v1807
        %v1809 = vmul.f32 %v1766, 1.442695
        %v1810 = vpow.pop %v1809
        %v1811 = vmul.f32 %v1767, 1.442695
        %v1812 = vpow.pop %v1811
        %v1813 = vmul.f32 %v1768, 1.442695
        %v1814 = vpow.pop %v1813
        %v1815 = vmul.f32 %v1769, 1.442695
        %v1816 = vpow.pop %v1815
        %v1817 = vmul.f32 %v1770, 1.442695
        %v1818 = vpow.pop %v1817
        %v1819 = vmul.f32 %v1771, 1.442695
        %v1820 = vpow.pop %v1819
        %v1821 = vmul.f32 %v1772, 1.442695
        %v1822 = vpow.pop %v1821
        %v1823 = vmul.f32 %v1773, 1.442695
        %v1824 = vpow.pop %v1823
        %v1825 = vmul.f32 %v1774, 1.442695
        %v1826 = vpow.pop %v1825
        %v1827 = vmul.f32 %v1775, 1.442695
        %v1828 = vpow.pop %v1827
        %v1829 = vmul.f32 %v1776, 1.442695
        %v1830 = vpow.pop %v1829
        %v1831 = vmul.f32 %v1777, 1.442695
        %v1832 = vpow.pop %v1831
        %v1833 = vmul.f32 %v1778, 1.442695
        %v1834 = vpow.pop %v1833
        %v1835 = vmul.f32 %v1779, 1.442695
        %v1836 = vpow.pop %v1835
        %v1837 = vmul.f32 %v1780, 1.442695
        %v1838 = vpow.pop %v1837
        %v1839 = vmul.f32 %v1781, 1.442695
        %v1840 = vpow.pop %v1839
        %v1841 = vmul.f32 %v1782, 1.442695
        %v1842 = vpow.pop %v1841
        %v1843 = vmul.f32 %v1783, 1.442695
        %v1844 = vpow.pop %v1843
        %v1845 = vmul.f32 %v1784, 1.442695
        %v1846 = vpow.pop %v1845
        %v1847 = vmul.f32 %v1785, 1.442695
        %v1848 = vpow.pop %v1847
        %v1849 = vmul.f32 %v1786, 1.442695
        %v1850 = vpow.pop %v1849
        %1851 = vadd.xlane.f32.xlu0 %v1788
        %v1852 = vpop.xlane.xlu0 %1851
        %1853 = vadd.xlane.f32.xlu0 %v1790
        %v1854 = vpop.xlane.xlu0 %1853
        %1855 = vadd.xlane.f32.xlu0 %v1792
        %v1856 = vpop.xlane.xlu0 %1855
        %1857 = vadd.xlane.f32.xlu0 %v1794
        %v1858 = vpop.xlane.xlu0 %1857
        %1859 = vadd.xlane.f32.xlu0 %v1796
        %v1860 = vpop.xlane.xlu0 %1859
        %1861 = vadd.xlane.f32.xlu0 %v1798
        %v1862 = vpop.xlane.xlu0 %1861
        %1863 = vadd.xlane.f32.xlu0 %v1800
        %v1864 = vpop.xlane.xlu0 %1863
        %1865 = vadd.xlane.f32.xlu0 %v1802
        %v1866 = vpop.xlane.xlu0 %1865
        %1867 = vadd.xlane.f32.xlu0 %v1804
        %v1868 = vpop.xlane.xlu0 %1867
        %1869 = vadd.xlane.f32.xlu0 %v1806
        %v1870 = vpop.xlane.xlu0 %1869
        %1871 = vadd.xlane.f32.xlu0 %v1808
        %v1872 = vpop.xlane.xlu0 %1871
        %1873 = vadd.xlane.f32.xlu0 %v1810
        %v1874 = vpop.xlane.xlu0 %1873
        %1875 = vadd.xlane.f32.xlu0 %v1812
        %v1876 = vpop.xlane.xlu0 %1875
        %1877 = vadd.xlane.f32.xlu0 %v1814
        %v1878 = vpop.xlane.xlu0 %1877
        %1879 = vadd.xlane.f32.xlu0 %v1816
        %v1880 = vpop.xlane.xlu0 %1879
        %1881 = vadd.xlane.f32.xlu0 %v1818
        %v1882 = vpop.xlane.xlu0 %1881
        %1883 = vadd.xlane.f32.xlu0 %v1820
        %v1884 = vpop.xlane.xlu0 %1883
        %1885 = vadd.xlane.f32.xlu0 %v1822
        %v1886 = vpop.xlane.xlu0 %1885
        %1887 = vadd.xlane.f32.xlu0 %v1824
        %v1888 = vpop.xlane.xlu0 %1887
        %1889 = vadd.xlane.f32.xlu0 %v1826
        %v1890 = vpop.xlane.xlu0 %1889
        %1891 = vadd.xlane.f32.xlu0 %v1828
        %v1892 = vpop.xlane.xlu0 %1891
        %1893 = vadd.xlane.f32.xlu0 %v1830
        %v1894 = vpop.xlane.xlu0 %1893
        %1895 = vadd.xlane.f32.xlu0 %v1832
        %v1896 = vpop.xlane.xlu0 %1895
        %1897 = vadd.xlane.f32.xlu0 %v1834
        %v1898 = vpop.xlane.xlu0 %1897
        %1899 = vadd.xlane.f32.xlu0 %v1836
        %v1900 = vpop.xlane.xlu0 %1899
        %1901 = vadd.xlane.f32.xlu0 %v1838
        %v1902 = vpop.xlane.xlu0 %1901
        %1903 = vadd.xlane.f32.xlu0 %v1840
        %v1904 = vpop.xlane.xlu0 %1903
        %1905 = vadd.xlane.f32.xlu0 %v1842
        %v1906 = vpop.xlane.xlu0 %1905
        %1907 = vadd.xlane.f32.xlu0 %v1844
        %v1908 = vpop.xlane.xlu0 %1907
        %1909 = vadd.xlane.f32.xlu0 %v1846
        %v1910 = vpop.xlane.xlu0 %1909
        %1911 = vadd.xlane.f32.xlu0 %v1848
        %v1912 = vpop.xlane.xlu0 %1911
        %1913 = vadd.xlane.f32.xlu0 %v1850
        %v1914 = vpop.xlane.xlu0 %1913
        %v1915 = vrcp.pop %v1852
        %v1916 = vrcp.pop %v1854
        %v1917 = vrcp.pop %v1856
        %v1918 = vrcp.pop %v1858
        %v1919 = vrcp.pop %v1860
        %v1920 = vrcp.pop %v1862
        %v1921 = vrcp.pop %v1864
        %v1922 = vrcp.pop %v1866
        %v1923 = vrcp.pop %v1868
        %v1924 = vrcp.pop %v1870
        %v1925 = vrcp.pop %v1872
        %v1926 = vrcp.pop %v1874
        %v1927 = vrcp.pop %v1876
        %v1928 = vrcp.pop %v1878
        %v1929 = vrcp.pop %v1880
        %v1930 = vrcp.pop %v1882
        %v1931 = vrcp.pop %v1884
        %v1932 = vrcp.pop %v1886
        %v1933 = vrcp.pop %v1888
        %v1934 = vrcp.pop %v1890
        %v1935 = vrcp.pop %v1892
        %v1936 = vrcp.pop %v1894
        %v1937 = vrcp.pop %v1896
        %v1938 = vrcp.pop %v1898
        %v1939 = vrcp.pop %v1900
        %v1940 = vrcp.pop %v1902
        %v1941 = vrcp.pop %v1904
        %v1942 = vrcp.pop %v1906
        %v1943 = vrcp.pop %v1908
        %v1944 = vrcp.pop %v1910
        %v1945 = vrcp.pop %v1912
        %v1946 = vrcp.pop %v1914
        %v1947 = vpack.c.bf16 %v1790, %v1788
        %v1948 = vpack.c.bf16 %v1794, %v1792
        %v1949 = vpack.c.bf16 %v1798, %v1796
        %v1950 = vpack.c.bf16 %v1802, %v1800
        %v1951 = vpack.c.bf16 %v1806, %v1804
        %v1952 = vpack.c.bf16 %v1810, %v1808
        %v1953 = vpack.c.bf16 %v1814, %v1812
        %v1954 = vpack.c.bf16 %v1818, %v1816
        %v1955 = vpack.c.bf16 %v1822, %v1820
        %v1956 = vpack.c.bf16 %v1826, %v1824
        %v1957 = vpack.c.bf16 %v1830, %v1828
        %v1958 = vpack.c.bf16 %v1834, %v1832
        %v1959 = vpack.c.bf16 %v1838, %v1836
        %v1960 = vpack.c.bf16 %v1842, %v1840
        %v1961 = vpack.c.bf16 %v1846, %v1844
        %v1962 = vpack.c.bf16 %v1850, %v1848
        %v1979 = vunpack.c.l.b16 %v1322
        %v1980 = vunpack.c.l.b16 %v1323
        %v1981 = vunpack.c.l.b16 %v1324
        %v1982 = vunpack.c.l.b16 %v1325
        %v1983 = vunpack.c.l.b16 %v1326
        %v1984 = vunpack.c.l.b16 %v1327
        %v1985 = vunpack.c.l.b16 %v1328
        %v1986 = vunpack.c.l.b16 %v1329
        %v1987 = vunpack.c.l.b16 %v1330
        %v1988 = vunpack.c.l.b16 %v1331
        %v1989 = vunpack.c.l.b16 %v1332
        %v1990 = vunpack.c.l.b16 %v1333
        %v1991 = vunpack.c.l.b16 %v1334
        %v1992 = vunpack.c.l.b16 %v1335
        %v1993 = vunpack.c.l.b16 %v1336
        %v1994 = vunpack.c.l.b16 %v1337
        %v1995 = vpack.c.b16 %v1980, %v1979
        %v1996 = vpack.c.b16 %v1982, %v1981
        %v1997 = vpack.c.b16 %v1984, %v1983
        %v1998 = vpack.c.b16 %v1986, %v1985
        %v1999 = vpack.c.b16 %v1988, %v1987
        %v2000 = vpack.c.b16 %v1990, %v1989
        %v2001 = vpack.c.b16 %v1992, %v1991
        %v2002 = vpack.c.b16 %v1994, %v1993
        %2011 = vmatprep.subr.bf16.mxu0 0
        %2012 = vmatpush1.bf16.msra.mxu0 %v1995
        %2013 = vmatprep.subr.bf16.mxu0 0
        %2014 = vmatpush1.bf16.msra.mxu0 %v1996
        %2015 = vmatprep.subr.bf16.mxu0 0
        %2016 = vmatpush1.bf16.msra.mxu0 %v1997
        %2017 = vmatprep.subr.bf16.mxu0 0
        %2018 = vmatpush1.bf16.msra.mxu0 %v1998
        %2019 = vmatprep.subr.bf16.mxu0 0
        %2020 = vmatpush1.bf16.msra.mxu0 %v1999
        %2021 = vmatprep.subr.bf16.mxu0 0
        %2022 = vmatpush1.bf16.msra.mxu0 %v2000
        %2023 = vmatprep.subr.bf16.mxu0 0
        %2024 = vmatpush1.bf16.msra.mxu0 %v2001
        %2025 = vmatprep.subr.bf16.mxu0 0
        %2026 = vmatpush1.bf16.msra.mxu0 %v2002
        %2027 = vmatprep.subr.bf16.mxu0 0
        %2028 = vmatpush1.bf16.msra.mxu0 0
        %2029 = vmatprep.subr.bf16.mxu0 0
        %2030 = vmatpush1.bf16.msra.mxu0 0
        %2031 = vmatprep.subr.bf16.mxu0 0
        %2032 = vmatpush1.bf16.msra.mxu0 0
        %2033 = vmatprep.subr.bf16.mxu0 0
        %2034 = vmatpush1.bf16.msra.mxu0 0
        %2035 = vmatprep.subr.bf16.mxu0 0
        %2036 = vmatpush1.bf16.msra.mxu0 0
        %2037 = vmatprep.subr.bf16.mxu0 0
        %2038 = vmatpush1.bf16.msra.mxu0 0
        %2039 = vmatprep.subr.bf16.mxu0 0
        %2040 = vmatpush1.bf16.msra.mxu0 0
        %2041 = vmatprep.subr.bf16.mxu0 0
        %2042 = vmatpush1.bf16.msra.mxu0 0
        %2043 = vmatprep.mubr.bf16.mxu0 0
        %2044 = vmatmul.mubr.bf16.gmra.mrb[0].mxu0 %v1947
        %v2045 = vpop.f32.mrb[0].mxu0
        %v2046 = vadd.f32 0.0, %v2045
        %v2047 = vpop.f32.mrb[0].mxu0
        %v2048 = vpop.f32.mrb[0].mxu0
        %v2049 = vadd.f32 0.0, %v2048
        %v2050 = vpop.f32.mrb[0].mxu0
        %2051 = vmatprep.mubr.bf16.mxu0 0
        %2052 = vmatmul.mubr.bf16.gmra.mrb[0].mxu0 %v1948
        %v2053 = vpop.f32.mrb[0].mxu0
        %v2054 = vadd.f32 0.0, %v2053
        %v2055 = vpop.f32.mrb[0].mxu0
        %v2056 = vpop.f32.mrb[0].mxu0
        %v2057 = vadd.f32 0.0, %v2056
        %v2058 = vpop.f32.mrb[0].mxu0
        %2059 = vmatprep.mubr.bf16.mxu0 0
        %2060 = vmatmul.mubr.bf16.gmra.mrb[0].mxu0 %v1949
        %v2061 = vpop.f32.mrb[0].mxu0
        %v2062 = vadd.f32 0.0, %v2061
        %v2063 = vpop.f32.mrb[0].mxu0
        %v2064 = vpop.f32.mrb[0].mxu0
        %v2065 = vadd.f32 0.0, %v2064
        %v2066 = vpop.f32.mrb[0].mxu0
        %2067 = vmatprep.mubr.bf16.mxu0 0
        %2068 = vmatmul.mubr.bf16.gmra.mrb[0].mxu0 %v1950
        %v2069 = vpop.f32.mrb[0].mxu0
        %v2070 = vadd.f32 0.0, %v2069
        %v2071 = vpop.f32.mrb[0].mxu0
        %v2072 = vpop.f32.mrb[0].mxu0
        %v2073 = vadd.f32 0.0, %v2072
        %v2074 = vpop.f32.mrb[0].mxu0
        %2075 = vmatprep.mubr.bf16.mxu0 0
        %2076 = vmatmul.mubr.bf16.gmra.mrb[0].mxu0 %v1951
        %v2077 = vpop.f32.mrb[0].mxu0
        %v2078 = vadd.f32 0.0, %v2077
        %v2079 = vpop.f32.mrb[0].mxu0
        %v2080 = vpop.f32.mrb[0].mxu0
        %v2081 = vadd.f32 0.0, %v2080
        %v2082 = vpop.f32.mrb[0].mxu0
        %2083 = vmatprep.mubr.bf16.mxu0 0
        %2084 = vmatmul.mubr.bf16.gmra.mrb[0].mxu0 %v1952
        %v2085 = vpop.f32.mrb[0].mxu0
        %v2086 = vadd.f32 0.0, %v2085
        %v2087 = vpop.f32.mrb[0].mxu0
        %v2088 = vpop.f32.mrb[0].mxu0
        %v2089 = vadd.f32 0.0, %v2088
        %v2090 = vpop.f32.mrb[0].mxu0
        %2091 = vmatprep.mubr.bf16.mxu0 0
        %2092 = vmatmul.mubr.bf16.gmra.mrb[0].mxu0 %v1953
        %v2093 = vpop.f32.mrb[0].mxu0
        %v2094 = vadd.f32 0.0, %v2093
        %v2095 = vpop.f32.mrb[0].mxu0
        %v2096 = vpop.f32.mrb[0].mxu0
        %v2097 = vadd.f32 0.0, %v2096
        %v2098 = vpop.f32.mrb[0].mxu0
        %2099 = vmatprep.mubr.bf16.mxu0 0
        %2100 = vmatmul.mubr.bf16.gmra.mrb[0].mxu0 %v1954
        %v2101 = vpop.f32.mrb[0].mxu0
        %v2102 = vadd.f32 0.0, %v2101
        %v2103 = vpop.f32.mrb[0].mxu0
        %v2104 = vpop.f32.mrb[0].mxu0
        %v2105 = vadd.f32 0.0, %v2104
        %v2106 = vpop.f32.mrb[0].mxu0
        %2107 = vmatprep.mubr.bf16.mxu0 0
        %2108 = vmatmul.mubr.bf16.gmra.mrb[0].mxu0 %v1955
        %v2109 = vpop.f32.mrb[0].mxu0
        %v2110 = vadd.f32 0.0, %v2109
        %v2111 = vpop.f32.mrb[0].mxu0
        %v2112 = vpop.f32.mrb[0].mxu0
        %v2113 = vadd.f32 0.0, %v2112
        %v2114 = vpop.f32.mrb[0].mxu0
        %2115 = vmatprep.mubr.bf16.mxu0 0
        %2116 = vmatmul.mubr.bf16.gmra.mrb[0].mxu0 %v1956
        %v2117 = vpop.f32.mrb[0].mxu0
        %v2118 = vadd.f32 0.0, %v2117
        %v2119 = vpop.f32.mrb[0].mxu0
        %v2120 = vpop.f32.mrb[0].mxu0
        %v2121 = vadd.f32 0.0, %v2120
        %v2122 = vpop.f32.mrb[0].mxu0
        %2123 = vmatprep.mubr.bf16.mxu0 0
        %2124 = vmatmul.mubr.bf16.gmra.mrb[0].mxu0 %v1957
        %v2125 = vpop.f32.mrb[0].mxu0
        %v2126 = vadd.f32 0.0, %v2125
        %v2127 = vpop.f32.mrb[0].mxu0
        %v2128 = vpop.f32.mrb[0].mxu0
        %v2129 = vadd.f32 0.0, %v2128
        %v2130 = vpop.f32.mrb[0].mxu0
        %2131 = vmatprep.mubr.bf16.mxu0 0
        %2132 = vmatmul.mubr.bf16.gmra.mrb[0].mxu0 %v1958
        %v2133 = vpop.f32.mrb[0].mxu0
        %v2134 = vadd.f32 0.0, %v2133
        %v2135 = vpop.f32.mrb[0].mxu0
        %v2136 = vpop.f32.mrb[0].mxu0
        %v2137 = vadd.f32 0.0, %v2136
        %v2138 = vpop.f32.mrb[0].mxu0
        %2139 = vmatprep.mubr.bf16.mxu0 0
        %2140 = vmatmul.mubr.bf16.gmra.mrb[0].mxu0 %v1959
        %v2141 = vpop.f32.mrb[0].mxu0
        %v2142 = vadd.f32 0.0, %v2141
        %v2143 = vpop.f32.mrb[0].mxu0
        %v2144 = vpop.f32.mrb[0].mxu0
        %v2145 = vadd.f32 0.0, %v2144
        %v2146 = vpop.f32.mrb[0].mxu0
        %2147 = vmatprep.mubr.bf16.mxu0 0
        %2148 = vmatmul.mubr.bf16.gmra.mrb[0].mxu0 %v1960
        %v2149 = vpop.f32.mrb[0].mxu0
        %v2150 = vadd.f32 0.0, %v2149
        %v2151 = vpop.f32.mrb[0].mxu0
        %v2152 = vpop.f32.mrb[0].mxu0
        %v2153 = vadd.f32 0.0, %v2152
        %v2154 = vpop.f32.mrb[0].mxu0
        %2155 = vmatprep.mubr.bf16.mxu0 0
        %2156 = vmatmul.mubr.bf16.gmra.mrb[0].mxu0 %v1961
        %v2157 = vpop.f32.mrb[0].mxu0
        %v2158 = vadd.f32 0.0, %v2157
        %v2159 = vpop.f32.mrb[0].mxu0
        %v2160 = vpop.f32.mrb[0].mxu0
        %v2161 = vadd.f32 0.0, %v2160
        %v2162 = vpop.f32.mrb[0].mxu0
        %2163 = vmatprep.mubr.bf16.mxu0 0
        %2164 = vmatmul.mubr.bf16.gmra.mrb[0].mxu0 %v1962
        %v2165 = vpop.f32.mrb[0].mxu0
        %v2166 = vadd.f32 0.0, %v2165
        %v2167 = vpop.f32.mrb[0].mxu0
        %v2168 = vpop.f32.mrb[0].mxu0
        %v2169 = vadd.f32 0.0, %v2168
        %v2170 = vpop.f32.mrb[0].mxu0
        %2171 = vdwg.mxu0
        %v2172 = vmul.f32 %v2046, %v1915
        %v2173 = vmul.f32 %v2049, %v1916
        %v2174 = vmul.f32 %v2054, %v1917
        %v2175 = vmul.f32 %v2057, %v1918
        %v2176 = vmul.f32 %v2062, %v1919
        %v2177 = vmul.f32 %v2065, %v1920
        %v2178 = vmul.f32 %v2070, %v1921
        %v2179 = vmul.f32 %v2073, %v1922
        %v2180 = vmul.f32 %v2078, %v1923
        %v2181 = vmul.f32 %v2081, %v1924
        %v2182 = vmul.f32 %v2086, %v1925
        %v2183 = vmul.f32 %v2089, %v1926
        %v2184 = vmul.f32 %v2094, %v1927
        %v2185 = vmul.f32 %v2097, %v1928
        %v2186 = vmul.f32 %v2102, %v1929
        %v2187 = vmul.f32 %v2105, %v1930
        %v2188 = vmul.f32 %v2110, %v1931
        %v2189 = vmul.f32 %v2113, %v1932
        %v2190 = vmul.f32 %v2118, %v1933
        %v2191 = vmul.f32 %v2121, %v1934
        %v2192 = vmul.f32 %v2126, %v1935
        %v2193 = vmul.f32 %v2129, %v1936
        %v2194 = vmul.f32 %v2134, %v1937
        %v2195 = vmul.f32 %v2137, %v1938
        %v2196 = vmul.f32 %v2142, %v1939
        %v2197 = vmul.f32 %v2145, %v1940
        %v2198 = vmul.f32 %v2150, %v1941
        %v2199 = vmul.f32 %v2153, %v1942
        %v2200 = vmul.f32 %v2158, %v1943
        %v2201 = vmul.f32 %v2161, %v1944
        %v2202 = vmul.f32 %v2166, %v1945
        %v2203 = vmul.f32 %v2169, %v1946
        %s2204 = scalar_lea.vmem %s383, 128
        %v2205 = vld [vmem:[%s2204] sm:$0xf]
        %v2206 = vld [vmem:[%s2204 + $0x4] sm:$0xf]
        %v2207 = vld [vmem:[%s2204 + $0x8] sm:$0xf]
        %v2208 = vld [vmem:[%s2204 + $0xc] sm:$0xf]
        %v2209 = vld [vmem:[%s2204 + $0x10] sm:$0xf]
        %v2210 = vld [vmem:[%s2204 + $0x14] sm:$0xf]
        %v2211 = vld [vmem:[%s2204 + $0x18] sm:$0xf]
        %v2212 = vld [vmem:[%s2204 + $0x1c] sm:$0xf]
        %v2213 = vld [vmem:[%s2204 + $0x20] sm:$0xf]
        %v2214 = vld [vmem:[%s2204 + $0x24] sm:$0xf]
        %v2215 = vld [vmem:[%s2204 + $0x28] sm:$0xf]
        %v2216 = vld [vmem:[%s2204 + $0x2c] sm:$0xf]
        %v2217 = vld [vmem:[%s2204 + $0x30] sm:$0xf]
        %v2218 = vld [vmem:[%s2204 + $0x34] sm:$0xf]
        %v2219 = vld [vmem:[%s2204 + $0x38] sm:$0xf]
        %v2220 = vld [vmem:[%s2204 + $0x3c] sm:$0xf]
        %s2221 = scalar_lea.vmem %s388, 128
        %v2222 = vld [vmem:[%s2221] sm:$0xf]
        %v2223 = vld [vmem:[%s2221 + $0x4] sm:$0xf]
        %v2224 = vld [vmem:[%s2221 + $0x8] sm:$0xf]
        %v2225 = vld [vmem:[%s2221 + $0xc] sm:$0xf]
        %v2226 = vld [vmem:[%s2221 + $0x10] sm:$0xf]
        %v2227 = vld [vmem:[%s2221 + $0x14] sm:$0xf]
        %v2228 = vld [vmem:[%s2221 + $0x18] sm:$0xf]
        %v2229 = vld [vmem:[%s2221 + $0x1c] sm:$0xf]
        %v2230 = vld [vmem:[%s2221 + $0x20] sm:$0xf]
        %v2231 = vld [vmem:[%s2221 + $0x24] sm:$0xf]
        %v2232 = vld [vmem:[%s2221 + $0x28] sm:$0xf]
        %v2233 = vld [vmem:[%s2221 + $0x2c] sm:$0xf]
        %v2234 = vld [vmem:[%s2221 + $0x30] sm:$0xf]
        %v2235 = vld [vmem:[%s2221 + $0x34] sm:$0xf]
        %v2236 = vld [vmem:[%s2221 + $0x38] sm:$0xf]
        %v2237 = vld [vmem:[%s2221 + $0x3c] sm:$0xf]
        %2238 = vrot.lane.b32.xlu0 %v434, 64
        %v2239 = vpop.permute.xlu0 %2238
        %2240 = vrot.lane.b32.xlu0 %v435, 64
        %v2241 = vpop.permute.xlu0 %2240
        %2242 = vrot.lane.b32.xlu0 %v436, 64
        %v2243 = vpop.permute.xlu0 %2242
        %2244 = vrot.lane.b32.xlu0 %v437, 64
        %v2245 = vpop.permute.xlu0 %2244
        %2246 = vrot.lane.b32.xlu0 %v438, 64
        %v2247 = vpop.permute.xlu0 %2246
        %2248 = vrot.lane.b32.xlu0 %v439, 64
        %v2249 = vpop.permute.xlu0 %2248
        %2250 = vrot.lane.b32.xlu0 %v440, 64
        %v2251 = vpop.permute.xlu0 %2250
        %2252 = vrot.lane.b32.xlu0 %v441, 64
        %v2253 = vpop.permute.xlu0 %2252
        %2254 = vrot.lane.b32.xlu0 %v442, 64
        %v2255 = vpop.permute.xlu0 %2254
        %2256 = vrot.lane.b32.xlu0 %v443, 64
        %v2257 = vpop.permute.xlu0 %2256
        %2258 = vrot.lane.b32.xlu0 %v444, 64
        %v2259 = vpop.permute.xlu0 %2258
        %2260 = vrot.lane.b32.xlu0 %v445, 64
        %v2261 = vpop.permute.xlu0 %2260
        %2262 = vrot.lane.b32.xlu0 %v446, 64
        %v2263 = vpop.permute.xlu0 %2262
        %2264 = vrot.lane.b32.xlu0 %v447, 64
        %v2265 = vpop.permute.xlu0 %2264
        %2266 = vrot.lane.b32.xlu0 %v448, 64
        %v2267 = vpop.permute.xlu0 %2266
        %2268 = vrot.lane.b32.xlu0 %v449, 64
        %v2269 = vpop.permute.xlu0 %2268
        %v2286 = vunpack.c.l.b16 %v2205
        %v2287 = vunpack.c.l.b16 %v2206
        %v2288 = vunpack.c.l.b16 %v2207
        %v2289 = vunpack.c.l.b16 %v2208
        %v2290 = vunpack.c.l.b16 %v2209
        %v2291 = vunpack.c.l.b16 %v2210
        %v2292 = vunpack.c.l.b16 %v2211
        %v2293 = vunpack.c.l.b16 %v2212
        %v2294 = vunpack.c.l.b16 %v2213
        %v2295 = vunpack.c.l.b16 %v2214
        %v2296 = vunpack.c.l.b16 %v2215
        %v2297 = vunpack.c.l.b16 %v2216
        %v2298 = vunpack.c.l.b16 %v2217
        %v2299 = vunpack.c.l.b16 %v2218
        %v2300 = vunpack.c.l.b16 %v2219
        %v2301 = vunpack.c.l.b16 %v2220
        %v2302 = vpack.c.b16 %v2287, %v2286
        %v2303 = vpack.c.b16 %v2289, %v2288
        %v2304 = vpack.c.b16 %v2291, %v2290
        %v2305 = vpack.c.b16 %v2293, %v2292
        %v2306 = vpack.c.b16 %v2295, %v2294
        %v2307 = vpack.c.b16 %v2297, %v2296
        %v2308 = vpack.c.b16 %v2299, %v2298
        %v2309 = vpack.c.b16 %v2301, %v2300
        %v2311 = vsel %vm522, %v2239, 0
        %v2314 = vsel %vm522, %v2241, 0
        %v2317 = vsel %vm522, %v2243, 0
        %v2320 = vsel %vm522, %v2245, 0
        %v2323 = vsel %vm522, %v2247, 0
        %v2326 = vsel %vm522, %v2249, 0
        %v2329 = vsel %vm522, %v2251, 0
        %v2332 = vsel %vm522, %v2253, 0
        %v2335 = vsel %vm522, %v2255, 0
        %v2338 = vsel %vm522, %v2257, 0
        %v2341 = vsel %vm522, %v2259, 0
        %v2344 = vsel %vm522, %v2261, 0
        %v2347 = vsel %vm522, %v2263, 0
        %v2350 = vsel %vm522, %v2265, 0
        %v2353 = vsel %vm522, %v2267, 0
        %v2356 = vsel %vm522, %v2269, 0
        %v2359 = vsel %vm522, %v2302, 0
        %v2362 = vsel %vm522, %v2303, 0
        %v2365 = vsel %vm522, %v2304, 0
        %v2368 = vsel %vm522, %v2305, 0
        %v2371 = vsel %vm522, %v2306, 0
        %v2374 = vsel %vm522, %v2307, 0
        %v2377 = vsel %vm522, %v2308, 0
        %v2380 = vsel %vm522, %v2309, 0
        %2382 = vmatprep.subr.bf16.mxu0 0
        %2383 = vmatpush1.bf16.xpose.msra.mxu0 %v2359
        %2384 = vmatprep.subr.bf16.mxu0 0
        %2385 = vmatpush1.bf16.xpose.msra.mxu0 %v2362
        %2386 = vmatprep.subr.bf16.mxu0 0
        %2387 = vmatpush1.bf16.xpose.msra.mxu0 %v2365
        %2388 = vmatprep.subr.bf16.mxu0 0
        %2389 = vmatpush1.bf16.xpose.msra.mxu0 %v2368
        %2390 = vmatprep.subr.bf16.mxu0 0
        %2391 = vmatpush1.bf16.xpose.msra.mxu0 %v2371
        %2392 = vmatprep.subr.bf16.mxu0 0
        %2393 = vmatpush1.bf16.xpose.msra.mxu0 %v2374
        %2394 = vmatprep.subr.bf16.mxu0 0
        %2395 = vmatpush1.bf16.xpose.msra.mxu0 %v2377
        %2396 = vmatprep.subr.bf16.mxu0 0
        %2397 = vmatpush1.bf16.xpose.msra.mxu0 %v2380
        %2398 = vmatprep.subr.bf16.mxu0 0
        %2399 = vmatpush1.bf16.xpose.msra.mxu0 0
        %2400 = vmatprep.subr.bf16.mxu0 0
        %2401 = vmatpush1.bf16.xpose.msra.mxu0 0
        %2402 = vmatprep.subr.bf16.mxu0 0
        %2403 = vmatpush1.bf16.xpose.msra.mxu0 0
        %2404 = vmatprep.subr.bf16.mxu0 0
        %2405 = vmatpush1.bf16.xpose.msra.mxu0 0
        %2406 = vmatprep.subr.bf16.mxu0 0
        %2407 = vmatpush1.bf16.xpose.msra.mxu0 0
        %2408 = vmatprep.subr.bf16.mxu0 0
        %2409 = vmatpush1.bf16.xpose.msra.mxu0 0
        %2410 = vmatprep.subr.bf16.mxu0 0
        %2411 = vmatpush1.bf16.xpose.msra.mxu0 0
        %2412 = vmatprep.subr.bf16.mxu0 0
        %2413 = vmatpush1.bf16.xpose.msra.mxu0 0
        %2414 = vmatprep.mubr.bf16.mxu0 0
        %2415 = vmatmul.mubr.bf16.gmra.mrb[0].mxu0 %v2311
        %v2416 = vpop.f32.mrb[0].mxu0
        %v2417 = vadd.f32 0.0, %v2416
        %v2418 = vpop.f32.mrb[0].mxu0
        %v2419 = vpop.f32.mrb[0].mxu0
        %v2420 = vadd.f32 0.0, %v2419
        %v2421 = vpop.f32.mrb[0].mxu0
        %2422 = vmatprep.mubr.bf16.mxu0 0
        %2423 = vmatmul.mubr.bf16.gmra.mrb[0].mxu0 %v2314
        %v2424 = vpop.f32.mrb[0].mxu0
        %v2425 = vadd.f32 0.0, %v2424
        %v2426 = vpop.f32.mrb[0].mxu0
        %v2427 = vpop.f32.mrb[0].mxu0
        %v2428 = vadd.f32 0.0, %v2427
        %v2429 = vpop.f32.mrb[0].mxu0
        %2430 = vmatprep.mubr.bf16.mxu0 0
        %2431 = vmatmul.mubr.bf16.gmra.mrb[0].mxu0 %v2317
        %v2432 = vpop.f32.mrb[0].mxu0
        %v2433 = vadd.f32 0.0, %v2432
        %v2434 = vpop.f32.mrb[0].mxu0
        %v2435 = vpop.f32.mrb[0].mxu0
        %v2436 = vadd.f32 0.0, %v2435
        %v2437 = vpop.f32.mrb[0].mxu0
        %2438 = vmatprep.mubr.bf16.mxu0 0
        %2439 = vmatmul.mubr.bf16.gmra.mrb[0].mxu0 %v2320
        %v2440 = vpop.f32.mrb[0].mxu0
        %v2441 = vadd.f32 0.0, %v2440
        %v2442 = vpop.f32.mrb[0].mxu0
        %v2443 = vpop.f32.mrb[0].mxu0
        %v2444 = vadd.f32 0.0, %v2443
        %v2445 = vpop.f32.mrb[0].mxu0
        %2446 = vmatprep.mubr.bf16.mxu0 0
        %2447 = vmatmul.mubr.bf16.gmra.mrb[0].mxu0 %v2323
        %v2448 = vpop.f32.mrb[0].mxu0
        %v2449 = vadd.f32 0.0, %v2448
        %v2450 = vpop.f32.mrb[0].mxu0
        %v2451 = vpop.f32.mrb[0].mxu0
        %v2452 = vadd.f32 0.0, %v2451
        %v2453 = vpop.f32.mrb[0].mxu0
        %2454 = vmatprep.mubr.bf16.mxu0 0
        %2455 = vmatmul.mubr.bf16.gmra.mrb[0].mxu0 %v2326
        %v2456 = vpop.f32.mrb[0].mxu0
        %v2457 = vadd.f32 0.0, %v2456
        %v2458 = vpop.f32.mrb[0].mxu0
        %v2459 = vpop.f32.mrb[0].mxu0
        %v2460 = vadd.f32 0.0, %v2459
        %v2461 = vpop.f32.mrb[0].mxu0
        %2462 = vmatprep.mubr.bf16.mxu0 0
        %2463 = vmatmul.mubr.bf16.gmra.mrb[0].mxu0 %v2329
        %v2464 = vpop.f32.mrb[0].mxu0
        %v2465 = vadd.f32 0.0, %v2464
        %v2466 = vpop.f32.mrb[0].mxu0
        %v2467 = vpop.f32.mrb[0].mxu0
        %v2468 = vadd.f32 0.0, %v2467
        %v2469 = vpop.f32.mrb[0].mxu0
        %2470 = vmatprep.mubr.bf16.mxu0 0
        %2471 = vmatmul.mubr.bf16.gmra.mrb[0].mxu0 %v2332
        %v2472 = vpop.f32.mrb[0].mxu0
        %v2473 = vadd.f32 0.0, %v2472
        %v2474 = vpop.f32.mrb[0].mxu0
        %v2475 = vpop.f32.mrb[0].mxu0
        %v2476 = vadd.f32 0.0, %v2475
        %v2477 = vpop.f32.mrb[0].mxu0
        %2478 = vmatprep.mubr.bf16.mxu0 0
        %2479 = vmatmul.mubr.bf16.gmra.mrb[0].mxu0 %v2335
        %v2480 = vpop.f32.mrb[0].mxu0
        %v2481 = vadd.f32 0.0, %v2480
        %v2482 = vpop.f32.mrb[0].mxu0
        %v2483 = vpop.f32.mrb[0].mxu0
        %v2484 = vadd.f32 0.0, %v2483
        %v2485 = vpop.f32.mrb[0].mxu0
        %2486 = vmatprep.mubr.bf16.mxu0 0
        %2487 = vmatmul.mubr.bf16.gmra.mrb[0].mxu0 %v2338
        %v2488 = vpop.f32.mrb[0].mxu0
        %v2489 = vadd.f32 0.0, %v2488
        %v2490 = vpop.f32.mrb[0].mxu0
        %v2491 = vpop.f32.mrb[0].mxu0
        %v2492 = vadd.f32 0.0, %v2491
        %v2493 = vpop.f32.mrb[0].mxu0
        %2494 = vmatprep.mubr.bf16.mxu0 0
        %2495 = vmatmul.mubr.bf16.gmra.mrb[0].mxu0 %v2341
        %v2496 = vpop.f32.mrb[0].mxu0
        %v2497 = vadd.f32 0.0, %v2496
        %v2498 = vpop.f32.mrb[0].mxu0
        %v2499 = vpop.f32.mrb[0].mxu0
        %v2500 = vadd.f32 0.0, %v2499
        %v2501 = vpop.f32.mrb[0].mxu0
        %2502 = vmatprep.mubr.bf16.mxu0 0
        %2503 = vmatmul.mubr.bf16.gmra.mrb[0].mxu0 %v2344
        %v2504 = vpop.f32.mrb[0].mxu0
        %v2505 = vadd.f32 0.0, %v2504
        %v2506 = vpop.f32.mrb[0].mxu0
        %v2507 = vpop.f32.mrb[0].mxu0
        %v2508 = vadd.f32 0.0, %v2507
        %v2509 = vpop.f32.mrb[0].mxu0
        %2510 = vmatprep.mubr.bf16.mxu0 0
        %2511 = vmatmul.mubr.bf16.gmra.mrb[0].mxu0 %v2347
        %v2512 = vpop.f32.mrb[0].mxu0
        %v2513 = vadd.f32 0.0, %v2512
        %v2514 = vpop.f32.mrb[0].mxu0
        %v2515 = vpop.f32.mrb[0].mxu0
        %v2516 = vadd.f32 0.0, %v2515
        %v2517 = vpop.f32.mrb[0].mxu0
        %2518 = vmatprep.mubr.bf16.mxu0 0
        %2519 = vmatmul.mubr.bf16.gmra.mrb[0].mxu0 %v2350
        %v2520 = vpop.f32.mrb[0].mxu0
        %v2521 = vadd.f32 0.0, %v2520
        %v2522 = vpop.f32.mrb[0].mxu0
        %v2523 = vpop.f32.mrb[0].mxu0
        %v2524 = vadd.f32 0.0, %v2523
        %v2525 = vpop.f32.mrb[0].mxu0
        %2526 = vmatprep.mubr.bf16.mxu0 0
        %2527 = vmatmul.mubr.bf16.gmra.mrb[0].mxu0 %v2353
        %v2528 = vpop.f32.mrb[0].mxu0
        %v2529 = vadd.f32 0.0, %v2528
        %v2530 = vpop.f32.mrb[0].mxu0
        %v2531 = vpop.f32.mrb[0].mxu0
        %v2532 = vadd.f32 0.0, %v2531
        %v2533 = vpop.f32.mrb[0].mxu0
        %2534 = vmatprep.mubr.bf16.mxu0 0
        %2535 = vmatmul.mubr.bf16.gmra.mrb[0].mxu0 %v2356
        %v2536 = vpop.f32.mrb[0].mxu0
        %v2537 = vadd.f32 0.0, %v2536
        %v2538 = vpop.f32.mrb[0].mxu0
        %v2539 = vpop.f32.mrb[0].mxu0
        %v2540 = vadd.f32 0.0, %v2539
        %v2541 = vpop.f32.mrb[0].mxu0
        %2542 = vdwg.mxu0
        %v2543 = vsel %vm758, %v2417, -1e+30
        %v2544 = vsel %vm758, %v2420, -1e+30
        %v2545 = vsel %vm758, %v2425, -1e+30
        %v2546 = vsel %vm758, %v2428, -1e+30
        %v2547 = vsel %vm758, %v2433, -1e+30
        %v2548 = vsel %vm758, %v2436, -1e+30
        %v2549 = vsel %vm758, %v2441, -1e+30
        %v2550 = vsel %vm758, %v2444, -1e+30
        %v2551 = vsel %vm758, %v2449, -1e+30
        %v2552 = vsel %vm758, %v2452, -1e+30
        %v2553 = vsel %vm758, %v2457, -1e+30
        %v2554 = vsel %vm758, %v2460, -1e+30
        %v2555 = vsel %vm758, %v2465, -1e+30
        %v2556 = vsel %vm758, %v2468, -1e+30
        %v2557 = vsel %vm758, %v2473, -1e+30
        %v2558 = vsel %vm758, %v2476, -1e+30
        %v2559 = vsel %vm758, %v2481, -1e+30
        %v2560 = vsel %vm758, %v2484, -1e+30
        %v2561 = vsel %vm758, %v2489, -1e+30
        %v2562 = vsel %vm758, %v2492, -1e+30
        %v2563 = vsel %vm758, %v2497, -1e+30
        %v2564 = vsel %vm758, %v2500, -1e+30
        %v2565 = vsel %vm758, %v2505, -1e+30
        %v2566 = vsel %vm758, %v2508, -1e+30
        %v2567 = vsel %vm758, %v2513, -1e+30
        %v2568 = vsel %vm758, %v2516, -1e+30
        %v2569 = vsel %vm758, %v2521, -1e+30
        %v2570 = vsel %vm758, %v2524, -1e+30
        %v2571 = vsel %vm758, %v2529, -1e+30
        %v2572 = vsel %vm758, %v2532, -1e+30
        %v2573 = vsel %vm758, %v2537, -1e+30
        %v2574 = vsel %vm758, %v2540, -1e+30
        %2575 = vmax.xlane.f32.xlu0 %v2543
        %v2576 = vpop.xlane.xlu0 %2575
        %2577 = vmax.xlane.f32.xlu0 %v2544
        %v2578 = vpop.xlane.xlu0 %2577
        %2579 = vmax.xlane.f32.xlu0 %v2545
        %v2580 = vpop.xlane.xlu0 %2579
        %2581 = vmax.xlane.f32.xlu0 %v2546
        %v2582 = vpop.xlane.xlu0 %2581
        %2583 = vmax.xlane.f32.xlu0 %v2547
        %v2584 = vpop.xlane.xlu0 %2583
        %2585 = vmax.xlane.f32.xlu0 %v2548
        %v2586 = vpop.xlane.xlu0 %2585
        %2587 = vmax.xlane.f32.xlu0 %v2549
        %v2588 = vpop.xlane.xlu0 %2587
        %2589 = vmax.xlane.f32.xlu0 %v2550
        %v2590 = vpop.xlane.xlu0 %2589
        %2591 = vmax.xlane.f32.xlu0 %v2551
        %v2592 = vpop.xlane.xlu0 %2591
        %2593 = vmax.xlane.f32.xlu0 %v2552
        %v2594 = vpop.xlane.xlu0 %2593
        %2595 = vmax.xlane.f32.xlu0 %v2553
        %v2596 = vpop.xlane.xlu0 %2595
        %2597 = vmax.xlane.f32.xlu0 %v2554
        %v2598 = vpop.xlane.xlu0 %2597
        %2599 = vmax.xlane.f32.xlu0 %v2555
        %v2600 = vpop.xlane.xlu0 %2599
        %2601 = vmax.xlane.f32.xlu0 %v2556
        %v2602 = vpop.xlane.xlu0 %2601
        %2603 = vmax.xlane.f32.xlu0 %v2557
        %v2604 = vpop.xlane.xlu0 %2603
        %2605 = vmax.xlane.f32.xlu0 %v2558
        %v2606 = vpop.xlane.xlu0 %2605
        %2607 = vmax.xlane.f32.xlu0 %v2559
        %v2608 = vpop.xlane.xlu0 %2607
        %2609 = vmax.xlane.f32.xlu0 %v2560
        %v2610 = vpop.xlane.xlu0 %2609
        %2611 = vmax.xlane.f32.xlu0 %v2561
        %v2612 = vpop.xlane.xlu0 %2611
        %2613 = vmax.xlane.f32.xlu0 %v2562
        %v2614 = vpop.xlane.xlu0 %2613
        %2615 = vmax.xlane.f32.xlu0 %v2563
        %v2616 = vpop.xlane.xlu0 %2615
        %2617 = vmax.xlane.f32.xlu0 %v2564
        %v2618 = vpop.xlane.xlu0 %2617
        %2619 = vmax.xlane.f32.xlu0 %v2565
        %v2620 = vpop.xlane.xlu0 %2619
        %2621 = vmax.xlane.f32.xlu0 %v2566
        %v2622 = vpop.xlane.xlu0 %2621
        %2623 = vmax.xlane.f32.xlu0 %v2567
        %v2624 = vpop.xlane.xlu0 %2623
        %2625 = vmax.xlane.f32.xlu0 %v2568
        %v2626 = vpop.xlane.xlu0 %2625
        %2627 = vmax.xlane.f32.xlu0 %v2569
        %v2628 = vpop.xlane.xlu0 %2627
        %2629 = vmax.xlane.f32.xlu0 %v2570
        %v2630 = vpop.xlane.xlu0 %2629
        %2631 = vmax.xlane.f32.xlu0 %v2571
        %v2632 = vpop.xlane.xlu0 %2631
        %2633 = vmax.xlane.f32.xlu0 %v2572
        %v2634 = vpop.xlane.xlu0 %2633
        %2635 = vmax.xlane.f32.xlu0 %v2573
        %v2636 = vpop.xlane.xlu0 %2635
        %2637 = vmax.xlane.f32.xlu0 %v2574
        %v2638 = vpop.xlane.xlu0 %2637
        %v2639 = vsub.f32 %v2543, %v2576
        %v2640 = vsub.f32 %v2544, %v2578
        %v2641 = vsub.f32 %v2545, %v2580
        %v2642 = vsub.f32 %v2546, %v2582
        %v2643 = vsub.f32 %v2547, %v2584
        %v2644 = vsub.f32 %v2548, %v2586
        %v2645 = vsub.f32 %v2549, %v2588
        %v2646 = vsub.f32 %v2550, %v2590
        %v2647 = vsub.f32 %v2551, %v2592
        %v2648 = vsub.f32 %v2552, %v2594
        %v2649 = vsub.f32 %v2553, %v2596
        %v2650 = vsub.f32 %v2554, %v2598
        %v2651 = vsub.f32 %v2555, %v2600
        %v2652 = vsub.f32 %v2556, %v2602
        %v2653 = vsub.f32 %v2557, %v2604
        %v2654 = vsub.f32 %v2558, %v2606
        %v2655 = vsub.f32 %v2559, %v2608
        %v2656 = vsub.f32 %v2560, %v2610
        %v2657 = vsub.f32 %v2561, %v2612
        %v2658 = vsub.f32 %v2562, %v2614
        %v2659 = vsub.f32 %v2563, %v2616
        %v2660 = vsub.f32 %v2564, %v2618
        %v2661 = vsub.f32 %v2565, %v2620
        %v2662 = vsub.f32 %v2566, %v2622
        %v2663 = vsub.f32 %v2567, %v2624
        %v2664 = vsub.f32 %v2568, %v2626
        %v2665 = vsub.f32 %v2569, %v2628
        %v2666 = vsub.f32 %v2570, %v2630
        %v2667 = vsub.f32 %v2571, %v2632
        %v2668 = vsub.f32 %v2572, %v2634
        %v2669 = vsub.f32 %v2573, %v2636
        %v2670 = vsub.f32 %v2574, %v2638
        %v2671 = vmul.f32 %v2639, 1.442695
        %v2672 = vpow.pop %v2671
        %v2673 = vmul.f32 %v2640, 1.442695
        %v2674 = vpow.pop %v2673
        %v2675 = vmul.f32 %v2641, 1.442695
        %v2676 = vpow.pop %v2675
        %v2677 = vmul.f32 %v2642, 1.442695
        %v2678 = vpow.pop %v2677
        %v2679 = vmul.f32 %v2643, 1.442695
        %v2680 = vpow.pop %v2679
        %v2681 = vmul.f32 %v2644, 1.442695
        %v2682 = vpow.pop %v2681
        %v2683 = vmul.f32 %v2645, 1.442695
        %v2684 = vpow.pop %v2683
        %v2685 = vmul.f32 %v2646, 1.442695
        %v2686 = vpow.pop %v2685
        %v2687 = vmul.f32 %v2647, 1.442695
        %v2688 = vpow.pop %v2687
        %v2689 = vmul.f32 %v2648, 1.442695
        %v2690 = vpow.pop %v2689
        %v2691 = vmul.f32 %v2649, 1.442695
        %v2692 = vpow.pop %v2691
        %v2693 = vmul.f32 %v2650, 1.442695
        %v2694 = vpow.pop %v2693
        %v2695 = vmul.f32 %v2651, 1.442695
        %v2696 = vpow.pop %v2695
        %v2697 = vmul.f32 %v2652, 1.442695
        %v2698 = vpow.pop %v2697
        %v2699 = vmul.f32 %v2653, 1.442695
        %v2700 = vpow.pop %v2699
        %v2701 = vmul.f32 %v2654, 1.442695
        %v2702 = vpow.pop %v2701
        %v2703 = vmul.f32 %v2655, 1.442695
        %v2704 = vpow.pop %v2703
        %v2705 = vmul.f32 %v2656, 1.442695
        %v2706 = vpow.pop %v2705
        %v2707 = vmul.f32 %v2657, 1.442695
        %v2708 = vpow.pop %v2707
        %v2709 = vmul.f32 %v2658, 1.442695
        %v2710 = vpow.pop %v2709
        %v2711 = vmul.f32 %v2659, 1.442695
        %v2712 = vpow.pop %v2711
        %v2713 = vmul.f32 %v2660, 1.442695
        %v2714 = vpow.pop %v2713
        %v2715 = vmul.f32 %v2661, 1.442695
        %v2716 = vpow.pop %v2715
        %v2717 = vmul.f32 %v2662, 1.442695
        %v2718 = vpow.pop %v2717
        %v2719 = vmul.f32 %v2663, 1.442695
        %v2720 = vpow.pop %v2719
        %v2721 = vmul.f32 %v2664, 1.442695
        %v2722 = vpow.pop %v2721
        %v2723 = vmul.f32 %v2665, 1.442695
        %v2724 = vpow.pop %v2723
        %v2725 = vmul.f32 %v2666, 1.442695
        %v2726 = vpow.pop %v2725
        %v2727 = vmul.f32 %v2667, 1.442695
        %v2728 = vpow.pop %v2727
        %v2729 = vmul.f32 %v2668, 1.442695
        %v2730 = vpow.pop %v2729
        %v2731 = vmul.f32 %v2669, 1.442695
        %v2732 = vpow.pop %v2731
        %v2733 = vmul.f32 %v2670, 1.442695
        %v2734 = vpow.pop %v2733
        %2735 = vadd.xlane.f32.xlu0 %v2672
        %v2736 = vpop.xlane.xlu0 %2735
        %2737 = vadd.xlane.f32.xlu0 %v2674
        %v2738 = vpop.xlane.xlu0 %2737
        %2739 = vadd.xlane.f32.xlu0 %v2676
        %v2740 = vpop.xlane.xlu0 %2739
        %2741 = vadd.xlane.f32.xlu0 %v2678
        %v2742 = vpop.xlane.xlu0 %2741
        %2743 = vadd.xlane.f32.xlu0 %v2680
        %v2744 = vpop.xlane.xlu0 %2743
        %2745 = vadd.xlane.f32.xlu0 %v2682
        %v2746 = vpop.xlane.xlu0 %2745
        %2747 = vadd.xlane.f32.xlu0 %v2684
        %v2748 = vpop.xlane.xlu0 %2747
        %2749 = vadd.xlane.f32.xlu0 %v2686
        %v2750 = vpop.xlane.xlu0 %2749
        %2751 = vadd.xlane.f32.xlu0 %v2688
        %v2752 = vpop.xlane.xlu0 %2751
        %2753 = vadd.xlane.f32.xlu0 %v2690
        %v2754 = vpop.xlane.xlu0 %2753
        %2755 = vadd.xlane.f32.xlu0 %v2692
        %v2756 = vpop.xlane.xlu0 %2755
        %2757 = vadd.xlane.f32.xlu0 %v2694
        %v2758 = vpop.xlane.xlu0 %2757
        %2759 = vadd.xlane.f32.xlu0 %v2696
        %v2760 = vpop.xlane.xlu0 %2759
        %2761 = vadd.xlane.f32.xlu0 %v2698
        %v2762 = vpop.xlane.xlu0 %2761
        %2763 = vadd.xlane.f32.xlu0 %v2700
        %v2764 = vpop.xlane.xlu0 %2763
        %2765 = vadd.xlane.f32.xlu0 %v2702
        %v2766 = vpop.xlane.xlu0 %2765
        %2767 = vadd.xlane.f32.xlu0 %v2704
        %v2768 = vpop.xlane.xlu0 %2767
        %2769 = vadd.xlane.f32.xlu0 %v2706
        %v2770 = vpop.xlane.xlu0 %2769
        %2771 = vadd.xlane.f32.xlu0 %v2708
        %v2772 = vpop.xlane.xlu0 %2771
        %2773 = vadd.xlane.f32.xlu0 %v2710
        %v2774 = vpop.xlane.xlu0 %2773
        %2775 = vadd.xlane.f32.xlu0 %v2712
        %v2776 = vpop.xlane.xlu0 %2775
        %2777 = vadd.xlane.f32.xlu0 %v2714
        %v2778 = vpop.xlane.xlu0 %2777
        %2779 = vadd.xlane.f32.xlu0 %v2716
        %v2780 = vpop.xlane.xlu0 %2779
        %2781 = vadd.xlane.f32.xlu0 %v2718
        %v2782 = vpop.xlane.xlu0 %2781
        %2783 = vadd.xlane.f32.xlu0 %v2720
        %v2784 = vpop.xlane.xlu0 %2783
        %2785 = vadd.xlane.f32.xlu0 %v2722
        %v2786 = vpop.xlane.xlu0 %2785
        %2787 = vadd.xlane.f32.xlu0 %v2724
        %v2788 = vpop.xlane.xlu0 %2787
        %2789 = vadd.xlane.f32.xlu0 %v2726
        %v2790 = vpop.xlane.xlu0 %2789
        %2791 = vadd.xlane.f32.xlu0 %v2728
        %v2792 = vpop.xlane.xlu0 %2791
        %2793 = vadd.xlane.f32.xlu0 %v2730
        %v2794 = vpop.xlane.xlu0 %2793
        %2795 = vadd.xlane.f32.xlu0 %v2732
        %v2796 = vpop.xlane.xlu0 %2795
        %2797 = vadd.xlane.f32.xlu0 %v2734
        %v2798 = vpop.xlane.xlu0 %2797
        %v2799 = vrcp.pop %v2736
        %v2800 = vrcp.pop %v2738
        %v2801 = vrcp.pop %v2740
        %v2802 = vrcp.pop %v2742
        %v2803 = vrcp.pop %v2744
        %v2804 = vrcp.pop %v2746
        %v2805 = vrcp.pop %v2748
        %v2806 = vrcp.pop %v2750
        %v2807 = vrcp.pop %v2752
        %v2808 = vrcp.pop %v2754
        %v2809 = vrcp.pop %v2756
        %v2810 = vrcp.pop %v2758
        %v2811 = vrcp.pop %v2760
        %v2812 = vrcp.pop %v2762
        %v2813 = vrcp.pop %v2764
        %v2814 = vrcp.pop %v2766
        %v2815 = vrcp.pop %v2768
        %v2816 = vrcp.pop %v2770
        %v2817 = vrcp.pop %v2772
        %v2818 = vrcp.pop %v2774
        %v2819 = vrcp.pop %v2776
        %v2820 = vrcp.pop %v2778
        %v2821 = vrcp.pop %v2780
        %v2822 = vrcp.pop %v2782
        %v2823 = vrcp.pop %v2784
        %v2824 = vrcp.pop %v2786
        %v2825 = vrcp.pop %v2788
        %v2826 = vrcp.pop %v2790
        %v2827 = vrcp.pop %v2792
        %v2828 = vrcp.pop %v2794
        %v2829 = vrcp.pop %v2796
        %v2830 = vrcp.pop %v2798
        %v2831 = vpack.c.bf16 %v2674, %v2672
        %v2832 = vpack.c.bf16 %v2678, %v2676
        %v2833 = vpack.c.bf16 %v2682, %v2680
        %v2834 = vpack.c.bf16 %v2686, %v2684
        %v2835 = vpack.c.bf16 %v2690, %v2688
        %v2836 = vpack.c.bf16 %v2694, %v2692
        %v2837 = vpack.c.bf16 %v2698, %v2696
        %v2838 = vpack.c.bf16 %v2702, %v2700
        %v2839 = vpack.c.bf16 %v2706, %v2704
        %v2840 = vpack.c.bf16 %v2710, %v2708
        %v2841 = vpack.c.bf16 %v2714, %v2712
        %v2842 = vpack.c.bf16 %v2718, %v2716
        %v2843 = vpack.c.bf16 %v2722, %v2720
        %v2844 = vpack.c.bf16 %v2726, %v2724
        %v2845 = vpack.c.bf16 %v2730, %v2728
        %v2846 = vpack.c.bf16 %v2734, %v2732
        %v2863 = vunpack.c.l.b16 %v2222
        %v2864 = vunpack.c.l.b16 %v2223
        %v2865 = vunpack.c.l.b16 %v2224
        %v2866 = vunpack.c.l.b16 %v2225
        %v2867 = vunpack.c.l.b16 %v2226
        %v2868 = vunpack.c.l.b16 %v2227
        %v2869 = vunpack.c.l.b16 %v2228
        %v2870 = vunpack.c.l.b16 %v2229
        %v2871 = vunpack.c.l.b16 %v2230
        %v2872 = vunpack.c.l.b16 %v2231
        %v2873 = vunpack.c.l.b16 %v2232
        %v2874 = vunpack.c.l.b16 %v2233
        %v2875 = vunpack.c.l.b16 %v2234
        %v2876 = vunpack.c.l.b16 %v2235
        %v2877 = vunpack.c.l.b16 %v2236
        %v2878 = vunpack.c.l.b16 %v2237
        %v2879 = vpack.c.b16 %v2864, %v2863
        %v2880 = vpack.c.b16 %v2866, %v2865
        %v2881 = vpack.c.b16 %v2868, %v2867
        %v2882 = vpack.c.b16 %v2870, %v2869
        %v2883 = vpack.c.b16 %v2872, %v2871
        %v2884 = vpack.c.b16 %v2874, %v2873
        %v2885 = vpack.c.b16 %v2876, %v2875
        %v2886 = vpack.c.b16 %v2878, %v2877
        %2895 = vmatprep.subr.bf16.mxu0 0
        %2896 = vmatpush1.bf16.msra.mxu0 %v2879
        %2897 = vmatprep.subr.bf16.mxu0 0
        %2898 = vmatpush1.bf16.msra.mxu0 %v2880
        %2899 = vmatprep.subr.bf16.mxu0 0
        %2900 = vmatpush1.bf16.msra.mxu0 %v2881
        %2901 = vmatprep.subr.bf16.mxu0 0
        %2902 = vmatpush1.bf16.msra.mxu0 %v2882
        %2903 = vmatprep.subr.bf16.mxu0 0
        %2904 = vmatpush1.bf16.msra.mxu0 %v2883
        %2905 = vmatprep.subr.bf16.mxu0 0
        %2906 = vmatpush1.bf16.msra.mxu0 %v2884
        %2907 = vmatprep.subr.bf16.mxu0 0
        %2908 = vmatpush1.bf16.msra.mxu0 %v2885
        %2909 = vmatprep.subr.bf16.mxu0 0
        %2910 = vmatpush1.bf16.msra.mxu0 %v2886
        %2911 = vmatprep.subr.bf16.mxu0 0
        %2912 = vmatpush1.bf16.msra.mxu0 0
        %2913 = vmatprep.subr.bf16.mxu0 0
        %2914 = vmatpush1.bf16.msra.mxu0 0
        %2915 = vmatprep.subr.bf16.mxu0 0
        %2916 = vmatpush1.bf16.msra.mxu0 0
        %2917 = vmatprep.subr.bf16.mxu0 0
        %2918 = vmatpush1.bf16.msra.mxu0 0
        %2919 = vmatprep.subr.bf16.mxu0 0
        %2920 = vmatpush1.bf16.msra.mxu0 0
        %2921 = vmatprep.subr.bf16.mxu0 0
        %2922 = vmatpush1.bf16.msra.mxu0 0
        %2923 = vmatprep.subr.bf16.mxu0 0
        %2924 = vmatpush1.bf16.msra.mxu0 0
        %2925 = vmatprep.subr.bf16.mxu0 0
        %2926 = vmatpush1.bf16.msra.mxu0 0
        %2927 = vmatprep.mubr.bf16.mxu0 0
        %2928 = vmatmul.mubr.bf16.gmra.mrb[0].mxu0 %v2831
        %v2929 = vpop.f32.mrb[0].mxu0
        %v2930 = vadd.f32 0.0, %v2929
        %v2931 = vpop.f32.mrb[0].mxu0
        %v2932 = vpop.f32.mrb[0].mxu0
        %v2933 = vadd.f32 0.0, %v2932
        %v2934 = vpop.f32.mrb[0].mxu0
        %2935 = vmatprep.mubr.bf16.mxu0 0
        %2936 = vmatmul.mubr.bf16.gmra.mrb[0].mxu0 %v2832
        %v2937 = vpop.f32.mrb[0].mxu0
        %v2938 = vadd.f32 0.0, %v2937
        %v2939 = vpop.f32.mrb[0].mxu0
        %v2940 = vpop.f32.mrb[0].mxu0
        %v2941 = vadd.f32 0.0, %v2940
        %v2942 = vpop.f32.mrb[0].mxu0
        %2943 = vmatprep.mubr.bf16.mxu0 0
        %2944 = vmatmul.mubr.bf16.gmra.mrb[0].mxu0 %v2833
        %v2945 = vpop.f32.mrb[0].mxu0
        %v2946 = vadd.f32 0.0, %v2945
        %v2947 = vpop.f32.mrb[0].mxu0
        %v2948 = vpop.f32.mrb[0].mxu0
        %v2949 = vadd.f32 0.0, %v2948
        %v2950 = vpop.f32.mrb[0].mxu0
        %2951 = vmatprep.mubr.bf16.mxu0 0
        %2952 = vmatmul.mubr.bf16.gmra.mrb[0].mxu0 %v2834
        %v2953 = vpop.f32.mrb[0].mxu0
        %v2954 = vadd.f32 0.0, %v2953
        %v2955 = vpop.f32.mrb[0].mxu0
        %v2956 = vpop.f32.mrb[0].mxu0
        %v2957 = vadd.f32 0.0, %v2956
        %v2958 = vpop.f32.mrb[0].mxu0
        %2959 = vmatprep.mubr.bf16.mxu0 0
        %2960 = vmatmul.mubr.bf16.gmra.mrb[0].mxu0 %v2835
        %v2961 = vpop.f32.mrb[0].mxu0
        %v2962 = vadd.f32 0.0, %v2961
        %v2963 = vpop.f32.mrb[0].mxu0
        %v2964 = vpop.f32.mrb[0].mxu0
        %v2965 = vadd.f32 0.0, %v2964
        %v2966 = vpop.f32.mrb[0].mxu0
        %2967 = vmatprep.mubr.bf16.mxu0 0
        %2968 = vmatmul.mubr.bf16.gmra.mrb[0].mxu0 %v2836
        %v2969 = vpop.f32.mrb[0].mxu0
        %v2970 = vadd.f32 0.0, %v2969
        %v2971 = vpop.f32.mrb[0].mxu0
        %v2972 = vpop.f32.mrb[0].mxu0
        %v2973 = vadd.f32 0.0, %v2972
        %v2974 = vpop.f32.mrb[0].mxu0
        %2975 = vmatprep.mubr.bf16.mxu0 0
        %2976 = vmatmul.mubr.bf16.gmra.mrb[0].mxu0 %v2837
        %v2977 = vpop.f32.mrb[0].mxu0
        %v2978 = vadd.f32 0.0, %v2977
        %v2979 = vpop.f32.mrb[0].mxu0
        %v2980 = vpop.f32.mrb[0].mxu0
        %v2981 = vadd.f32 0.0, %v2980
        %v2982 = vpop.f32.mrb[0].mxu0
        %2983 = vmatprep.mubr.bf16.mxu0 0
        %2984 = vmatmul.mubr.bf16.gmra.mrb[0].mxu0 %v2838
        %v2985 = vpop.f32.mrb[0].mxu0
        %v2986 = vadd.f32 0.0, %v2985
        %v2987 = vpop.f32.mrb[0].mxu0
        %v2988 = vpop.f32.mrb[0].mxu0
        %v2989 = vadd.f32 0.0, %v2988
        %v2990 = vpop.f32.mrb[0].mxu0
        %2991 = vmatprep.mubr.bf16.mxu0 0
        %2992 = vmatmul.mubr.bf16.gmra.mrb[0].mxu0 %v2839
        %v2993 = vpop.f32.mrb[0].mxu0
        %v2994 = vadd.f32 0.0, %v2993
        %v2995 = vpop.f32.mrb[0].mxu0
        %v2996 = vpop.f32.mrb[0].mxu0
        %v2997 = vadd.f32 0.0, %v2996
        %v2998 = vpop.f32.mrb[0].mxu0
        %2999 = vmatprep.mubr.bf16.mxu0 0
        %3000 = vmatmul.mubr.bf16.gmra.mrb[0].mxu0 %v2840
        %v3001 = vpop.f32.mrb[0].mxu0
        %v3002 = vadd.f32 0.0, %v3001
        %v3003 = vpop.f32.mrb[0].mxu0
        %v3004 = vpop.f32.mrb[0].mxu0
        %v3005 = vadd.f32 0.0, %v3004
        %v3006 = vpop.f32.mrb[0].mxu0
        %3007 = vmatprep.mubr.bf16.mxu0 0
        %3008 = vmatmul.mubr.bf16.gmra.mrb[0].mxu0 %v2841
        %v3009 = vpop.f32.mrb[0].mxu0
        %v3010 = vadd.f32 0.0, %v3009
        %v3011 = vpop.f32.mrb[0].mxu0
        %v3012 = vpop.f32.mrb[0].mxu0
        %v3013 = vadd.f32 0.0, %v3012
        %v3014 = vpop.f32.mrb[0].mxu0
        %3015 = vmatprep.mubr.bf16.mxu0 0
        %3016 = vmatmul.mubr.bf16.gmra.mrb[0].mxu0 %v2842
        %v3017 = vpop.f32.mrb[0].mxu0
        %v3018 = vadd.f32 0.0, %v3017
        %v3019 = vpop.f32.mrb[0].mxu0
        %v3020 = vpop.f32.mrb[0].mxu0
        %v3021 = vadd.f32 0.0, %v3020
        %v3022 = vpop.f32.mrb[0].mxu0
        %3023 = vmatprep.mubr.bf16.mxu0 0
        %3024 = vmatmul.mubr.bf16.gmra.mrb[0].mxu0 %v2843
        %v3025 = vpop.f32.mrb[0].mxu0
        %v3026 = vadd.f32 0.0, %v3025
        %v3027 = vpop.f32.mrb[0].mxu0
        %v3028 = vpop.f32.mrb[0].mxu0
        %v3029 = vadd.f32 0.0, %v3028
        %v3030 = vpop.f32.mrb[0].mxu0
        %3031 = vmatprep.mubr.bf16.mxu0 0
        %3032 = vmatmul.mubr.bf16.gmra.mrb[0].mxu0 %v2844
        %v3033 = vpop.f32.mrb[0].mxu0
        %v3034 = vadd.f32 0.0, %v3033
        %v3035 = vpop.f32.mrb[0].mxu0
        %v3036 = vpop.f32.mrb[0].mxu0
        %v3037 = vadd.f32 0.0, %v3036
        %v3038 = vpop.f32.mrb[0].mxu0
        %3039 = vmatprep.mubr.bf16.mxu0 0
        %3040 = vmatmul.mubr.bf16.gmra.mrb[0].mxu0 %v2845
        %v3041 = vpop.f32.mrb[0].mxu0
        %v3042 = vadd.f32 0.0, %v3041
        %v3043 = vpop.f32.mrb[0].mxu0
        %v3044 = vpop.f32.mrb[0].mxu0
        %v3045 = vadd.f32 0.0, %v3044
        %v3046 = vpop.f32.mrb[0].mxu0
        %3047 = vmatprep.mubr.bf16.mxu0 0
        %3048 = vmatmul.mubr.bf16.gmra.mrb[0].mxu0 %v2846
        %v3049 = vpop.f32.mrb[0].mxu0
        %v3050 = vadd.f32 0.0, %v3049
        %v3051 = vpop.f32.mrb[0].mxu0
        %v3052 = vpop.f32.mrb[0].mxu0
        %v3053 = vadd.f32 0.0, %v3052
        %v3054 = vpop.f32.mrb[0].mxu0
        %3055 = vdwg.mxu0
        %v3056 = vmul.f32 %v2930, %v2799
        %v3057 = vmul.f32 %v2933, %v2800
        %v3058 = vmul.f32 %v2938, %v2801
        %v3059 = vmul.f32 %v2941, %v2802
        %v3060 = vmul.f32 %v2946, %v2803
        %v3061 = vmul.f32 %v2949, %v2804
        %v3062 = vmul.f32 %v2954, %v2805
        %v3063 = vmul.f32 %v2957, %v2806
        %v3064 = vmul.f32 %v2962, %v2807
        %v3065 = vmul.f32 %v2965, %v2808
        %v3066 = vmul.f32 %v2970, %v2809
        %v3067 = vmul.f32 %v2973, %v2810
        %v3068 = vmul.f32 %v2978, %v2811
        %v3069 = vmul.f32 %v2981, %v2812
        %v3070 = vmul.f32 %v2986, %v2813
        %v3071 = vmul.f32 %v2989, %v2814
        %v3072 = vmul.f32 %v2994, %v2815
        %v3073 = vmul.f32 %v2997, %v2816
        %v3074 = vmul.f32 %v3002, %v2817
        %v3075 = vmul.f32 %v3005, %v2818
        %v3076 = vmul.f32 %v3010, %v2819
        %v3077 = vmul.f32 %v3013, %v2820
        %v3078 = vmul.f32 %v3018, %v2821
        %v3079 = vmul.f32 %v3021, %v2822
        %v3080 = vmul.f32 %v3026, %v2823
        %v3081 = vmul.f32 %v3029, %v2824
        %v3082 = vmul.f32 %v3034, %v2825
        %v3083 = vmul.f32 %v3037, %v2826
        %v3084 = vmul.f32 %v3042, %v2827
        %v3085 = vmul.f32 %v3045, %v2828
        %v3086 = vmul.f32 %v3050, %v2829
        %v3087 = vmul.f32 %v3053, %v2830
        %s3088 = scalar_lea.vmem %s383, 192
        %v3089 = vld [vmem:[%s3088] sm:$0xf]
        %v3090 = vld [vmem:[%s3088 + $0x4] sm:$0xf]
        %v3091 = vld [vmem:[%s3088 + $0x8] sm:$0xf]
        %v3092 = vld [vmem:[%s3088 + $0xc] sm:$0xf]
        %v3093 = vld [vmem:[%s3088 + $0x10] sm:$0xf]
        %v3094 = vld [vmem:[%s3088 + $0x14] sm:$0xf]
        %v3095 = vld [vmem:[%s3088 + $0x18] sm:$0xf]
        %v3096 = vld [vmem:[%s3088 + $0x1c] sm:$0xf]
        %v3097 = vld [vmem:[%s3088 + $0x20] sm:$0xf]
        %v3098 = vld [vmem:[%s3088 + $0x24] sm:$0xf]
        %v3099 = vld [vmem:[%s3088 + $0x28] sm:$0xf]
        %v3100 = vld [vmem:[%s3088 + $0x2c] sm:$0xf]
        %v3101 = vld [vmem:[%s3088 + $0x30] sm:$0xf]
        %v3102 = vld [vmem:[%s3088 + $0x34] sm:$0xf]
        %v3103 = vld [vmem:[%s3088 + $0x38] sm:$0xf]
        %v3104 = vld [vmem:[%s3088 + $0x3c] sm:$0xf]
        %s3105 = scalar_lea.vmem %s388, 192
        %v3106 = vld [vmem:[%s3105] sm:$0xf]
        %v3107 = vld [vmem:[%s3105 + $0x4] sm:$0xf]
        %v3108 = vld [vmem:[%s3105 + $0x8] sm:$0xf]
        %v3109 = vld [vmem:[%s3105 + $0xc] sm:$0xf]
        %v3110 = vld [vmem:[%s3105 + $0x10] sm:$0xf]
        %v3111 = vld [vmem:[%s3105 + $0x14] sm:$0xf]
        %v3112 = vld [vmem:[%s3105 + $0x18] sm:$0xf]
        %v3113 = vld [vmem:[%s3105 + $0x1c] sm:$0xf]
        %v3114 = vld [vmem:[%s3105 + $0x20] sm:$0xf]
        %v3115 = vld [vmem:[%s3105 + $0x24] sm:$0xf]
        %v3116 = vld [vmem:[%s3105 + $0x28] sm:$0xf]
        %v3117 = vld [vmem:[%s3105 + $0x2c] sm:$0xf]
        %v3118 = vld [vmem:[%s3105 + $0x30] sm:$0xf]
        %v3119 = vld [vmem:[%s3105 + $0x34] sm:$0xf]
        %v3120 = vld [vmem:[%s3105 + $0x38] sm:$0xf]
        %v3121 = vld [vmem:[%s3105 + $0x3c] sm:$0xf]
        %3122 = vrot.lane.b32.xlu0 %v434, 32
        %v3123 = vpop.permute.xlu0 %3122
        %3124 = vrot.lane.b32.xlu0 %v435, 32
        %v3125 = vpop.permute.xlu0 %3124
        %3126 = vrot.lane.b32.xlu0 %v436, 32
        %v3127 = vpop.permute.xlu0 %3126
        %3128 = vrot.lane.b32.xlu0 %v437, 32
        %v3129 = vpop.permute.xlu0 %3128
        %3130 = vrot.lane.b32.xlu0 %v438, 32
        %v3131 = vpop.permute.xlu0 %3130
        %3132 = vrot.lane.b32.xlu0 %v439, 32
        %v3133 = vpop.permute.xlu0 %3132
        %3134 = vrot.lane.b32.xlu0 %v440, 32
        %v3135 = vpop.permute.xlu0 %3134
        %3136 = vrot.lane.b32.xlu0 %v441, 32
        %v3137 = vpop.permute.xlu0 %3136
        %3138 = vrot.lane.b32.xlu0 %v442, 32
        %v3139 = vpop.permute.xlu0 %3138
        %3140 = vrot.lane.b32.xlu0 %v443, 32
        %v3141 = vpop.permute.xlu0 %3140
        %3142 = vrot.lane.b32.xlu0 %v444, 32
        %v3143 = vpop.permute.xlu0 %3142
        %3144 = vrot.lane.b32.xlu0 %v445, 32
        %v3145 = vpop.permute.xlu0 %3144
        %3146 = vrot.lane.b32.xlu0 %v446, 32
        %v3147 = vpop.permute.xlu0 %3146
        %3148 = vrot.lane.b32.xlu0 %v447, 32
        %v3149 = vpop.permute.xlu0 %3148
        %3150 = vrot.lane.b32.xlu0 %v448, 32
        %v3151 = vpop.permute.xlu0 %3150
        %3152 = vrot.lane.b32.xlu0 %v449, 32
        %v3153 = vpop.permute.xlu0 %3152
        %v3170 = vunpack.c.l.b16 %v3089
        %v3171 = vunpack.c.l.b16 %v3090
        %v3172 = vunpack.c.l.b16 %v3091
        %v3173 = vunpack.c.l.b16 %v3092
        %v3174 = vunpack.c.l.b16 %v3093
        %v3175 = vunpack.c.l.b16 %v3094
        %v3176 = vunpack.c.l.b16 %v3095
        %v3177 = vunpack.c.l.b16 %v3096
        %v3178 = vunpack.c.l.b16 %v3097
        %v3179 = vunpack.c.l.b16 %v3098
        %v3180 = vunpack.c.l.b16 %v3099
        %v3181 = vunpack.c.l.b16 %v3100
        %v3182 = vunpack.c.l.b16 %v3101
        %v3183 = vunpack.c.l.b16 %v3102
        %v3184 = vunpack.c.l.b16 %v3103
        %v3185 = vunpack.c.l.b16 %v3104
        %v3186 = vpack.c.b16 %v3171, %v3170
        %v3187 = vpack.c.b16 %v3173, %v3172
        %v3188 = vpack.c.b16 %v3175, %v3174
        %v3189 = vpack.c.b16 %v3177, %v3176
        %v3190 = vpack.c.b16 %v3179, %v3178
        %v3191 = vpack.c.b16 %v3181, %v3180
        %v3192 = vpack.c.b16 %v3183, %v3182
        %v3193 = vpack.c.b16 %v3185, %v3184
        %v3195 = vsel %vm522, %v3123, 0
        %v3198 = vsel %vm522, %v3125, 0
        %v3201 = vsel %vm522, %v3127, 0
        %v3204 = vsel %vm522, %v3129, 0
        %v3207 = vsel %vm522, %v3131, 0
        %v3210 = vsel %vm522, %v3133, 0
        %v3213 = vsel %vm522, %v3135, 0
        %v3216 = vsel %vm522, %v3137, 0
        %v3219 = vsel %vm522, %v3139, 0
        %v3222 = vsel %vm522, %v3141, 0
        %v3225 = vsel %vm522, %v3143, 0
        %v3228 = vsel %vm522, %v3145, 0
        %v3231 = vsel %vm522, %v3147, 0
        %v3234 = vsel %vm522, %v3149, 0
        %v3237 = vsel %vm522, %v3151, 0
        %v3240 = vsel %vm522, %v3153, 0
        %v3243 = vsel %vm522, %v3186, 0
        %v3246 = vsel %vm522, %v3187, 0
        %v3249 = vsel %vm522, %v3188, 0
        %v3252 = vsel %vm522, %v3189, 0
        %v3255 = vsel %vm522, %v3190, 0
        %v3258 = vsel %vm522, %v3191, 0
        %v3261 = vsel %vm522, %v3192, 0
        %v3264 = vsel %vm522, %v3193, 0
        %3266 = vmatprep.subr.bf16.mxu0 0
        %3267 = vmatpush1.bf16.xpose.msra.mxu0 %v3243
        %3268 = vmatprep.subr.bf16.mxu0 0
        %3269 = vmatpush1.bf16.xpose.msra.mxu0 %v3246
        %3270 = vmatprep.subr.bf16.mxu0 0
        %3271 = vmatpush1.bf16.xpose.msra.mxu0 %v3249
        %3272 = vmatprep.subr.bf16.mxu0 0
        %3273 = vmatpush1.bf16.xpose.msra.mxu0 %v3252
        %3274 = vmatprep.subr.bf16.mxu0 0
        %3275 = vmatpush1.bf16.xpose.msra.mxu0 %v3255
        %3276 = vmatprep.subr.bf16.mxu0 0
        %3277 = vmatpush1.bf16.xpose.msra.mxu0 %v3258
        %3278 = vmatprep.subr.bf16.mxu0 0
        %3279 = vmatpush1.bf16.xpose.msra.mxu0 %v3261
        %3280 = vmatprep.subr.bf16.mxu0 0
        %3281 = vmatpush1.bf16.xpose.msra.mxu0 %v3264
        %3282 = vmatprep.subr.bf16.mxu0 0
        %3283 = vmatpush1.bf16.xpose.msra.mxu0 0
        %3284 = vmatprep.subr.bf16.mxu0 0
        %3285 = vmatpush1.bf16.xpose.msra.mxu0 0
        %3286 = vmatprep.subr.bf16.mxu0 0
        %3287 = vmatpush1.bf16.xpose.msra.mxu0 0
        %3288 = vmatprep.subr.bf16.mxu0 0
        %3289 = vmatpush1.bf16.xpose.msra.mxu0 0
        %3290 = vmatprep.subr.bf16.mxu0 0
        %3291 = vmatpush1.bf16.xpose.msra.mxu0 0
        %3292 = vmatprep.subr.bf16.mxu0 0
        %3293 = vmatpush1.bf16.xpose.msra.mxu0 0
        %3294 = vmatprep.subr.bf16.mxu0 0
        %3295 = vmatpush1.bf16.xpose.msra.mxu0 0
        %3296 = vmatprep.subr.bf16.mxu0 0
        %3297 = vmatpush1.bf16.xpose.msra.mxu0 0
        %3298 = vmatprep.mubr.bf16.mxu0 0
        %3299 = vmatmul.mubr.bf16.gmra.mrb[0].mxu0 %v3195
        %v3300 = vpop.f32.mrb[0].mxu0
        %v3301 = vadd.f32 0.0, %v3300
        %v3302 = vpop.f32.mrb[0].mxu0
        %v3303 = vpop.f32.mrb[0].mxu0
        %v3304 = vadd.f32 0.0, %v3303
        %v3305 = vpop.f32.mrb[0].mxu0
        %3306 = vmatprep.mubr.bf16.mxu0 0
        %3307 = vmatmul.mubr.bf16.gmra.mrb[0].mxu0 %v3198
        %v3308 = vpop.f32.mrb[0].mxu0
        %v3309 = vadd.f32 0.0, %v3308
        %v3310 = vpop.f32.mrb[0].mxu0
        %v3311 = vpop.f32.mrb[0].mxu0
        %v3312 = vadd.f32 0.0, %v3311
        %v3313 = vpop.f32.mrb[0].mxu0
        %3314 = vmatprep.mubr.bf16.mxu0 0
        %3315 = vmatmul.mubr.bf16.gmra.mrb[0].mxu0 %v3201
        %v3316 = vpop.f32.mrb[0].mxu0
        %v3317 = vadd.f32 0.0, %v3316
        %v3318 = vpop.f32.mrb[0].mxu0
        %v3319 = vpop.f32.mrb[0].mxu0
        %v3320 = vadd.f32 0.0, %v3319
        %v3321 = vpop.f32.mrb[0].mxu0
        %3322 = vmatprep.mubr.bf16.mxu0 0
        %3323 = vmatmul.mubr.bf16.gmra.mrb[0].mxu0 %v3204
        %v3324 = vpop.f32.mrb[0].mxu0
        %v3325 = vadd.f32 0.0, %v3324
        %v3326 = vpop.f32.mrb[0].mxu0
        %v3327 = vpop.f32.mrb[0].mxu0
        %v3328 = vadd.f32 0.0, %v3327
        %v3329 = vpop.f32.mrb[0].mxu0
        %3330 = vmatprep.mubr.bf16.mxu0 0
        %3331 = vmatmul.mubr.bf16.gmra.mrb[0].mxu0 %v3207
        %v3332 = vpop.f32.mrb[0].mxu0
        %v3333 = vadd.f32 0.0, %v3332
        %v3334 = vpop.f32.mrb[0].mxu0
        %v3335 = vpop.f32.mrb[0].mxu0
        %v3336 = vadd.f32 0.0, %v3335
        %v3337 = vpop.f32.mrb[0].mxu0
        %3338 = vmatprep.mubr.bf16.mxu0 0
        %3339 = vmatmul.mubr.bf16.gmra.mrb[0].mxu0 %v3210
        %v3340 = vpop.f32.mrb[0].mxu0
        %v3341 = vadd.f32 0.0, %v3340
        %v3342 = vpop.f32.mrb[0].mxu0
        %v3343 = vpop.f32.mrb[0].mxu0
        %v3344 = vadd.f32 0.0, %v3343
        %v3345 = vpop.f32.mrb[0].mxu0
        %3346 = vmatprep.mubr.bf16.mxu0 0
        %3347 = vmatmul.mubr.bf16.gmra.mrb[0].mxu0 %v3213
        %v3348 = vpop.f32.mrb[0].mxu0
        %v3349 = vadd.f32 0.0, %v3348
        %v3350 = vpop.f32.mrb[0].mxu0
        %v3351 = vpop.f32.mrb[0].mxu0
        %v3352 = vadd.f32 0.0, %v3351
        %v3353 = vpop.f32.mrb[0].mxu0
        %3354 = vmatprep.mubr.bf16.mxu0 0
        %3355 = vmatmul.mubr.bf16.gmra.mrb[0].mxu0 %v3216
        %v3356 = vpop.f32.mrb[0].mxu0
        %v3357 = vadd.f32 0.0, %v3356
        %v3358 = vpop.f32.mrb[0].mxu0
        %v3359 = vpop.f32.mrb[0].mxu0
        %v3360 = vadd.f32 0.0, %v3359
        %v3361 = vpop.f32.mrb[0].mxu0
        %3362 = vmatprep.mubr.bf16.mxu0 0
        %3363 = vmatmul.mubr.bf16.gmra.mrb[0].mxu0 %v3219
        %v3364 = vpop.f32.mrb[0].mxu0
        %v3365 = vadd.f32 0.0, %v3364
        %v3366 = vpop.f32.mrb[0].mxu0
        %v3367 = vpop.f32.mrb[0].mxu0
        %v3368 = vadd.f32 0.0, %v3367
        %v3369 = vpop.f32.mrb[0].mxu0
        %3370 = vmatprep.mubr.bf16.mxu0 0
        %3371 = vmatmul.mubr.bf16.gmra.mrb[0].mxu0 %v3222
        %v3372 = vpop.f32.mrb[0].mxu0
        %v3373 = vadd.f32 0.0, %v3372
        %v3374 = vpop.f32.mrb[0].mxu0
        %v3375 = vpop.f32.mrb[0].mxu0
        %v3376 = vadd.f32 0.0, %v3375
        %v3377 = vpop.f32.mrb[0].mxu0
        %3378 = vmatprep.mubr.bf16.mxu0 0
        %3379 = vmatmul.mubr.bf16.gmra.mrb[0].mxu0 %v3225
        %v3380 = vpop.f32.mrb[0].mxu0
        %v3381 = vadd.f32 0.0, %v3380
        %v3382 = vpop.f32.mrb[0].mxu0
        %v3383 = vpop.f32.mrb[0].mxu0
        %v3384 = vadd.f32 0.0, %v3383
        %v3385 = vpop.f32.mrb[0].mxu0
        %3386 = vmatprep.mubr.bf16.mxu0 0
        %3387 = vmatmul.mubr.bf16.gmra.mrb[0].mxu0 %v3228
        %v3388 = vpop.f32.mrb[0].mxu0
        %v3389 = vadd.f32 0.0, %v3388
        %v3390 = vpop.f32.mrb[0].mxu0
        %v3391 = vpop.f32.mrb[0].mxu0
        %v3392 = vadd.f32 0.0, %v3391
        %v3393 = vpop.f32.mrb[0].mxu0
        %3394 = vmatprep.mubr.bf16.mxu0 0
        %3395 = vmatmul.mubr.bf16.gmra.mrb[0].mxu0 %v3231
        %v3396 = vpop.f32.mrb[0].mxu0
        %v3397 = vadd.f32 0.0, %v3396
        %v3398 = vpop.f32.mrb[0].mxu0
        %v3399 = vpop.f32.mrb[0].mxu0
        %v3400 = vadd.f32 0.0, %v3399
        %v3401 = vpop.f32.mrb[0].mxu0
        %3402 = vmatprep.mubr.bf16.mxu0 0
        %3403 = vmatmul.mubr.bf16.gmra.mrb[0].mxu0 %v3234
        %v3404 = vpop.f32.mrb[0].mxu0
        %v3405 = vadd.f32 0.0, %v3404
        %v3406 = vpop.f32.mrb[0].mxu0
        %v3407 = vpop.f32.mrb[0].mxu0
        %v3408 = vadd.f32 0.0, %v3407
        %v3409 = vpop.f32.mrb[0].mxu0
        %3410 = vmatprep.mubr.bf16.mxu0 0
        %3411 = vmatmul.mubr.bf16.gmra.mrb[0].mxu0 %v3237
        %v3412 = vpop.f32.mrb[0].mxu0
        %v3413 = vadd.f32 0.0, %v3412
        %v3414 = vpop.f32.mrb[0].mxu0
        %v3415 = vpop.f32.mrb[0].mxu0
        %v3416 = vadd.f32 0.0, %v3415
        %v3417 = vpop.f32.mrb[0].mxu0
        %3418 = vmatprep.mubr.bf16.mxu0 0
        %3419 = vmatmul.mubr.bf16.gmra.mrb[0].mxu0 %v3240
        %v3420 = vpop.f32.mrb[0].mxu0
        %v3421 = vadd.f32 0.0, %v3420
        %v3422 = vpop.f32.mrb[0].mxu0
        %v3423 = vpop.f32.mrb[0].mxu0
        %v3424 = vadd.f32 0.0, %v3423
        %v3425 = vpop.f32.mrb[0].mxu0
        %3426 = vdwg.mxu0
        %v3427 = vsel %vm758, %v3301, -1e+30
        %v3428 = vsel %vm758, %v3304, -1e+30
        %v3429 = vsel %vm758, %v3309, -1e+30
        %v3430 = vsel %vm758, %v3312, -1e+30
        %v3431 = vsel %vm758, %v3317, -1e+30
        %v3432 = vsel %vm758, %v3320, -1e+30
        %v3433 = vsel %vm758, %v3325, -1e+30
        %v3434 = vsel %vm758, %v3328, -1e+30
        %v3435 = vsel %vm758, %v3333, -1e+30
        %v3436 = vsel %vm758, %v3336, -1e+30
        %v3437 = vsel %vm758, %v3341, -1e+30
        %v3438 = vsel %vm758, %v3344, -1e+30
        %v3439 = vsel %vm758, %v3349, -1e+30
        %v3440 = vsel %vm758, %v3352, -1e+30
        %v3441 = vsel %vm758, %v3357, -1e+30
        %v3442 = vsel %vm758, %v3360, -1e+30
        %v3443 = vsel %vm758, %v3365, -1e+30
        %v3444 = vsel %vm758, %v3368, -1e+30
        %v3445 = vsel %vm758, %v3373, -1e+30
        %v3446 = vsel %vm758, %v3376, -1e+30
        %v3447 = vsel %vm758, %v3381, -1e+30
        %v3448 = vsel %vm758, %v3384, -1e+30
        %v3449 = vsel %vm758, %v3389, -1e+30
        %v3450 = vsel %vm758, %v3392, -1e+30
        %v3451 = vsel %vm758, %v3397, -1e+30
        %v3452 = vsel %vm758, %v3400, -1e+30
        %v3453 = vsel %vm758, %v3405, -1e+30
        %v3454 = vsel %vm758, %v3408, -1e+30
        %v3455 = vsel %vm758, %v3413, -1e+30
        %v3456 = vsel %vm758, %v3416, -1e+30
        %v3457 = vsel %vm758, %v3421, -1e+30
        %v3458 = vsel %vm758, %v3424, -1e+30
        %3459 = vmax.xlane.f32.xlu0 %v3427
        %v3460 = vpop.xlane.xlu0 %3459
        %3461 = vmax.xlane.f32.xlu0 %v3428
        %v3462 = vpop.xlane.xlu0 %3461
        %3463 = vmax.xlane.f32.xlu0 %v3429
        %v3464 = vpop.xlane.xlu0 %3463
        %3465 = vmax.xlane.f32.xlu0 %v3430
        %v3466 = vpop.xlane.xlu0 %3465
        %3467 = vmax.xlane.f32.xlu0 %v3431
        %v3468 = vpop.xlane.xlu0 %3467
        %3469 = vmax.xlane.f32.xlu0 %v3432
        %v3470 = vpop.xlane.xlu0 %3469
        %3471 = vmax.xlane.f32.xlu0 %v3433
        %v3472 = vpop.xlane.xlu0 %3471
        %3473 = vmax.xlane.f32.xlu0 %v3434
        %v3474 = vpop.xlane.xlu0 %3473
        %3475 = vmax.xlane.f32.xlu0 %v3435
        %v3476 = vpop.xlane.xlu0 %3475
        %3477 = vmax.xlane.f32.xlu0 %v3436
        %v3478 = vpop.xlane.xlu0 %3477
        %3479 = vmax.xlane.f32.xlu0 %v3437
        %v3480 = vpop.xlane.xlu0 %3479
        %3481 = vmax.xlane.f32.xlu0 %v3438
        %v3482 = vpop.xlane.xlu0 %3481
        %3483 = vmax.xlane.f32.xlu0 %v3439
        %v3484 = vpop.xlane.xlu0 %3483
        %3485 = vmax.xlane.f32.xlu0 %v3440
        %v3486 = vpop.xlane.xlu0 %3485
        %3487 = vmax.xlane.f32.xlu0 %v3441
        %v3488 = vpop.xlane.xlu0 %3487
        %3489 = vmax.xlane.f32.xlu0 %v3442
        %v3490 = vpop.xlane.xlu0 %3489
        %3491 = vmax.xlane.f32.xlu0 %v3443
        %v3492 = vpop.xlane.xlu0 %3491
        %3493 = vmax.xlane.f32.xlu0 %v3444
        %v3494 = vpop.xlane.xlu0 %3493
        %3495 = vmax.xlane.f32.xlu0 %v3445
        %v3496 = vpop.xlane.xlu0 %3495
        %3497 = vmax.xlane.f32.xlu0 %v3446
        %v3498 = vpop.xlane.xlu0 %3497
        %3499 = vmax.xlane.f32.xlu0 %v3447
        %v3500 = vpop.xlane.xlu0 %3499
        %3501 = vmax.xlane.f32.xlu0 %v3448
        %v3502 = vpop.xlane.xlu0 %3501
        %3503 = vmax.xlane.f32.xlu0 %v3449
        %v3504 = vpop.xlane.xlu0 %3503
        %3505 = vmax.xlane.f32.xlu0 %v3450
        %v3506 = vpop.xlane.xlu0 %3505
        %3507 = vmax.xlane.f32.xlu0 %v3451
        %v3508 = vpop.xlane.xlu0 %3507
        %3509 = vmax.xlane.f32.xlu0 %v3452
        %v3510 = vpop.xlane.xlu0 %3509
        %3511 = vmax.xlane.f32.xlu0 %v3453
        %v3512 = vpop.xlane.xlu0 %3511
        %3513 = vmax.xlane.f32.xlu0 %v3454
        %v3514 = vpop.xlane.xlu0 %3513
        %3515 = vmax.xlane.f32.xlu0 %v3455
        %v3516 = vpop.xlane.xlu0 %3515
        %3517 = vmax.xlane.f32.xlu0 %v3456
        %v3518 = vpop.xlane.xlu0 %3517
        %3519 = vmax.xlane.f32.xlu0 %v3457
        %v3520 = vpop.xlane.xlu0 %3519
        %3521 = vmax.xlane.f32.xlu0 %v3458
        %v3522 = vpop.xlane.xlu0 %3521
        %v3523 = vsub.f32 %v3427, %v3460
        %v3524 = vsub.f32 %v3428, %v3462
        %v3525 = vsub.f32 %v3429, %v3464
        %v3526 = vsub.f32 %v3430, %v3466
        %v3527 = vsub.f32 %v3431, %v3468
        %v3528 = vsub.f32 %v3432, %v3470
        %v3529 = vsub.f32 %v3433, %v3472
        %v3530 = vsub.f32 %v3434, %v3474
        %v3531 = vsub.f32 %v3435, %v3476
        %v3532 = vsub.f32 %v3436, %v3478
        %v3533 = vsub.f32 %v3437, %v3480
        %v3534 = vsub.f32 %v3438, %v3482
        %v3535 = vsub.f32 %v3439, %v3484
        %v3536 = vsub.f32 %v3440, %v3486
        %v3537 = vsub.f32 %v3441, %v3488
        %v3538 = vsub.f32 %v3442, %v3490
        %v3539 = vsub.f32 %v3443, %v3492
        %v3540 = vsub.f32 %v3444, %v3494
        %v3541 = vsub.f32 %v3445, %v3496
        %v3542 = vsub.f32 %v3446, %v3498
        %v3543 = vsub.f32 %v3447, %v3500
        %v3544 = vsub.f32 %v3448, %v3502
        %v3545 = vsub.f32 %v3449, %v3504
        %v3546 = vsub.f32 %v3450, %v3506
        %v3547 = vsub.f32 %v3451, %v3508
        %v3548 = vsub.f32 %v3452, %v3510
        %v3549 = vsub.f32 %v3453, %v3512
        %v3550 = vsub.f32 %v3454, %v3514
        %v3551 = vsub.f32 %v3455, %v3516
        %v3552 = vsub.f32 %v3456, %v3518
        %v3553 = vsub.f32 %v3457, %v3520
        %v3554 = vsub.f32 %v3458, %v3522
        %v3555 = vmul.f32 %v3523, 1.442695
        %v3556 = vpow.pop %v3555
        %v3557 = vmul.f32 %v3524, 1.442695
        %v3558 = vpow.pop %v3557
        %v3559 = vmul.f32 %v3525, 1.442695
        %v3560 = vpow.pop %v3559
        %v3561 = vmul.f32 %v3526, 1.442695
        %v3562 = vpow.pop %v3561
        %v3563 = vmul.f32 %v3527, 1.442695
        %v3564 = vpow.pop %v3563
        %v3565 = vmul.f32 %v3528, 1.442695
        %v3566 = vpow.pop %v3565
        %v3567 = vmul.f32 %v3529, 1.442695
        %v3568 = vpow.pop %v3567
        %v3569 = vmul.f32 %v3530, 1.442695
        %v3570 = vpow.pop %v3569
        %v3571 = vmul.f32 %v3531, 1.442695
        %v3572 = vpow.pop %v3571
        %v3573 = vmul.f32 %v3532, 1.442695
        %v3574 = vpow.pop %v3573
        %v3575 = vmul.f32 %v3533, 1.442695
        %v3576 = vpow.pop %v3575
        %v3577 = vmul.f32 %v3534, 1.442695
        %v3578 = vpow.pop %v3577
        %v3579 = vmul.f32 %v3535, 1.442695
        %v3580 = vpow.pop %v3579
        %v3581 = vmul.f32 %v3536, 1.442695
        %v3582 = vpow.pop %v3581
        %v3583 = vmul.f32 %v3537, 1.442695
        %v3584 = vpow.pop %v3583
        %v3585 = vmul.f32 %v3538, 1.442695
        %v3586 = vpow.pop %v3585
        %v3587 = vmul.f32 %v3539, 1.442695
        %v3588 = vpow.pop %v3587
        %v3589 = vmul.f32 %v3540, 1.442695
        %v3590 = vpow.pop %v3589
        %v3591 = vmul.f32 %v3541, 1.442695
        %v3592 = vpow.pop %v3591
        %v3593 = vmul.f32 %v3542, 1.442695
        %v3594 = vpow.pop %v3593
        %v3595 = vmul.f32 %v3543, 1.442695
        %v3596 = vpow.pop %v3595
        %v3597 = vmul.f32 %v3544, 1.442695
        %v3598 = vpow.pop %v3597
        %v3599 = vmul.f32 %v3545, 1.442695
        %v3600 = vpow.pop %v3599
        %v3601 = vmul.f32 %v3546, 1.442695
        %v3602 = vpow.pop %v3601
        %v3603 = vmul.f32 %v3547, 1.442695
        %v3604 = vpow.pop %v3603
        %v3605 = vmul.f32 %v3548, 1.442695
        %v3606 = vpow.pop %v3605
        %v3607 = vmul.f32 %v3549, 1.442695
        %v3608 = vpow.pop %v3607
        %v3609 = vmul.f32 %v3550, 1.442695
        %v3610 = vpow.pop %v3609
        %v3611 = vmul.f32 %v3551, 1.442695
        %v3612 = vpow.pop %v3611
        %v3613 = vmul.f32 %v3552, 1.442695
        %v3614 = vpow.pop %v3613
        %v3615 = vmul.f32 %v3553, 1.442695
        %v3616 = vpow.pop %v3615
        %v3617 = vmul.f32 %v3554, 1.442695
        %v3618 = vpow.pop %v3617
        %3619 = vadd.xlane.f32.xlu0 %v3556
        %v3620 = vpop.xlane.xlu0 %3619
        %3621 = vadd.xlane.f32.xlu0 %v3558
        %v3622 = vpop.xlane.xlu0 %3621
        %3623 = vadd.xlane.f32.xlu0 %v3560
        %v3624 = vpop.xlane.xlu0 %3623
        %3625 = vadd.xlane.f32.xlu0 %v3562
        %v3626 = vpop.xlane.xlu0 %3625
        %3627 = vadd.xlane.f32.xlu0 %v3564
        %v3628 = vpop.xlane.xlu0 %3627
        %3629 = vadd.xlane.f32.xlu0 %v3566
        %v3630 = vpop.xlane.xlu0 %3629
        %3631 = vadd.xlane.f32.xlu0 %v3568
        %v3632 = vpop.xlane.xlu0 %3631
        %3633 = vadd.xlane.f32.xlu0 %v3570
        %v3634 = vpop.xlane.xlu0 %3633
        %3635 = vadd.xlane.f32.xlu0 %v3572
        %v3636 = vpop.xlane.xlu0 %3635
        %3637 = vadd.xlane.f32.xlu0 %v3574
        %v3638 = vpop.xlane.xlu0 %3637
        %3639 = vadd.xlane.f32.xlu0 %v3576
        %v3640 = vpop.xlane.xlu0 %3639
        %3641 = vadd.xlane.f32.xlu0 %v3578
        %v3642 = vpop.xlane.xlu0 %3641
        %3643 = vadd.xlane.f32.xlu0 %v3580
        %v3644 = vpop.xlane.xlu0 %3643
        %3645 = vadd.xlane.f32.xlu0 %v3582
        %v3646 = vpop.xlane.xlu0 %3645
        %3647 = vadd.xlane.f32.xlu0 %v3584
        %v3648 = vpop.xlane.xlu0 %3647
        %3649 = vadd.xlane.f32.xlu0 %v3586
        %v3650 = vpop.xlane.xlu0 %3649
        %3651 = vadd.xlane.f32.xlu0 %v3588
        %v3652 = vpop.xlane.xlu0 %3651
        %3653 = vadd.xlane.f32.xlu0 %v3590
        %v3654 = vpop.xlane.xlu0 %3653
        %3655 = vadd.xlane.f32.xlu0 %v3592
        %v3656 = vpop.xlane.xlu0 %3655
        %3657 = vadd.xlane.f32.xlu0 %v3594
        %v3658 = vpop.xlane.xlu0 %3657
        %3659 = vadd.xlane.f32.xlu0 %v3596
        %v3660 = vpop.xlane.xlu0 %3659
        %3661 = vadd.xlane.f32.xlu0 %v3598
        %v3662 = vpop.xlane.xlu0 %3661
        %3663 = vadd.xlane.f32.xlu0 %v3600
        %v3664 = vpop.xlane.xlu0 %3663
        %3665 = vadd.xlane.f32.xlu0 %v3602
        %v3666 = vpop.xlane.xlu0 %3665
        %3667 = vadd.xlane.f32.xlu0 %v3604
        %v3668 = vpop.xlane.xlu0 %3667
        %3669 = vadd.xlane.f32.xlu0 %v3606
        %v3670 = vpop.xlane.xlu0 %3669
        %3671 = vadd.xlane.f32.xlu0 %v3608
        %v3672 = vpop.xlane.xlu0 %3671
        %3673 = vadd.xlane.f32.xlu0 %v3610
        %v3674 = vpop.xlane.xlu0 %3673
        %3675 = vadd.xlane.f32.xlu0 %v3612
        %v3676 = vpop.xlane.xlu0 %3675
        %3677 = vadd.xlane.f32.xlu0 %v3614
        %v3678 = vpop.xlane.xlu0 %3677
        %3679 = vadd.xlane.f32.xlu0 %v3616
        %v3680 = vpop.xlane.xlu0 %3679
        %3681 = vadd.xlane.f32.xlu0 %v3618
        %v3682 = vpop.xlane.xlu0 %3681
        %v3683 = vrcp.pop %v3620
        %v3684 = vrcp.pop %v3622
        %v3685 = vrcp.pop %v3624
        %v3686 = vrcp.pop %v3626
        %v3687 = vrcp.pop %v3628
        %v3688 = vrcp.pop %v3630
        %v3689 = vrcp.pop %v3632
        %v3690 = vrcp.pop %v3634
        %v3691 = vrcp.pop %v3636
        %v3692 = vrcp.pop %v3638
        %v3693 = vrcp.pop %v3640
        %v3694 = vrcp.pop %v3642
        %v3695 = vrcp.pop %v3644
        %v3696 = vrcp.pop %v3646
        %v3697 = vrcp.pop %v3648
        %v3698 = vrcp.pop %v3650
        %v3699 = vrcp.pop %v3652
        %v3700 = vrcp.pop %v3654
        %v3701 = vrcp.pop %v3656
        %v3702 = vrcp.pop %v3658
        %v3703 = vrcp.pop %v3660
        %v3704 = vrcp.pop %v3662
        %v3705 = vrcp.pop %v3664
        %v3706 = vrcp.pop %v3666
        %v3707 = vrcp.pop %v3668
        %v3708 = vrcp.pop %v3670
        %v3709 = vrcp.pop %v3672
        %v3710 = vrcp.pop %v3674
        %v3711 = vrcp.pop %v3676
        %v3712 = vrcp.pop %v3678
        %v3713 = vrcp.pop %v3680
        %v3714 = vrcp.pop %v3682
        %v3715 = vpack.c.bf16 %v3558, %v3556
        %v3716 = vpack.c.bf16 %v3562, %v3560
        %v3717 = vpack.c.bf16 %v3566, %v3564
        %v3718 = vpack.c.bf16 %v3570, %v3568
        %v3719 = vpack.c.bf16 %v3574, %v3572
        %v3720 = vpack.c.bf16 %v3578, %v3576
        %v3721 = vpack.c.bf16 %v3582, %v3580
        %v3722 = vpack.c.bf16 %v3586, %v3584
        %v3723 = vpack.c.bf16 %v3590, %v3588
        %v3724 = vpack.c.bf16 %v3594, %v3592
        %v3725 = vpack.c.bf16 %v3598, %v3596
        %v3726 = vpack.c.bf16 %v3602, %v3600
        %v3727 = vpack.c.bf16 %v3606, %v3604
        %v3728 = vpack.c.bf16 %v3610, %v3608
        %v3729 = vpack.c.bf16 %v3614, %v3612
        %v3730 = vpack.c.bf16 %v3618, %v3616
        %v3747 = vunpack.c.l.b16 %v3106
        %v3748 = vunpack.c.l.b16 %v3107
        %v3749 = vunpack.c.l.b16 %v3108
        %v3750 = vunpack.c.l.b16 %v3109
        %v3751 = vunpack.c.l.b16 %v3110
        %v3752 = vunpack.c.l.b16 %v3111
        %v3753 = vunpack.c.l.b16 %v3112
        %v3754 = vunpack.c.l.b16 %v3113
        %v3755 = vunpack.c.l.b16 %v3114
        %v3756 = vunpack.c.l.b16 %v3115
        %v3757 = vunpack.c.l.b16 %v3116
        %v3758 = vunpack.c.l.b16 %v3117
        %v3759 = vunpack.c.l.b16 %v3118
        %v3760 = vunpack.c.l.b16 %v3119
        %v3761 = vunpack.c.l.b16 %v3120
        %v3762 = vunpack.c.l.b16 %v3121
        %v3763 = vpack.c.b16 %v3748, %v3747
        %v3764 = vpack.c.b16 %v3750, %v3749
        %v3765 = vpack.c.b16 %v3752, %v3751
        %v3766 = vpack.c.b16 %v3754, %v3753
        %v3767 = vpack.c.b16 %v3756, %v3755
        %v3768 = vpack.c.b16 %v3758, %v3757
        %v3769 = vpack.c.b16 %v3760, %v3759
        %v3770 = vpack.c.b16 %v3762, %v3761
        %3779 = vmatprep.subr.bf16.mxu0 0
        %3780 = vmatpush1.bf16.msra.mxu0 %v3763
        %3781 = vmatprep.subr.bf16.mxu0 0
        %3782 = vmatpush1.bf16.msra.mxu0 %v3764
        %3783 = vmatprep.subr.bf16.mxu0 0
        %3784 = vmatpush1.bf16.msra.mxu0 %v3765
        %3785 = vmatprep.subr.bf16.mxu0 0
        %3786 = vmatpush1.bf16.msra.mxu0 %v3766
        %3787 = vmatprep.subr.bf16.mxu0 0
        %3788 = vmatpush1.bf16.msra.mxu0 %v3767
        %3789 = vmatprep.subr.bf16.mxu0 0
        %3790 = vmatpush1.bf16.msra.mxu0 %v3768
        %3791 = vmatprep.subr.bf16.mxu0 0
        %3792 = vmatpush1.bf16.msra.mxu0 %v3769
        %3793 = vmatprep.subr.bf16.mxu0 0
        %3794 = vmatpush1.bf16.msra.mxu0 %v3770
        %3795 = vmatprep.subr.bf16.mxu0 0
        %3796 = vmatpush1.bf16.msra.mxu0 0
        %3797 = vmatprep.subr.bf16.mxu0 0
        %3798 = vmatpush1.bf16.msra.mxu0 0
        %3799 = vmatprep.subr.bf16.mxu0 0
        %3800 = vmatpush1.bf16.msra.mxu0 0
        %3801 = vmatprep.subr.bf16.mxu0 0
        %3802 = vmatpush1.bf16.msra.mxu0 0
        %3803 = vmatprep.subr.bf16.mxu0 0
        %3804 = vmatpush1.bf16.msra.mxu0 0
        %3805 = vmatprep.subr.bf16.mxu0 0
        %3806 = vmatpush1.bf16.msra.mxu0 0
        %3807 = vmatprep.subr.bf16.mxu0 0
        %3808 = vmatpush1.bf16.msra.mxu0 0
        %3809 = vmatprep.subr.bf16.mxu0 0
        %3810 = vmatpush1.bf16.msra.mxu0 0
        %3811 = vmatprep.mubr.bf16.mxu0 0
        %3812 = vmatmul.mubr.bf16.gmra.mrb[0].mxu0 %v3715
        %v3813 = vpop.f32.mrb[0].mxu0
        %v3814 = vadd.f32 0.0, %v3813
        %v3815 = vpop.f32.mrb[0].mxu0
        %v3816 = vpop.f32.mrb[0].mxu0
        %v3817 = vadd.f32 0.0, %v3816
        %v3818 = vpop.f32.mrb[0].mxu0
        %3819 = vmatprep.mubr.bf16.mxu0 0
        %3820 = vmatmul.mubr.bf16.gmra.mrb[0].mxu0 %v3716
        %v3821 = vpop.f32.mrb[0].mxu0
        %v3822 = vadd.f32 0.0, %v3821
        %v3823 = vpop.f32.mrb[0].mxu0
        %v3824 = vpop.f32.mrb[0].mxu0
        %v3825 = vadd.f32 0.0, %v3824
        %v3826 = vpop.f32.mrb[0].mxu0
        %3827 = vmatprep.mubr.bf16.mxu0 0
        %3828 = vmatmul.mubr.bf16.gmra.mrb[0].mxu0 %v3717
        %v3829 = vpop.f32.mrb[0].mxu0
        %v3830 = vadd.f32 0.0, %v3829
        %v3831 = vpop.f32.mrb[0].mxu0
        %v3832 = vpop.f32.mrb[0].mxu0
        %v3833 = vadd.f32 0.0, %v3832
        %v3834 = vpop.f32.mrb[0].mxu0
        %3835 = vmatprep.mubr.bf16.mxu0 0
        %3836 = vmatmul.mubr.bf16.gmra.mrb[0].mxu0 %v3718
        %v3837 = vpop.f32.mrb[0].mxu0
        %v3838 = vadd.f32 0.0, %v3837
        %v3839 = vpop.f32.mrb[0].mxu0
        %v3840 = vpop.f32.mrb[0].mxu0
        %v3841 = vadd.f32 0.0, %v3840
        %v3842 = vpop.f32.mrb[0].mxu0
        %3843 = vmatprep.mubr.bf16.mxu0 0
        %3844 = vmatmul.mubr.bf16.gmra.mrb[0].mxu0 %v3719
        %v3845 = vpop.f32.mrb[0].mxu0
        %v3846 = vadd.f32 0.0, %v3845
        %v3847 = vpop.f32.mrb[0].mxu0
        %v3848 = vpop.f32.mrb[0].mxu0
        %v3849 = vadd.f32 0.0, %v3848
        %v3850 = vpop.f32.mrb[0].mxu0
        %3851 = vmatprep.mubr.bf16.mxu0 0
        %3852 = vmatmul.mubr.bf16.gmra.mrb[0].mxu0 %v3720
        %v3853 = vpop.f32.mrb[0].mxu0
        %v3854 = vadd.f32 0.0, %v3853
        %v3855 = vpop.f32.mrb[0].mxu0
        %v3856 = vpop.f32.mrb[0].mxu0
        %v3857 = vadd.f32 0.0, %v3856
        %v3858 = vpop.f32.mrb[0].mxu0
        %3859 = vmatprep.mubr.bf16.mxu0 0
        %3860 = vmatmul.mubr.bf16.gmra.mrb[0].mxu0 %v3721
        %v3861 = vpop.f32.mrb[0].mxu0
        %v3862 = vadd.f32 0.0, %v3861
        %v3863 = vpop.f32.mrb[0].mxu0
        %v3864 = vpop.f32.mrb[0].mxu0
        %v3865 = vadd.f32 0.0, %v3864
        %v3866 = vpop.f32.mrb[0].mxu0
        %3867 = vmatprep.mubr.bf16.mxu0 0
        %3868 = vmatmul.mubr.bf16.gmra.mrb[0].mxu0 %v3722
        %v3869 = vpop.f32.mrb[0].mxu0
        %v3870 = vadd.f32 0.0, %v3869
        %v3871 = vpop.f32.mrb[0].mxu0
        %v3872 = vpop.f32.mrb[0].mxu0
        %v3873 = vadd.f32 0.0, %v3872
        %v3874 = vpop.f32.mrb[0].mxu0
        %3875 = vmatprep.mubr.bf16.mxu0 0
        %3876 = vmatmul.mubr.bf16.gmra.mrb[0].mxu0 %v3723
        %v3877 = vpop.f32.mrb[0].mxu0
        %v3878 = vadd.f32 0.0, %v3877
        %v3879 = vpop.f32.mrb[0].mxu0
        %v3880 = vpop.f32.mrb[0].mxu0
        %v3881 = vadd.f32 0.0, %v3880
        %v3882 = vpop.f32.mrb[0].mxu0
        %3883 = vmatprep.mubr.bf16.mxu0 0
        %3884 = vmatmul.mubr.bf16.gmra.mrb[0].mxu0 %v3724
        %v3885 = vpop.f32.mrb[0].mxu0
        %v3886 = vadd.f32 0.0, %v3885
        %v3887 = vpop.f32.mrb[0].mxu0
        %v3888 = vpop.f32.mrb[0].mxu0
        %v3889 = vadd.f32 0.0, %v3888
        %v3890 = vpop.f32.mrb[0].mxu0
        %3891 = vmatprep.mubr.bf16.mxu0 0
        %3892 = vmatmul.mubr.bf16.gmra.mrb[0].mxu0 %v3725
        %v3893 = vpop.f32.mrb[0].mxu0
        %v3894 = vadd.f32 0.0, %v3893
        %v3895 = vpop.f32.mrb[0].mxu0
        %v3896 = vpop.f32.mrb[0].mxu0
        %v3897 = vadd.f32 0.0, %v3896
        %v3898 = vpop.f32.mrb[0].mxu0
        %3899 = vmatprep.mubr.bf16.mxu0 0
        %3900 = vmatmul.mubr.bf16.gmra.mrb[0].mxu0 %v3726
        %v3901 = vpop.f32.mrb[0].mxu0
        %v3902 = vadd.f32 0.0, %v3901
        %v3903 = vpop.f32.mrb[0].mxu0
        %v3904 = vpop.f32.mrb[0].mxu0
        %v3905 = vadd.f32 0.0, %v3904
        %v3906 = vpop.f32.mrb[0].mxu0
        %3907 = vmatprep.mubr.bf16.mxu0 0
        %3908 = vmatmul.mubr.bf16.gmra.mrb[0].mxu0 %v3727
        %v3909 = vpop.f32.mrb[0].mxu0
        %v3910 = vadd.f32 0.0, %v3909
        %v3911 = vpop.f32.mrb[0].mxu0
        %v3912 = vpop.f32.mrb[0].mxu0
        %v3913 = vadd.f32 0.0, %v3912
        %v3914 = vpop.f32.mrb[0].mxu0
        %3915 = vmatprep.mubr.bf16.mxu0 0
        %3916 = vmatmul.mubr.bf16.gmra.mrb[0].mxu0 %v3728
        %v3917 = vpop.f32.mrb[0].mxu0
        %v3918 = vadd.f32 0.0, %v3917
        %v3919 = vpop.f32.mrb[0].mxu0
        %v3920 = vpop.f32.mrb[0].mxu0
        %v3921 = vadd.f32 0.0, %v3920
        %v3922 = vpop.f32.mrb[0].mxu0
        %3923 = vmatprep.mubr.bf16.mxu0 0
        %3924 = vmatmul.mubr.bf16.gmra.mrb[0].mxu0 %v3729
        %v3925 = vpop.f32.mrb[0].mxu0
        %v3926 = vadd.f32 0.0, %v3925
        %v3927 = vpop.f32.mrb[0].mxu0
        %v3928 = vpop.f32.mrb[0].mxu0
        %v3929 = vadd.f32 0.0, %v3928
        %v3930 = vpop.f32.mrb[0].mxu0
        %3931 = vmatprep.mubr.bf16.mxu0 0
        %3932 = vmatmul.mubr.bf16.gmra.mrb[0].mxu0 %v3730
        %v3933 = vpop.f32.mrb[0].mxu0
        %v3934 = vadd.f32 0.0, %v3933
        %v3935 = vpop.f32.mrb[0].mxu0
        %v3936 = vpop.f32.mrb[0].mxu0
        %v3937 = vadd.f32 0.0, %v3936
        %v3938 = vpop.f32.mrb[0].mxu0
        %3939 = vdwg.mxu0
        %v3940 = vmul.f32 %v3814, %v3683
        %v3941 = vmul.f32 %v3817, %v3684
        %v3942 = vmul.f32 %v3822, %v3685
        %v3943 = vmul.f32 %v3825, %v3686
        %v3944 = vmul.f32 %v3830, %v3687
        %v3945 = vmul.f32 %v3833, %v3688
        %v3946 = vmul.f32 %v3838, %v3689
        %v3947 = vmul.f32 %v3841, %v3690
        %v3948 = vmul.f32 %v3846, %v3691
        %v3949 = vmul.f32 %v3849, %v3692
        %v3950 = vmul.f32 %v3854, %v3693
        %v3951 = vmul.f32 %v3857, %v3694
        %v3952 = vmul.f32 %v3862, %v3695
        %v3953 = vmul.f32 %v3865, %v3696
        %v3954 = vmul.f32 %v3870, %v3697
        %v3955 = vmul.f32 %v3873, %v3698
        %v3956 = vmul.f32 %v3878, %v3699
        %v3957 = vmul.f32 %v3881, %v3700
        %v3958 = vmul.f32 %v3886, %v3701
        %v3959 = vmul.f32 %v3889, %v3702
        %v3960 = vmul.f32 %v3894, %v3703
        %v3961 = vmul.f32 %v3897, %v3704
        %v3962 = vmul.f32 %v3902, %v3705
        %v3963 = vmul.f32 %v3905, %v3706
        %v3964 = vmul.f32 %v3910, %v3707
        %v3965 = vmul.f32 %v3913, %v3708
        %v3966 = vmul.f32 %v3918, %v3709
        %v3967 = vmul.f32 %v3921, %v3710
        %v3968 = vmul.f32 %v3926, %v3711
        %v3969 = vmul.f32 %v3929, %v3712
        %v3970 = vmul.f32 %v3934, %v3713
        %v3971 = vmul.f32 %v3937, %v3714
        %4004 = vrot.lane.b32.xlu0 %v2172, 32
        %v4005 = vpop.permute.xlu0 %4004
        %4006 = vrot.lane.b32.xlu0 %v2173, 32
        %v4007 = vpop.permute.xlu0 %4006
        %4008 = vrot.lane.b32.xlu0 %v2174, 32
        %v4009 = vpop.permute.xlu0 %4008
        %4010 = vrot.lane.b32.xlu0 %v2175, 32
        %v4011 = vpop.permute.xlu0 %4010
        %4012 = vrot.lane.b32.xlu0 %v2176, 32
        %v4013 = vpop.permute.xlu0 %4012
        %4014 = vrot.lane.b32.xlu0 %v2177, 32
        %v4015 = vpop.permute.xlu0 %4014
        %4016 = vrot.lane.b32.xlu0 %v2178, 32
        %v4017 = vpop.permute.xlu0 %4016
        %4018 = vrot.lane.b32.xlu0 %v2179, 32
        %v4019 = vpop.permute.xlu0 %4018
        %4020 = vrot.lane.b32.xlu0 %v2180, 32
        %v4021 = vpop.permute.xlu0 %4020
        %4022 = vrot.lane.b32.xlu0 %v2181, 32
        %v4023 = vpop.permute.xlu0 %4022
        %4024 = vrot.lane.b32.xlu0 %v2182, 32
        %v4025 = vpop.permute.xlu0 %4024
        %4026 = vrot.lane.b32.xlu0 %v2183, 32
        %v4027 = vpop.permute.xlu0 %4026
        %4028 = vrot.lane.b32.xlu0 %v2184, 32
        %v4029 = vpop.permute.xlu0 %4028
        %4030 = vrot.lane.b32.xlu0 %v2185, 32
        %v4031 = vpop.permute.xlu0 %4030
        %4032 = vrot.lane.b32.xlu0 %v2186, 32
        %v4033 = vpop.permute.xlu0 %4032
        %4034 = vrot.lane.b32.xlu0 %v2187, 32
        %v4035 = vpop.permute.xlu0 %4034
        %4036 = vrot.lane.b32.xlu0 %v2188, 32
        %v4037 = vpop.permute.xlu0 %4036
        %4038 = vrot.lane.b32.xlu0 %v2189, 32
        %v4039 = vpop.permute.xlu0 %4038
        %4040 = vrot.lane.b32.xlu0 %v2190, 32
        %v4041 = vpop.permute.xlu0 %4040
        %4042 = vrot.lane.b32.xlu0 %v2191, 32
        %v4043 = vpop.permute.xlu0 %4042
        %4044 = vrot.lane.b32.xlu0 %v2192, 32
        %v4045 = vpop.permute.xlu0 %4044
        %4046 = vrot.lane.b32.xlu0 %v2193, 32
        %v4047 = vpop.permute.xlu0 %4046
        %4048 = vrot.lane.b32.xlu0 %v2194, 32
        %v4049 = vpop.permute.xlu0 %4048
        %4050 = vrot.lane.b32.xlu0 %v2195, 32
        %v4051 = vpop.permute.xlu0 %4050
        %4052 = vrot.lane.b32.xlu0 %v2196, 32
        %v4053 = vpop.permute.xlu0 %4052
        %4054 = vrot.lane.b32.xlu0 %v2197, 32
        %v4055 = vpop.permute.xlu0 %4054
        %4056 = vrot.lane.b32.xlu0 %v2198, 32
        %v4057 = vpop.permute.xlu0 %4056
        %4058 = vrot.lane.b32.xlu0 %v2199, 32
        %v4059 = vpop.permute.xlu0 %4058
        %4060 = vrot.lane.b32.xlu0 %v2200, 32
        %v4061 = vpop.permute.xlu0 %4060
        %4062 = vrot.lane.b32.xlu0 %v2201, 32
        %v4063 = vpop.permute.xlu0 %4062
        %4064 = vrot.lane.b32.xlu0 %v2202, 32
        %v4065 = vpop.permute.xlu0 %4064
        %4066 = vrot.lane.b32.xlu0 %v2203, 32
        %v4067 = vpop.permute.xlu0 %4066
        %4132 = vrot.lane.b32.xlu0 %v3056, 64
        %v4133 = vpop.permute.xlu0 %4132
        %4134 = vrot.lane.b32.xlu0 %v3057, 64
        %v4135 = vpop.permute.xlu0 %4134
        %4136 = vrot.lane.b32.xlu0 %v3058, 64
        %v4137 = vpop.permute.xlu0 %4136
        %4138 = vrot.lane.b32.xlu0 %v3059, 64
        %v4139 = vpop.permute.xlu0 %4138
        %4140 = vrot.lane.b32.xlu0 %v3060, 64
        %v4141 = vpop.permute.xlu0 %4140
        %4142 = vrot.lane.b32.xlu0 %v3061, 64
        %v4143 = vpop.permute.xlu0 %4142
        %4144 = vrot.lane.b32.xlu0 %v3062, 64
        %v4145 = vpop.permute.xlu0 %4144
        %4146 = vrot.lane.b32.xlu0 %v3063, 64
        %v4147 = vpop.permute.xlu0 %4146
        %4148 = vrot.lane.b32.xlu0 %v3064, 64
        %v4149 = vpop.permute.xlu0 %4148
        %4150 = vrot.lane.b32.xlu0 %v3065, 64
        %v4151 = vpop.permute.xlu0 %4150
        %4152 = vrot.lane.b32.xlu0 %v3066, 64
        %v4153 = vpop.permute.xlu0 %4152
        %4154 = vrot.lane.b32.xlu0 %v3067, 64
        %v4155 = vpop.permute.xlu0 %4154
        %4156 = vrot.lane.b32.xlu0 %v3068, 64
        %v4157 = vpop.permute.xlu0 %4156
        %4158 = vrot.lane.b32.xlu0 %v3069, 64
        %v4159 = vpop.permute.xlu0 %4158
        %4160 = vrot.lane.b32.xlu0 %v3070, 64
        %v4161 = vpop.permute.xlu0 %4160
        %4162 = vrot.lane.b32.xlu0 %v3071, 64
        %v4163 = vpop.permute.xlu0 %4162
        %4164 = vrot.lane.b32.xlu0 %v3072, 64
        %v4165 = vpop.permute.xlu0 %4164
        %4166 = vrot.lane.b32.xlu0 %v3073, 64
        %v4167 = vpop.permute.xlu0 %4166
        %4168 = vrot.lane.b32.xlu0 %v3074, 64
        %v4169 = vpop.permute.xlu0 %4168
        %4170 = vrot.lane.b32.xlu0 %v3075, 64
        %v4171 = vpop.permute.xlu0 %4170
        %4172 = vrot.lane.b32.xlu0 %v3076, 64
        %v4173 = vpop.permute.xlu0 %4172
        %4174 = vrot.lane.b32.xlu0 %v3077, 64
        %v4175 = vpop.permute.xlu0 %4174
        %4176 = vrot.lane.b32.xlu0 %v3078, 64
        %v4177 = vpop.permute.xlu0 %4176
        %4178 = vrot.lane.b32.xlu0 %v3079, 64
        %v4179 = vpop.permute.xlu0 %4178
        %4180 = vrot.lane.b32.xlu0 %v3080, 64
        %v4181 = vpop.permute.xlu0 %4180
        %4182 = vrot.lane.b32.xlu0 %v3081, 64
        %v4183 = vpop.permute.xlu0 %4182
        %4184 = vrot.lane.b32.xlu0 %v3082, 64
        %v4185 = vpop.permute.xlu0 %4184
        %4186 = vrot.lane.b32.xlu0 %v3083, 64
        %v4187 = vpop.permute.xlu0 %4186
        %4188 = vrot.lane.b32.xlu0 %v3084, 64
        %v4189 = vpop.permute.xlu0 %4188
        %4190 = vrot.lane.b32.xlu0 %v3085, 64
        %v4191 = vpop.permute.xlu0 %4190
        %4192 = vrot.lane.b32.xlu0 %v3086, 64
        %v4193 = vpop.permute.xlu0 %4192
        %4194 = vrot.lane.b32.xlu0 %v3087, 64
        %v4195 = vpop.permute.xlu0 %4194
        %4260 = vrot.lane.b32.xlu0 %v3940, 96
        %v4261 = vpop.permute.xlu0 %4260
        %4262 = vrot.lane.b32.xlu0 %v3941, 96
        %v4263 = vpop.permute.xlu0 %4262
        %4264 = vrot.lane.b32.xlu0 %v3942, 96
        %v4265 = vpop.permute.xlu0 %4264
        %4266 = vrot.lane.b32.xlu0 %v3943, 96
        %v4267 = vpop.permute.xlu0 %4266
        %4268 = vrot.lane.b32.xlu0 %v3944, 96
        %v4269 = vpop.permute.xlu0 %4268
        %4270 = vrot.lane.b32.xlu0 %v3945, 96
        %v4271 = vpop.permute.xlu0 %4270
        %4272 = vrot.lane.b32.xlu0 %v3946, 96
        %v4273 = vpop.permute.xlu0 %4272
        %4274 = vrot.lane.b32.xlu0 %v3947, 96
        %v4275 = vpop.permute.xlu0 %4274
        %4276 = vrot.lane.b32.xlu0 %v3948, 96
        %v4277 = vpop.permute.xlu0 %4276
        %4278 = vrot.lane.b32.xlu0 %v3949, 96
        %v4279 = vpop.permute.xlu0 %4278
        %4280 = vrot.lane.b32.xlu0 %v3950, 96
        %v4281 = vpop.permute.xlu0 %4280
        %4282 = vrot.lane.b32.xlu0 %v3951, 96
        %v4283 = vpop.permute.xlu0 %4282
        %4284 = vrot.lane.b32.xlu0 %v3952, 96
        %v4285 = vpop.permute.xlu0 %4284
        %4286 = vrot.lane.b32.xlu0 %v3953, 96
        %v4287 = vpop.permute.xlu0 %4286
        %4288 = vrot.lane.b32.xlu0 %v3954, 96
        %v4289 = vpop.permute.xlu0 %4288
        %4290 = vrot.lane.b32.xlu0 %v3955, 96
        %v4291 = vpop.permute.xlu0 %4290
        %4292 = vrot.lane.b32.xlu0 %v3956, 96
        %v4293 = vpop.permute.xlu0 %4292
        %4294 = vrot.lane.b32.xlu0 %v3957, 96
        %v4295 = vpop.permute.xlu0 %4294
        %4296 = vrot.lane.b32.xlu0 %v3958, 96
        %v4297 = vpop.permute.xlu0 %4296
        %4298 = vrot.lane.b32.xlu0 %v3959, 96
        %v4299 = vpop.permute.xlu0 %4298
        %4300 = vrot.lane.b32.xlu0 %v3960, 96
        %v4301 = vpop.permute.xlu0 %4300
        %4302 = vrot.lane.b32.xlu0 %v3961, 96
        %v4303 = vpop.permute.xlu0 %4302
        %4304 = vrot.lane.b32.xlu0 %v3962, 96
        %v4305 = vpop.permute.xlu0 %4304
        %4306 = vrot.lane.b32.xlu0 %v3963, 96
        %v4307 = vpop.permute.xlu0 %4306
        %4308 = vrot.lane.b32.xlu0 %v3964, 96
        %v4309 = vpop.permute.xlu0 %4308
        %4310 = vrot.lane.b32.xlu0 %v3965, 96
        %v4311 = vpop.permute.xlu0 %4310
        %4312 = vrot.lane.b32.xlu0 %v3966, 96
        %v4313 = vpop.permute.xlu0 %4312
        %4314 = vrot.lane.b32.xlu0 %v3967, 96
        %v4315 = vpop.permute.xlu0 %4314
        %4316 = vrot.lane.b32.xlu0 %v3968, 96
        %v4317 = vpop.permute.xlu0 %4316
        %4318 = vrot.lane.b32.xlu0 %v3969, 96
        %v4319 = vpop.permute.xlu0 %4318
        %4320 = vrot.lane.b32.xlu0 %v3970, 96
        %v4321 = vpop.permute.xlu0 %4320
        %4322 = vrot.lane.b32.xlu0 %v3971, 96
        %v4323 = vpop.permute.xlu0 %4322
        %v4356 = vsel %vm522, %v1272, %v4005
        %v4357 = vsel %vm522, %v1273, %v4007
        %v4358 = vsel %vm522, %v1274, %v4009
        %v4359 = vsel %vm522, %v1275, %v4011
        %v4360 = vsel %vm522, %v1276, %v4013
        %v4361 = vsel %vm522, %v1277, %v4015
        %v4362 = vsel %vm522, %v1278, %v4017
        %v4363 = vsel %vm522, %v1279, %v4019
        %v4364 = vsel %vm522, %v1280, %v4021
        %v4365 = vsel %vm522, %v1281, %v4023
        %v4366 = vsel %vm522, %v1282, %v4025
        %v4367 = vsel %vm522, %v1283, %v4027
        %v4368 = vsel %vm522, %v1284, %v4029
        %v4369 = vsel %vm522, %v1285, %v4031
        %v4370 = vsel %vm522, %v1286, %v4033
        %v4371 = vsel %vm522, %v1287, %v4035
        %v4372 = vsel %vm522, %v1288, %v4037
        %v4373 = vsel %vm522, %v1289, %v4039
        %v4374 = vsel %vm522, %v1290, %v4041
        %v4375 = vsel %vm522, %v1291, %v4043
        %v4376 = vsel %vm522, %v1292, %v4045
        %v4377 = vsel %vm522, %v1293, %v4047
        %v4378 = vsel %vm522, %v1294, %v4049
        %v4379 = vsel %vm522, %v1295, %v4051
        %v4380 = vsel %vm522, %v1296, %v4053
        %v4381 = vsel %vm522, %v1297, %v4055
        %v4382 = vsel %vm522, %v1298, %v4057
        %v4383 = vsel %vm522, %v1299, %v4059
        %v4384 = vsel %vm522, %v1300, %v4061
        %v4385 = vsel %vm522, %v1301, %v4063
        %v4386 = vsel %vm522, %v1302, %v4065
        %v4387 = vsel %vm522, %v1303, %v4067
        %vm4388 = vcmask 523264
        %v4389 = vsel %vm4388, %v4356, %v4133
        %v4390 = vsel %vm4388, %v4357, %v4135
        %v4391 = vsel %vm4388, %v4358, %v4137
        %v4392 = vsel %vm4388, %v4359, %v4139
        %v4393 = vsel %vm4388, %v4360, %v4141
        %v4394 = vsel %vm4388, %v4361, %v4143
        %v4395 = vsel %vm4388, %v4362, %v4145
        %v4396 = vsel %vm4388, %v4363, %v4147
        %v4397 = vsel %vm4388, %v4364, %v4149
        %v4398 = vsel %vm4388, %v4365, %v4151
        %v4399 = vsel %vm4388, %v4366, %v4153
        %v4400 = vsel %vm4388, %v4367, %v4155
        %v4401 = vsel %vm4388, %v4368, %v4157
        %v4402 = vsel %vm4388, %v4369, %v4159
        %v4403 = vsel %vm4388, %v4370, %v4161
        %v4404 = vsel %vm4388, %v4371, %v4163
        %v4405 = vsel %vm4388, %v4372, %v4165
        %v4406 = vsel %vm4388, %v4373, %v4167
        %v4407 = vsel %vm4388, %v4374, %v4169
        %v4408 = vsel %vm4388, %v4375, %v4171
        %v4409 = vsel %vm4388, %v4376, %v4173
        %v4410 = vsel %vm4388, %v4377, %v4175
        %v4411 = vsel %vm4388, %v4378, %v4177
        %v4412 = vsel %vm4388, %v4379, %v4179
        %v4413 = vsel %vm4388, %v4380, %v4181
        %v4414 = vsel %vm4388, %v4381, %v4183
        %v4415 = vsel %vm4388, %v4382, %v4185
        %v4416 = vsel %vm4388, %v4383, %v4187
        %v4417 = vsel %vm4388, %v4384, %v4189
        %v4418 = vsel %vm4388, %v4385, %v4191
        %v4419 = vsel %vm4388, %v4386, %v4193
        %v4420 = vsel %vm4388, %v4387, %v4195
        %vm4421 = vcmask 785408
        %v4422 = vsel %vm4421, %v4389, %v4261
        %v4423 = vsel %vm4421, %v4390, %v4263
        %v4424 = vsel %vm4421, %v4391, %v4265
        %v4425 = vsel %vm4421, %v4392, %v4267
        %v4426 = vsel %vm4421, %v4393, %v4269
        %v4427 = vsel %vm4421, %v4394, %v4271
        %v4428 = vsel %vm4421, %v4395, %v4273
        %v4429 = vsel %vm4421, %v4396, %v4275
        %v4430 = vsel %vm4421, %v4397, %v4277
        %v4431 = vsel %vm4421, %v4398, %v4279
        %v4432 = vsel %vm4421, %v4399, %v4281
        %v4433 = vsel %vm4421, %v4400, %v4283
        %v4434 = vsel %vm4421, %v4401, %v4285
        %v4435 = vsel %vm4421, %v4402, %v4287
        %v4436 = vsel %vm4421, %v4403, %v4289
        %v4437 = vsel %vm4421, %v4404, %v4291
        %v4438 = vsel %vm4421, %v4405, %v4293
        %v4439 = vsel %vm4421, %v4406, %v4295
        %v4440 = vsel %vm4421, %v4407, %v4297
        %v4441 = vsel %vm4421, %v4408, %v4299
        %v4442 = vsel %vm4421, %v4409, %v4301
        %v4443 = vsel %vm4421, %v4410, %v4303
        %v4444 = vsel %vm4421, %v4411, %v4305
        %v4445 = vsel %vm4421, %v4412, %v4307
        %v4446 = vsel %vm4421, %v4413, %v4309
        %v4447 = vsel %vm4421, %v4414, %v4311
        %v4448 = vsel %vm4421, %v4415, %v4313
        %v4449 = vsel %vm4421, %v4416, %v4315
        %v4450 = vsel %vm4421, %v4417, %v4317
        %v4451 = vsel %vm4421, %v4418, %v4319
        %v4452 = vsel %vm4421, %v4419, %v4321
        %v4453 = vsel %vm4421, %v4420, %v4323
        %v4454 = vpack.c.bf16 %v4423, %v4422
        %v4455 = vpack.c.bf16 %v4425, %v4424
        %v4456 = vpack.c.bf16 %v4427, %v4426
        %v4457 = vpack.c.bf16 %v4429, %v4428
        %v4458 = vpack.c.bf16 %v4431, %v4430
        %v4459 = vpack.c.bf16 %v4433, %v4432
        %v4460 = vpack.c.bf16 %v4435, %v4434
        %v4461 = vpack.c.bf16 %v4437, %v4436
        %v4462 = vpack.c.bf16 %v4439, %v4438
        %v4463 = vpack.c.bf16 %v4441, %v4440
        %v4464 = vpack.c.bf16 %v4443, %v4442
        %v4465 = vpack.c.bf16 %v4445, %v4444
        %v4466 = vpack.c.bf16 %v4447, %v4446
        %v4467 = vpack.c.bf16 %v4449, %v4448
        %v4468 = vpack.c.bf16 %v4451, %v4450
        %v4469 = vpack.c.bf16 %v4453, %v4452
        %v4486 = vunpack.c.l.b16 %v4454
        %v4487 = vunpack.c.h.b16 %v4454
        %v4488 = vunpack.c.l.b16 %v4455
        %v4489 = vunpack.c.h.b16 %v4455
        %v4490 = vunpack.c.l.b16 %v4456
        %v4491 = vunpack.c.h.b16 %v4456
        %v4492 = vunpack.c.l.b16 %v4457
        %v4493 = vunpack.c.h.b16 %v4457
        %v4494 = vunpack.c.l.b16 %v4458
        %v4495 = vunpack.c.h.b16 %v4458
        %v4496 = vunpack.c.l.b16 %v4459
        %v4497 = vunpack.c.h.b16 %v4459
        %v4498 = vunpack.c.l.b16 %v4460
        %v4499 = vunpack.c.h.b16 %v4460
        %v4500 = vunpack.c.l.b16 %v4461
        %v4501 = vunpack.c.h.b16 %v4461
        %v4502 = vunpack.c.l.b16 %v4462
        %v4503 = vunpack.c.h.b16 %v4462
        %v4504 = vunpack.c.l.b16 %v4463
        %v4505 = vunpack.c.h.b16 %v4463
        %v4506 = vunpack.c.l.b16 %v4464
        %v4507 = vunpack.c.h.b16 %v4464
        %v4508 = vunpack.c.l.b16 %v4465
        %v4509 = vunpack.c.h.b16 %v4465
        %v4510 = vunpack.c.l.b16 %v4466
        %v4511 = vunpack.c.h.b16 %v4466
        %v4512 = vunpack.c.l.b16 %v4467
        %v4513 = vunpack.c.h.b16 %v4467
        %v4514 = vunpack.c.l.b16 %v4468
        %v4515 = vunpack.c.h.b16 %v4468
        %v4516 = vunpack.c.l.b16 %v4469
        %v4517 = vunpack.c.h.b16 %v4469
        %v4518 = vpack.c.b16 %v4486, %v4486
        %v4519 = vpack.c.b16 %v4487, %v4487
        %v4520 = vpack.c.b16 %v4488, %v4488
        %v4521 = vpack.c.b16 %v4489, %v4489
        %v4522 = vpack.c.b16 %v4490, %v4490
        %v4523 = vpack.c.b16 %v4491, %v4491
        %v4524 = vpack.c.b16 %v4492, %v4492
        %v4525 = vpack.c.b16 %v4493, %v4493
        %v4526 = vpack.c.b16 %v4494, %v4494
        %v4527 = vpack.c.b16 %v4495, %v4495
        %v4528 = vpack.c.b16 %v4496, %v4496
        %v4529 = vpack.c.b16 %v4497, %v4497
        %v4530 = vpack.c.b16 %v4498, %v4498
        %v4531 = vpack.c.b16 %v4499, %v4499
        %v4532 = vpack.c.b16 %v4500, %v4500
        %v4533 = vpack.c.b16 %v4501, %v4501
        %v4534 = vpack.c.b16 %v4502, %v4502
        %v4535 = vpack.c.b16 %v4503, %v4503
        %v4536 = vpack.c.b16 %v4504, %v4504
        %v4537 = vpack.c.b16 %v4505, %v4505
        %v4538 = vpack.c.b16 %v4506, %v4506
        %v4539 = vpack.c.b16 %v4507, %v4507
        %v4540 = vpack.c.b16 %v4508, %v4508
        %v4541 = vpack.c.b16 %v4509, %v4509
        %v4542 = vpack.c.b16 %v4510, %v4510
        %v4543 = vpack.c.b16 %v4511, %v4511
        %v4544 = vpack.c.b16 %v4512, %v4512
        %v4545 = vpack.c.b16 %v4513, %v4513
        %v4546 = vpack.c.b16 %v4514, %v4514
        %v4547 = vpack.c.b16 %v4515, %v4515
        %v4548 = vpack.c.b16 %v4516, %v4516
        %v4549 = vpack.c.b16 %v4517, %v4517
        %4582 = vst [vmem:[%s397] sm:$0xf] %v4518
        %4583 = vst [vmem:[%s397 + $0x4] sm:$0xf] %v4519
        %4584 = vst [vmem:[%s397 + $0x8] sm:$0xf] %v4520
        %4585 = vst [vmem:[%s397 + $0xc] sm:$0xf] %v4521
        %4586 = vst [vmem:[%s397 + $0x10] sm:$0xf] %v4522
        %4587 = vst [vmem:[%s397 + $0x14] sm:$0xf] %v4523
        %4588 = vst [vmem:[%s397 + $0x18] sm:$0xf] %v4524
        %4589 = vst [vmem:[%s397 + $0x1c] sm:$0xf] %v4525
        %4590 = vst [vmem:[%s397 + $0x20] sm:$0xf] %v4526
        %4591 = vst [vmem:[%s397 + $0x24] sm:$0xf] %v4527
        %4592 = vst [vmem:[%s397 + $0x28] sm:$0xf] %v4528
        %4593 = vst [vmem:[%s397 + $0x2c] sm:$0xf] %v4529
        %4594 = vst [vmem:[%s397 + $0x30] sm:$0xf] %v4530
        %4595 = vst [vmem:[%s397 + $0x34] sm:$0xf] %v4531
        %4596 = vst [vmem:[%s397 + $0x38] sm:$0xf] %v4532
        %4597 = vst [vmem:[%s397 + $0x3c] sm:$0xf] %v4533
        %4598 = vst [vmem:[%s397 + $0x40] sm:$0xf] %v4534
        %4599 = vst [vmem:[%s397 + $0x44] sm:$0xf] %v4535
        %4600 = vst [vmem:[%s397 + $0x48] sm:$0xf] %v4536
        %4601 = vst [vmem:[%s397 + $0x4c] sm:$0xf] %v4537
        %4602 = vst [vmem:[%s397 + $0x50] sm:$0xf] %v4538
        %4603 = vst [vmem:[%s397 + $0x54] sm:$0xf] %v4539
        %4604 = vst [vmem:[%s397 + $0x58] sm:$0xf] %v4540
        %4605 = vst [vmem:[%s397 + $0x5c] sm:$0xf] %v4541
        %4606 = vst [vmem:[%s397 + $0x60] sm:$0xf] %v4542
        %4607 = vst [vmem:[%s397 + $0x64] sm:$0xf] %v4543
        %4608 = vst [vmem:[%s397 + $0x68] sm:$0xf] %v4544
        %4609 = vst [vmem:[%s397 + $0x6c] sm:$0xf] %v4545
        %4610 = vst [vmem:[%s397 + $0x70] sm:$0xf] %v4546
        %4611 = vst [vmem:[%s397 + $0x74] sm:$0xf] %v4547
        %4612 = vst [vmem:[%s397 + $0x78] sm:$0xf] %v4548
        %4613 = vst [vmem:[%s397 + $0x7c] sm:$0xf] %v4549
        %s4614 = smul.u32 32, %s19
        %p4615 = scmp.lt.s32.totalorder %s18, 1
        %s4616 = scalar_select %p4615, %s18, 1
        %p4617 = scmp.lt.s32.totalorder %s4614, 31
        %s4618 = scalar_select %p4617, %s4614, 31
        %s4619 = smul.addr %s4616, 32
        %s4620 = sadd.s32 %s4618, %s4619
        %s4621 = smul.addr %s4620, 4
        %s4622 = scalar_lea.vmem %s3, %s4621
        // Predicated region
        $region71: #{dpsa_forward.4} parent=65 // pred_check
          %p4623 = pneg %p126
        $region72: #{dpsa_forward.4} parent=65 // pred_check_branch
          %4625 = sbr.rel (%p4623) target = $region74
        $region73: #{dpsa_forward.4} parent=65 // pred_region
          %s4626 = smul.u32 32, %s19
        $region74: #{dpsa_forward.4} parent=65 // pred_fallthru
          _
      $region66: #{dpsa_forward.4} parent=5 // pred_fallthru
        _
      %p4627 = scmp.le.s32.totalorder 2, %s9
      // Predicated region
      $region75: #{dpsa_forward.4} parent=5 // pred_check
        %p4628 = pneg %p4627
      $region76: #{dpsa_forward.4} parent=5 // pred_check_branch
        %4630 = sbr.rel (%p4628) target = $region78
      $region77: #{dpsa_forward.4} parent=5 // pred_region
        %s4631 = ssub.s32 %s9, 2
        // Predicated region
        $region79: #{dpsa_forward.4} parent=77 // pred_check
          %p4632 = pneg %p132
        $region80: #{dpsa_forward.4} parent=77 // pred_check_branch
          %4634 = sbr.rel (%p4632) target = $region82
        $region81: #{dpsa_forward.4} parent=77 // pred_region
          %s4635 = smul.u32 32, %s21
          %p4636 = scmp.lt.s32.totalorder %s20, 1
          %s4637 = scalar_select %p4636, %s20, 1
          %p4638 = scmp.lt.s32.totalorder %s4635, 31
          %s4639 = scalar_select %p4638, %s4635, 31
          %s4640 = smul.addr %s4637, 32
          %s4641 = sadd.s32 %s4639, %s4640
          %s4642 = smul.addr %s4641, 4
          %s4643 = scalar_lea.vmem %s3, %s4642
        $region82: #{dpsa_forward.4} parent=77 // pred_fallthru
          _
      $region78: #{dpsa_forward.4} parent=5 // pred_fallthru
        _
    $region6: #{dpsa_forward.4} parent=1 // loop_footer
      %s13 = sadd.s32 1, %s9
    $region7: #{dpsa_forward.4} parent=1 // loop_footer_branch
      %8 = sbr.rel target = $region3
    $region8: #{dpsa_forward.4} parent=1 // loop_exit
      _

</llo_original>
